<compile_context>
chip_gen: v7x
topology: tpu7x:2x2x1
jax: 0.10.0
libtpu: 0.0.40
codegen_flags: <defaults>
</compile_context>

<pallas_src>
import functools

import jax
import jax.numpy as jnp
from jax import lax
from jax.experimental import pallas as pl
from jax.experimental.pallas import tpu as pltpu

DILATIONS = (1, 2, 4, 8)

# Safe on v5e/v6e (128 MiB phys) and v7x (64 MiB phys); per-step footprint is
# additionally bounded by _VMEM_TILE_BUDGET when choosing hw_tile.
_VMEM_LIMIT = 48 * 1024 * 1024
_VMEM_TILE_BUDGET = 24 * 1024 * 1024


# ---------------------------------------------------------------------------
# Fused kernel: spatial conv (all branches) -> VMEM scratch -> dilated
# temporal convs + folded BatchNorm (+ ReLU), single HBM write of the output.
# ---------------------------------------------------------------------------
def _ddcnn_fused_kernel(x_ref, w1_ref, wc_ref, we_ref, shift_ref, o_ref,
                        h_ref, acc_ref, *, T, HWT, K9, NC, NF, relu):
    """Per grid step (batch b, spatial tile j):
       x_ref:     (1, T, HWT, K9)  bf16  im2col'd input rows (K9 = 9*C_in)
       w1_ref:    (K9, NC)         bf16  merged (1,3,3) weights, all 4 branches
       wc_ref:    (NC, NF)         bf16  center temporal taps, block-diag, BN-scaled
       we_ref:    (4, 2, NC, NF)   bf16  [branch, past/future] temporal taps
       shift_ref: (1, NF)          f32   BN shift (or conv2 bias)
       o_ref:     (1, T, HWT, NF)  f32
       h_ref:     (T*HWT, NC)      bf16  VMEM scratch: spatial-conv activation
       acc_ref:   (T*HWT, NF)      f32   VMEM scratch: temporal accumulator
    """
    M = T * HWT

    # ---- spatial (1,3,3) conv for all four branches: one MXU dot ------------
    x2 = x_ref[0].reshape(M, K9)                       # major-dim merge: free
    h_ref[...] = jnp.dot(x2, w1_ref[...],
                         preferred_element_type=jnp.float32).astype(h_ref.dtype)

    # ---- temporal center taps (all branches, block-diagonal, one dot) -------
    acc_ref[...] = jnp.dot(h_ref[...], wc_ref[...],
                           preferred_element_type=jnp.float32)

    # ---- dilated past / future taps: sliced scratch accumulation ------------
    # Frame shift by d == row shift by d*HWT (static, sublane-aligned offsets);
    # out-of-range frames get no contribution == PyTorch zero padding.
    for j, d in enumerate(DILATIONS):
        if T > d:
            n = (T - d) * HWT
            acc_ref[pl.ds(d * HWT, n), :] += jnp.dot(
                h_ref[pl.ds(0, n), :], we_ref[j, 0],
                preferred_element_type=jnp.float32)
            acc_ref[pl.ds(0, n), :] += jnp.dot(
                h_ref[pl.ds(d * HWT, n), :], we_ref[j, 1],
                preferred_element_type=jnp.float32)

    # ---- BN affine (+ ReLU) epilogue in f32, single store --------------------
    res = acc_ref[...] + shift_ref[...]
    if relu:
        res = jnp.maximum(res, 0.0)
    o_ref[0] = res.reshape(T, HWT, NF)


def _pick_hw_tile(HW, T, K9, NC, NF):
    """Largest HW tile (multiple of 8, divides HW, >=2 tiles if possible) whose
    per-step VMEM footprint stays under budget -- derived, not inherited."""
    # bytes per (t, hw) output row: im2col block (double-buffered) + h scratch
    # + acc scratch + output block (double-buffered)
    per_row = 2 * (2 * K9) + 2 * NC + 4 * NF + 2 * (4 * NF)
    divs = [c for c in (512, 256, 128, 64, 32, 16, 8) if HW % c == 0 and c < HW]
    if not divs:
        return HW
    for c in divs:
        if T * c * per_row <= _VMEM_TILE_BUDGET:
            return c
    return divs[-1]


def ddcnn_fused(x_col, w1m, w_ctr, w_edge, shift_row, *, T, HW, relu,
                hw_tile=None):
    """x_col: [B, T, HW, 9*C_in] bf16 -> [B, T, HW, NF] f32 (BN + optional ReLU)."""
    B = x_col.shape[0]
    K9 = x_col.shape[-1]
    NC = w1m.shape[-1]
    NF = w_ctr.shape[-1]
    if hw_tile is None:
        hw_tile = _pick_hw_tile(HW, T, K9, NC, NF)
    assert HW % hw_tile == 0
    n_hw = HW // hw_tile

    kern = functools.partial(_ddcnn_fused_kernel, T=T, HWT=hw_tile, K9=K9,
                             NC=NC, NF=NF, relu=relu)

    # advisory cost estimate so XLA schedules the surrounding glue sensibly
    flops = 2 * B * T * HW * (K9 * NC + NC * NF)
    for d in DILATIONS:
        if T > d:
            flops += 2 * 2 * B * (T - d) * HW * NC * NF
    bytes_accessed = (x_col.size * 2 + w1m.size * 2 + w_ctr.size * 2
                      + w_edge.size * 2 + shift_row.size * 4
                      + B * T * HW * NF * 4)

    return pl.pallas_call(
        kern,
        out_shape=jax.ShapeDtypeStruct((B, T, HW, NF), jnp.float32),
        grid=(B, n_hw),
        in_specs=[
            pl.BlockSpec((1, T, hw_tile, K9), lambda b, j: (b, 0, j, 0)),
            pl.BlockSpec((K9, NC), lambda b, j: (0, 0)),
            pl.BlockSpec((NC, NF), lambda b, j: (0, 0)),
            pl.BlockSpec((4, 2, NC, NF), lambda b, j: (0, 0, 0, 0)),
            pl.BlockSpec((1, NF), lambda b, j: (0, 0)),
        ],
        out_specs=pl.BlockSpec((1, T, hw_tile, NF), lambda b, j: (b, 0, j, 0)),
        scratch_shapes=[
            pltpu.VMEM((T * hw_tile, NC), jnp.bfloat16),   # spatial activation
            pltpu.VMEM((T * hw_tile, NF), jnp.float32),    # temporal accumulator
        ],
        compiler_params=pltpu.CompilerParams(
            dimension_semantics=("parallel", "parallel"),
            vmem_limit_bytes=_VMEM_LIMIT),
        cost_estimate=pl.CostEstimate(flops=flops, transcendentals=0,
                                      bytes_accessed=bytes_accessed),
    )(x_col, w1m, w_ctr, w_edge, shift_row)


# ---------------------------------------------------------------------------
# DilatedDCNNV2 forward
# ---------------------------------------------------------------------------
def dilated_dcnn_v2_forward(params, x, *, batch_norm=True, activation=None,
                            hw_tile=None):
    """x: [B, C_in, T, H, W] f32 (NCDHW, like PyTorch).
       Returns [B, 4*filters, T, H, W] f32."""
    B, C_in, T, H, W = x.shape
    F = params['branches'][0]['w2'].shape[0]
    C2 = 2 * F
    NC, NF = 4 * C2, 4 * F
    HW = H * W
    K9 = 9 * C_in

    # ---- fold eval-mode BatchNorm (eps=0.001) into the temporal conv --------
    if batch_norm:
        bn = params['bn']
        scale = bn['gamma'] * lax.rsqrt(bn['var'] + 1e-3)
        shift = bn['beta'] - bn['mean'] * scale
    else:
        scale = jnp.ones((NF,), jnp.float32)
        shift = jnp.concatenate([br['b2'] for br in params['branches']])

    # ---- weight repacking (tiny; plain XLA glue) -----------------------------
    # merged spatial weight: [9*C_in, NC]  (row order = (ky, kx, c), all branches)
    w1m = jnp.concatenate(
        [jnp.transpose(br['w1'][:, :, 0, :, :], (2, 3, 1, 0)).reshape(K9, C2)
         for br in params['branches']], axis=-1).astype(jnp.bfloat16)
    # temporal weights, BN scale folded, block-diagonal over branches
    w_ctr = jnp.zeros((NC, NF), jnp.float32)
    w_edge = jnp.zeros((4, 2, NC, NF), jnp.float32)
    for j, br in enumerate(params['branches']):
        w2 = jnp.transpose(br['w2'][:, :, :, 0, 0], (2, 1, 0))   # (3, C2, F)
        w2 = w2 * scale[j * F:(j + 1) * F][None, None, :]
        r0, r1 = j * C2, (j + 1) * C2
        c0, c1 = j * F, (j + 1) * F
        w_ctr = w_ctr.at[r0:r1, c0:c1].set(w2[1])                # center tap
        w_edge = w_edge.at[j, 0, r0:r1, c0:c1].set(w2[0])        # past tap
        w_edge = w_edge.at[j, 1, r0:r1, c0:c1].set(w2[2])        # future tap
    w_ctr = w_ctr.astype(jnp.bfloat16)
    w_edge = w_edge.astype(jnp.bfloat16)
    shift_row = shift.reshape(1, NF).astype(jnp.float32)

    # ---- input: NCDHW -> channel-last bf16, fused 3x3 im2col -----------------
    # Border handling + patch extraction stay in XLA (lane-dense K = 9*C_in rows
    # for the kernel; removes all lane-sparse / misaligned slicing in-kernel).
    # TODO(synk): at very large C_in the 9x im2col blowup should move in-kernel.
    x_cl = jnp.transpose(x, (0, 2, 3, 4, 1)).astype(jnp.bfloat16)     # [B,T,H,W,C]
    x_pad = jnp.pad(x_cl, ((0, 0), (0, 0), (1, 1), (1, 1), (0, 0)))
    taps = [x_pad[:, :, ky:ky + H, kx:kx + W, :]
            for ky in range(3) for kx in range(3)]
    x_col = jnp.concatenate(taps, axis=-1).reshape(B, T, HW, K9)

    if activation is None:
        relu = False
    elif activation == "relu":
        relu = True
    else:
        raise ValueError("only None / 'relu' activations are supported")

    # ---- single fused Pallas kernel ------------------------------------------
    y = ddcnn_fused(x_col, w1m, w_ctr, w_edge, shift_row,
                    T=T, HW=HW, relu=relu, hw_tile=hw_tile)   # [B, T, HW, NF]

    # ---- back to NCDHW (channel order == torch.cat([conv1..conv4], dim=1)) ---
    y = y.reshape(B, T, H, W, NF)
    return jnp.transpose(y, (0, 4, 1, 2, 3))


# ---------------------------------------------------------------------------
# Pure-XLA reference (op-for-op mirror of the PyTorch module) for validation.
# The intermediate activation is rounded to bf16 like the kernel's VMEM scratch
# so the tolerance can be tight.
# ---------------------------------------------------------------------------
def reference_forward(params, x, *, batch_norm=True, activation=None):
    def q(a):  # round to bf16 like the kernel path feeds the MXU
        return a.astype(jnp.bfloat16).astype(jnp.float32)

    xq = q(x)
    dn = ('NCDHW', 'OIDHW', 'NCDHW')
    outs = []
    for d, br in zip(DILATIONS, params['branches']):
        h = lax.conv_general_dilated(
            xq, q(br['w1']), window_strides=(1, 1, 1),
            padding=((0, 0), (1, 1), (1, 1)),
            dimension_numbers=dn, precision=lax.Precision.HIGHEST)
        h = q(h)   # kernel keeps the intermediate activation in bf16
        y = lax.conv_general_dilated(
            h, q(br['w2']), window_strides=(1, 1, 1),
            padding=((d, d), (0, 0), (0, 0)), rhs_dilation=(d, 1, 1),
            dimension_numbers=dn, precision=lax.Precision.HIGHEST)
        if not batch_norm:
            y = y + br['b2'].reshape(1, -1, 1, 1, 1)
        outs.append(y)
    y = jnp.concatenate(outs, axis=1)
    if batch_norm:
        bn = params['bn']
        rs = lambda a: a.reshape(1, -1, 1, 1, 1)
        y = (y - rs(bn['mean'])) * rs(lax.rsqrt(bn['var'] + 1e-3)) \
            * rs(bn['gamma']) + rs(bn['beta'])
    if activation is not None:
        y = jnp.maximum(y, 0.0)
    return y


# ---------------------------------------------------------------------------
# Deterministic parameter init (PyTorch weight layouts).
# ---------------------------------------------------------------------------
def init_params(key, in_filters, filters, *, batch_norm=True):
    ks = iter(jax.random.split(key, 16))

    def nrm(shape, std):
        return jax.random.normal(next(ks), shape, jnp.float32) * std

    branches = []
    for _ in DILATIONS:
        br = {
            'w1': nrm((2 * filters, in_filters, 1, 3, 3),
                      (2.0 / (in_filters * 9)) ** 0.5),
            'w2': nrm((filters, 2 * filters, 3, 1, 1),
                      (2.0 / (2 * filters * 3)) ** 0.5),
        }
        if not batch_norm:
            br['b2'] = nrm((filters,), 0.02)
        branches.append(br)
    params = {'branches': branches}
    if batch_norm:
        params['bn'] = {
            'gamma': 1.0 + 0.3 * jax.random.normal(next(ks), (4 * filters,), jnp.float32),
            'beta': nrm((4 * filters,), 0.1),
            'mean': nrm((4 * filters,), 0.1),
            'var': 1.0 + 0.3 * jnp.abs(jax.random.normal(next(ks), (4 * filters,), jnp.float32)),
        }
    return params


# ---------------------------------------------------------------------------
if __name__ == "__main__":
    # Small config: DilatedDCNNV2(in_filters=8, filters=16) on a NCDHW clip
    # [B=2, C=8, T=8, H=16, W=16]  ->  output [2, 64, 8, 16, 16].
    B, C_in, T, H, W = 2, 8, 8, 16, 16
    filters = 16

    key = jax.random.PRNGKey(0)
    kp, kx = jax.random.split(key)
    params = init_params(kp, C_in, filters, batch_norm=True)
    x = jax.random.uniform(kx, (B, C_in, T, H, W), jnp.float32)

    # --- module defaults: batch_norm=True, activation=None -------------------
    fwd = jax.jit(functools.partial(dilated_dcnn_v2_forward,
                                    batch_norm=True, activation=None))
    y = jax.block_until_ready(fwd(params, x))
    assert y.shape == (B, 4 * filters, T, H, W)

    ref = jax.block_until_ready(
        jax.jit(functools.partial(reference_forward,
                                  batch_norm=True, activation=None))(params, x))
    tol = 2e-2 * max(1.0, float(jnp.max(jnp.abs(ref))))
    err = float(jnp.max(jnp.abs(y - ref)))
    assert err < tol, f"mismatch (no act): max|err|={err:.4f} tol={tol:.4f}"

    # --- fused-ReLU epilogue (how TransNetV2 instantiates this block) --------
    fwd_r = jax.jit(functools.partial(dilated_dcnn_v2_forward,
                                      batch_norm=True, activation="relu"))
    yr = jax.block_until_ready(fwd_r(params, x))
    ref_r = jax.block_until_ready(
        jax.jit(functools.partial(reference_forward,
                                  batch_norm=True, activation="relu"))(params, x))
    err_r = float(jnp.max(jnp.abs(yr - ref_r)))
    assert err_r < tol, f"mismatch (relu): max|err|={err_r:.4f} tol={tol:.4f}"

    print("KERNEL_OK")
</pallas_src>

<mosaic_0001>
module attributes {stable_mosaic.version = 11 : i64} {
  func.func @_ddcnn_fused_kernel(%arg0: i32, %arg1: i32, %arg2: memref<1x8x128x72xbf16, #tpu.memory_space<vmem>>, %arg3: memref<72x128xbf16, #tpu.memory_space<vmem>>, %arg4: memref<128x64xbf16, #tpu.memory_space<vmem>>, %arg5: memref<4x2x128x64xbf16, #tpu.memory_space<vmem>>, %arg6: memref<1x64xf32, #tpu.memory_space<vmem>>, %arg7: memref<1x8x128x64xf32, #tpu.memory_space<vmem>>, %arg8: memref<1024x128xbf16, #tpu.memory_space<vmem>>, %arg9: memref<1024x64xf32, #tpu.memory_space<vmem>>) attributes {dimension_semantics = [#tpu.dimension_semantics<parallel>, #tpu.dimension_semantics<parallel>], iteration_bounds = array<i64: 2, 2>, scalar_prefetch = 0 : i64, scratch_operands = 2 : i64, tpu.core_type = #tpu.core_type<tc>, window_params = [{transform_indices = @transform_0, window_bounds = array<i64: 1, 8, 128, 72>}, {pipeline_mode = #tpu.pipeline_mode<synchronous>, transform_indices = @transform_1, window_bounds = array<i64: 72, 128>}, {pipeline_mode = #tpu.pipeline_mode<synchronous>, transform_indices = @transform_2, window_bounds = array<i64: 128, 64>}, {pipeline_mode = #tpu.pipeline_mode<synchronous>, transform_indices = @transform_3, window_bounds = array<i64: 4, 2, 128, 64>}, {pipeline_mode = #tpu.pipeline_mode<synchronous>, transform_indices = @transform_4, window_bounds = array<i64: 1, 64>}, {transform_indices = @transform_5, window_bounds = array<i64: 1, 8, 128, 64>}]} {
    %c0 = arith.constant 0 : index
    %c0_0 = arith.constant 0 : index
    %c0_1 = arith.constant 0 : index
    %c0_2 = arith.constant 0 : index
    %0 = vector.load %arg2[%c0, %c0_0, %c0_1, %c0_2] : memref<1x8x128x72xbf16, #tpu.memory_space<vmem>>, vector<1x8x128x72xbf16>
    %1 = vector.shape_cast %0 : vector<1x8x128x72xbf16> to vector<8x128x72xbf16>
    %2 = vector.shape_cast %1 : vector<8x128x72xbf16> to vector<1024x72xbf16>
    %c0_3 = arith.constant 0 : index
    %c0_4 = arith.constant 0 : index
    %3 = vector.load %arg3[%c0_3, %c0_4] : memref<72x128xbf16, #tpu.memory_space<vmem>>, vector<72x128xbf16>
    %cst = arith.constant dense<0.000000e+00> : vector<1024x128xf32>
    %4 = tpu.matmul %2, %3, %cst {dimension_numbers = #tpu.dot_dimension_numbers<[1], [0], [0], [1], [0, 0, 1, 1], [], []>} : vector<1024x72xbf16>, vector<72x128xbf16>, vector<1024x128xf32> -> vector<1024x128xf32>
    %5 = arith.truncf %4 : vector<1024x128xf32> to vector<1024x128xbf16>
    %c0_5 = arith.constant 0 : index
    %c0_6 = arith.constant 0 : index
    %6 = vector.load %arg8[%c0_5, %c0_6] : memref<1024x128xbf16, #tpu.memory_space<vmem>>, vector<1024x128xbf16>
    tpu.vector_store %arg8[%c0_5, %c0_6], %5 {strides = array<i32>} : memref<1024x128xbf16, #tpu.memory_space<vmem>>, vector<1024x128xbf16>,
    %c0_7 = arith.constant 0 : index
    %c0_8 = arith.constant 0 : index
    %7 = vector.load %arg8[%c0_7, %c0_8] : memref<1024x128xbf16, #tpu.memory_space<vmem>>, vector<1024x128xbf16>
    %c0_9 = arith.constant 0 : index
    %c0_10 = arith.constant 0 : index
    %8 = vector.load %arg4[%c0_9, %c0_10] : memref<128x64xbf16, #tpu.memory_space<vmem>>, vector<128x64xbf16>
    %cst_11 = arith.constant dense<0.000000e+00> : vector<1024x64xf32>
    %9 = tpu.matmul %7, %8, %cst_11 {dimension_numbers = #tpu.dot_dimension_numbers<[1], [0], [0], [1], [0, 0, 1, 1], [], []>} : vector<1024x128xbf16>, vector<128x64xbf16>, vector<1024x64xf32> -> vector<1024x64xf32>
    %c0_12 = arith.constant 0 : index
    %c0_13 = arith.constant 0 : index
    %10 = vector.load %arg9[%c0_12, %c0_13] : memref<1024x64xf32, #tpu.memory_space<vmem>>, vector<1024x64xf32>
    tpu.vector_store %arg9[%c0_12, %c0_13], %9 {strides = array<i32>} : memref<1024x64xf32, #tpu.memory_space<vmem>>, vector<1024x64xf32>,
    %c128 = arith.constant 128 : index
    %c0_14 = arith.constant 0 : index
    %11 = vector.load %arg9[%c128, %c0_14] : memref<1024x64xf32, #tpu.memory_space<vmem>>, vector<896x64xf32>
    %c0_15 = arith.constant 0 : index
    %c0_16 = arith.constant 0 : index
    %12 = vector.load %arg8[%c0_15, %c0_16] : memref<1024x128xbf16, #tpu.memory_space<vmem>>, vector<896x128xbf16>
    %c0_17 = arith.constant 0 : index
    %c0_18 = arith.constant 0 : index
    %c0_19 = arith.constant 0 : index
    %c0_20 = arith.constant 0 : index
    %13 = vector.load %arg5[%c0_17, %c0_18, %c0_19, %c0_20] : memref<4x2x128x64xbf16, #tpu.memory_space<vmem>>, vector<1x1x128x64xbf16>
    %14 = vector.shape_cast %13 : vector<1x1x128x64xbf16> to vector<128x64xbf16>
    %cst_21 = arith.constant dense<0.000000e+00> : vector<896x64xf32>
    %15 = tpu.matmul %12, %14, %cst_21 {dimension_numbers = #tpu.dot_dimension_numbers<[1], [0], [0], [1], [0, 0, 1, 1], [], []>} : vector<896x128xbf16>, vector<128x64xbf16>, vector<896x64xf32> -> vector<896x64xf32>
    %16 = arith.addf %11, %15 : vector<896x64xf32>
    %c128_22 = arith.constant 128 : index
    %c0_23 = arith.constant 0 : index
    %17 = vector.load %arg9[%c128_22, %c0_23] : memref<1024x64xf32, #tpu.memory_space<vmem>>, vector<896x64xf32>
    tpu.vector_store %arg9[%c128_22, %c0_23], %16 {strides = array<i32>} : memref<1024x64xf32, #tpu.memory_space<vmem>>, vector<896x64xf32>,
    %c0_24 = arith.constant 0 : index
    %c0_25 = arith.constant 0 : index
    %18 = vector.load %arg9[%c0_24, %c0_25] : memref<1024x64xf32, #tpu.memory_space<vmem>>, vector<896x64xf32>
    %c128_26 = arith.constant 128 : index
    %c0_27 = arith.constant 0 : index
    %19 = vector.load %arg8[%c128_26, %c0_27] : memref<1024x128xbf16, #tpu.memory_space<vmem>>, vector<896x128xbf16>
    %c0_28 = arith.constant 0 : index
    %c1 = arith.constant 1 : index
    %c0_29 = arith.constant 0 : index
    %c0_30 = arith.constant 0 : index
    %20 = vector.load %arg5[%c0_28, %c1, %c0_29, %c0_30] : memref<4x2x128x64xbf16, #tpu.memory_space<vmem>>, vector<1x1x128x64xbf16>
    %21 = vector.shape_cast %20 : vector<1x1x128x64xbf16> to vector<128x64xbf16>
    %cst_31 = arith.constant dense<0.000000e+00> : vector<896x64xf32>
    %22 = tpu.matmul %19, %21, %cst_31 {dimension_numbers = #tpu.dot_dimension_numbers<[1], [0], [0], [1], [0, 0, 1, 1], [], []>} : vector<896x128xbf16>, vector<128x64xbf16>, vector<896x64xf32> -> vector<896x64xf32>
    %23 = arith.addf %18, %22 : vector<896x64xf32>
    %c0_32 = arith.constant 0 : index
    %c0_33 = arith.constant 0 : index
    %24 = vector.load %arg9[%c0_32, %c0_33] : memref<1024x64xf32, #tpu.memory_space<vmem>>, vector<896x64xf32>
    tpu.vector_store %arg9[%c0_32, %c0_33], %23 {strides = array<i32>} : memref<1024x64xf32, #tpu.memory_space<vmem>>, vector<896x64xf32>,
    %c256 = arith.constant 256 : index
    %c0_34 = arith.constant 0 : index
    %25 = vector.load %arg9[%c256, %c0_34] : memref<1024x64xf32, #tpu.memory_space<vmem>>, vector<768x64xf32>
    %c0_35 = arith.constant 0 : index
    %c0_36 = arith.constant 0 : index
    %26 = vector.load %arg8[%c0_35, %c0_36] : memref<1024x128xbf16, #tpu.memory_space<vmem>>, vector<768x128xbf16>
    %c1_37 = arith.constant 1 : index
    %c0_38 = arith.constant 0 : index
    %c0_39 = arith.constant 0 : index
    %c0_40 = arith.constant 0 : index
    %27 = vector.load %arg5[%c1_37, %c0_38, %c0_39, %c0_40] : memref<4x2x128x64xbf16, #tpu.memory_space<vmem>>, vector<1x1x128x64xbf16>
    %28 = vector.shape_cast %27 : vector<1x1x128x64xbf16> to vector<128x64xbf16>
    %cst_41 = arith.constant dense<0.000000e+00> : vector<768x64xf32>
    %29 = tpu.matmul %26, %28, %cst_41 {dimension_numbers = #tpu.dot_dimension_numbers<[1], [0], [0], [1], [0, 0, 1, 1], [], []>} : vector<768x128xbf16>, vector<128x64xbf16>, vector<768x64xf32> -> vector<768x64xf32>
    %30 = arith.addf %25, %29 : vector<768x64xf32>
    %c256_42 = arith.constant 256 : index
    %c0_43 = arith.constant 0 : index
    %31 = vector.load %arg9[%c256_42, %c0_43] : memref<1024x64xf32, #tpu.memory_space<vmem>>, vector<768x64xf32>
    tpu.vector_store %arg9[%c256_42, %c0_43], %30 {strides = array<i32>} : memref<1024x64xf32, #tpu.memory_space<vmem>>, vector<768x64xf32>,
    %c0_44 = arith.constant 0 : index
    %c0_45 = arith.constant 0 : index
    %32 = vector.load %arg9[%c0_44, %c0_45] : memref<1024x64xf32, #tpu.memory_space<vmem>>, vector<768x64xf32>
    %c256_46 = arith.constant 256 : index
    %c0_47 = arith.constant 0 : index
    %33 = vector.load %arg8[%c256_46, %c0_47] : memref<1024x128xbf16, #tpu.memory_space<vmem>>, vector<768x128xbf16>
    %c1_48 = arith.constant 1 : index
    %c1_49 = arith.constant 1 : index
    %c0_50 = arith.constant 0 : index
    %c0_51 = arith.constant 0 : index
    %34 = vector.load %arg5[%c1_48, %c1_49, %c0_50, %c0_51] : memref<4x2x128x64xbf16, #tpu.memory_space<vmem>>, vector<1x1x128x64xbf16>
    %35 = vector.shape_cast %34 : vector<1x1x128x64xbf16> to vector<128x64xbf16>
    %cst_52 = arith.constant dense<0.000000e+00> : vector<768x64xf32>
    %36 = tpu.matmul %33, %35, %cst_52 {dimension_numbers = #tpu.dot_dimension_numbers<[1], [0], [0], [1], [0, 0, 1, 1], [], []>} : vector<768x128xbf16>, vector<128x64xbf16>, vector<768x64xf32> -> vector<768x64xf32>
    %37 = arith.addf %32, %36 : vector<768x64xf32>
    %c0_53 = arith.constant 0 : index
    %c0_54 = arith.constant 0 : index
    %38 = vector.load %arg9[%c0_53, %c0_54] : memref<1024x64xf32, #tpu.memory_space<vmem>>, vector<768x64xf32>
    tpu.vector_store %arg9[%c0_53, %c0_54], %37 {strides = array<i32>} : memref<1024x64xf32, #tpu.memory_space<vmem>>, vector<768x64xf32>,
    %c512 = arith.constant 512 : index
    %c0_55 = arith.constant 0 : index
    %39 = vector.load %arg9[%c512, %c0_55] : memref<1024x64xf32, #tpu.memory_space<vmem>>, vector<512x64xf32>
    %c0_56 = arith.constant 0 : index
    %c0_57 = arith.constant 0 : index
    %40 = vector.load %arg8[%c0_56, %c0_57] : memref<1024x128xbf16, #tpu.memory_space<vmem>>, vector<512x128xbf16>
    %c2 = arith.constant 2 : index
    %c0_58 = arith.constant 0 : index
    %c0_59 = arith.constant 0 : index
    %c0_60 = arith.constant 0 : index
    %41 = vector.load %arg5[%c2, %c0_58, %c0_59, %c0_60] : memref<4x2x128x64xbf16, #tpu.memory_space<vmem>>, vector<1x1x128x64xbf16>
    %42 = vector.shape_cast %41 : vector<1x1x128x64xbf16> to vector<128x64xbf16>
    %cst_61 = arith.constant dense<0.000000e+00> : vector<512x64xf32>
    %43 = tpu.matmul %40, %42, %cst_61 {dimension_numbers = #tpu.dot_dimension_numbers<[1], [0], [0], [1], [0, 0, 1, 1], [], []>} : vector<512x128xbf16>, vector<128x64xbf16>, vector<512x64xf32> -> vector<512x64xf32>
    %44 = arith.addf %39, %43 : vector<512x64xf32>
    %c512_62 = arith.constant 512 : index
    %c0_63 = arith.constant 0 : index
    %45 = vector.load %arg9[%c512_62, %c0_63] : memref<1024x64xf32, #tpu.memory_space<vmem>>, vector<512x64xf32>
    tpu.vector_store %arg9[%c512_62, %c0_63], %44 {strides = array<i32>} : memref<1024x64xf32, #tpu.memory_space<vmem>>, vector<512x64xf32>,
    %c0_64 = arith.constant 0 : index
    %c0_65 = arith.constant 0 : index
    %46 = vector.load %arg9[%c0_64, %c0_65] : memref<1024x64xf32, #tpu.memory_space<vmem>>, vector<512x64xf32>
    %c512_66 = arith.constant 512 : index
    %c0_67 = arith.constant 0 : index
    %47 = vector.load %arg8[%c512_66, %c0_67] : memref<1024x128xbf16, #tpu.memory_space<vmem>>, vector<512x128xbf16>
    %c2_68 = arith.constant 2 : index
    %c1_69 = arith.constant 1 : index
    %c0_70 = arith.constant 0 : index
    %c0_71 = arith.constant 0 : index
    %48 = vector.load %arg5[%c2_68, %c1_69, %c0_70, %c0_71] : memref<4x2x128x64xbf16, #tpu.memory_space<vmem>>, vector<1x1x128x64xbf16>
    %49 = vector.shape_cast %48 : vector<1x1x128x64xbf16> to vector<128x64xbf16>
    %cst_72 = arith.constant dense<0.000000e+00> : vector<512x64xf32>
    %50 = tpu.matmul %47, %49, %cst_72 {dimension_numbers = #tpu.dot_dimension_numbers<[1], [0], [0], [1], [0, 0, 1, 1], [], []>} : vector<512x128xbf16>, vector<128x64xbf16>, vector<512x64xf32> -> vector<512x64xf32>
    %51 = arith.addf %46, %50 : vector<512x64xf32>
    %c0_73 = arith.constant 0 : index
    %c0_74 = arith.constant 0 : index
    %52 = vector.load %arg9[%c0_73, %c0_74] : memref<1024x64xf32, #tpu.memory_space<vmem>>, vector<512x64xf32>
    tpu.vector_store %arg9[%c0_73, %c0_74], %51 {strides = array<i32>} : memref<1024x64xf32, #tpu.memory_space<vmem>>, vector<512x64xf32>,
    %c0_75 = arith.constant 0 : index
    %c0_76 = arith.constant 0 : index
    %53 = vector.load %arg9[%c0_75, %c0_76] : memref<1024x64xf32, #tpu.memory_space<vmem>>, vector<1024x64xf32>
    %c0_77 = arith.constant 0 : index
    %c0_78 = arith.constant 0 : index
    %54 = vector.load %arg6[%c0_77, %c0_78] : memref<1x64xf32, #tpu.memory_space<vmem>>, vector<1x64xf32>
    %55 = vector.broadcast %54 : vector<1x64xf32> to vector<1024x64xf32>
    %56 = arith.addf %53, %55 : vector<1024x64xf32>
    %57 = vector.shape_cast %56 : vector<1024x64xf32> to vector<8x128x64xf32>
    %c0_79 = arith.constant 0 : index
    %c0_80 = arith.constant 0 : index
    %c0_81 = arith.constant 0 : index
    %c0_82 = arith.constant 0 : index
    %58 = vector.load %arg7[%c0_79, %c0_80, %c0_81, %c0_82] : memref<1x8x128x64xf32, #tpu.memory_space<vmem>>, vector<1x8x128x64xf32>
    %59 = vector.shape_cast %58 : vector<1x8x128x64xf32> to vector<8x128x64xf32>
    %60 = vector.shape_cast %57 : vector<8x128x64xf32> to vector<1x8x128x64xf32>
    tpu.vector_store %arg7[%c0_79, %c0_80, %c0_81, %c0_82], %60 {strides = array<i32>} : memref<1x8x128x64xf32, #tpu.memory_space<vmem>>, vector<1x8x128x64xf32>,
    return
  }
  func.func @transform_0(%arg0: i32, %arg1: i32) -> (i32, i32, i32, i32) {
    %c0_i32 = arith.constant 0 : i32
    %c0_i32_0 = arith.constant 0 : i32
    %c0_i32_1 = arith.constant 0 : i32
    return %arg0, %c0_i32, %arg1, %c0_i32_0 : i32, i32, i32, i32
  }
  func.func @transform_1(%arg0: i32, %arg1: i32) -> (i32, i32) {
    %c0_i32 = arith.constant 0 : i32
    %c0_i32_0 = arith.constant 0 : i32
    %c0_i32_1 = arith.constant 0 : i32
    return %c0_i32, %c0_i32_0 : i32, i32
  }
  func.func @transform_2(%arg0: i32, %arg1: i32) -> (i32, i32) {
    %c0_i32 = arith.constant 0 : i32
    %c0_i32_0 = arith.constant 0 : i32
    %c0_i32_1 = arith.constant 0 : i32
    return %c0_i32, %c0_i32_0 : i32, i32
  }
  func.func @transform_3(%arg0: i32, %arg1: i32) -> (i32, i32, i32, i32) {
    %c0_i32 = arith.constant 0 : i32
    %c0_i32_0 = arith.constant 0 : i32
    %c0_i32_1 = arith.constant 0 : i32
    %c0_i32_2 = arith.constant 0 : i32
    %c0_i32_3 = arith.constant 0 : i32
    return %c0_i32, %c0_i32_0, %c0_i32_1, %c0_i32_2 : i32, i32, i32, i32
  }
  func.func @transform_4(%arg0: i32, %arg1: i32) -> (i32, i32) {
    %c0_i32 = arith.constant 0 : i32
    %c0_i32_0 = arith.constant 0 : i32
    %c0_i32_1 = arith.constant 0 : i32
    return %c0_i32, %c0_i32_0 : i32, i32
  }
  func.func @transform_5(%arg0: i32, %arg1: i32) -> (i32, i32, i32, i32) {
    %c0_i32 = arith.constant 0 : i32
    %c0_i32_0 = arith.constant 0 : i32
    %c0_i32_1 = arith.constant 0 : i32
    return %arg0, %c0_i32, %arg1, %c0_i32_0 : i32, i32, i32, i32
  }
}

</mosaic_0001>

<llo_original>
// kernel: dilated_dcnn_v2_forward.1
$region0: #{dilated_dcnn_v2_forward.1}
  #allocation0 [shape = 'u32[]', space=smem, size = 0x4, offset = 0x4, fixed_abs, tag = 'smem constant byte address 0x4 - core index']
  #allocation1 [shape = 'u32[144,128]{1,0:T(1,128)}', space=vmem, size = 0x12000, scoped, tag = 'internal scratch']
  #allocation2 [shape = 'bf16[1024,128]{1,0:T(16,128)(2,1)}', space=vmem, size = 0x40000, scoped, tag = 'scratch operand']
  #allocation3 [shape = 'f32[1024,64]{1,0:T(8,128)}', space=vmem, size = 0x80000, scoped, tag = 'scratch operand']
  #allocation7 [shape = 's32[]', space=sflag, size = 0x4, offset = 0, fixed_abs, tag = 'sflag constant byte address 0x0 - dummy sync flag']
  %s0 = inlined_call_operand.vmem [shape: bf16[2,8,256,72], index: 0, kind: input, shape index: {}]
  %s1 = inlined_call_operand.vmem [shape: bf16[72,128], index: 1, kind: input, shape index: {}]
  %s2 = inlined_call_operand.vmem [shape: bf16[128,64], index: 2, kind: input, shape index: {}]
  %s3 = inlined_call_operand.vmem [shape: bf16[4,2,128,64], index: 3, kind: input, shape index: {}]
  %s4 = inlined_call_operand.vmem [shape: f32[1,64], index: 4, kind: input, shape index: {}]
  %s5 = inlined_call_operand.hbm [shape: f32[2,8,256,64], index: 5, kind: output, shape index: {}]
  %s6 = sld [smem:[#allocation0]]
  $region94: #{dilated_dcnn_v2_forward.1} parent=0
    _
  %s8 = ssub.s32 1, %s6
  %s9 = scalar_select 0, %s8, %s6
  $region1: #{dilated_dcnn_v2_forward.1} parent=0
    #allocation4 [shape = 'u8[524288]{0}', space=vmem, size = 0x80000, scoped, tag = 'input window, operand 0']
    #allocation5 [shape = 'u8[1048576]{0}', space=vmem, size = 0x100000, scoped, tag = 'output window, operand 0']
    #allocation6 [shape = 's32[2]{0}', space=sflag, size = 0x8, scoped, tag = 'scoped memory for dilated_dcnn_v2_forward.1']
    %10 = vsyncpa [#allocation6], 0
    %s11 = scalar_lea.sflag [#allocation6], 1
    %12 = vsyncpa %s11, 0
    loop: start=0, step=1, limit=6
    $region2: #{dilated_dcnn_v2_forward.1} parent=1 // loop_pre_header
      _
    $region3: #{dilated_dcnn_v2_forward.1} parent=1 // loop_header
      %s14 = sphi 0, %s18
      %p15 = scmp.ge.s32.totalorder %s14, 6
      %s21 = sphi 0, %s33
      %s22 = sphi 0, %s29
      %s23 = sphi 0, %s21
      %s24 = sphi 0, %s22
      %s25 = sphi 0, %s23
      %s26 = sphi 0, %s24
      %s38 = sphi 0, %s40
      %s41 = sphi 0, %s38
      %s42 = sphi 0, %s41
      %s58 = sphi 0, %s42
      %s62 = sphi 0, %s62
      %s64 = sphi 0, %s62
      %s65 = sphi 0, %s64
      %s79 = sphi 0, %s65
      %s83 = sphi 0, %s83
      %s85 = sphi 0, %s83
      %s86 = sphi 0, %s85
      %s100 = sphi 0, %s86
      %s104 = sphi 0, %s104
      %s106 = sphi 0, %s104
      %s107 = sphi 0, %s106
      %s121 = sphi 0, %s107
      %s125 = sphi 0, %s125
      %s127 = sphi 0, %s125
      %s128 = sphi 0, %s127
      %s142 = sphi 0, %s128
      %s150 = sphi 0, %s152
      %s153 = sphi 0, %s150
      %s154 = sphi 0, %s153
      %s170 = sphi 0, %s154
    $region4: #{dilated_dcnn_v2_forward.1} parent=1 // loop_header_branch
      %17 = sbr.rel (%p15) target = $region8
    $region5: #{dilated_dcnn_v2_forward.1} parent=1 // loop_body
      %s19 = ssub.s32 %s14, 1
      %s20 = ssub.s32 %s14, 2
      %s27 = sadd.s32 1, %s22
      %p28 = scmp.ge.s32.totalorder %s27, 2
      %s29 = scalar_select %p28, 0, %s27
      %s30 = sadd.s32 1, %s21
      %s31 = scalar_select %p28, %s30, %s21
      %p32 = scmp.ge.s32.totalorder %s31, 2
      %s33 = scalar_select %p32, 0, %s31
      %s34 = ssub.s32 %s21, %s33
      %s35 = ssub.s32 %s22, %s29
      %s36 = sor.u32 %s34, %s35
      %p37 = scmp.eq.s32.totalorder %s36, 0
      %s39 = sadd.s32 %s38, 1
      %s40 = scalar_select %p37, %s38, %s39
      %p43 = pneg %p37
      %p44 = scmp.eq.s32.totalorder %s14, 3
      %p45 = por %p43, %p44
      %p46 = scmp.ne.s32.totalorder %s38, %s41
      %p47 = scmp.eq.s32.totalorder %s14, 0
      %p48 = por %p46, %p47
      %p49 = scmp.ne.s32.totalorder %s38, %s41
      %p50 = scmp.eq.s32.totalorder %s19, 3
      %p51 = por %p49, %p50
      %p52 = scmp.ne.s32.totalorder %s41, %s42
      %p53 = scmp.eq.s32.totalorder %s19, 0
      %p54 = por %p52, %p53
      %p55 = scmp.ne.s32.totalorder %s41, %s42
      %p56 = scmp.eq.s32.totalorder %s20, 3
      %p57 = por %p55, %p56
      %p59 = scmp.ne.s32.totalorder %s42, %s58
      %p60 = scmp.eq.s32.totalorder %s20, 0
      %p61 = por %p59, %p60
      %s63 = sadd.s32 %s62, 1
      %p66 = scmp.eq.s32.totalorder %s14, 3
      %p67 = scmp.ne.s32.totalorder %s62, %s64
      %p68 = scmp.eq.s32.totalorder %s14, 0
      %p69 = por %p67, %p68
      %p70 = scmp.ne.s32.totalorder %s62, %s64
      %p71 = scmp.eq.s32.totalorder %s19, 3
      %p72 = por %p70, %p71
      %p73 = scmp.ne.s32.totalorder %s64, %s65
      %p74 = scmp.eq.s32.totalorder %s19, 0
      %p75 = por %p73, %p74
      %p76 = scmp.ne.s32.totalorder %s64, %s65
      %p77 = scmp.eq.s32.totalorder %s20, 3
      %p78 = por %p76, %p77
      %p80 = scmp.ne.s32.totalorder %s65, %s79
      %p81 = scmp.eq.s32.totalorder %s20, 0
      %p82 = por %p80, %p81
      %s84 = sadd.s32 %s83, 1
      %p87 = scmp.eq.s32.totalorder %s14, 3
      %p88 = scmp.ne.s32.totalorder %s83, %s85
      %p89 = scmp.eq.s32.totalorder %s14, 0
      %p90 = por %p88, %p89
      %p91 = scmp.ne.s32.totalorder %s83, %s85
      %p92 = scmp.eq.s32.totalorder %s19, 3
      %p93 = por %p91, %p92
      %p94 = scmp.ne.s32.totalorder %s85, %s86
      %p95 = scmp.eq.s32.totalorder %s19, 0
      %p96 = por %p94, %p95
      %p97 = scmp.ne.s32.totalorder %s85, %s86
      %p98 = scmp.eq.s32.totalorder %s20, 3
      %p99 = por %p97, %p98
      %p101 = scmp.ne.s32.totalorder %s86, %s100
      %p102 = scmp.eq.s32.totalorder %s20, 0
      %p103 = por %p101, %p102
      %s105 = sadd.s32 %s104, 1
      %p108 = scmp.eq.s32.totalorder %s14, 3
      %p109 = scmp.ne.s32.totalorder %s104, %s106
      %p110 = scmp.eq.s32.totalorder %s14, 0
      %p111 = por %p109, %p110
      %p112 = scmp.ne.s32.totalorder %s104, %s106
      %p113 = scmp.eq.s32.totalorder %s19, 3
      %p114 = por %p112, %p113
      %p115 = scmp.ne.s32.totalorder %s106, %s107
      %p116 = scmp.eq.s32.totalorder %s19, 0
      %p117 = por %p115, %p116
      %p118 = scmp.ne.s32.totalorder %s106, %s107
      %p119 = scmp.eq.s32.totalorder %s20, 3
      %p120 = por %p118, %p119
      %p122 = scmp.ne.s32.totalorder %s107, %s121
      %p123 = scmp.eq.s32.totalorder %s20, 0
      %p124 = por %p122, %p123
      %s126 = sadd.s32 %s125, 1
      %p129 = scmp.eq.s32.totalorder %s14, 3
      %p130 = scmp.ne.s32.totalorder %s125, %s127
      %p131 = scmp.eq.s32.totalorder %s14, 0
      %p132 = por %p130, %p131
      %p133 = scmp.ne.s32.totalorder %s125, %s127
      %p134 = scmp.eq.s32.totalorder %s19, 3
      %p135 = por %p133, %p134
      %p136 = scmp.ne.s32.totalorder %s127, %s128
      %p137 = scmp.eq.s32.totalorder %s19, 0
      %p138 = por %p136, %p137
      %p139 = scmp.ne.s32.totalorder %s127, %s128
      %p140 = scmp.eq.s32.totalorder %s20, 3
      %p141 = por %p139, %p140
      %p143 = scmp.ne.s32.totalorder %s128, %s142
      %p144 = scmp.eq.s32.totalorder %s20, 0
      %p145 = por %p143, %p144
      %s146 = ssub.s32 %s21, %s33
      %s147 = ssub.s32 %s22, %s29
      %s148 = sor.u32 %s146, %s147
      %p149 = scmp.eq.s32.totalorder %s148, 0
      %s151 = sadd.s32 %s150, 1
      %s152 = scalar_select %p149, %s150, %s151
      %p155 = pneg %p149
      %p156 = scmp.eq.s32.totalorder %s14, 3
      %p157 = por %p155, %p156
      %p158 = scmp.ne.s32.totalorder %s150, %s153
      %p159 = scmp.eq.s32.totalorder %s14, 0
      %p160 = por %p158, %p159
      %p161 = scmp.ne.s32.totalorder %s150, %s153
      %p162 = scmp.eq.s32.totalorder %s19, 3
      %p163 = por %p161, %p162
      %p164 = scmp.ne.s32.totalorder %s153, %s154
      %p165 = scmp.eq.s32.totalorder %s19, 0
      %p166 = por %p164, %p165
      %p167 = scmp.ne.s32.totalorder %s153, %s154
      %p168 = scmp.eq.s32.totalorder %s20, 3
      %p169 = por %p167, %p168
      %p171 = scmp.ne.s32.totalorder %s154, %s170
      %p172 = scmp.eq.s32.totalorder %s20, 0
      %p173 = por %p171, %p172
      %p174 = scmp.le.s32.totalorder 1, %s14
      %p175 = scmp.lt.s32.totalorder %s14, 5
      %p176 = pnand %p174, %p175
      %p177 = pneg %p176
      // Predicated region
      $region9: #{dilated_dcnn_v2_forward.1} parent=5 // pred_check
        _
      $region10: #{dilated_dcnn_v2_forward.1} parent=5 // pred_check_branch
        %179 = sbr.rel (%p176) target = $region12
      $region11: #{dilated_dcnn_v2_forward.1} parent=5 // pred_region
        %s180 = ssub.s32 %s14, 1
        // Predicated region
        $region13: #{dilated_dcnn_v2_forward.1} parent=11 // pred_check
          %p181 = pneg %p75
        $region14: #{dilated_dcnn_v2_forward.1} parent=11 // pred_check_branch
          %183 = sbr.rel (%p181) target = $region16
        $region15: #{dilated_dcnn_v2_forward.1} parent=11 // pred_region
          _
        $region16: #{dilated_dcnn_v2_forward.1} parent=11 // pred_fallthru
          _
        // Predicated region
        $region17: #{dilated_dcnn_v2_forward.1} parent=11 // pred_check
          %p184 = pneg %p96
        $region18: #{dilated_dcnn_v2_forward.1} parent=11 // pred_check_branch
          %186 = sbr.rel (%p184) target = $region20
        $region19: #{dilated_dcnn_v2_forward.1} parent=11 // pred_region
          _
        $region20: #{dilated_dcnn_v2_forward.1} parent=11 // pred_fallthru
          _
        // Predicated region
        $region21: #{dilated_dcnn_v2_forward.1} parent=11 // pred_check
          %p187 = pneg %p117
        $region22: #{dilated_dcnn_v2_forward.1} parent=11 // pred_check_branch
          %189 = sbr.rel (%p187) target = $region24
        $region23: #{dilated_dcnn_v2_forward.1} parent=11 // pred_region
          _
        $region24: #{dilated_dcnn_v2_forward.1} parent=11 // pred_fallthru
          _
        // Predicated region
        $region25: #{dilated_dcnn_v2_forward.1} parent=11 // pred_check
          %p190 = pneg %p138
        $region26: #{dilated_dcnn_v2_forward.1} parent=11 // pred_check_branch
          %192 = sbr.rel (%p190) target = $region28
        $region27: #{dilated_dcnn_v2_forward.1} parent=11 // pred_region
          _
        $region28: #{dilated_dcnn_v2_forward.1} parent=11 // pred_fallthru
          _
      $region12: #{dilated_dcnn_v2_forward.1} parent=5 // pred_fallthru
        _
      %p193 = scmp.lt.s32.totalorder %s14, 4
      // Predicated region
      $region29: #{dilated_dcnn_v2_forward.1} parent=5 // pred_check
        %p194 = pneg %p193
      $region30: #{dilated_dcnn_v2_forward.1} parent=5 // pred_check_branch
        %196 = sbr.rel (%p194) target = $region32
      $region31: #{dilated_dcnn_v2_forward.1} parent=5 // pred_region
        // Predicated region
        $region33: #{dilated_dcnn_v2_forward.1} parent=31 // pred_check
          %p197 = pneg %p48
        $region34: #{dilated_dcnn_v2_forward.1} parent=31 // pred_check_branch
          %199 = sbr.rel (%p197) target = $region36
        $region35: #{dilated_dcnn_v2_forward.1} parent=31 // pred_region
          %s200 = sand.u32 %s38, 1
          %s201 = sand.u32 %s38, 1
          %s202 = smul.addr %s201, 512
          %s203 = scalar_lea.vmem [#allocation4], %s202
          %s204 = smul.u32 16, %s22
          %s205 = smul.addr %s21, 256
          %s206 = sadd.s32 %s204, %s205
          %s207 = smul.addr %s206, 4
          %s208 = scalar_lea.vmem %s0, %s207
          // Predicated region
          $region37: #{dilated_dcnn_v2_forward.1} parent=35 // pred_check
            _
          $region38: #{dilated_dcnn_v2_forward.1} parent=35 // pred_check_branch
            %210 = sbr.rel (0) target = $region40
          $region39: #{dilated_dcnn_v2_forward.1} parent=35 // pred_region
            // Predicated region
            $region41: #{dilated_dcnn_v2_forward.1} parent=39 // pred_check
              _
            $region42: #{dilated_dcnn_v2_forward.1} parent=39 // pred_check_branch
              %212 = sbr.rel target = $region44
            $region43: #{dilated_dcnn_v2_forward.1} parent=39 // pred_region
              // Predicated region
              $region56: #{dilated_dcnn_v2_forward.1} parent=43 // pred_check
                _
              $region57: #{dilated_dcnn_v2_forward.1} parent=43 // pred_check_branch
                %481 = sbr.rel (0) target = $region59
              $region58: #{dilated_dcnn_v2_forward.1} parent=43 // pred_region
                loop: start=0, step=1, limit=1
                $region60: #{dilated_dcnn_v2_forward.1} parent=58 // loop_pre_header
                  _
                $region61: #{dilated_dcnn_v2_forward.1} parent=58 // loop_header
                  %s483 = sphi 0, %s487
                  %p484 = scmp.ge.s32.totalorder %s483, 1
                  %s488 = sphi %s208, %s208
                  %s489 = sphi %s203, %s203
                $region62: #{dilated_dcnn_v2_forward.1} parent=58 // loop_header_branch
                  %486 = sbr.rel (%p484) target = $region66
                $region63: #{dilated_dcnn_v2_forward.1} parent=58 // loop_body
                  _
                $region64: #{dilated_dcnn_v2_forward.1} parent=58 // loop_footer
                  %s487 = sadd.s32 1, %s483
                $region65: #{dilated_dcnn_v2_forward.1} parent=58 // loop_footer_branch
                  %482 = sbr.rel target = $region61
                $region66: #{dilated_dcnn_v2_forward.1} parent=58 // loop_exit
                  _
                loop: start=0, step=1, limit=1
                $region67: #{dilated_dcnn_v2_forward.1} parent=58 // loop_pre_header
                  _
                $region68: #{dilated_dcnn_v2_forward.1} parent=58 // loop_header
                  %s492 = sphi 0, %s496
                  %p493 = scmp.ge.s32.totalorder %s492, 1
                  %s497 = sphi %s208, %s208
                  %s498 = sphi %s203, %s203
                $region69: #{dilated_dcnn_v2_forward.1} parent=58 // loop_header_branch
                  %495 = sbr.rel (%p493) target = $region73
                $region70: #{dilated_dcnn_v2_forward.1} parent=58 // loop_body
                  %v499 = vld [vmem:[%s497] sm:$0xf]
                  %500 = vst [vmem:[%s498] sm:$0xf] %v499
                  %v501 = vld [vmem:[%s497 + $0x4] sm:$0xf]
                  %502 = vst [vmem:[%s498 + $0x4] sm:$0xf] %v501
                  %v503 = vld [vmem:[%s497 + $0x8] sm:$0xf]
                  %504 = vst [vmem:[%s498 + $0x8] sm:$0xf] %v503
                  %v505 = vld [vmem:[%s497 + $0xc] sm:$0xf]
                  %506 = vst [vmem:[%s498 + $0xc] sm:$0xf] %v505
                  %v507 = vld [vmem:[%s497 + $0x10] sm:$0xf]
                  %508 = vst [vmem:[%s498 + $0x10] sm:$0xf] %v507
                  %v509 = vld [vmem:[%s497 + $0x14] sm:$0xf]
                  %510 = vst [vmem:[%s498 + $0x14] sm:$0xf] %v509
                  %v511 = vld [vmem:[%s497 + $0x18] sm:$0xf]
                  %512 = vst [vmem:[%s498 + $0x18] sm:$0xf] %v511
                  %v513 = vld [vmem:[%s497 + $0x1c] sm:$0xf]
                  %514 = vst [vmem:[%s498 + $0x1c] sm:$0xf] %v513
                  %v515 = vld [vmem:[%s497 + $0x20] sm:$0xf]
                  %516 = vst [vmem:[%s498 + $0x20] sm:$0xf] %v515
                  %v517 = vld [vmem:[%s497 + $0x24] sm:$0xf]
                  %518 = vst [vmem:[%s498 + $0x24] sm:$0xf] %v517
                  %v519 = vld [vmem:[%s497 + $0x28] sm:$0xf]
                  %520 = vst [vmem:[%s498 + $0x28] sm:$0xf] %v519
                  %v521 = vld [vmem:[%s497 + $0x2c] sm:$0xf]
                  %522 = vst [vmem:[%s498 + $0x2c] sm:$0xf] %v521
                  %v523 = vld [vmem:[%s497 + $0x30] sm:$0xf]
                  %524 = vst [vmem:[%s498 + $0x30] sm:$0xf] %v523
                  %v525 = vld [vmem:[%s497 + $0x34] sm:$0xf]
                  %526 = vst [vmem:[%s498 + $0x34] sm:$0xf] %v525
                  %v527 = vld [vmem:[%s497 + $0x38] sm:$0xf]
                  %528 = vst [vmem:[%s498 + $0x38] sm:$0xf] %v527
                  %v529 = vld [vmem:[%s497 + $0x3c] sm:$0xf]
                  %530 = vst [vmem:[%s498 + $0x3c] sm:$0xf] %v529
                  %v531 = vld [vmem:[%s497 + $0x80] sm:$0xf]
                  %532 = vst [vmem:[%s498 + $0x40] sm:$0xf] %v531
                  %v533 = vld [vmem:[%s497 + $0x84] sm:$0xf]
                  %534 = vst [vmem:[%s498 + $0x44] sm:$0xf] %v533
                  %v535 = vld [vmem:[%s497 + $0x88] sm:$0xf]
                  %536 = vst [vmem:[%s498 + $0x48] sm:$0xf] %v535
                  %v537 = vld [vmem:[%s497 + $0x8c] sm:$0xf]
                  %538 = vst [vmem:[%s498 + $0x4c] sm:$0xf] %v537
                  %v539 = vld [vmem:[%s497 + $0x90] sm:$0xf]
                  %540 = vst [vmem:[%s498 + $0x50] sm:$0xf] %v539
                  %v541 = vld [vmem:[%s497 + $0x94] sm:$0xf]
                  %542 = vst [vmem:[%s498 + $0x54] sm:$0xf] %v541
                  %v543 = vld [vmem:[%s497 + $0x98] sm:$0xf]
                  %544 = vst [vmem:[%s498 + $0x58] sm:$0xf] %v543
                  %v545 = vld [vmem:[%s497 + $0x9c] sm:$0xf]
                  %546 = vst [vmem:[%s498 + $0x5c] sm:$0xf] %v545
                  %v547 = vld [vmem:[%s497 + $0xa0] sm:$0xf]
                  %548 = vst [vmem:[%s498 + $0x60] sm:$0xf] %v547
                  %v549 = vld [vmem:[%s497 + $0xa4] sm:$0xf]
                  %550 = vst [vmem:[%s498 + $0x64] sm:$0xf] %v549
                  %v551 = vld [vmem:[%s497 + $0xa8] sm:$0xf]
                  %552 = vst [vmem:[%s498 + $0x68] sm:$0xf] %v551
                  %v553 = vld [vmem:[%s497 + $0xac] sm:$0xf]
                  %554 = vst [vmem:[%s498 + $0x6c] sm:$0xf] %v553
                  %v555 = vld [vmem:[%s497 + $0xb0] sm:$0xf]
                  %556 = vst [vmem:[%s498 + $0x70] sm:$0xf] %v555
                  %v557 = vld [vmem:[%s497 + $0xb4] sm:$0xf]
                  %558 = vst [vmem:[%s498 + $0x74] sm:$0xf] %v557
                  %v559 = vld [vmem:[%s497 + $0xb8] sm:$0xf]
                  %560 = vst [vmem:[%s498 + $0x78] sm:$0xf] %v559
                  %v561 = vld [vmem:[%s497 + $0xbc] sm:$0xf]
                  %562 = vst [vmem:[%s498 + $0x7c] sm:$0xf] %v561
                  %v563 = vld [vmem:[%s497 + $0x100] sm:$0xf]
                  %564 = vst [vmem:[%s498 + $0x80] sm:$0xf] %v563
                  %v565 = vld [vmem:[%s497 + $0x104] sm:$0xf]
                  %566 = vst [vmem:[%s498 + $0x84] sm:$0xf] %v565
                  %v567 = vld [vmem:[%s497 + $0x108] sm:$0xf]
                  %568 = vst [vmem:[%s498 + $0x88] sm:$0xf] %v567
                  %v569 = vld [vmem:[%s497 + $0x10c] sm:$0xf]
                  %570 = vst [vmem:[%s498 + $0x8c] sm:$0xf] %v569
                  %v571 = vld [vmem:[%s497 + $0x110] sm:$0xf]
                  %572 = vst [vmem:[%s498 + $0x90] sm:$0xf] %v571
                  %v573 = vld [vmem:[%s497 + $0x114] sm:$0xf]
                  %574 = vst [vmem:[%s498 + $0x94] sm:$0xf] %v573
                  %v575 = vld [vmem:[%s497 + $0x118] sm:$0xf]
                  %576 = vst [vmem:[%s498 + $0x98] sm:$0xf] %v575
                  %v577 = vld [vmem:[%s497 + $0x11c] sm:$0xf]
                  %578 = vst [vmem:[%s498 + $0x9c] sm:$0xf] %v577
                  %v579 = vld [vmem:[%s497 + $0x120] sm:$0xf]
                  %580 = vst [vmem:[%s498 + $0xa0] sm:$0xf] %v579
                  %v581 = vld [vmem:[%s497 + $0x124] sm:$0xf]
                  %582 = vst [vmem:[%s498 + $0xa4] sm:$0xf] %v581
                  %v583 = vld [vmem:[%s497 + $0x128] sm:$0xf]
                  %584 = vst [vmem:[%s498 + $0xa8] sm:$0xf] %v583
                  %v585 = vld [vmem:[%s497 + $0x12c] sm:$0xf]
                  %586 = vst [vmem:[%s498 + $0xac] sm:$0xf] %v585
                  %v587 = vld [vmem:[%s497 + $0x130] sm:$0xf]
                  %588 = vst [vmem:[%s498 + $0xb0] sm:$0xf] %v587
                  %v589 = vld [vmem:[%s497 + $0x134] sm:$0xf]
                  %590 = vst [vmem:[%s498 + $0xb4] sm:$0xf] %v589
                  %v591 = vld [vmem:[%s497 + $0x138] sm:$0xf]
                  %592 = vst [vmem:[%s498 + $0xb8] sm:$0xf] %v591
                  %v593 = vld [vmem:[%s497 + $0x13c] sm:$0xf]
                  %594 = vst [vmem:[%s498 + $0xbc] sm:$0xf] %v593
                  %v595 = vld [vmem:[%s497 + $0x180] sm:$0xf]
                  %596 = vst [vmem:[%s498 + $0xc0] sm:$0xf] %v595
                  %v597 = vld [vmem:[%s497 + $0x184] sm:$0xf]
                  %598 = vst [vmem:[%s498 + $0xc4] sm:$0xf] %v597
                  %v599 = vld [vmem:[%s497 + $0x188] sm:$0xf]
                  %600 = vst [vmem:[%s498 + $0xc8] sm:$0xf] %v599
                  %v601 = vld [vmem:[%s497 + $0x18c] sm:$0xf]
                  %602 = vst [vmem:[%s498 + $0xcc] sm:$0xf] %v601
                  %v603 = vld [vmem:[%s497 + $0x190] sm:$0xf]
                  %604 = vst [vmem:[%s498 + $0xd0] sm:$0xf] %v603
                  %v605 = vld [vmem:[%s497 + $0x194] sm:$0xf]
                  %606 = vst [vmem:[%s498 + $0xd4] sm:$0xf] %v605
                  %v607 = vld [vmem:[%s497 + $0x198] sm:$0xf]
                  %608 = vst [vmem:[%s498 + $0xd8] sm:$0xf] %v607
                  %v609 = vld [vmem:[%s497 + $0x19c] sm:$0xf]
                  %610 = vst [vmem:[%s498 + $0xdc] sm:$0xf] %v609
                  %v611 = vld [vmem:[%s497 + $0x1a0] sm:$0xf]
                  %612 = vst [vmem:[%s498 + $0xe0] sm:$0xf] %v611
                  %v613 = vld [vmem:[%s497 + $0x1a4] sm:$0xf]
                  %614 = vst [vmem:[%s498 + $0xe4] sm:$0xf] %v613
                  %v615 = vld [vmem:[%s497 + $0x1a8] sm:$0xf]
                  %616 = vst [vmem:[%s498 + $0xe8] sm:$0xf] %v615
                  %v617 = vld [vmem:[%s497 + $0x1ac] sm:$0xf]
                  %618 = vst [vmem:[%s498 + $0xec] sm:$0xf] %v617
                  %v619 = vld [vmem:[%s497 + $0x1b0] sm:$0xf]
                  %620 = vst [vmem:[%s498 + $0xf0] sm:$0xf] %v619
                  %v621 = vld [vmem:[%s497 + $0x1b4] sm:$0xf]
                  %622 = vst [vmem:[%s498 + $0xf4] sm:$0xf] %v621
                  %v623 = vld [vmem:[%s497 + $0x1b8] sm:$0xf]
                  %624 = vst [vmem:[%s498 + $0xf8] sm:$0xf] %v623
                  %v625 = vld [vmem:[%s497 + $0x1bc] sm:$0xf]
                  %626 = vst [vmem:[%s498 + $0xfc] sm:$0xf] %v625
                  %v627 = vld [vmem:[%s497 + $0x200] sm:$0xf]
                  %628 = vst [vmem:[%s498 + $0x100] sm:$0xf] %v627
                  %v629 = vld [vmem:[%s497 + $0x204] sm:$0xf]
                  %630 = vst [vmem:[%s498 + $0x104] sm:$0xf] %v629
                  %v631 = vld [vmem:[%s497 + $0x208] sm:$0xf]
                  %632 = vst [vmem:[%s498 + $0x108] sm:$0xf] %v631
                  %v633 = vld [vmem:[%s497 + $0x20c] sm:$0xf]
                  %634 = vst [vmem:[%s498 + $0x10c] sm:$0xf] %v633
                  %v635 = vld [vmem:[%s497 + $0x210] sm:$0xf]
                  %636 = vst [vmem:[%s498 + $0x110] sm:$0xf] %v635
                  %v637 = vld [vmem:[%s497 + $0x214] sm:$0xf]
                  %638 = vst [vmem:[%s498 + $0x114] sm:$0xf] %v637
                  %v639 = vld [vmem:[%s497 + $0x218] sm:$0xf]
                  %640 = vst [vmem:[%s498 + $0x118] sm:$0xf] %v639
                  %v641 = vld [vmem:[%s497 + $0x21c] sm:$0xf]
                  %642 = vst [vmem:[%s498 + $0x11c] sm:$0xf] %v641
                  %v643 = vld [vmem:[%s497 + $0x220] sm:$0xf]
                  %644 = vst [vmem:[%s498 + $0x120] sm:$0xf] %v643
                  %v645 = vld [vmem:[%s497 + $0x224] sm:$0xf]
                  %646 = vst [vmem:[%s498 + $0x124] sm:$0xf] %v645
                  %v647 = vld [vmem:[%s497 + $0x228] sm:$0xf]
                  %648 = vst [vmem:[%s498 + $0x128] sm:$0xf] %v647
                  %v649 = vld [vmem:[%s497 + $0x22c] sm:$0xf]
                  %650 = vst [vmem:[%s498 + $0x12c] sm:$0xf] %v649
                  %v651 = vld [vmem:[%s497 + $0x230] sm:$0xf]
                  %652 = vst [vmem:[%s498 + $0x130] sm:$0xf] %v651
                  %v653 = vld [vmem:[%s497 + $0x234] sm:$0xf]
                  %654 = vst [vmem:[%s498 + $0x134] sm:$0xf] %v653
                  %v655 = vld [vmem:[%s497 + $0x238] sm:$0xf]
                  %656 = vst [vmem:[%s498 + $0x138] sm:$0xf] %v655
                  %v657 = vld [vmem:[%s497 + $0x23c] sm:$0xf]
                  %658 = vst [vmem:[%s498 + $0x13c] sm:$0xf] %v657
                  %v659 = vld [vmem:[%s497 + $0x280] sm:$0xf]
                  %660 = vst [vmem:[%s498 + $0x140] sm:$0xf] %v659
                  %v661 = vld [vmem:[%s497 + $0x284] sm:$0xf]
                  %662 = vst [vmem:[%s498 + $0x144] sm:$0xf] %v661
                  %v663 = vld [vmem:[%s497 + $0x288] sm:$0xf]
                  %664 = vst [vmem:[%s498 + $0x148] sm:$0xf] %v663
                  %v665 = vld [vmem:[%s497 + $0x28c] sm:$0xf]
                  %666 = vst [vmem:[%s498 + $0x14c] sm:$0xf] %v665
                  %v667 = vld [vmem:[%s497 + $0x290] sm:$0xf]
                  %668 = vst [vmem:[%s498 + $0x150] sm:$0xf] %v667
                  %v669 = vld [vmem:[%s497 + $0x294] sm:$0xf]
                  %670 = vst [vmem:[%s498 + $0x154] sm:$0xf] %v669
                  %v671 = vld [vmem:[%s497 + $0x298] sm:$0xf]
                  %672 = vst [vmem:[%s498 + $0x158] sm:$0xf] %v671
                  %v673 = vld [vmem:[%s497 + $0x29c] sm:$0xf]
                  %674 = vst [vmem:[%s498 + $0x15c] sm:$0xf] %v673
                  %v675 = vld [vmem:[%s497 + $0x2a0] sm:$0xf]
                  %676 = vst [vmem:[%s498 + $0x160] sm:$0xf] %v675
                  %v677 = vld [vmem:[%s497 + $0x2a4] sm:$0xf]
                  %678 = vst [vmem:[%s498 + $0x164] sm:$0xf] %v677
                  %v679 = vld [vmem:[%s497 + $0x2a8] sm:$0xf]
                  %680 = vst [vmem:[%s498 + $0x168] sm:$0xf] %v679
                  %v681 = vld [vmem:[%s497 + $0x2ac] sm:$0xf]
                  %682 = vst [vmem:[%s498 + $0x16c] sm:$0xf] %v681
                  %v683 = vld [vmem:[%s497 + $0x2b0] sm:$0xf]
                  %684 = vst [vmem:[%s498 + $0x170] sm:$0xf] %v683
                  %v685 = vld [vmem:[%s497 + $0x2b4] sm:$0xf]
                  %686 = vst [vmem:[%s498 + $0x174] sm:$0xf] %v685
                  %v687 = vld [vmem:[%s497 + $0x2b8] sm:$0xf]
                  %688 = vst [vmem:[%s498 + $0x178] sm:$0xf] %v687
                  %v689 = vld [vmem:[%s497 + $0x2bc] sm:$0xf]
                  %690 = vst [vmem:[%s498 + $0x17c] sm:$0xf] %v689
                  %v691 = vld [vmem:[%s497 + $0x300] sm:$0xf]
                  %692 = vst [vmem:[%s498 + $0x180] sm:$0xf] %v691
                  %v693 = vld [vmem:[%s497 + $0x304] sm:$0xf]
                  %694 = vst [vmem:[%s498 + $0x184] sm:$0xf] %v693
                  %v695 = vld [vmem:[%s497 + $0x308] sm:$0xf]
                  %696 = vst [vmem:[%s498 + $0x188] sm:$0xf] %v695
                  %v697 = vld [vmem:[%s497 + $0x30c] sm:$0xf]
                  %698 = vst [vmem:[%s498 + $0x18c] sm:$0xf] %v697
                  %v699 = vld [vmem:[%s497 + $0x310] sm:$0xf]
                  %700 = vst [vmem:[%s498 + $0x190] sm:$0xf] %v699
                  %v701 = vld [vmem:[%s497 + $0x314] sm:$0xf]
                  %702 = vst [vmem:[%s498 + $0x194] sm:$0xf] %v701
                  %v703 = vld [vmem:[%s497 + $0x318] sm:$0xf]
                  %704 = vst [vmem:[%s498 + $0x198] sm:$0xf] %v703
                  %v705 = vld [vmem:[%s497 + $0x31c] sm:$0xf]
                  %706 = vst [vmem:[%s498 + $0x19c] sm:$0xf] %v705
                  %v707 = vld [vmem:[%s497 + $0x320] sm:$0xf]
                  %708 = vst [vmem:[%s498 + $0x1a0] sm:$0xf] %v707
                  %v709 = vld [vmem:[%s497 + $0x324] sm:$0xf]
                  %710 = vst [vmem:[%s498 + $0x1a4] sm:$0xf] %v709
                  %v711 = vld [vmem:[%s497 + $0x328] sm:$0xf]
                  %712 = vst [vmem:[%s498 + $0x1a8] sm:$0xf] %v711
                  %v713 = vld [vmem:[%s497 + $0x32c] sm:$0xf]
                  %714 = vst [vmem:[%s498 + $0x1ac] sm:$0xf] %v713
                  %v715 = vld [vmem:[%s497 + $0x330] sm:$0xf]
                  %716 = vst [vmem:[%s498 + $0x1b0] sm:$0xf] %v715
                  %v717 = vld [vmem:[%s497 + $0x334] sm:$0xf]
                  %718 = vst [vmem:[%s498 + $0x1b4] sm:$0xf] %v717
                  %v719 = vld [vmem:[%s497 + $0x338] sm:$0xf]
                  %720 = vst [vmem:[%s498 + $0x1b8] sm:$0xf] %v719
                  %v721 = vld [vmem:[%s497 + $0x33c] sm:$0xf]
                  %722 = vst [vmem:[%s498 + $0x1bc] sm:$0xf] %v721
                  %v723 = vld [vmem:[%s497 + $0x380] sm:$0xf]
                  %724 = vst [vmem:[%s498 + $0x1c0] sm:$0xf] %v723
                  %v725 = vld [vmem:[%s497 + $0x384] sm:$0xf]
                  %726 = vst [vmem:[%s498 + $0x1c4] sm:$0xf] %v725
                  %v727 = vld [vmem:[%s497 + $0x388] sm:$0xf]
                  %728 = vst [vmem:[%s498 + $0x1c8] sm:$0xf] %v727
                  %v729 = vld [vmem:[%s497 + $0x38c] sm:$0xf]
                  %730 = vst [vmem:[%s498 + $0x1cc] sm:$0xf] %v729
                  %v731 = vld [vmem:[%s497 + $0x390] sm:$0xf]
                  %732 = vst [vmem:[%s498 + $0x1d0] sm:$0xf] %v731
                  %v733 = vld [vmem:[%s497 + $0x394] sm:$0xf]
                  %734 = vst [vmem:[%s498 + $0x1d4] sm:$0xf] %v733
                  %v735 = vld [vmem:[%s497 + $0x398] sm:$0xf]
                  %736 = vst [vmem:[%s498 + $0x1d8] sm:$0xf] %v735
                  %v737 = vld [vmem:[%s497 + $0x39c] sm:$0xf]
                  %738 = vst [vmem:[%s498 + $0x1dc] sm:$0xf] %v737
                  %v739 = vld [vmem:[%s497 + $0x3a0] sm:$0xf]
                  %740 = vst [vmem:[%s498 + $0x1e0] sm:$0xf] %v739
                  %v741 = vld [vmem:[%s497 + $0x3a4] sm:$0xf]
                  %742 = vst [vmem:[%s498 + $0x1e4] sm:$0xf] %v741
                  %v743 = vld [vmem:[%s497 + $0x3a8] sm:$0xf]
                  %744 = vst [vmem:[%s498 + $0x1e8] sm:$0xf] %v743
                  %v745 = vld [vmem:[%s497 + $0x3ac] sm:$0xf]
                  %746 = vst [vmem:[%s498 + $0x1ec] sm:$0xf] %v745
                  %v747 = vld [vmem:[%s497 + $0x3b0] sm:$0xf]
                  %748 = vst [vmem:[%s498 + $0x1f0] sm:$0xf] %v747
                  %v749 = vld [vmem:[%s497 + $0x3b4] sm:$0xf]
                  %750 = vst [vmem:[%s498 + $0x1f4] sm:$0xf] %v749
                  %v751 = vld [vmem:[%s497 + $0x3b8] sm:$0xf]
                  %752 = vst [vmem:[%s498 + $0x1f8] sm:$0xf] %v751
                  %v753 = vld [vmem:[%s497 + $0x3bc] sm:$0xf]
                  %754 = vst [vmem:[%s498 + $0x1fc] sm:$0xf] %v753
                $region71: #{dilated_dcnn_v2_forward.1} parent=58 // loop_footer
                  %s496 = sadd.s32 1, %s492
                $region72: #{dilated_dcnn_v2_forward.1} parent=58 // loop_footer_branch
                  %491 = sbr.rel target = $region68
                $region73: #{dilated_dcnn_v2_forward.1} parent=58 // loop_exit
                  _
              $region59: #{dilated_dcnn_v2_forward.1} parent=43 // pred_fallthru
                _
            $region44: #{dilated_dcnn_v2_forward.1} parent=39 // pred_fallthru
              _
            // Predicated region
            $region45: #{dilated_dcnn_v2_forward.1} parent=39 // pred_check
              _
            $region46: #{dilated_dcnn_v2_forward.1} parent=39 // pred_check_branch
              %214 = sbr.rel (0) target = $region48
            $region47: #{dilated_dcnn_v2_forward.1} parent=39 // pred_region
              loop: start=0, step=1, limit=1
              $region49: #{dilated_dcnn_v2_forward.1} parent=47 // loop_pre_header
                _
              $region50: #{dilated_dcnn_v2_forward.1} parent=47 // loop_header
                %s217 = sphi 0, %s221
                %p218 = scmp.ge.s32.totalorder %s217, 1
                %s222 = sphi %s208, %s208
                %s223 = sphi %s203, %s203
              $region51: #{dilated_dcnn_v2_forward.1} parent=47 // loop_header_branch
                %220 = sbr.rel (%p218) target = $region55
              $region52: #{dilated_dcnn_v2_forward.1} parent=47 // loop_body
                %v224 = vld [vmem:[%s222] sm:$0xf]
                %225 = vst [vmem:[%s223] sm:$0xf] %v224
                %v226 = vld [vmem:[%s222 + $0x4] sm:$0xf]
                %227 = vst [vmem:[%s223 + $0x4] sm:$0xf] %v226
                %v228 = vld [vmem:[%s222 + $0x8] sm:$0xf]
                %229 = vst [vmem:[%s223 + $0x8] sm:$0xf] %v228
                %v230 = vld [vmem:[%s222 + $0xc] sm:$0xf]
                %231 = vst [vmem:[%s223 + $0xc] sm:$0xf] %v230
                %v232 = vld [vmem:[%s222 + $0x10] sm:$0xf]
                %233 = vst [vmem:[%s223 + $0x10] sm:$0xf] %v232
                %v234 = vld [vmem:[%s222 + $0x14] sm:$0xf]
                %235 = vst [vmem:[%s223 + $0x14] sm:$0xf] %v234
                %v236 = vld [vmem:[%s222 + $0x18] sm:$0xf]
                %237 = vst [vmem:[%s223 + $0x18] sm:$0xf] %v236
                %v238 = vld [vmem:[%s222 + $0x1c] sm:$0xf]
                %239 = vst [vmem:[%s223 + $0x1c] sm:$0xf] %v238
                %v240 = vld [vmem:[%s222 + $0x20] sm:$0xf]
                %241 = vst [vmem:[%s223 + $0x20] sm:$0xf] %v240
                %v242 = vld [vmem:[%s222 + $0x24] sm:$0xf]
                %243 = vst [vmem:[%s223 + $0x24] sm:$0xf] %v242
                %v244 = vld [vmem:[%s222 + $0x28] sm:$0xf]
                %245 = vst [vmem:[%s223 + $0x28] sm:$0xf] %v244
                %v246 = vld [vmem:[%s222 + $0x2c] sm:$0xf]
                %247 = vst [vmem:[%s223 + $0x2c] sm:$0xf] %v246
                %v248 = vld [vmem:[%s222 + $0x30] sm:$0xf]
                %249 = vst [vmem:[%s223 + $0x30] sm:$0xf] %v248
                %v250 = vld [vmem:[%s222 + $0x34] sm:$0xf]
                %251 = vst [vmem:[%s223 + $0x34] sm:$0xf] %v250
                %v252 = vld [vmem:[%s222 + $0x38] sm:$0xf]
                %253 = vst [vmem:[%s223 + $0x38] sm:$0xf] %v252
                %v254 = vld [vmem:[%s222 + $0x3c] sm:$0xf]
                %255 = vst [vmem:[%s223 + $0x3c] sm:$0xf] %v254
                %v256 = vld [vmem:[%s222 + $0x80] sm:$0xf]
                %257 = vst [vmem:[%s223 + $0x40] sm:$0xf] %v256
                %v258 = vld [vmem:[%s222 + $0x84] sm:$0xf]
                %259 = vst [vmem:[%s223 + $0x44] sm:$0xf] %v258
                %v260 = vld [vmem:[%s222 + $0x88] sm:$0xf]
                %261 = vst [vmem:[%s223 + $0x48] sm:$0xf] %v260
                %v262 = vld [vmem:[%s222 + $0x8c] sm:$0xf]
                %263 = vst [vmem:[%s223 + $0x4c] sm:$0xf] %v262
                %v264 = vld [vmem:[%s222 + $0x90] sm:$0xf]
                %265 = vst [vmem:[%s223 + $0x50] sm:$0xf] %v264
                %v266 = vld [vmem:[%s222 + $0x94] sm:$0xf]
                %267 = vst [vmem:[%s223 + $0x54] sm:$0xf] %v266
                %v268 = vld [vmem:[%s222 + $0x98] sm:$0xf]
                %269 = vst [vmem:[%s223 + $0x58] sm:$0xf] %v268
                %v270 = vld [vmem:[%s222 + $0x9c] sm:$0xf]
                %271 = vst [vmem:[%s223 + $0x5c] sm:$0xf] %v270
                %v272 = vld [vmem:[%s222 + $0xa0] sm:$0xf]
                %273 = vst [vmem:[%s223 + $0x60] sm:$0xf] %v272
                %v274 = vld [vmem:[%s222 + $0xa4] sm:$0xf]
                %275 = vst [vmem:[%s223 + $0x64] sm:$0xf] %v274
                %v276 = vld [vmem:[%s222 + $0xa8] sm:$0xf]
                %277 = vst [vmem:[%s223 + $0x68] sm:$0xf] %v276
                %v278 = vld [vmem:[%s222 + $0xac] sm:$0xf]
                %279 = vst [vmem:[%s223 + $0x6c] sm:$0xf] %v278
                %v280 = vld [vmem:[%s222 + $0xb0] sm:$0xf]
                %281 = vst [vmem:[%s223 + $0x70] sm:$0xf] %v280
                %v282 = vld [vmem:[%s222 + $0xb4] sm:$0xf]
                %283 = vst [vmem:[%s223 + $0x74] sm:$0xf] %v282
                %v284 = vld [vmem:[%s222 + $0xb8] sm:$0xf]
                %285 = vst [vmem:[%s223 + $0x78] sm:$0xf] %v284
                %v286 = vld [vmem:[%s222 + $0xbc] sm:$0xf]
                %287 = vst [vmem:[%s223 + $0x7c] sm:$0xf] %v286
                %v288 = vld [vmem:[%s222 + $0x100] sm:$0xf]
                %289 = vst [vmem:[%s223 + $0x80] sm:$0xf] %v288
                %v290 = vld [vmem:[%s222 + $0x104] sm:$0xf]
                %291 = vst [vmem:[%s223 + $0x84] sm:$0xf] %v290
                %v292 = vld [vmem:[%s222 + $0x108] sm:$0xf]
                %293 = vst [vmem:[%s223 + $0x88] sm:$0xf] %v292
                %v294 = vld [vmem:[%s222 + $0x10c] sm:$0xf]
                %295 = vst [vmem:[%s223 + $0x8c] sm:$0xf] %v294
                %v296 = vld [vmem:[%s222 + $0x110] sm:$0xf]
                %297 = vst [vmem:[%s223 + $0x90] sm:$0xf] %v296
                %v298 = vld [vmem:[%s222 + $0x114] sm:$0xf]
                %299 = vst [vmem:[%s223 + $0x94] sm:$0xf] %v298
                %v300 = vld [vmem:[%s222 + $0x118] sm:$0xf]
                %301 = vst [vmem:[%s223 + $0x98] sm:$0xf] %v300
                %v302 = vld [vmem:[%s222 + $0x11c] sm:$0xf]
                %303 = vst [vmem:[%s223 + $0x9c] sm:$0xf] %v302
                %v304 = vld [vmem:[%s222 + $0x120] sm:$0xf]
                %305 = vst [vmem:[%s223 + $0xa0] sm:$0xf] %v304
                %v306 = vld [vmem:[%s222 + $0x124] sm:$0xf]
                %307 = vst [vmem:[%s223 + $0xa4] sm:$0xf] %v306
                %v308 = vld [vmem:[%s222 + $0x128] sm:$0xf]
                %309 = vst [vmem:[%s223 + $0xa8] sm:$0xf] %v308
                %v310 = vld [vmem:[%s222 + $0x12c] sm:$0xf]
                %311 = vst [vmem:[%s223 + $0xac] sm:$0xf] %v310
                %v312 = vld [vmem:[%s222 + $0x130] sm:$0xf]
                %313 = vst [vmem:[%s223 + $0xb0] sm:$0xf] %v312
                %v314 = vld [vmem:[%s222 + $0x134] sm:$0xf]
                %315 = vst [vmem:[%s223 + $0xb4] sm:$0xf] %v314
                %v316 = vld [vmem:[%s222 + $0x138] sm:$0xf]
                %317 = vst [vmem:[%s223 + $0xb8] sm:$0xf] %v316
                %v318 = vld [vmem:[%s222 + $0x13c] sm:$0xf]
                %319 = vst [vmem:[%s223 + $0xbc] sm:$0xf] %v318
                %v320 = vld [vmem:[%s222 + $0x180] sm:$0xf]
                %321 = vst [vmem:[%s223 + $0xc0] sm:$0xf] %v320
                %v322 = vld [vmem:[%s222 + $0x184] sm:$0xf]
                %323 = vst [vmem:[%s223 + $0xc4] sm:$0xf] %v322
                %v324 = vld [vmem:[%s222 + $0x188] sm:$0xf]
                %325 = vst [vmem:[%s223 + $0xc8] sm:$0xf] %v324
                %v326 = vld [vmem:[%s222 + $0x18c] sm:$0xf]
                %327 = vst [vmem:[%s223 + $0xcc] sm:$0xf] %v326
                %v328 = vld [vmem:[%s222 + $0x190] sm:$0xf]
                %329 = vst [vmem:[%s223 + $0xd0] sm:$0xf] %v328
                %v330 = vld [vmem:[%s222 + $0x194] sm:$0xf]
                %331 = vst [vmem:[%s223 + $0xd4] sm:$0xf] %v330
                %v332 = vld [vmem:[%s222 + $0x198] sm:$0xf]
                %333 = vst [vmem:[%s223 + $0xd8] sm:$0xf] %v332
                %v334 = vld [vmem:[%s222 + $0x19c] sm:$0xf]
                %335 = vst [vmem:[%s223 + $0xdc] sm:$0xf] %v334
                %v336 = vld [vmem:[%s222 + $0x1a0] sm:$0xf]
                %337 = vst [vmem:[%s223 + $0xe0] sm:$0xf] %v336
                %v338 = vld [vmem:[%s222 + $0x1a4] sm:$0xf]
                %339 = vst [vmem:[%s223 + $0xe4] sm:$0xf] %v338
                %v340 = vld [vmem:[%s222 + $0x1a8] sm:$0xf]
                %341 = vst [vmem:[%s223 + $0xe8] sm:$0xf] %v340
                %v342 = vld [vmem:[%s222 + $0x1ac] sm:$0xf]
                %343 = vst [vmem:[%s223 + $0xec] sm:$0xf] %v342
                %v344 = vld [vmem:[%s222 + $0x1b0] sm:$0xf]
                %345 = vst [vmem:[%s223 + $0xf0] sm:$0xf] %v344
                %v346 = vld [vmem:[%s222 + $0x1b4] sm:$0xf]
                %347 = vst [vmem:[%s223 + $0xf4] sm:$0xf] %v346
                %v348 = vld [vmem:[%s222 + $0x1b8] sm:$0xf]
                %349 = vst [vmem:[%s223 + $0xf8] sm:$0xf] %v348
                %v350 = vld [vmem:[%s222 + $0x1bc] sm:$0xf]
                %351 = vst [vmem:[%s223 + $0xfc] sm:$0xf] %v350
                %v352 = vld [vmem:[%s222 + $0x200] sm:$0xf]
                %353 = vst [vmem:[%s223 + $0x100] sm:$0xf] %v352
                %v354 = vld [vmem:[%s222 + $0x204] sm:$0xf]
                %355 = vst [vmem:[%s223 + $0x104] sm:$0xf] %v354
                %v356 = vld [vmem:[%s222 + $0x208] sm:$0xf]
                %357 = vst [vmem:[%s223 + $0x108] sm:$0xf] %v356
                %v358 = vld [vmem:[%s222 + $0x20c] sm:$0xf]
                %359 = vst [vmem:[%s223 + $0x10c] sm:$0xf] %v358
                %v360 = vld [vmem:[%s222 + $0x210] sm:$0xf]
                %361 = vst [vmem:[%s223 + $0x110] sm:$0xf] %v360
                %v362 = vld [vmem:[%s222 + $0x214] sm:$0xf]
                %363 = vst [vmem:[%s223 + $0x114] sm:$0xf] %v362
                %v364 = vld [vmem:[%s222 + $0x218] sm:$0xf]
                %365 = vst [vmem:[%s223 + $0x118] sm:$0xf] %v364
                %v366 = vld [vmem:[%s222 + $0x21c] sm:$0xf]
                %367 = vst [vmem:[%s223 + $0x11c] sm:$0xf] %v366
                %v368 = vld [vmem:[%s222 + $0x220] sm:$0xf]
                %369 = vst [vmem:[%s223 + $0x120] sm:$0xf] %v368
                %v370 = vld [vmem:[%s222 + $0x224] sm:$0xf]
                %371 = vst [vmem:[%s223 + $0x124] sm:$0xf] %v370
                %v372 = vld [vmem:[%s222 + $0x228] sm:$0xf]
                %373 = vst [vmem:[%s223 + $0x128] sm:$0xf] %v372
                %v374 = vld [vmem:[%s222 + $0x22c] sm:$0xf]
                %375 = vst [vmem:[%s223 + $0x12c] sm:$0xf] %v374
                %v376 = vld [vmem:[%s222 + $0x230] sm:$0xf]
                %377 = vst [vmem:[%s223 + $0x130] sm:$0xf] %v376
                %v378 = vld [vmem:[%s222 + $0x234] sm:$0xf]
                %379 = vst [vmem:[%s223 + $0x134] sm:$0xf] %v378
                %v380 = vld [vmem:[%s222 + $0x238] sm:$0xf]
                %381 = vst [vmem:[%s223 + $0x138] sm:$0xf] %v380
                %v382 = vld [vmem:[%s222 + $0x23c] sm:$0xf]
                %383 = vst [vmem:[%s223 + $0x13c] sm:$0xf] %v382
                %v384 = vld [vmem:[%s222 + $0x280] sm:$0xf]
                %385 = vst [vmem:[%s223 + $0x140] sm:$0xf] %v384
                %v386 = vld [vmem:[%s222 + $0x284] sm:$0xf]
                %387 = vst [vmem:[%s223 + $0x144] sm:$0xf] %v386
                %v388 = vld [vmem:[%s222 + $0x288] sm:$0xf]
                %389 = vst [vmem:[%s223 + $0x148] sm:$0xf] %v388
                %v390 = vld [vmem:[%s222 + $0x28c] sm:$0xf]
                %391 = vst [vmem:[%s223 + $0x14c] sm:$0xf] %v390
                %v392 = vld [vmem:[%s222 + $0x290] sm:$0xf]
                %393 = vst [vmem:[%s223 + $0x150] sm:$0xf] %v392
                %v394 = vld [vmem:[%s222 + $0x294] sm:$0xf]
                %395 = vst [vmem:[%s223 + $0x154] sm:$0xf] %v394
                %v396 = vld [vmem:[%s222 + $0x298] sm:$0xf]
                %397 = vst [vmem:[%s223 + $0x158] sm:$0xf] %v396
                %v398 = vld [vmem:[%s222 + $0x29c] sm:$0xf]
                %399 = vst [vmem:[%s223 + $0x15c] sm:$0xf] %v398
                %v400 = vld [vmem:[%s222 + $0x2a0] sm:$0xf]
                %401 = vst [vmem:[%s223 + $0x160] sm:$0xf] %v400
                %v402 = vld [vmem:[%s222 + $0x2a4] sm:$0xf]
                %403 = vst [vmem:[%s223 + $0x164] sm:$0xf] %v402
                %v404 = vld [vmem:[%s222 + $0x2a8] sm:$0xf]
                %405 = vst [vmem:[%s223 + $0x168] sm:$0xf] %v404
                %v406 = vld [vmem:[%s222 + $0x2ac] sm:$0xf]
                %407 = vst [vmem:[%s223 + $0x16c] sm:$0xf] %v406
                %v408 = vld [vmem:[%s222 + $0x2b0] sm:$0xf]
                %409 = vst [vmem:[%s223 + $0x170] sm:$0xf] %v408
                %v410 = vld [vmem:[%s222 + $0x2b4] sm:$0xf]
                %411 = vst [vmem:[%s223 + $0x174] sm:$0xf] %v410
                %v412 = vld [vmem:[%s222 + $0x2b8] sm:$0xf]
                %413 = vst [vmem:[%s223 + $0x178] sm:$0xf] %v412
                %v414 = vld [vmem:[%s222 + $0x2bc] sm:$0xf]
                %415 = vst [vmem:[%s223 + $0x17c] sm:$0xf] %v414
                %v416 = vld [vmem:[%s222 + $0x300] sm:$0xf]
                %417 = vst [vmem:[%s223 + $0x180] sm:$0xf] %v416
                %v418 = vld [vmem:[%s222 + $0x304] sm:$0xf]
                %419 = vst [vmem:[%s223 + $0x184] sm:$0xf] %v418
                %v420 = vld [vmem:[%s222 + $0x308] sm:$0xf]
                %421 = vst [vmem:[%s223 + $0x188] sm:$0xf] %v420
                %v422 = vld [vmem:[%s222 + $0x30c] sm:$0xf]
                %423 = vst [vmem:[%s223 + $0x18c] sm:$0xf] %v422
                %v424 = vld [vmem:[%s222 + $0x310] sm:$0xf]
                %425 = vst [vmem:[%s223 + $0x190] sm:$0xf] %v424
                %v426 = vld [vmem:[%s222 + $0x314] sm:$0xf]
                %427 = vst [vmem:[%s223 + $0x194] sm:$0xf] %v426
                %v428 = vld [vmem:[%s222 + $0x318] sm:$0xf]
                %429 = vst [vmem:[%s223 + $0x198] sm:$0xf] %v428
                %v430 = vld [vmem:[%s222 + $0x31c] sm:$0xf]
                %431 = vst [vmem:[%s223 + $0x19c] sm:$0xf] %v430
                %v432 = vld [vmem:[%s222 + $0x320] sm:$0xf]
                %433 = vst [vmem:[%s223 + $0x1a0] sm:$0xf] %v432
                %v434 = vld [vmem:[%s222 + $0x324] sm:$0xf]
                %435 = vst [vmem:[%s223 + $0x1a4] sm:$0xf] %v434
                %v436 = vld [vmem:[%s222 + $0x328] sm:$0xf]
                %437 = vst [vmem:[%s223 + $0x1a8] sm:$0xf] %v436
                %v438 = vld [vmem:[%s222 + $0x32c] sm:$0xf]
                %439 = vst [vmem:[%s223 + $0x1ac] sm:$0xf] %v438
                %v440 = vld [vmem:[%s222 + $0x330] sm:$0xf]
                %441 = vst [vmem:[%s223 + $0x1b0] sm:$0xf] %v440
                %v442 = vld [vmem:[%s222 + $0x334] sm:$0xf]
                %443 = vst [vmem:[%s223 + $0x1b4] sm:$0xf] %v442
                %v444 = vld [vmem:[%s222 + $0x338] sm:$0xf]
                %445 = vst [vmem:[%s223 + $0x1b8] sm:$0xf] %v444
                %v446 = vld [vmem:[%s222 + $0x33c] sm:$0xf]
                %447 = vst [vmem:[%s223 + $0x1bc] sm:$0xf] %v446
                %v448 = vld [vmem:[%s222 + $0x380] sm:$0xf]
                %449 = vst [vmem:[%s223 + $0x1c0] sm:$0xf] %v448
                %v450 = vld [vmem:[%s222 + $0x384] sm:$0xf]
                %451 = vst [vmem:[%s223 + $0x1c4] sm:$0xf] %v450
                %v452 = vld [vmem:[%s222 + $0x388] sm:$0xf]
                %453 = vst [vmem:[%s223 + $0x1c8] sm:$0xf] %v452
                %v454 = vld [vmem:[%s222 + $0x38c] sm:$0xf]
                %455 = vst [vmem:[%s223 + $0x1cc] sm:$0xf] %v454
                %v456 = vld [vmem:[%s222 + $0x390] sm:$0xf]
                %457 = vst [vmem:[%s223 + $0x1d0] sm:$0xf] %v456
                %v458 = vld [vmem:[%s222 + $0x394] sm:$0xf]
                %459 = vst [vmem:[%s223 + $0x1d4] sm:$0xf] %v458
                %v460 = vld [vmem:[%s222 + $0x398] sm:$0xf]
                %461 = vst [vmem:[%s223 + $0x1d8] sm:$0xf] %v460
                %v462 = vld [vmem:[%s222 + $0x39c] sm:$0xf]
                %463 = vst [vmem:[%s223 + $0x1dc] sm:$0xf] %v462
                %v464 = vld [vmem:[%s222 + $0x3a0] sm:$0xf]
                %465 = vst [vmem:[%s223 + $0x1e0] sm:$0xf] %v464
                %v466 = vld [vmem:[%s222 + $0x3a4] sm:$0xf]
                %467 = vst [vmem:[%s223 + $0x1e4] sm:$0xf] %v466
                %v468 = vld [vmem:[%s222 + $0x3a8] sm:$0xf]
                %469 = vst [vmem:[%s223 + $0x1e8] sm:$0xf] %v468
                %v470 = vld [vmem:[%s222 + $0x3ac] sm:$0xf]
                %471 = vst [vmem:[%s223 + $0x1ec] sm:$0xf] %v470
                %v472 = vld [vmem:[%s222 + $0x3b0] sm:$0xf]
                %473 = vst [vmem:[%s223 + $0x1f0] sm:$0xf] %v472
                %v474 = vld [vmem:[%s222 + $0x3b4] sm:$0xf]
                %475 = vst [vmem:[%s223 + $0x1f4] sm:$0xf] %v474
                %v476 = vld [vmem:[%s222 + $0x3b8] sm:$0xf]
                %477 = vst [vmem:[%s223 + $0x1f8] sm:$0xf] %v476
                %v478 = vld [vmem:[%s222 + $0x3bc] sm:$0xf]
                %479 = vst [vmem:[%s223 + $0x1fc] sm:$0xf] %v478
              $region53: #{dilated_dcnn_v2_forward.1} parent=47 // loop_footer
                %s221 = sadd.s32 1, %s217
              $region54: #{dilated_dcnn_v2_forward.1} parent=47 // loop_footer_branch
                %216 = sbr.rel target = $region50
              $region55: #{dilated_dcnn_v2_forward.1} parent=47 // loop_exit
                _
            $region48: #{dilated_dcnn_v2_forward.1} parent=39 // pred_fallthru
              _
          $region40: #{dilated_dcnn_v2_forward.1} parent=35 // pred_fallthru
            _
          %755 = vnop
        $region36: #{dilated_dcnn_v2_forward.1} parent=31 // pred_fallthru
          _
      $region32: #{dilated_dcnn_v2_forward.1} parent=5 // pred_fallthru
        _
      %p756 = scmp.le.s32.totalorder 1, %s14
      %p757 = scmp.lt.s32.totalorder %s14, 5
      %p758 = pnand %p756, %p757
      %p759 = pneg %p758
      // Predicated region
      $region74: #{dilated_dcnn_v2_forward.1} parent=5 // pred_check
        _
      $region75: #{dilated_dcnn_v2_forward.1} parent=5 // pred_check_branch
        %761 = sbr.rel (%p758) target = $region77
      $region76: #{dilated_dcnn_v2_forward.1} parent=5 // pred_region
        %s762 = ssub.s32 %s14, 1
        %s763 = sand.u32 %s41, 1
        %s764 = sand.u32 %s41, 1
        %s765 = smul.addr %s764, 512
        %s766 = scalar_lea.vmem [#allocation4], %s765
        // Predicated region
        $region78: #{dilated_dcnn_v2_forward.1} parent=76 // pred_check
          %p767 = pneg %p54
        $region79: #{dilated_dcnn_v2_forward.1} parent=76 // pred_check_branch
          %769 = sbr.rel (%p767) target = $region81
        $region80: #{dilated_dcnn_v2_forward.1} parent=76 // pred_region
          _
        $region81: #{dilated_dcnn_v2_forward.1} parent=76 // pred_fallthru
          _
        %s770 = sand.u32 %s41, 1
        %s771 = sand.u32 %s41, 1
        %s772 = smul.addr %s771, 512
        %s773 = scalar_lea.vmem [#allocation4], %s772
        %p774 = pneg %p54
        %p775 = pneg %p51
        %p776 = pneg %p75
        %p777 = pneg %p72
        %p778 = pneg %p96
        %p779 = pneg %p93
        %p780 = pneg %p117
        %p781 = pneg %p114
        %p782 = pneg %p138
        %p783 = pneg %p135
        %p784 = pneg %p166
        %p785 = pneg %p163
        %s786 = sand.u32 %s153, 1
        %s787 = scalar_lea.sflag [#allocation6], %s786
        %s788 = sand.u32 %s153, 1
        %s789 = smul.addr %s788, 1024
        %s790 = scalar_lea.vmem [#allocation5], %s789
        %s791 = smul.u32 16, %s24
        %s792 = smul.u32 16, %s24
        %v794 = vld [vmem:[%s766] sm:$0xf]
        %v795 = vld [vmem:[%s766 + $0x4] sm:$0xf]
        %v796 = vld [vmem:[%s766 + $0x8] sm:$0xf]
        %v797 = vld [vmem:[%s766 + $0xc] sm:$0xf]
        %v798 = vld [vmem:[%s766 + $0x10] sm:$0xf]
        %v799 = vld [vmem:[%s766 + $0x14] sm:$0xf]
        %v800 = vld [vmem:[%s766 + $0x18] sm:$0xf]
        %v801 = vld [vmem:[%s766 + $0x1c] sm:$0xf]
        %v802 = vld [vmem:[%s766 + $0x20] sm:$0xf]
        %v803 = vld [vmem:[%s766 + $0x24] sm:$0xf]
        %v804 = vld [vmem:[%s766 + $0x28] sm:$0xf]
        %v805 = vld [vmem:[%s766 + $0x2c] sm:$0xf]
        %v806 = vld [vmem:[%s766 + $0x30] sm:$0xf]
        %v807 = vld [vmem:[%s766 + $0x34] sm:$0xf]
        %v808 = vld [vmem:[%s766 + $0x38] sm:$0xf]
        %v809 = vld [vmem:[%s766 + $0x3c] sm:$0xf]
        %v810 = vld [vmem:[%s766 + $0x40] sm:$0xf]
        %v811 = vld [vmem:[%s766 + $0x44] sm:$0xf]
        %v812 = vld [vmem:[%s766 + $0x48] sm:$0xf]
        %v813 = vld [vmem:[%s766 + $0x4c] sm:$0xf]
        %v814 = vld [vmem:[%s766 + $0x50] sm:$0xf]
        %v815 = vld [vmem:[%s766 + $0x54] sm:$0xf]
        %v816 = vld [vmem:[%s766 + $0x58] sm:$0xf]
        %v817 = vld [vmem:[%s766 + $0x5c] sm:$0xf]
        %v818 = vld [vmem:[%s766 + $0x60] sm:$0xf]
        %v819 = vld [vmem:[%s766 + $0x64] sm:$0xf]
        %v820 = vld [vmem:[%s766 + $0x68] sm:$0xf]
        %v821 = vld [vmem:[%s766 + $0x6c] sm:$0xf]
        %v822 = vld [vmem:[%s766 + $0x70] sm:$0xf]
        %v823 = vld [vmem:[%s766 + $0x74] sm:$0xf]
        %v824 = vld [vmem:[%s766 + $0x78] sm:$0xf]
        %v825 = vld [vmem:[%s766 + $0x7c] sm:$0xf]
        %v826 = vld [vmem:[%s766 + $0x80] sm:$0xf]
        %v827 = vld [vmem:[%s766 + $0x84] sm:$0xf]
        %v828 = vld [vmem:[%s766 + $0x88] sm:$0xf]
        %v829 = vld [vmem:[%s766 + $0x8c] sm:$0xf]
        %v830 = vld [vmem:[%s766 + $0x90] sm:$0xf]
        %v831 = vld [vmem:[%s766 + $0x94] sm:$0xf]
        %v832 = vld [vmem:[%s766 + $0x98] sm:$0xf]
        %v833 = vld [vmem:[%s766 + $0x9c] sm:$0xf]
        %v834 = vld [vmem:[%s766 + $0xa0] sm:$0xf]
        %v835 = vld [vmem:[%s766 + $0xa4] sm:$0xf]
        %v836 = vld [vmem:[%s766 + $0xa8] sm:$0xf]
        %v837 = vld [vmem:[%s766 + $0xac] sm:$0xf]
        %v838 = vld [vmem:[%s766 + $0xb0] sm:$0xf]
        %v839 = vld [vmem:[%s766 + $0xb4] sm:$0xf]
        %v840 = vld [vmem:[%s766 + $0xb8] sm:$0xf]
        %v841 = vld [vmem:[%s766 + $0xbc] sm:$0xf]
        %v842 = vld [vmem:[%s766 + $0xc0] sm:$0xf]
        %v843 = vld [vmem:[%s766 + $0xc4] sm:$0xf]
        %v844 = vld [vmem:[%s766 + $0xc8] sm:$0xf]
        %v845 = vld [vmem:[%s766 + $0xcc] sm:$0xf]
        %v846 = vld [vmem:[%s766 + $0xd0] sm:$0xf]
        %v847 = vld [vmem:[%s766 + $0xd4] sm:$0xf]
        %v848 = vld [vmem:[%s766 + $0xd8] sm:$0xf]
        %v849 = vld [vmem:[%s766 + $0xdc] sm:$0xf]
        %v850 = vld [vmem:[%s766 + $0xe0] sm:$0xf]
        %v851 = vld [vmem:[%s766 + $0xe4] sm:$0xf]
        %v852 = vld [vmem:[%s766 + $0xe8] sm:$0xf]
        %v853 = vld [vmem:[%s766 + $0xec] sm:$0xf]
        %v854 = vld [vmem:[%s766 + $0xf0] sm:$0xf]
        %v855 = vld [vmem:[%s766 + $0xf4] sm:$0xf]
        %v856 = vld [vmem:[%s766 + $0xf8] sm:$0xf]
        %v857 = vld [vmem:[%s766 + $0xfc] sm:$0xf]
        %v858 = vld [vmem:[%s766 + $0x100] sm:$0xf]
        %v859 = vld [vmem:[%s766 + $0x104] sm:$0xf]
        %v860 = vld [vmem:[%s766 + $0x108] sm:$0xf]
        %v861 = vld [vmem:[%s766 + $0x10c] sm:$0xf]
        %v862 = vld [vmem:[%s766 + $0x110] sm:$0xf]
        %v863 = vld [vmem:[%s766 + $0x114] sm:$0xf]
        %v864 = vld [vmem:[%s766 + $0x118] sm:$0xf]
        %v865 = vld [vmem:[%s766 + $0x11c] sm:$0xf]
        %v866 = vld [vmem:[%s766 + $0x120] sm:$0xf]
        %v867 = vld [vmem:[%s766 + $0x124] sm:$0xf]
        %v868 = vld [vmem:[%s766 + $0x128] sm:$0xf]
        %v869 = vld [vmem:[%s766 + $0x12c] sm:$0xf]
        %v870 = vld [vmem:[%s766 + $0x130] sm:$0xf]
        %v871 = vld [vmem:[%s766 + $0x134] sm:$0xf]
        %v872 = vld [vmem:[%s766 + $0x138] sm:$0xf]
        %v873 = vld [vmem:[%s766 + $0x13c] sm:$0xf]
        %v874 = vld [vmem:[%s766 + $0x140] sm:$0xf]
        %v875 = vld [vmem:[%s766 + $0x144] sm:$0xf]
        %v876 = vld [vmem:[%s766 + $0x148] sm:$0xf]
        %v877 = vld [vmem:[%s766 + $0x14c] sm:$0xf]
        %v878 = vld [vmem:[%s766 + $0x150] sm:$0xf]
        %v879 = vld [vmem:[%s766 + $0x154] sm:$0xf]
        %v880 = vld [vmem:[%s766 + $0x158] sm:$0xf]
        %v881 = vld [vmem:[%s766 + $0x15c] sm:$0xf]
        %v882 = vld [vmem:[%s766 + $0x160] sm:$0xf]
        %v883 = vld [vmem:[%s766 + $0x164] sm:$0xf]
        %v884 = vld [vmem:[%s766 + $0x168] sm:$0xf]
        %v885 = vld [vmem:[%s766 + $0x16c] sm:$0xf]
        %v886 = vld [vmem:[%s766 + $0x170] sm:$0xf]
        %v887 = vld [vmem:[%s766 + $0x174] sm:$0xf]
        %v888 = vld [vmem:[%s766 + $0x178] sm:$0xf]
        %v889 = vld [vmem:[%s766 + $0x17c] sm:$0xf]
        %v890 = vld [vmem:[%s766 + $0x180] sm:$0xf]
        %v891 = vld [vmem:[%s766 + $0x184] sm:$0xf]
        %v892 = vld [vmem:[%s766 + $0x188] sm:$0xf]
        %v893 = vld [vmem:[%s766 + $0x18c] sm:$0xf]
        %v894 = vld [vmem:[%s766 + $0x190] sm:$0xf]
        %v895 = vld [vmem:[%s766 + $0x194] sm:$0xf]
        %v896 = vld [vmem:[%s766 + $0x198] sm:$0xf]
        %v897 = vld [vmem:[%s766 + $0x19c] sm:$0xf]
        %v898 = vld [vmem:[%s766 + $0x1a0] sm:$0xf]
        %v899 = vld [vmem:[%s766 + $0x1a4] sm:$0xf]
        %v900 = vld [vmem:[%s766 + $0x1a8] sm:$0xf]
        %v901 = vld [vmem:[%s766 + $0x1ac] sm:$0xf]
        %v902 = vld [vmem:[%s766 + $0x1b0] sm:$0xf]
        %v903 = vld [vmem:[%s766 + $0x1b4] sm:$0xf]
        %v904 = vld [vmem:[%s766 + $0x1b8] sm:$0xf]
        %v905 = vld [vmem:[%s766 + $0x1bc] sm:$0xf]
        %v906 = vld [vmem:[%s766 + $0x1c0] sm:$0xf]
        %v907 = vld [vmem:[%s766 + $0x1c4] sm:$0xf]
        %v908 = vld [vmem:[%s766 + $0x1c8] sm:$0xf]
        %v909 = vld [vmem:[%s766 + $0x1cc] sm:$0xf]
        %v910 = vld [vmem:[%s766 + $0x1d0] sm:$0xf]
        %v911 = vld [vmem:[%s766 + $0x1d4] sm:$0xf]
        %v912 = vld [vmem:[%s766 + $0x1d8] sm:$0xf]
        %v913 = vld [vmem:[%s766 + $0x1dc] sm:$0xf]
        %v914 = vld [vmem:[%s766 + $0x1e0] sm:$0xf]
        %v915 = vld [vmem:[%s766 + $0x1e4] sm:$0xf]
        %v916 = vld [vmem:[%s766 + $0x1e8] sm:$0xf]
        %v917 = vld [vmem:[%s766 + $0x1ec] sm:$0xf]
        %v918 = vld [vmem:[%s766 + $0x1f0] sm:$0xf]
        %v919 = vld [vmem:[%s766 + $0x1f4] sm:$0xf]
        %v920 = vld [vmem:[%s766 + $0x1f8] sm:$0xf]
        %v921 = vld [vmem:[%s766 + $0x1fc] sm:$0xf]
        %v922 = vld [vmem:[%s1] sm:$0xf]
        %v923 = vld [vmem:[%s1 + $0x4] sm:$0xf]
        %v924 = vld [vmem:[%s1 + $0x8] sm:$0xf]
        %v925 = vld [vmem:[%s1 + $0xc] sm:$0xf]
        %v926 = vld [vmem:[%s1 + $0x10] sm:$0xf]
        %v927 = vld [vmem:[%s1 + $0x14] sm:$0xf]
        %v928 = vld [vmem:[%s1 + $0x18] sm:$0xf]
        %v929 = vld [vmem:[%s1 + $0x1c] sm:$0xf]
        %v930 = vld [vmem:[%s1 + $0x20] sm:$0xf]
        %v1059 = vunpack.c.l.b16 %v794
        %v1060 = vunpack.c.l.b16 %v795
        %v1061 = vunpack.c.l.b16 %v796
        %v1062 = vunpack.c.l.b16 %v797
        %v1063 = vunpack.c.l.b16 %v798
        %v1064 = vunpack.c.l.b16 %v799
        %v1065 = vunpack.c.l.b16 %v800
        %v1066 = vunpack.c.l.b16 %v801
        %v1067 = vunpack.c.l.b16 %v802
        %v1068 = vunpack.c.l.b16 %v803
        %v1069 = vunpack.c.l.b16 %v804
        %v1070 = vunpack.c.l.b16 %v805
        %v1071 = vunpack.c.l.b16 %v806
        %v1072 = vunpack.c.l.b16 %v807
        %v1073 = vunpack.c.l.b16 %v808
        %v1074 = vunpack.c.l.b16 %v809
        %v1075 = vunpack.c.l.b16 %v810
        %v1076 = vunpack.c.l.b16 %v811
        %v1077 = vunpack.c.l.b16 %v812
        %v1078 = vunpack.c.l.b16 %v813
        %v1079 = vunpack.c.l.b16 %v814
        %v1080 = vunpack.c.l.b16 %v815
        %v1081 = vunpack.c.l.b16 %v816
        %v1082 = vunpack.c.l.b16 %v817
        %v1083 = vunpack.c.l.b16 %v818
        %v1084 = vunpack.c.l.b16 %v819
        %v1085 = vunpack.c.l.b16 %v820
        %v1086 = vunpack.c.l.b16 %v821
        %v1087 = vunpack.c.l.b16 %v822
        %v1088 = vunpack.c.l.b16 %v823
        %v1089 = vunpack.c.l.b16 %v824
        %v1090 = vunpack.c.l.b16 %v825
        %v1091 = vunpack.c.l.b16 %v826
        %v1092 = vunpack.c.l.b16 %v827
        %v1093 = vunpack.c.l.b16 %v828
        %v1094 = vunpack.c.l.b16 %v829
        %v1095 = vunpack.c.l.b16 %v830
        %v1096 = vunpack.c.l.b16 %v831
        %v1097 = vunpack.c.l.b16 %v832
        %v1098 = vunpack.c.l.b16 %v833
        %v1099 = vunpack.c.l.b16 %v834
        %v1100 = vunpack.c.l.b16 %v835
        %v1101 = vunpack.c.l.b16 %v836
        %v1102 = vunpack.c.l.b16 %v837
        %v1103 = vunpack.c.l.b16 %v838
        %v1104 = vunpack.c.l.b16 %v839
        %v1105 = vunpack.c.l.b16 %v840
        %v1106 = vunpack.c.l.b16 %v841
        %v1107 = vunpack.c.l.b16 %v842
        %v1108 = vunpack.c.l.b16 %v843
        %v1109 = vunpack.c.l.b16 %v844
        %v1110 = vunpack.c.l.b16 %v845
        %v1111 = vunpack.c.l.b16 %v846
        %v1112 = vunpack.c.l.b16 %v847
        %v1113 = vunpack.c.l.b16 %v848
        %v1114 = vunpack.c.l.b16 %v849
        %v1115 = vunpack.c.l.b16 %v850
        %v1116 = vunpack.c.l.b16 %v851
        %v1117 = vunpack.c.l.b16 %v852
        %v1118 = vunpack.c.l.b16 %v853
        %v1119 = vunpack.c.l.b16 %v854
        %v1120 = vunpack.c.l.b16 %v855
        %v1121 = vunpack.c.l.b16 %v856
        %v1122 = vunpack.c.l.b16 %v857
        %v1123 = vunpack.c.l.b16 %v858
        %v1124 = vunpack.c.l.b16 %v859
        %v1125 = vunpack.c.l.b16 %v860
        %v1126 = vunpack.c.l.b16 %v861
        %v1127 = vunpack.c.l.b16 %v862
        %v1128 = vunpack.c.l.b16 %v863
        %v1129 = vunpack.c.l.b16 %v864
        %v1130 = vunpack.c.l.b16 %v865
        %v1131 = vunpack.c.l.b16 %v866
        %v1132 = vunpack.c.l.b16 %v867
        %v1133 = vunpack.c.l.b16 %v868
        %v1134 = vunpack.c.l.b16 %v869
        %v1135 = vunpack.c.l.b16 %v870
        %v1136 = vunpack.c.l.b16 %v871
        %v1137 = vunpack.c.l.b16 %v872
        %v1138 = vunpack.c.l.b16 %v873
        %v1139 = vunpack.c.l.b16 %v874
        %v1140 = vunpack.c.l.b16 %v875
        %v1141 = vunpack.c.l.b16 %v876
        %v1142 = vunpack.c.l.b16 %v877
        %v1143 = vunpack.c.l.b16 %v878
        %v1144 = vunpack.c.l.b16 %v879
        %v1145 = vunpack.c.l.b16 %v880
        %v1146 = vunpack.c.l.b16 %v881
        %v1147 = vunpack.c.l.b16 %v882
        %v1148 = vunpack.c.l.b16 %v883
        %v1149 = vunpack.c.l.b16 %v884
        %v1150 = vunpack.c.l.b16 %v885
        %v1151 = vunpack.c.l.b16 %v886
        %v1152 = vunpack.c.l.b16 %v887
        %v1153 = vunpack.c.l.b16 %v888
        %v1154 = vunpack.c.l.b16 %v889
        %v1155 = vunpack.c.l.b16 %v890
        %v1156 = vunpack.c.l.b16 %v891
        %v1157 = vunpack.c.l.b16 %v892
        %v1158 = vunpack.c.l.b16 %v893
        %v1159 = vunpack.c.l.b16 %v894
        %v1160 = vunpack.c.l.b16 %v895
        %v1161 = vunpack.c.l.b16 %v896
        %v1162 = vunpack.c.l.b16 %v897
        %v1163 = vunpack.c.l.b16 %v898
        %v1164 = vunpack.c.l.b16 %v899
        %v1165 = vunpack.c.l.b16 %v900
        %v1166 = vunpack.c.l.b16 %v901
        %v1167 = vunpack.c.l.b16 %v902
        %v1168 = vunpack.c.l.b16 %v903
        %v1169 = vunpack.c.l.b16 %v904
        %v1170 = vunpack.c.l.b16 %v905
        %v1171 = vunpack.c.l.b16 %v906
        %v1172 = vunpack.c.l.b16 %v907
        %v1173 = vunpack.c.l.b16 %v908
        %v1174 = vunpack.c.l.b16 %v909
        %v1175 = vunpack.c.l.b16 %v910
        %v1176 = vunpack.c.l.b16 %v911
        %v1177 = vunpack.c.l.b16 %v912
        %v1178 = vunpack.c.l.b16 %v913
        %v1179 = vunpack.c.l.b16 %v914
        %v1180 = vunpack.c.l.b16 %v915
        %v1181 = vunpack.c.l.b16 %v916
        %v1182 = vunpack.c.l.b16 %v917
        %v1183 = vunpack.c.l.b16 %v918
        %v1184 = vunpack.c.l.b16 %v919
        %v1185 = vunpack.c.l.b16 %v920
        %v1186 = vunpack.c.l.b16 %v921
        %v1187 = vpack.c.b16 %v1060, %v1059
        %v1188 = vpack.c.b16 %v1062, %v1061
        %v1189 = vpack.c.b16 %v1064, %v1063
        %v1190 = vpack.c.b16 %v1066, %v1065
        %v1191 = vpack.c.b16 %v1068, %v1067
        %v1192 = vpack.c.b16 %v1070, %v1069
        %v1193 = vpack.c.b16 %v1072, %v1071
        %v1194 = vpack.c.b16 %v1074, %v1073
        %v1195 = vpack.c.b16 %v1076, %v1075
        %v1196 = vpack.c.b16 %v1078, %v1077
        %v1197 = vpack.c.b16 %v1080, %v1079
        %v1198 = vpack.c.b16 %v1082, %v1081
        %v1199 = vpack.c.b16 %v1084, %v1083
        %v1200 = vpack.c.b16 %v1086, %v1085
        %v1201 = vpack.c.b16 %v1088, %v1087
        %v1202 = vpack.c.b16 %v1090, %v1089
        %v1203 = vpack.c.b16 %v1092, %v1091
        %v1204 = vpack.c.b16 %v1094, %v1093
        %v1205 = vpack.c.b16 %v1096, %v1095
        %v1206 = vpack.c.b16 %v1098, %v1097
        %v1207 = vpack.c.b16 %v1100, %v1099
        %v1208 = vpack.c.b16 %v1102, %v1101
        %v1209 = vpack.c.b16 %v1104, %v1103
        %v1210 = vpack.c.b16 %v1106, %v1105
        %v1211 = vpack.c.b16 %v1108, %v1107
        %v1212 = vpack.c.b16 %v1110, %v1109
        %v1213 = vpack.c.b16 %v1112, %v1111
        %v1214 = vpack.c.b16 %v1114, %v1113
        %v1215 = vpack.c.b16 %v1116, %v1115
        %v1216 = vpack.c.b16 %v1118, %v1117
        %v1217 = vpack.c.b16 %v1120, %v1119
        %v1218 = vpack.c.b16 %v1122, %v1121
        %v1219 = vpack.c.b16 %v1124, %v1123
        %v1220 = vpack.c.b16 %v1126, %v1125
        %v1221 = vpack.c.b16 %v1128, %v1127
        %v1222 = vpack.c.b16 %v1130, %v1129
        %v1223 = vpack.c.b16 %v1132, %v1131
        %v1224 = vpack.c.b16 %v1134, %v1133
        %v1225 = vpack.c.b16 %v1136, %v1135
        %v1226 = vpack.c.b16 %v1138, %v1137
        %v1227 = vpack.c.b16 %v1140, %v1139
        %v1228 = vpack.c.b16 %v1142, %v1141
        %v1229 = vpack.c.b16 %v1144, %v1143
        %v1230 = vpack.c.b16 %v1146, %v1145
        %v1231 = vpack.c.b16 %v1148, %v1147
        %v1232 = vpack.c.b16 %v1150, %v1149
        %v1233 = vpack.c.b16 %v1152, %v1151
        %v1234 = vpack.c.b16 %v1154, %v1153
        %v1235 = vpack.c.b16 %v1156, %v1155
        %v1236 = vpack.c.b16 %v1158, %v1157
        %v1237 = vpack.c.b16 %v1160, %v1159
        %v1238 = vpack.c.b16 %v1162, %v1161
        %v1239 = vpack.c.b16 %v1164, %v1163
        %v1240 = vpack.c.b16 %v1166, %v1165
        %v1241 = vpack.c.b16 %v1168, %v1167
        %v1242 = vpack.c.b16 %v1170, %v1169
        %v1243 = vpack.c.b16 %v1172, %v1171
        %v1244 = vpack.c.b16 %v1174, %v1173
        %v1245 = vpack.c.b16 %v1176, %v1175
        %v1246 = vpack.c.b16 %v1178, %v1177
        %v1247 = vpack.c.b16 %v1180, %v1179
        %v1248 = vpack.c.b16 %v1182, %v1181
        %v1249 = vpack.c.b16 %v1184, %v1183
        %v1250 = vpack.c.b16 %v1186, %v1185
        %v1260 = vunpack.c.l.b16 %v922
        %v1261 = vunpack.c.l.b16 %v923
        %v1262 = vunpack.c.l.b16 %v924
        %v1263 = vunpack.c.l.b16 %v925
        %v1264 = vunpack.c.l.b16 %v926
        %v1265 = vunpack.c.l.b16 %v927
        %v1266 = vunpack.c.l.b16 %v928
        %v1267 = vunpack.c.l.b16 %v929
        %v1268 = vunpack.c.l.b16 %v930
        %v1269 = vpack.c.b16 %v1261, %v1260
        %v1270 = vpack.c.b16 %v1263, %v1262
        %v1271 = vpack.c.b16 %v1265, %v1264
        %v1272 = vpack.c.b16 %v1267, %v1266
        %v1273 = vpack.c.b16 %v1268, %v1268
        %vm1278 = vcmask 588800
        %v1280 = vsel %vm1278, %v1187, 0
        %v1283 = vsel %vm1278, %v1188, 0
        %v1286 = vsel %vm1278, %v1189, 0
        %v1289 = vsel %vm1278, %v1190, 0
        %v1292 = vsel %vm1278, %v1191, 0
        %v1295 = vsel %vm1278, %v1192, 0
        %v1298 = vsel %vm1278, %v1193, 0
        %v1301 = vsel %vm1278, %v1194, 0
        %v1304 = vsel %vm1278, %v1195, 0
        %v1307 = vsel %vm1278, %v1196, 0
        %v1310 = vsel %vm1278, %v1197, 0
        %v1313 = vsel %vm1278, %v1198, 0
        %v1316 = vsel %vm1278, %v1199, 0
        %v1319 = vsel %vm1278, %v1200, 0
        %v1322 = vsel %vm1278, %v1201, 0
        %v1325 = vsel %vm1278, %v1202, 0
        %v1328 = vsel %vm1278, %v1203, 0
        %v1331 = vsel %vm1278, %v1204, 0
        %v1334 = vsel %vm1278, %v1205, 0
        %v1337 = vsel %vm1278, %v1206, 0
        %v1340 = vsel %vm1278, %v1207, 0
        %v1343 = vsel %vm1278, %v1208, 0
        %v1346 = vsel %vm1278, %v1209, 0
        %v1349 = vsel %vm1278, %v1210, 0
        %v1352 = vsel %vm1278, %v1211, 0
        %v1355 = vsel %vm1278, %v1212, 0
        %v1358 = vsel %vm1278, %v1213, 0
        %v1361 = vsel %vm1278, %v1214, 0
        %v1364 = vsel %vm1278, %v1215, 0
        %v1367 = vsel %vm1278, %v1216, 0
        %v1370 = vsel %vm1278, %v1217, 0
        %v1373 = vsel %vm1278, %v1218, 0
        %v1376 = vsel %vm1278, %v1219, 0
        %v1379 = vsel %vm1278, %v1220, 0
        %v1382 = vsel %vm1278, %v1221, 0
        %v1385 = vsel %vm1278, %v1222, 0
        %v1388 = vsel %vm1278, %v1223, 0
        %v1391 = vsel %vm1278, %v1224, 0
        %v1394 = vsel %vm1278, %v1225, 0
        %v1397 = vsel %vm1278, %v1226, 0
        %v1400 = vsel %vm1278, %v1227, 0
        %v1403 = vsel %vm1278, %v1228, 0
        %v1406 = vsel %vm1278, %v1229, 0
        %v1409 = vsel %vm1278, %v1230, 0
        %v1412 = vsel %vm1278, %v1231, 0
        %v1415 = vsel %vm1278, %v1232, 0
        %v1418 = vsel %vm1278, %v1233, 0
        %v1421 = vsel %vm1278, %v1234, 0
        %v1424 = vsel %vm1278, %v1235, 0
        %v1427 = vsel %vm1278, %v1236, 0
        %v1430 = vsel %vm1278, %v1237, 0
        %v1433 = vsel %vm1278, %v1238, 0
        %v1436 = vsel %vm1278, %v1239, 0
        %v1439 = vsel %vm1278, %v1240, 0
        %v1442 = vsel %vm1278, %v1241, 0
        %v1445 = vsel %vm1278, %v1242, 0
        %v1448 = vsel %vm1278, %v1243, 0
        %v1451 = vsel %vm1278, %v1244, 0
        %v1454 = vsel %vm1278, %v1245, 0
        %v1457 = vsel %vm1278, %v1246, 0
        %v1460 = vsel %vm1278, %v1247, 0
        %v1463 = vsel %vm1278, %v1248, 0
        %v1466 = vsel %vm1278, %v1249, 0
        %v1469 = vsel %vm1278, %v1250, 0
        %vm1471 = vcmask 1043456
        %v1473 = vsel %vm1471, %v1273, 0
        %1475 = vmatprep.subr.bf16.mxu0 0
        %1476 = vmatpush1.bf16.msra.mxu0 %v1269
        %1477 = vmatprep.subr.bf16.mxu0 0
        %1478 = vmatpush1.bf16.msra.mxu0 %v1270
        %1479 = vmatprep.subr.bf16.mxu0 0
        %1480 = vmatpush1.bf16.msra.mxu0 %v1271
        %1481 = vmatprep.subr.bf16.mxu0 0
        %1482 = vmatpush1.bf16.msra.mxu0 %v1272
        %1483 = vmatprep.subr.bf16.mxu0 0
        %1484 = vmatpush1.bf16.msra.mxu0 %v1473
        %1485 = vmatprep.subr.bf16.mxu0 0
        %1486 = vmatpush1.bf16.msra.mxu0 0
        %1487 = vmatprep.subr.bf16.mxu0 0
        %1488 = vmatpush1.bf16.msra.mxu0 0
        %1489 = vmatprep.subr.bf16.mxu0 0
        %1490 = vmatpush1.bf16.msra.mxu0 0
        %1491 = vmatprep.subr.bf16.mxu0 0
        %1492 = vmatpush1.bf16.msra.mxu0 0
        %1493 = vmatprep.subr.bf16.mxu0 0
        %1494 = vmatpush1.bf16.msra.mxu0 0
        %1495 = vmatprep.subr.bf16.mxu0 0
        %1496 = vmatpush1.bf16.msra.mxu0 0
        %1497 = vmatprep.subr.bf16.mxu0 0
        %1498 = vmatpush1.bf16.msra.mxu0 0
        %1499 = vmatprep.subr.bf16.mxu0 0
        %1500 = vmatpush1.bf16.msra.mxu0 0
        %1501 = vmatprep.subr.bf16.mxu0 0
        %1502 = vmatpush1.bf16.msra.mxu0 0
        %1503 = vmatprep.subr.bf16.mxu0 0
        %1504 = vmatpush1.bf16.msra.mxu0 0
        %1505 = vmatprep.subr.bf16.mxu0 0
        %1506 = vmatpush1.bf16.msra.mxu0 0
        %1507 = vmatprep.mubr.bf16.mxu0 0
        %1508 = vmatmul.mubr.bf16.gmra.mrb[0].mxu0 %v1280
        %v1509 = vpop.f32.mrb[0].mxu0
        %v1510 = vadd.f32 0.0, %v1509
        %v1511 = vpop.f32.mrb[0].mxu0
        %v1512 = vpop.f32.mrb[0].mxu0
        %v1513 = vadd.f32 0.0, %v1512
        %v1514 = vpop.f32.mrb[0].mxu0
        %1515 = vmatprep.mubr.bf16.mxu0 0
        %1516 = vmatmul.mubr.bf16.gmra.mrb[0].mxu0 %v1283
        %v1517 = vpop.f32.mrb[0].mxu0
        %v1518 = vadd.f32 0.0, %v1517
        %v1519 = vpop.f32.mrb[0].mxu0
        %v1520 = vpop.f32.mrb[0].mxu0
        %v1521 = vadd.f32 0.0, %v1520
        %v1522 = vpop.f32.mrb[0].mxu0
        %1523 = vmatprep.mubr.bf16.mxu0 0
        %1524 = vmatmul.mubr.bf16.gmra.mrb[0].mxu0 %v1286
        %v1525 = vpop.f32.mrb[0].mxu0
        %v1526 = vadd.f32 0.0, %v1525
        %v1527 = vpop.f32.mrb[0].mxu0
        %v1528 = vpop.f32.mrb[0].mxu0
        %v1529 = vadd.f32 0.0, %v1528
        %v1530 = vpop.f32.mrb[0].mxu0
        %1531 = vmatprep.mubr.bf16.mxu0 0
        %1532 = vmatmul.mubr.bf16.gmra.mrb[0].mxu0 %v1289
        %v1533 = vpop.f32.mrb[0].mxu0
        %v1534 = vadd.f32 0.0, %v1533
        %v1535 = vpop.f32.mrb[0].mxu0
        %v1536 = vpop.f32.mrb[0].mxu0
        %v1537 = vadd.f32 0.0, %v1536
        %v1538 = vpop.f32.mrb[0].mxu0
        %1539 = vmatprep.mubr.bf16.mxu0 0
        %1540 = vmatmul.mubr.bf16.gmra.mrb[0].mxu0 %v1292
        %v1541 = vpop.f32.mrb[0].mxu0
        %v1542 = vadd.f32 0.0, %v1541
        %v1543 = vpop.f32.mrb[0].mxu0
        %v1544 = vpop.f32.mrb[0].mxu0
        %v1545 = vadd.f32 0.0, %v1544
        %v1546 = vpop.f32.mrb[0].mxu0
        %1547 = vmatprep.mubr.bf16.mxu0 0
        %1548 = vmatmul.mubr.bf16.gmra.mrb[0].mxu0 %v1295
        %v1549 = vpop.f32.mrb[0].mxu0
        %v1550 = vadd.f32 0.0, %v1549
        %v1551 = vpop.f32.mrb[0].mxu0
        %v1552 = vpop.f32.mrb[0].mxu0
        %v1553 = vadd.f32 0.0, %v1552
        %v1554 = vpop.f32.mrb[0].mxu0
        %1555 = vmatprep.mubr.bf16.mxu0 0
        %1556 = vmatmul.mubr.bf16.gmra.mrb[0].mxu0 %v1298
        %v1557 = vpop.f32.mrb[0].mxu0
        %v1558 = vadd.f32 0.0, %v1557
        %v1559 = vpop.f32.mrb[0].mxu0
        %v1560 = vpop.f32.mrb[0].mxu0
        %v1561 = vadd.f32 0.0, %v1560
        %v1562 = vpop.f32.mrb[0].mxu0
        %1563 = vmatprep.mubr.bf16.mxu0 0
        %1564 = vmatmul.mubr.bf16.gmra.mrb[0].mxu0 %v1301
        %v1565 = vpop.f32.mrb[0].mxu0
        %v1566 = vadd.f32 0.0, %v1565
        %v1567 = vpop.f32.mrb[0].mxu0
        %v1568 = vpop.f32.mrb[0].mxu0
        %v1569 = vadd.f32 0.0, %v1568
        %v1570 = vpop.f32.mrb[0].mxu0
        %1571 = vmatprep.mubr.bf16.mxu0 0
        %1572 = vmatmul.mubr.bf16.gmra.mrb[0].mxu0 %v1304
        %v1573 = vpop.f32.mrb[0].mxu0
        %v1574 = vadd.f32 0.0, %v1573
        %v1575 = vpop.f32.mrb[0].mxu0
        %v1576 = vpop.f32.mrb[0].mxu0
        %v1577 = vadd.f32 0.0, %v1576
        %v1578 = vpop.f32.mrb[0].mxu0
        %1579 = vmatprep.mubr.bf16.mxu0 0
        %1580 = vmatmul.mubr.bf16.gmra.mrb[0].mxu0 %v1307
        %v1581 = vpop.f32.mrb[0].mxu0
        %v1582 = vadd.f32 0.0, %v1581
        %v1583 = vpop.f32.mrb[0].mxu0
        %v1584 = vpop.f32.mrb[0].mxu0
        %v1585 = vadd.f32 0.0, %v1584
        %v1586 = vpop.f32.mrb[0].mxu0
        %1587 = vmatprep.mubr.bf16.mxu0 0
        %1588 = vmatmul.mubr.bf16.gmra.mrb[0].mxu0 %v1310
        %v1589 = vpop.f32.mrb[0].mxu0
        %v1590 = vadd.f32 0.0, %v1589
        %v1591 = vpop.f32.mrb[0].mxu0
        %v1592 = vpop.f32.mrb[0].mxu0
        %v1593 = vadd.f32 0.0, %v1592
        %v1594 = vpop.f32.mrb[0].mxu0
        %1595 = vmatprep.mubr.bf16.mxu0 0
        %1596 = vmatmul.mubr.bf16.gmra.mrb[0].mxu0 %v1313
        %v1597 = vpop.f32.mrb[0].mxu0
        %v1598 = vadd.f32 0.0, %v1597
        %v1599 = vpop.f32.mrb[0].mxu0
        %v1600 = vpop.f32.mrb[0].mxu0
        %v1601 = vadd.f32 0.0, %v1600
        %v1602 = vpop.f32.mrb[0].mxu0
        %1603 = vmatprep.mubr.bf16.mxu0 0
        %1604 = vmatmul.mubr.bf16.gmra.mrb[0].mxu0 %v1316
        %v1605 = vpop.f32.mrb[0].mxu0
        %v1606 = vadd.f32 0.0, %v1605
        %v1607 = vpop.f32.mrb[0].mxu0
        %v1608 = vpop.f32.mrb[0].mxu0
        %v1609 = vadd.f32 0.0, %v1608
        %v1610 = vpop.f32.mrb[0].mxu0
        %1611 = vmatprep.mubr.bf16.mxu0 0
        %1612 = vmatmul.mubr.bf16.gmra.mrb[0].mxu0 %v1319
        %v1613 = vpop.f32.mrb[0].mxu0
        %v1614 = vadd.f32 0.0, %v1613
        %v1615 = vpop.f32.mrb[0].mxu0
        %v1616 = vpop.f32.mrb[0].mxu0
        %v1617 = vadd.f32 0.0, %v1616
        %v1618 = vpop.f32.mrb[0].mxu0
        %1619 = vmatprep.mubr.bf16.mxu0 0
        %1620 = vmatmul.mubr.bf16.gmra.mrb[0].mxu0 %v1322
        %v1621 = vpop.f32.mrb[0].mxu0
        %v1622 = vadd.f32 0.0, %v1621
        %v1623 = vpop.f32.mrb[0].mxu0
        %v1624 = vpop.f32.mrb[0].mxu0
        %v1625 = vadd.f32 0.0, %v1624
        %v1626 = vpop.f32.mrb[0].mxu0
        %1627 = vmatprep.mubr.bf16.mxu0 0
        %1628 = vmatmul.mubr.bf16.gmra.mrb[0].mxu0 %v1325
        %v1629 = vpop.f32.mrb[0].mxu0
        %v1630 = vadd.f32 0.0, %v1629
        %v1631 = vpop.f32.mrb[0].mxu0
        %v1632 = vpop.f32.mrb[0].mxu0
        %v1633 = vadd.f32 0.0, %v1632
        %v1634 = vpop.f32.mrb[0].mxu0
        %1635 = vmatprep.mubr.bf16.mxu0 0
        %1636 = vmatmul.mubr.bf16.gmra.mrb[0].mxu0 %v1328
        %v1637 = vpop.f32.mrb[0].mxu0
        %v1638 = vadd.f32 0.0, %v1637
        %v1639 = vpop.f32.mrb[0].mxu0
        %v1640 = vpop.f32.mrb[0].mxu0
        %v1641 = vadd.f32 0.0, %v1640
        %v1642 = vpop.f32.mrb[0].mxu0
        %1643 = vmatprep.mubr.bf16.mxu0 0
        %1644 = vmatmul.mubr.bf16.gmra.mrb[0].mxu0 %v1331
        %v1645 = vpop.f32.mrb[0].mxu0
        %v1646 = vadd.f32 0.0, %v1645
        %v1647 = vpop.f32.mrb[0].mxu0
        %v1648 = vpop.f32.mrb[0].mxu0
        %v1649 = vadd.f32 0.0, %v1648
        %v1650 = vpop.f32.mrb[0].mxu0
        %1651 = vmatprep.mubr.bf16.mxu0 0
        %1652 = vmatmul.mubr.bf16.gmra.mrb[0].mxu0 %v1334
        %v1653 = vpop.f32.mrb[0].mxu0
        %v1654 = vadd.f32 0.0, %v1653
        %v1655 = vpop.f32.mrb[0].mxu0
        %v1656 = vpop.f32.mrb[0].mxu0
        %v1657 = vadd.f32 0.0, %v1656
        %v1658 = vpop.f32.mrb[0].mxu0
        %1659 = vmatprep.mubr.bf16.mxu0 0
        %1660 = vmatmul.mubr.bf16.gmra.mrb[0].mxu0 %v1337
        %v1661 = vpop.f32.mrb[0].mxu0
        %v1662 = vadd.f32 0.0, %v1661
        %v1663 = vpop.f32.mrb[0].mxu0
        %v1664 = vpop.f32.mrb[0].mxu0
        %v1665 = vadd.f32 0.0, %v1664
        %v1666 = vpop.f32.mrb[0].mxu0
        %1667 = vmatprep.mubr.bf16.mxu0 0
        %1668 = vmatmul.mubr.bf16.gmra.mrb[0].mxu0 %v1340
        %v1669 = vpop.f32.mrb[0].mxu0
        %v1670 = vadd.f32 0.0, %v1669
        %v1671 = vpop.f32.mrb[0].mxu0
        %v1672 = vpop.f32.mrb[0].mxu0
        %v1673 = vadd.f32 0.0, %v1672
        %v1674 = vpop.f32.mrb[0].mxu0
        %1675 = vmatprep.mubr.bf16.mxu0 0
        %1676 = vmatmul.mubr.bf16.gmra.mrb[0].mxu0 %v1343
        %v1677 = vpop.f32.mrb[0].mxu0
        %v1678 = vadd.f32 0.0, %v1677
        %v1679 = vpop.f32.mrb[0].mxu0
        %v1680 = vpop.f32.mrb[0].mxu0
        %v1681 = vadd.f32 0.0, %v1680
        %v1682 = vpop.f32.mrb[0].mxu0
        %1683 = vmatprep.mubr.bf16.mxu0 0
        %1684 = vmatmul.mubr.bf16.gmra.mrb[0].mxu0 %v1346
        %v1685 = vpop.f32.mrb[0].mxu0
        %v1686 = vadd.f32 0.0, %v1685
        %v1687 = vpop.f32.mrb[0].mxu0
        %v1688 = vpop.f32.mrb[0].mxu0
        %v1689 = vadd.f32 0.0, %v1688
        %v1690 = vpop.f32.mrb[0].mxu0
        %1691 = vmatprep.mubr.bf16.mxu0 0
        %1692 = vmatmul.mubr.bf16.gmra.mrb[0].mxu0 %v1349
        %v1693 = vpop.f32.mrb[0].mxu0
        %v1694 = vadd.f32 0.0, %v1693
        %v1695 = vpop.f32.mrb[0].mxu0
        %v1696 = vpop.f32.mrb[0].mxu0
        %v1697 = vadd.f32 0.0, %v1696
        %v1698 = vpop.f32.mrb[0].mxu0
        %1699 = vmatprep.mubr.bf16.mxu0 0
        %1700 = vmatmul.mubr.bf16.gmra.mrb[0].mxu0 %v1352
        %v1701 = vpop.f32.mrb[0].mxu0
        %v1702 = vadd.f32 0.0, %v1701
        %v1703 = vpop.f32.mrb[0].mxu0
        %v1704 = vpop.f32.mrb[0].mxu0
        %v1705 = vadd.f32 0.0, %v1704
        %v1706 = vpop.f32.mrb[0].mxu0
        %1707 = vmatprep.mubr.bf16.mxu0 0
        %1708 = vmatmul.mubr.bf16.gmra.mrb[0].mxu0 %v1355
        %v1709 = vpop.f32.mrb[0].mxu0
        %v1710 = vadd.f32 0.0, %v1709
        %v1711 = vpop.f32.mrb[0].mxu0
        %v1712 = vpop.f32.mrb[0].mxu0
        %v1713 = vadd.f32 0.0, %v1712
        %v1714 = vpop.f32.mrb[0].mxu0
        %1715 = vmatprep.mubr.bf16.mxu0 0
        %1716 = vmatmul.mubr.bf16.gmra.mrb[0].mxu0 %v1358
        %v1717 = vpop.f32.mrb[0].mxu0
        %v1718 = vadd.f32 0.0, %v1717
        %v1719 = vpop.f32.mrb[0].mxu0
        %v1720 = vpop.f32.mrb[0].mxu0
        %v1721 = vadd.f32 0.0, %v1720
        %v1722 = vpop.f32.mrb[0].mxu0
        %1723 = vmatprep.mubr.bf16.mxu0 0
        %1724 = vmatmul.mubr.bf16.gmra.mrb[0].mxu0 %v1361
        %v1725 = vpop.f32.mrb[0].mxu0
        %v1726 = vadd.f32 0.0, %v1725
        %v1727 = vpop.f32.mrb[0].mxu0
        %v1728 = vpop.f32.mrb[0].mxu0
        %v1729 = vadd.f32 0.0, %v1728
        %v1730 = vpop.f32.mrb[0].mxu0
        %1731 = vmatprep.mubr.bf16.mxu0 0
        %1732 = vmatmul.mubr.bf16.gmra.mrb[0].mxu0 %v1364
        %v1733 = vpop.f32.mrb[0].mxu0
        %v1734 = vadd.f32 0.0, %v1733
        %v1735 = vpop.f32.mrb[0].mxu0
        %v1736 = vpop.f32.mrb[0].mxu0
        %v1737 = vadd.f32 0.0, %v1736
        %v1738 = vpop.f32.mrb[0].mxu0
        %1739 = vmatprep.mubr.bf16.mxu0 0
        %1740 = vmatmul.mubr.bf16.gmra.mrb[0].mxu0 %v1367
        %v1741 = vpop.f32.mrb[0].mxu0
        %v1742 = vadd.f32 0.0, %v1741
        %v1743 = vpop.f32.mrb[0].mxu0
        %v1744 = vpop.f32.mrb[0].mxu0
        %v1745 = vadd.f32 0.0, %v1744
        %v1746 = vpop.f32.mrb[0].mxu0
        %1747 = vmatprep.mubr.bf16.mxu0 0
        %1748 = vmatmul.mubr.bf16.gmra.mrb[0].mxu0 %v1370
        %v1749 = vpop.f32.mrb[0].mxu0
        %v1750 = vadd.f32 0.0, %v1749
        %v1751 = vpop.f32.mrb[0].mxu0
        %v1752 = vpop.f32.mrb[0].mxu0
        %v1753 = vadd.f32 0.0, %v1752
        %v1754 = vpop.f32.mrb[0].mxu0
        %1755 = vmatprep.mubr.bf16.mxu0 0
        %1756 = vmatmul.mubr.bf16.gmra.mrb[0].mxu0 %v1373
        %v1757 = vpop.f32.mrb[0].mxu0
        %v1758 = vadd.f32 0.0, %v1757
        %v1759 = vpop.f32.mrb[0].mxu0
        %v1760 = vpop.f32.mrb[0].mxu0
        %v1761 = vadd.f32 0.0, %v1760
        %v1762 = vpop.f32.mrb[0].mxu0
        %1763 = vmatprep.mubr.bf16.mxu0 0
        %1764 = vmatmul.mubr.bf16.gmra.mrb[0].mxu0 %v1376
        %v1765 = vpop.f32.mrb[0].mxu0
        %v1766 = vadd.f32 0.0, %v1765
        %v1767 = vpop.f32.mrb[0].mxu0
        %v1768 = vpop.f32.mrb[0].mxu0
        %v1769 = vadd.f32 0.0, %v1768
        %v1770 = vpop.f32.mrb[0].mxu0
        %1771 = vmatprep.mubr.bf16.mxu0 0
        %1772 = vmatmul.mubr.bf16.gmra.mrb[0].mxu0 %v1379
        %v1773 = vpop.f32.mrb[0].mxu0
        %v1774 = vadd.f32 0.0, %v1773
        %v1775 = vpop.f32.mrb[0].mxu0
        %v1776 = vpop.f32.mrb[0].mxu0
        %v1777 = vadd.f32 0.0, %v1776
        %v1778 = vpop.f32.mrb[0].mxu0
        %1779 = vmatprep.mubr.bf16.mxu0 0
        %1780 = vmatmul.mubr.bf16.gmra.mrb[0].mxu0 %v1382
        %v1781 = vpop.f32.mrb[0].mxu0
        %v1782 = vadd.f32 0.0, %v1781
        %v1783 = vpop.f32.mrb[0].mxu0
        %v1784 = vpop.f32.mrb[0].mxu0
        %v1785 = vadd.f32 0.0, %v1784
        %v1786 = vpop.f32.mrb[0].mxu0
        %1787 = vmatprep.mubr.bf16.mxu0 0
        %1788 = vmatmul.mubr.bf16.gmra.mrb[0].mxu0 %v1385
        %v1789 = vpop.f32.mrb[0].mxu0
        %v1790 = vadd.f32 0.0, %v1789
        %v1791 = vpop.f32.mrb[0].mxu0
        %v1792 = vpop.f32.mrb[0].mxu0
        %v1793 = vadd.f32 0.0, %v1792
        %v1794 = vpop.f32.mrb[0].mxu0
        %1795 = vmatprep.mubr.bf16.mxu0 0
        %1796 = vmatmul.mubr.bf16.gmra.mrb[0].mxu0 %v1388
        %v1797 = vpop.f32.mrb[0].mxu0
        %v1798 = vadd.f32 0.0, %v1797
        %v1799 = vpop.f32.mrb[0].mxu0
        %v1800 = vpop.f32.mrb[0].mxu0
        %v1801 = vadd.f32 0.0, %v1800
        %v1802 = vpop.f32.mrb[0].mxu0
        %1803 = vmatprep.mubr.bf16.mxu0 0
        %1804 = vmatmul.mubr.bf16.gmra.mrb[0].mxu0 %v1391
        %v1805 = vpop.f32.mrb[0].mxu0
        %v1806 = vadd.f32 0.0, %v1805
        %v1807 = vpop.f32.mrb[0].mxu0
        %v1808 = vpop.f32.mrb[0].mxu0
        %v1809 = vadd.f32 0.0, %v1808
        %v1810 = vpop.f32.mrb[0].mxu0
        %1811 = vmatprep.mubr.bf16.mxu0 0
        %1812 = vmatmul.mubr.bf16.gmra.mrb[0].mxu0 %v1394
        %v1813 = vpop.f32.mrb[0].mxu0
        %v1814 = vadd.f32 0.0, %v1813
        %v1815 = vpop.f32.mrb[0].mxu0
        %v1816 = vpop.f32.mrb[0].mxu0
        %v1817 = vadd.f32 0.0, %v1816
        %v1818 = vpop.f32.mrb[0].mxu0
        %1819 = vmatprep.mubr.bf16.mxu0 0
        %1820 = vmatmul.mubr.bf16.gmra.mrb[0].mxu0 %v1397
        %v1821 = vpop.f32.mrb[0].mxu0
        %v1822 = vadd.f32 0.0, %v1821
        %v1823 = vpop.f32.mrb[0].mxu0
        %v1824 = vpop.f32.mrb[0].mxu0
        %v1825 = vadd.f32 0.0, %v1824
        %v1826 = vpop.f32.mrb[0].mxu0
        %1827 = vmatprep.mubr.bf16.mxu0 0
        %1828 = vmatmul.mubr.bf16.gmra.mrb[0].mxu0 %v1400
        %v1829 = vpop.f32.mrb[0].mxu0
        %v1830 = vadd.f32 0.0, %v1829
        %v1831 = vpop.f32.mrb[0].mxu0
        %v1832 = vpop.f32.mrb[0].mxu0
        %v1833 = vadd.f32 0.0, %v1832
        %v1834 = vpop.f32.mrb[0].mxu0
        %1835 = vmatprep.mubr.bf16.mxu0 0
        %1836 = vmatmul.mubr.bf16.gmra.mrb[0].mxu0 %v1403
        %v1837 = vpop.f32.mrb[0].mxu0
        %v1838 = vadd.f32 0.0, %v1837
        %v1839 = vpop.f32.mrb[0].mxu0
        %v1840 = vpop.f32.mrb[0].mxu0
        %v1841 = vadd.f32 0.0, %v1840
        %v1842 = vpop.f32.mrb[0].mxu0
        %1843 = vmatprep.mubr.bf16.mxu0 0
        %1844 = vmatmul.mubr.bf16.gmra.mrb[0].mxu0 %v1406
        %v1845 = vpop.f32.mrb[0].mxu0
        %v1846 = vadd.f32 0.0, %v1845
        %v1847 = vpop.f32.mrb[0].mxu0
        %v1848 = vpop.f32.mrb[0].mxu0
        %v1849 = vadd.f32 0.0, %v1848
        %v1850 = vpop.f32.mrb[0].mxu0
        %1851 = vmatprep.mubr.bf16.mxu0 0
        %1852 = vmatmul.mubr.bf16.gmra.mrb[0].mxu0 %v1409
        %v1853 = vpop.f32.mrb[0].mxu0
        %v1854 = vadd.f32 0.0, %v1853
        %v1855 = vpop.f32.mrb[0].mxu0
        %v1856 = vpop.f32.mrb[0].mxu0
        %v1857 = vadd.f32 0.0, %v1856
        %v1858 = vpop.f32.mrb[0].mxu0
        %1859 = vmatprep.mubr.bf16.mxu0 0
        %1860 = vmatmul.mubr.bf16.gmra.mrb[0].mxu0 %v1412
        %v1861 = vpop.f32.mrb[0].mxu0
        %v1862 = vadd.f32 0.0, %v1861
        %v1863 = vpop.f32.mrb[0].mxu0
        %v1864 = vpop.f32.mrb[0].mxu0
        %v1865 = vadd.f32 0.0, %v1864
        %v1866 = vpop.f32.mrb[0].mxu0
        %1867 = vmatprep.mubr.bf16.mxu0 0
        %1868 = vmatmul.mubr.bf16.gmra.mrb[0].mxu0 %v1415
        %v1869 = vpop.f32.mrb[0].mxu0
        %v1870 = vadd.f32 0.0, %v1869
        %v1871 = vpop.f32.mrb[0].mxu0
        %v1872 = vpop.f32.mrb[0].mxu0
        %v1873 = vadd.f32 0.0, %v1872
        %v1874 = vpop.f32.mrb[0].mxu0
        %1875 = vmatprep.mubr.bf16.mxu0 0
        %1876 = vmatmul.mubr.bf16.gmra.mrb[0].mxu0 %v1418
        %v1877 = vpop.f32.mrb[0].mxu0
        %v1878 = vadd.f32 0.0, %v1877
        %v1879 = vpop.f32.mrb[0].mxu0
        %v1880 = vpop.f32.mrb[0].mxu0
        %v1881 = vadd.f32 0.0, %v1880
        %v1882 = vpop.f32.mrb[0].mxu0
        %1883 = vmatprep.mubr.bf16.mxu0 0
        %1884 = vmatmul.mubr.bf16.gmra.mrb[0].mxu0 %v1421
        %v1885 = vpop.f32.mrb[0].mxu0
        %v1886 = vadd.f32 0.0, %v1885
        %v1887 = vpop.f32.mrb[0].mxu0
        %v1888 = vpop.f32.mrb[0].mxu0
        %v1889 = vadd.f32 0.0, %v1888
        %v1890 = vpop.f32.mrb[0].mxu0
        %1891 = vmatprep.mubr.bf16.mxu0 0
        %1892 = vmatmul.mubr.bf16.gmra.mrb[0].mxu0 %v1424
        %v1893 = vpop.f32.mrb[0].mxu0
        %v1894 = vadd.f32 0.0, %v1893
        %v1895 = vpop.f32.mrb[0].mxu0
        %v1896 = vpop.f32.mrb[0].mxu0
        %v1897 = vadd.f32 0.0, %v1896
        %v1898 = vpop.f32.mrb[0].mxu0
        %1899 = vmatprep.mubr.bf16.mxu0 0
        %1900 = vmatmul.mubr.bf16.gmra.mrb[0].mxu0 %v1427
        %v1901 = vpop.f32.mrb[0].mxu0
        %v1902 = vadd.f32 0.0, %v1901
        %v1903 = vpop.f32.mrb[0].mxu0
        %v1904 = vpop.f32.mrb[0].mxu0
        %v1905 = vadd.f32 0.0, %v1904
        %v1906 = vpop.f32.mrb[0].mxu0
        %1907 = vmatprep.mubr.bf16.mxu0 0
        %1908 = vmatmul.mubr.bf16.gmra.mrb[0].mxu0 %v1430
        %v1909 = vpop.f32.mrb[0].mxu0
        %v1910 = vadd.f32 0.0, %v1909
        %v1911 = vpop.f32.mrb[0].mxu0
        %v1912 = vpop.f32.mrb[0].mxu0
        %v1913 = vadd.f32 0.0, %v1912
        %v1914 = vpop.f32.mrb[0].mxu0
        %1915 = vmatprep.mubr.bf16.mxu0 0
        %1916 = vmatmul.mubr.bf16.gmra.mrb[0].mxu0 %v1433
        %v1917 = vpop.f32.mrb[0].mxu0
        %v1918 = vadd.f32 0.0, %v1917
        %v1919 = vpop.f32.mrb[0].mxu0
        %v1920 = vpop.f32.mrb[0].mxu0
        %v1921 = vadd.f32 0.0, %v1920
        %v1922 = vpop.f32.mrb[0].mxu0
        %1923 = vmatprep.mubr.bf16.mxu0 0
        %1924 = vmatmul.mubr.bf16.gmra.mrb[0].mxu0 %v1436
        %v1925 = vpop.f32.mrb[0].mxu0
        %v1926 = vadd.f32 0.0, %v1925
        %v1927 = vpop.f32.mrb[0].mxu0
        %v1928 = vpop.f32.mrb[0].mxu0
        %v1929 = vadd.f32 0.0, %v1928
        %v1930 = vpop.f32.mrb[0].mxu0
        %1931 = vmatprep.mubr.bf16.mxu0 0
        %1932 = vmatmul.mubr.bf16.gmra.mrb[0].mxu0 %v1439
        %v1933 = vpop.f32.mrb[0].mxu0
        %v1934 = vadd.f32 0.0, %v1933
        %v1935 = vpop.f32.mrb[0].mxu0
        %v1936 = vpop.f32.mrb[0].mxu0
        %v1937 = vadd.f32 0.0, %v1936
        %v1938 = vpop.f32.mrb[0].mxu0
        %1939 = vmatprep.mubr.bf16.mxu0 0
        %1940 = vmatmul.mubr.bf16.gmra.mrb[0].mxu0 %v1442
        %v1941 = vpop.f32.mrb[0].mxu0
        %v1942 = vadd.f32 0.0, %v1941
        %v1943 = vpop.f32.mrb[0].mxu0
        %v1944 = vpop.f32.mrb[0].mxu0
        %v1945 = vadd.f32 0.0, %v1944
        %v1946 = vpop.f32.mrb[0].mxu0
        %1947 = vmatprep.mubr.bf16.mxu0 0
        %1948 = vmatmul.mubr.bf16.gmra.mrb[0].mxu0 %v1445
        %v1949 = vpop.f32.mrb[0].mxu0
        %v1950 = vadd.f32 0.0, %v1949
        %v1951 = vpop.f32.mrb[0].mxu0
        %v1952 = vpop.f32.mrb[0].mxu0
        %v1953 = vadd.f32 0.0, %v1952
        %v1954 = vpop.f32.mrb[0].mxu0
        %1955 = vmatprep.mubr.bf16.mxu0 0
        %1956 = vmatmul.mubr.bf16.gmra.mrb[0].mxu0 %v1448
        %v1957 = vpop.f32.mrb[0].mxu0
        %v1958 = vadd.f32 0.0, %v1957
        %v1959 = vpop.f32.mrb[0].mxu0
        %v1960 = vpop.f32.mrb[0].mxu0
        %v1961 = vadd.f32 0.0, %v1960
        %v1962 = vpop.f32.mrb[0].mxu0
        %1963 = vmatprep.mubr.bf16.mxu0 0
        %1964 = vmatmul.mubr.bf16.gmra.mrb[0].mxu0 %v1451
        %v1965 = vpop.f32.mrb[0].mxu0
        %v1966 = vadd.f32 0.0, %v1965
        %v1967 = vpop.f32.mrb[0].mxu0
        %v1968 = vpop.f32.mrb[0].mxu0
        %v1969 = vadd.f32 0.0, %v1968
        %v1970 = vpop.f32.mrb[0].mxu0
        %1971 = vmatprep.mubr.bf16.mxu0 0
        %1972 = vmatmul.mubr.bf16.gmra.mrb[0].mxu0 %v1454
        %v1973 = vpop.f32.mrb[0].mxu0
        %v1974 = vadd.f32 0.0, %v1973
        %v1975 = vpop.f32.mrb[0].mxu0
        %v1976 = vpop.f32.mrb[0].mxu0
        %v1977 = vadd.f32 0.0, %v1976
        %v1978 = vpop.f32.mrb[0].mxu0
        %1979 = vmatprep.mubr.bf16.mxu0 0
        %1980 = vmatmul.mubr.bf16.gmra.mrb[0].mxu0 %v1457
        %v1981 = vpop.f32.mrb[0].mxu0
        %v1982 = vadd.f32 0.0, %v1981
        %v1983 = vpop.f32.mrb[0].mxu0
        %v1984 = vpop.f32.mrb[0].mxu0
        %v1985 = vadd.f32 0.0, %v1984
        %v1986 = vpop.f32.mrb[0].mxu0
        %1987 = vmatprep.mubr.bf16.mxu0 0
        %1988 = vmatmul.mubr.bf16.gmra.mrb[0].mxu0 %v1460
        %v1989 = vpop.f32.mrb[0].mxu0
        %v1990 = vadd.f32 0.0, %v1989
        %v1991 = vpop.f32.mrb[0].mxu0
        %v1992 = vpop.f32.mrb[0].mxu0
        %v1993 = vadd.f32 0.0, %v1992
        %v1994 = vpop.f32.mrb[0].mxu0
        %1995 = vmatprep.mubr.bf16.mxu0 0
        %1996 = vmatmul.mubr.bf16.gmra.mrb[0].mxu0 %v1463
        %v1997 = vpop.f32.mrb[0].mxu0
        %v1998 = vadd.f32 0.0, %v1997
        %v1999 = vpop.f32.mrb[0].mxu0
        %v2000 = vpop.f32.mrb[0].mxu0
        %v2001 = vadd.f32 0.0, %v2000
        %v2002 = vpop.f32.mrb[0].mxu0
        %2003 = vmatprep.mubr.bf16.mxu0 0
        %2004 = vmatmul.mubr.bf16.gmra.mrb[0].mxu0 %v1466
        %v2005 = vpop.f32.mrb[0].mxu0
        %v2006 = vadd.f32 0.0, %v2005
        %v2007 = vpop.f32.mrb[0].mxu0
        %v2008 = vpop.f32.mrb[0].mxu0
        %v2009 = vadd.f32 0.0, %v2008
        %v2010 = vpop.f32.mrb[0].mxu0
        %2011 = vmatprep.mubr.bf16.mxu0 0
        %2012 = vmatmul.mubr.bf16.gmra.mrb[0].mxu0 %v1469
        %v2013 = vpop.f32.mrb[0].mxu0
        %v2014 = vadd.f32 0.0, %v2013
        %v2015 = vpop.f32.mrb[0].mxu0
        %v2016 = vpop.f32.mrb[0].mxu0
        %v2017 = vadd.f32 0.0, %v2016
        %v2018 = vpop.f32.mrb[0].mxu0
        %2019 = vdwg.mxu0
        %v2020 = vpack.c.bf16 %v1513, %v1510
        %v2021 = vpack.c.bf16 %v1521, %v1518
        %v2022 = vpack.c.bf16 %v1529, %v1526
        %v2023 = vpack.c.bf16 %v1537, %v1534
        %v2024 = vpack.c.bf16 %v1545, %v1542
        %v2025 = vpack.c.bf16 %v1553, %v1550
        %v2026 = vpack.c.bf16 %v1561, %v1558
        %v2027 = vpack.c.bf16 %v1569, %v1566
        %v2028 = vpack.c.bf16 %v1577, %v1574
        %v2029 = vpack.c.bf16 %v1585, %v1582
        %v2030 = vpack.c.bf16 %v1593, %v1590
        %v2031 = vpack.c.bf16 %v1601, %v1598
        %v2032 = vpack.c.bf16 %v1609, %v1606
        %v2033 = vpack.c.bf16 %v1617, %v1614
        %v2034 = vpack.c.bf16 %v1625, %v1622
        %v2035 = vpack.c.bf16 %v1633, %v1630
        %v2036 = vpack.c.bf16 %v1641, %v1638
        %v2037 = vpack.c.bf16 %v1649, %v1646
        %v2038 = vpack.c.bf16 %v1657, %v1654
        %v2039 = vpack.c.bf16 %v1665, %v1662
        %v2040 = vpack.c.bf16 %v1673, %v1670
        %v2041 = vpack.c.bf16 %v1681, %v1678
        %v2042 = vpack.c.bf16 %v1689, %v1686
        %v2043 = vpack.c.bf16 %v1697, %v1694
        %v2044 = vpack.c.bf16 %v1705, %v1702
        %v2045 = vpack.c.bf16 %v1713, %v1710
        %v2046 = vpack.c.bf16 %v1721, %v1718
        %v2047 = vpack.c.bf16 %v1729, %v1726
        %v2048 = vpack.c.bf16 %v1737, %v1734
        %v2049 = vpack.c.bf16 %v1745, %v1742
        %v2050 = vpack.c.bf16 %v1753, %v1750
        %v2051 = vpack.c.bf16 %v1761, %v1758
        %v2052 = vpack.c.bf16 %v1769, %v1766
        %v2053 = vpack.c.bf16 %v1777, %v1774
        %v2054 = vpack.c.bf16 %v1785, %v1782
        %v2055 = vpack.c.bf16 %v1793, %v1790
        %v2056 = vpack.c.bf16 %v1801, %v1798
        %v2057 = vpack.c.bf16 %v1809, %v1806
        %v2058 = vpack.c.bf16 %v1817, %v1814
        %v2059 = vpack.c.bf16 %v1825, %v1822
        %v2060 = vpack.c.bf16 %v1833, %v1830
        %v2061 = vpack.c.bf16 %v1841, %v1838
        %v2062 = vpack.c.bf16 %v1849, %v1846
        %v2063 = vpack.c.bf16 %v1857, %v1854
        %v2064 = vpack.c.bf16 %v1865, %v1862
        %v2065 = vpack.c.bf16 %v1873, %v1870
        %v2066 = vpack.c.bf16 %v1881, %v1878
        %v2067 = vpack.c.bf16 %v1889, %v1886
        %v2068 = vpack.c.bf16 %v1897, %v1894
        %v2069 = vpack.c.bf16 %v1905, %v1902
        %v2070 = vpack.c.bf16 %v1913, %v1910
        %v2071 = vpack.c.bf16 %v1921, %v1918
        %v2072 = vpack.c.bf16 %v1929, %v1926
        %v2073 = vpack.c.bf16 %v1937, %v1934
        %v2074 = vpack.c.bf16 %v1945, %v1942
        %v2075 = vpack.c.bf16 %v1953, %v1950
        %v2076 = vpack.c.bf16 %v1961, %v1958
        %v2077 = vpack.c.bf16 %v1969, %v1966
        %v2078 = vpack.c.bf16 %v1977, %v1974
        %v2079 = vpack.c.bf16 %v1985, %v1982
        %v2080 = vpack.c.bf16 %v1993, %v1990
        %v2081 = vpack.c.bf16 %v2001, %v1998
        %v2082 = vpack.c.bf16 %v2009, %v2006
        %v2083 = vpack.c.bf16 %v2017, %v2014
        %2084 = vst [vmem:[#allocation2] sm:$0xff] %v2020
        %2085 = vst [vmem:[#allocation2 + $0x8] sm:$0xff] %v2021
        %2086 = vst [vmem:[#allocation2 + $0x10] sm:$0xff] %v2022
        %2087 = vst [vmem:[#allocation2 + $0x18] sm:$0xff] %v2023
        %2088 = vst [vmem:[#allocation2 + $0x20] sm:$0xff] %v2024
        %2089 = vst [vmem:[#allocation2 + $0x28] sm:$0xff] %v2025
        %2090 = vst [vmem:[#allocation2 + $0x30] sm:$0xff] %v2026
        %2091 = vst [vmem:[#allocation2 + $0x38] sm:$0xff] %v2027
        %2092 = vst [vmem:[#allocation2 + $0x40] sm:$0xff] %v2028
        %2093 = vst [vmem:[#allocation2 + $0x48] sm:$0xff] %v2029
        %2094 = vst [vmem:[#allocation2 + $0x50] sm:$0xff] %v2030
        %2095 = vst [vmem:[#allocation2 + $0x58] sm:$0xff] %v2031
        %2096 = vst [vmem:[#allocation2 + $0x60] sm:$0xff] %v2032
        %2097 = vst [vmem:[#allocation2 + $0x68] sm:$0xff] %v2033
        %2098 = vst [vmem:[#allocation2 + $0x70] sm:$0xff] %v2034
        %2099 = vst [vmem:[#allocation2 + $0x78] sm:$0xff] %v2035
        %2100 = vst [vmem:[#allocation2 + $0x80] sm:$0xff] %v2036
        %2101 = vst [vmem:[#allocation2 + $0x88] sm:$0xff] %v2037
        %2102 = vst [vmem:[#allocation2 + $0x90] sm:$0xff] %v2038
        %2103 = vst [vmem:[#allocation2 + $0x98] sm:$0xff] %v2039
        %2104 = vst [vmem:[#allocation2 + $0xa0] sm:$0xff] %v2040
        %2105 = vst [vmem:[#allocation2 + $0xa8] sm:$0xff] %v2041
        %2106 = vst [vmem:[#allocation2 + $0xb0] sm:$0xff] %v2042
        %2107 = vst [vmem:[#allocation2 + $0xb8] sm:$0xff] %v2043
        %2108 = vst [vmem:[#allocation2 + $0xc0] sm:$0xff] %v2044
        %2109 = vst [vmem:[#allocation2 + $0xc8] sm:$0xff] %v2045
        %2110 = vst [vmem:[#allocation2 + $0xd0] sm:$0xff] %v2046
        %2111 = vst [vmem:[#allocation2 + $0xd8] sm:$0xff] %v2047
        %2112 = vst [vmem:[#allocation2 + $0xe0] sm:$0xff] %v2048
        %2113 = vst [vmem:[#allocation2 + $0xe8] sm:$0xff] %v2049
        %2114 = vst [vmem:[#allocation2 + $0xf0] sm:$0xff] %v2050
        %2115 = vst [vmem:[#allocation2 + $0xf8] sm:$0xff] %v2051
        %2116 = vst [vmem:[#allocation2 + $0x100] sm:$0xff] %v2052
        %2117 = vst [vmem:[#allocation2 + $0x108] sm:$0xff] %v2053
        %2118 = vst [vmem:[#allocation2 + $0x110] sm:$0xff] %v2054
        %2119 = vst [vmem:[#allocation2 + $0x118] sm:$0xff] %v2055
        %2120 = vst [vmem:[#allocation2 + $0x120] sm:$0xff] %v2056
        %2121 = vst [vmem:[#allocation2 + $0x128] sm:$0xff] %v2057
        %2122 = vst [vmem:[#allocation2 + $0x130] sm:$0xff] %v2058
        %2123 = vst [vmem:[#allocation2 + $0x138] sm:$0xff] %v2059
        %2124 = vst [vmem:[#allocation2 + $0x140] sm:$0xff] %v2060
        %2125 = vst [vmem:[#allocation2 + $0x148] sm:$0xff] %v2061
        %2126 = vst [vmem:[#allocation2 + $0x150] sm:$0xff] %v2062
        %2127 = vst [vmem:[#allocation2 + $0x158] sm:$0xff] %v2063
        %2128 = vst [vmem:[#allocation2 + $0x160] sm:$0xff] %v2064
        %2129 = vst [vmem:[#allocation2 + $0x168] sm:$0xff] %v2065
        %2130 = vst [vmem:[#allocation2 + $0x170] sm:$0xff] %v2066
        %2131 = vst [vmem:[#allocation2 + $0x178] sm:$0xff] %v2067
        %2132 = vst [vmem:[#allocation2 + $0x180] sm:$0xff] %v2068
        %2133 = vst [vmem:[#allocation2 + $0x188] sm:$0xff] %v2069
        %2134 = vst [vmem:[#allocation2 + $0x190] sm:$0xff] %v2070
        %2135 = vst [vmem:[#allocation2 + $0x198] sm:$0xff] %v2071
        %2136 = vst [vmem:[#allocation2 + $0x1a0] sm:$0xff] %v2072
        %2137 = vst [vmem:[#allocation2 + $0x1a8] sm:$0xff] %v2073
        %2138 = vst [vmem:[#allocation2 + $0x1b0] sm:$0xff] %v2074
        %2139 = vst [vmem:[#allocation2 + $0x1b8] sm:$0xff] %v2075
        %2140 = vst [vmem:[#allocation2 + $0x1c0] sm:$0xff] %v2076
        %2141 = vst [vmem:[#allocation2 + $0x1c8] sm:$0xff] %v2077
        %2142 = vst [vmem:[#allocation2 + $0x1d0] sm:$0xff] %v2078
        %2143 = vst [vmem:[#allocation2 + $0x1d8] sm:$0xff] %v2079
        %2144 = vst [vmem:[#allocation2 + $0x1e0] sm:$0xff] %v2080
        %2145 = vst [vmem:[#allocation2 + $0x1e8] sm:$0xff] %v2081
        %2146 = vst [vmem:[#allocation2 + $0x1f0] sm:$0xff] %v2082
        %2147 = vst [vmem:[#allocation2 + $0x1f8] sm:$0xff] %v2083
        %v2148 = vld [vmem:[#allocation2] sm:$0xff]
        %v2149 = vld [vmem:[#allocation2 + $0x8] sm:$0xff]
        %v2150 = vld [vmem:[#allocation2 + $0x10] sm:$0xff]
        %v2151 = vld [vmem:[#allocation2 + $0x18] sm:$0xff]
        %v2152 = vld [vmem:[#allocation2 + $0x20] sm:$0xff]
        %v2153 = vld [vmem:[#allocation2 + $0x28] sm:$0xff]
        %v2154 = vld [vmem:[#allocation2 + $0x30] sm:$0xff]
        %v2155 = vld [vmem:[#allocation2 + $0x38] sm:$0xff]
        %v2156 = vld [vmem:[#allocation2 + $0x40] sm:$0xff]
        %v2157 = vld [vmem:[#allocation2 + $0x48] sm:$0xff]
        %v2158 = vld [vmem:[#allocation2 + $0x50] sm:$0xff]
        %v2159 = vld [vmem:[#allocation2 + $0x58] sm:$0xff]
        %v2160 = vld [vmem:[#allocation2 + $0x60] sm:$0xff]
        %v2161 = vld [vmem:[#allocation2 + $0x68] sm:$0xff]
        %v2162 = vld [vmem:[#allocation2 + $0x70] sm:$0xff]
        %v2163 = vld [vmem:[#allocation2 + $0x78] sm:$0xff]
        %v2164 = vld [vmem:[#allocation2 + $0x80] sm:$0xff]
        %v2165 = vld [vmem:[#allocation2 + $0x88] sm:$0xff]
        %v2166 = vld [vmem:[#allocation2 + $0x90] sm:$0xff]
        %v2167 = vld [vmem:[#allocation2 + $0x98] sm:$0xff]
        %v2168 = vld [vmem:[#allocation2 + $0xa0] sm:$0xff]
        %v2169 = vld [vmem:[#allocation2 + $0xa8] sm:$0xff]
        %v2170 = vld [vmem:[#allocation2 + $0xb0] sm:$0xff]
        %v2171 = vld [vmem:[#allocation2 + $0xb8] sm:$0xff]
        %v2172 = vld [vmem:[#allocation2 + $0xc0] sm:$0xff]
        %v2173 = vld [vmem:[#allocation2 + $0xc8] sm:$0xff]
        %v2174 = vld [vmem:[#allocation2 + $0xd0] sm:$0xff]
        %v2175 = vld [vmem:[#allocation2 + $0xd8] sm:$0xff]
        %v2176 = vld [vmem:[#allocation2 + $0xe0] sm:$0xff]
        %v2177 = vld [vmem:[#allocation2 + $0xe8] sm:$0xff]
        %v2178 = vld [vmem:[#allocation2 + $0xf0] sm:$0xff]
        %v2179 = vld [vmem:[#allocation2 + $0xf8] sm:$0xff]
        %v2180 = vld [vmem:[#allocation2 + $0x100] sm:$0xff]
        %v2181 = vld [vmem:[#allocation2 + $0x108] sm:$0xff]
        %v2182 = vld [vmem:[#allocation2 + $0x110] sm:$0xff]
        %v2183 = vld [vmem:[#allocation2 + $0x118] sm:$0xff]
        %v2184 = vld [vmem:[#allocation2 + $0x120] sm:$0xff]
        %v2185 = vld [vmem:[#allocation2 + $0x128] sm:$0xff]
        %v2186 = vld [vmem:[#allocation2 + $0x130] sm:$0xff]
        %v2187 = vld [vmem:[#allocation2 + $0x138] sm:$0xff]
        %v2188 = vld [vmem:[#allocation2 + $0x140] sm:$0xff]
        %v2189 = vld [vmem:[#allocation2 + $0x148] sm:$0xff]
        %v2190 = vld [vmem:[#allocation2 + $0x150] sm:$0xff]
        %v2191 = vld [vmem:[#allocation2 + $0x158] sm:$0xff]
        %v2192 = vld [vmem:[#allocation2 + $0x160] sm:$0xff]
        %v2193 = vld [vmem:[#allocation2 + $0x168] sm:$0xff]
        %v2194 = vld [vmem:[#allocation2 + $0x170] sm:$0xff]
        %v2195 = vld [vmem:[#allocation2 + $0x178] sm:$0xff]
        %v2196 = vld [vmem:[#allocation2 + $0x180] sm:$0xff]
        %v2197 = vld [vmem:[#allocation2 + $0x188] sm:$0xff]
        %v2198 = vld [vmem:[#allocation2 + $0x190] sm:$0xff]
        %v2199 = vld [vmem:[#allocation2 + $0x198] sm:$0xff]
        %v2200 = vld [vmem:[#allocation2 + $0x1a0] sm:$0xff]
        %v2201 = vld [vmem:[#allocation2 + $0x1a8] sm:$0xff]
        %v2202 = vld [vmem:[#allocation2 + $0x1b0] sm:$0xff]
        %v2203 = vld [vmem:[#allocation2 + $0x1b8] sm:$0xff]
        %v2204 = vld [vmem:[#allocation2 + $0x1c0] sm:$0xff]
        %v2205 = vld [vmem:[#allocation2 + $0x1c8] sm:$0xff]
        %v2206 = vld [vmem:[#allocation2 + $0x1d0] sm:$0xff]
        %v2207 = vld [vmem:[#allocation2 + $0x1d8] sm:$0xff]
        %v2208 = vld [vmem:[#allocation2 + $0x1e0] sm:$0xff]
        %v2209 = vld [vmem:[#allocation2 + $0x1e8] sm:$0xff]
        %v2210 = vld [vmem:[#allocation2 + $0x1f0] sm:$0xff]
        %v2211 = vld [vmem:[#allocation2 + $0x1f8] sm:$0xff]
        %v2212 = vld [vmem:[%s2] sm:$0xf]
        %v2213 = vld [vmem:[%s2 + $0x4] sm:$0xf]
        %v2214 = vld [vmem:[%s2 + $0x8] sm:$0xf]
        %v2215 = vld [vmem:[%s2 + $0xc] sm:$0xf]
        %v2216 = vld [vmem:[%s2 + $0x10] sm:$0xf]
        %v2217 = vld [vmem:[%s2 + $0x14] sm:$0xf]
        %v2218 = vld [vmem:[%s2 + $0x18] sm:$0xf]
        %v2219 = vld [vmem:[%s2 + $0x1c] sm:$0xf]
        %v2220 = vld [vmem:[%s2 + $0x20] sm:$0xf]
        %v2221 = vld [vmem:[%s2 + $0x24] sm:$0xf]
        %v2222 = vld [vmem:[%s2 + $0x28] sm:$0xf]
        %v2223 = vld [vmem:[%s2 + $0x2c] sm:$0xf]
        %v2224 = vld [vmem:[%s2 + $0x30] sm:$0xf]
        %v2225 = vld [vmem:[%s2 + $0x34] sm:$0xf]
        %v2226 = vld [vmem:[%s2 + $0x38] sm:$0xf]
        %v2227 = vld [vmem:[%s2 + $0x3c] sm:$0xf]
        %v2244 = vunpack.c.l.b16 %v2212
        %v2245 = vunpack.c.l.b16 %v2213
        %v2246 = vunpack.c.l.b16 %v2214
        %v2247 = vunpack.c.l.b16 %v2215
        %v2248 = vunpack.c.l.b16 %v2216
        %v2249 = vunpack.c.l.b16 %v2217
        %v2250 = vunpack.c.l.b16 %v2218
        %v2251 = vunpack.c.l.b16 %v2219
        %v2252 = vunpack.c.l.b16 %v2220
        %v2253 = vunpack.c.l.b16 %v2221
        %v2254 = vunpack.c.l.b16 %v2222
        %v2255 = vunpack.c.l.b16 %v2223
        %v2256 = vunpack.c.l.b16 %v2224
        %v2257 = vunpack.c.l.b16 %v2225
        %v2258 = vunpack.c.l.b16 %v2226
        %v2259 = vunpack.c.l.b16 %v2227
        %v2260 = vpack.c.b16 %v2245, %v2244
        %v2261 = vpack.c.b16 %v2247, %v2246
        %v2262 = vpack.c.b16 %v2249, %v2248
        %v2263 = vpack.c.b16 %v2251, %v2250
        %v2264 = vpack.c.b16 %v2253, %v2252
        %v2265 = vpack.c.b16 %v2255, %v2254
        %v2266 = vpack.c.b16 %v2257, %v2256
        %v2267 = vpack.c.b16 %v2259, %v2258
        %2276 = vmatprep.subr.bf16.mxu0 0
        %2277 = vmatpush1.bf16.msra.mxu0 %v2260
        %2278 = vmatprep.subr.bf16.mxu0 0
        %2279 = vmatpush1.bf16.msra.mxu0 %v2261
        %2280 = vmatprep.subr.bf16.mxu0 0
        %2281 = vmatpush1.bf16.msra.mxu0 %v2262
        %2282 = vmatprep.subr.bf16.mxu0 0
        %2283 = vmatpush1.bf16.msra.mxu0 %v2263
        %2284 = vmatprep.subr.bf16.mxu0 0
        %2285 = vmatpush1.bf16.msra.mxu0 %v2264
        %2286 = vmatprep.subr.bf16.mxu0 0
        %2287 = vmatpush1.bf16.msra.mxu0 %v2265
        %2288 = vmatprep.subr.bf16.mxu0 0
        %2289 = vmatpush1.bf16.msra.mxu0 %v2266
        %2290 = vmatprep.subr.bf16.mxu0 0
        %2291 = vmatpush1.bf16.msra.mxu0 %v2267
        %2292 = vmatprep.subr.bf16.mxu0 0
        %2293 = vmatpush1.bf16.msra.mxu0 0
        %2294 = vmatprep.subr.bf16.mxu0 0
        %2295 = vmatpush1.bf16.msra.mxu0 0
        %2296 = vmatprep.subr.bf16.mxu0 0
        %2297 = vmatpush1.bf16.msra.mxu0 0
        %2298 = vmatprep.subr.bf16.mxu0 0
        %2299 = vmatpush1.bf16.msra.mxu0 0
        %2300 = vmatprep.subr.bf16.mxu0 0
        %2301 = vmatpush1.bf16.msra.mxu0 0
        %2302 = vmatprep.subr.bf16.mxu0 0
        %2303 = vmatpush1.bf16.msra.mxu0 0
        %2304 = vmatprep.subr.bf16.mxu0 0
        %2305 = vmatpush1.bf16.msra.mxu0 0
        %2306 = vmatprep.subr.bf16.mxu0 0
        %2307 = vmatpush1.bf16.msra.mxu0 0
        %2308 = vmatprep.mubr.bf16.mxu0 0
        %2309 = vmatmul.mubr.bf16.gmra.mrb[0].mxu0 %v2148
        %v2310 = vpop.f32.mrb[0].mxu0
        %v2311 = vadd.f32 0.0, %v2310
        %v2312 = vpop.f32.mrb[0].mxu0
        %v2313 = vpop.f32.mrb[0].mxu0
        %v2314 = vadd.f32 0.0, %v2313
        %v2315 = vpop.f32.mrb[0].mxu0
        %2316 = vmatprep.mubr.bf16.mxu0 0
        %2317 = vmatmul.mubr.bf16.gmra.mrb[0].mxu0 %v2149
        %v2318 = vpop.f32.mrb[0].mxu0
        %v2319 = vadd.f32 0.0, %v2318
        %v2320 = vpop.f32.mrb[0].mxu0
        %v2321 = vpop.f32.mrb[0].mxu0
        %v2322 = vadd.f32 0.0, %v2321
        %v2323 = vpop.f32.mrb[0].mxu0
        %2324 = vmatprep.mubr.bf16.mxu0 0
        %2325 = vmatmul.mubr.bf16.gmra.mrb[0].mxu0 %v2150
        %v2326 = vpop.f32.mrb[0].mxu0
        %v2327 = vadd.f32 0.0, %v2326
        %v2328 = vpop.f32.mrb[0].mxu0
        %v2329 = vpop.f32.mrb[0].mxu0
        %v2330 = vadd.f32 0.0, %v2329
        %v2331 = vpop.f32.mrb[0].mxu0
        %2332 = vmatprep.mubr.bf16.mxu0 0
        %2333 = vmatmul.mubr.bf16.gmra.mrb[0].mxu0 %v2151
        %v2334 = vpop.f32.mrb[0].mxu0
        %v2335 = vadd.f32 0.0, %v2334
        %v2336 = vpop.f32.mrb[0].mxu0
        %v2337 = vpop.f32.mrb[0].mxu0
        %v2338 = vadd.f32 0.0, %v2337
        %v2339 = vpop.f32.mrb[0].mxu0
        %2340 = vmatprep.mubr.bf16.mxu0 0
        %2341 = vmatmul.mubr.bf16.gmra.mrb[0].mxu0 %v2152
        %v2342 = vpop.f32.mrb[0].mxu0
        %v2343 = vadd.f32 0.0, %v2342
        %v2344 = vpop.f32.mrb[0].mxu0
        %v2345 = vpop.f32.mrb[0].mxu0
        %v2346 = vadd.f32 0.0, %v2345
        %v2347 = vpop.f32.mrb[0].mxu0
        %2348 = vmatprep.mubr.bf16.mxu0 0
        %2349 = vmatmul.mubr.bf16.gmra.mrb[0].mxu0 %v2153
        %v2350 = vpop.f32.mrb[0].mxu0
        %v2351 = vadd.f32 0.0, %v2350
        %v2352 = vpop.f32.mrb[0].mxu0
        %v2353 = vpop.f32.mrb[0].mxu0
        %v2354 = vadd.f32 0.0, %v2353
        %v2355 = vpop.f32.mrb[0].mxu0
        %2356 = vmatprep.mubr.bf16.mxu0 0
        %2357 = vmatmul.mubr.bf16.gmra.mrb[0].mxu0 %v2154
        %v2358 = vpop.f32.mrb[0].mxu0
        %v2359 = vadd.f32 0.0, %v2358
        %v2360 = vpop.f32.mrb[0].mxu0
        %v2361 = vpop.f32.mrb[0].mxu0
        %v2362 = vadd.f32 0.0, %v2361
        %v2363 = vpop.f32.mrb[0].mxu0
        %2364 = vmatprep.mubr.bf16.mxu0 0
        %2365 = vmatmul.mubr.bf16.gmra.mrb[0].mxu0 %v2155
        %v2366 = vpop.f32.mrb[0].mxu0
        %v2367 = vadd.f32 0.0, %v2366
        %v2368 = vpop.f32.mrb[0].mxu0
        %v2369 = vpop.f32.mrb[0].mxu0
        %v2370 = vadd.f32 0.0, %v2369
        %v2371 = vpop.f32.mrb[0].mxu0
        %2372 = vmatprep.mubr.bf16.mxu0 0
        %2373 = vmatmul.mubr.bf16.gmra.mrb[0].mxu0 %v2156
        %v2374 = vpop.f32.mrb[0].mxu0
        %v2375 = vadd.f32 0.0, %v2374
        %v2376 = vpop.f32.mrb[0].mxu0
        %v2377 = vpop.f32.mrb[0].mxu0
        %v2378 = vadd.f32 0.0, %v2377
        %v2379 = vpop.f32.mrb[0].mxu0
        %2380 = vmatprep.mubr.bf16.mxu0 0
        %2381 = vmatmul.mubr.bf16.gmra.mrb[0].mxu0 %v2157
        %v2382 = vpop.f32.mrb[0].mxu0
        %v2383 = vadd.f32 0.0, %v2382
        %v2384 = vpop.f32.mrb[0].mxu0
        %v2385 = vpop.f32.mrb[0].mxu0
        %v2386 = vadd.f32 0.0, %v2385
        %v2387 = vpop.f32.mrb[0].mxu0
        %2388 = vmatprep.mubr.bf16.mxu0 0
        %2389 = vmatmul.mubr.bf16.gmra.mrb[0].mxu0 %v2158
        %v2390 = vpop.f32.mrb[0].mxu0
        %v2391 = vadd.f32 0.0, %v2390
        %v2392 = vpop.f32.mrb[0].mxu0
        %v2393 = vpop.f32.mrb[0].mxu0
        %v2394 = vadd.f32 0.0, %v2393
        %v2395 = vpop.f32.mrb[0].mxu0
        %2396 = vmatprep.mubr.bf16.mxu0 0
        %2397 = vmatmul.mubr.bf16.gmra.mrb[0].mxu0 %v2159
        %v2398 = vpop.f32.mrb[0].mxu0
        %v2399 = vadd.f32 0.0, %v2398
        %v2400 = vpop.f32.mrb[0].mxu0
        %v2401 = vpop.f32.mrb[0].mxu0
        %v2402 = vadd.f32 0.0, %v2401
        %v2403 = vpop.f32.mrb[0].mxu0
        %2404 = vmatprep.mubr.bf16.mxu0 0
        %2405 = vmatmul.mubr.bf16.gmra.mrb[0].mxu0 %v2160
        %v2406 = vpop.f32.mrb[0].mxu0
        %v2407 = vadd.f32 0.0, %v2406
        %v2408 = vpop.f32.mrb[0].mxu0
        %v2409 = vpop.f32.mrb[0].mxu0
        %v2410 = vadd.f32 0.0, %v2409
        %v2411 = vpop.f32.mrb[0].mxu0
        %2412 = vmatprep.mubr.bf16.mxu0 0
        %2413 = vmatmul.mubr.bf16.gmra.mrb[0].mxu0 %v2161
        %v2414 = vpop.f32.mrb[0].mxu0
        %v2415 = vadd.f32 0.0, %v2414
        %v2416 = vpop.f32.mrb[0].mxu0
        %v2417 = vpop.f32.mrb[0].mxu0
        %v2418 = vadd.f32 0.0, %v2417
        %v2419 = vpop.f32.mrb[0].mxu0
        %2420 = vmatprep.mubr.bf16.mxu0 0
        %2421 = vmatmul.mubr.bf16.gmra.mrb[0].mxu0 %v2162
        %v2422 = vpop.f32.mrb[0].mxu0
        %v2423 = vadd.f32 0.0, %v2422
        %v2424 = vpop.f32.mrb[0].mxu0
        %v2425 = vpop.f32.mrb[0].mxu0
        %v2426 = vadd.f32 0.0, %v2425
        %v2427 = vpop.f32.mrb[0].mxu0
        %2428 = vmatprep.mubr.bf16.mxu0 0
        %2429 = vmatmul.mubr.bf16.gmra.mrb[0].mxu0 %v2163
        %v2430 = vpop.f32.mrb[0].mxu0
        %v2431 = vadd.f32 0.0, %v2430
        %v2432 = vpop.f32.mrb[0].mxu0
        %v2433 = vpop.f32.mrb[0].mxu0
        %v2434 = vadd.f32 0.0, %v2433
        %v2435 = vpop.f32.mrb[0].mxu0
        %2436 = vmatprep.mubr.bf16.mxu0 0
        %2437 = vmatmul.mubr.bf16.gmra.mrb[0].mxu0 %v2164
        %v2438 = vpop.f32.mrb[0].mxu0
        %v2439 = vadd.f32 0.0, %v2438
        %v2440 = vpop.f32.mrb[0].mxu0
        %v2441 = vpop.f32.mrb[0].mxu0
        %v2442 = vadd.f32 0.0, %v2441
        %v2443 = vpop.f32.mrb[0].mxu0
        %2444 = vmatprep.mubr.bf16.mxu0 0
        %2445 = vmatmul.mubr.bf16.gmra.mrb[0].mxu0 %v2165
        %v2446 = vpop.f32.mrb[0].mxu0
        %v2447 = vadd.f32 0.0, %v2446
        %v2448 = vpop.f32.mrb[0].mxu0
        %v2449 = vpop.f32.mrb[0].mxu0
        %v2450 = vadd.f32 0.0, %v2449
        %v2451 = vpop.f32.mrb[0].mxu0
        %2452 = vmatprep.mubr.bf16.mxu0 0
        %2453 = vmatmul.mubr.bf16.gmra.mrb[0].mxu0 %v2166
        %v2454 = vpop.f32.mrb[0].mxu0
        %v2455 = vadd.f32 0.0, %v2454
        %v2456 = vpop.f32.mrb[0].mxu0
        %v2457 = vpop.f32.mrb[0].mxu0
        %v2458 = vadd.f32 0.0, %v2457
        %v2459 = vpop.f32.mrb[0].mxu0
        %2460 = vmatprep.mubr.bf16.mxu0 0
        %2461 = vmatmul.mubr.bf16.gmra.mrb[0].mxu0 %v2167
        %v2462 = vpop.f32.mrb[0].mxu0
        %v2463 = vadd.f32 0.0, %v2462
        %v2464 = vpop.f32.mrb[0].mxu0
        %v2465 = vpop.f32.mrb[0].mxu0
        %v2466 = vadd.f32 0.0, %v2465
        %v2467 = vpop.f32.mrb[0].mxu0
        %2468 = vmatprep.mubr.bf16.mxu0 0
        %2469 = vmatmul.mubr.bf16.gmra.mrb[0].mxu0 %v2168
        %v2470 = vpop.f32.mrb[0].mxu0
        %v2471 = vadd.f32 0.0, %v2470
        %v2472 = vpop.f32.mrb[0].mxu0
        %v2473 = vpop.f32.mrb[0].mxu0
        %v2474 = vadd.f32 0.0, %v2473
        %v2475 = vpop.f32.mrb[0].mxu0
        %2476 = vmatprep.mubr.bf16.mxu0 0
        %2477 = vmatmul.mubr.bf16.gmra.mrb[0].mxu0 %v2169
        %v2478 = vpop.f32.mrb[0].mxu0
        %v2479 = vadd.f32 0.0, %v2478
        %v2480 = vpop.f32.mrb[0].mxu0
        %v2481 = vpop.f32.mrb[0].mxu0
        %v2482 = vadd.f32 0.0, %v2481
        %v2483 = vpop.f32.mrb[0].mxu0
        %2484 = vmatprep.mubr.bf16.mxu0 0
        %2485 = vmatmul.mubr.bf16.gmra.mrb[0].mxu0 %v2170
        %v2486 = vpop.f32.mrb[0].mxu0
        %v2487 = vadd.f32 0.0, %v2486
        %v2488 = vpop.f32.mrb[0].mxu0
        %v2489 = vpop.f32.mrb[0].mxu0
        %v2490 = vadd.f32 0.0, %v2489
        %v2491 = vpop.f32.mrb[0].mxu0
        %2492 = vmatprep.mubr.bf16.mxu0 0
        %2493 = vmatmul.mubr.bf16.gmra.mrb[0].mxu0 %v2171
        %v2494 = vpop.f32.mrb[0].mxu0
        %v2495 = vadd.f32 0.0, %v2494
        %v2496 = vpop.f32.mrb[0].mxu0
        %v2497 = vpop.f32.mrb[0].mxu0
        %v2498 = vadd.f32 0.0, %v2497
        %v2499 = vpop.f32.mrb[0].mxu0
        %2500 = vmatprep.mubr.bf16.mxu0 0
        %2501 = vmatmul.mubr.bf16.gmra.mrb[0].mxu0 %v2172
        %v2502 = vpop.f32.mrb[0].mxu0
        %v2503 = vadd.f32 0.0, %v2502
        %v2504 = vpop.f32.mrb[0].mxu0
        %v2505 = vpop.f32.mrb[0].mxu0
        %v2506 = vadd.f32 0.0, %v2505
        %v2507 = vpop.f32.mrb[0].mxu0
        %2508 = vmatprep.mubr.bf16.mxu0 0
        %2509 = vmatmul.mubr.bf16.gmra.mrb[0].mxu0 %v2173
        %v2510 = vpop.f32.mrb[0].mxu0
        %v2511 = vadd.f32 0.0, %v2510
        %v2512 = vpop.f32.mrb[0].mxu0
        %v2513 = vpop.f32.mrb[0].mxu0
        %v2514 = vadd.f32 0.0, %v2513
        %v2515 = vpop.f32.mrb[0].mxu0
        %2516 = vmatprep.mubr.bf16.mxu0 0
        %2517 = vmatmul.mubr.bf16.gmra.mrb[0].mxu0 %v2174
        %v2518 = vpop.f32.mrb[0].mxu0
        %v2519 = vadd.f32 0.0, %v2518
        %v2520 = vpop.f32.mrb[0].mxu0
        %v2521 = vpop.f32.mrb[0].mxu0
        %v2522 = vadd.f32 0.0, %v2521
        %v2523 = vpop.f32.mrb[0].mxu0
        %2524 = vmatprep.mubr.bf16.mxu0 0
        %2525 = vmatmul.mubr.bf16.gmra.mrb[0].mxu0 %v2175
        %v2526 = vpop.f32.mrb[0].mxu0
        %v2527 = vadd.f32 0.0, %v2526
        %v2528 = vpop.f32.mrb[0].mxu0
        %v2529 = vpop.f32.mrb[0].mxu0
        %v2530 = vadd.f32 0.0, %v2529
        %v2531 = vpop.f32.mrb[0].mxu0
        %2532 = vmatprep.mubr.bf16.mxu0 0
        %2533 = vmatmul.mubr.bf16.gmra.mrb[0].mxu0 %v2176
        %v2534 = vpop.f32.mrb[0].mxu0
        %v2535 = vadd.f32 0.0, %v2534
        %v2536 = vpop.f32.mrb[0].mxu0
        %v2537 = vpop.f32.mrb[0].mxu0
        %v2538 = vadd.f32 0.0, %v2537
        %v2539 = vpop.f32.mrb[0].mxu0
        %2540 = vmatprep.mubr.bf16.mxu0 0
        %2541 = vmatmul.mubr.bf16.gmra.mrb[0].mxu0 %v2177
        %v2542 = vpop.f32.mrb[0].mxu0
        %v2543 = vadd.f32 0.0, %v2542
        %v2544 = vpop.f32.mrb[0].mxu0
        %v2545 = vpop.f32.mrb[0].mxu0
        %v2546 = vadd.f32 0.0, %v2545
        %v2547 = vpop.f32.mrb[0].mxu0
        %2548 = vmatprep.mubr.bf16.mxu0 0
        %2549 = vmatmul.mubr.bf16.gmra.mrb[0].mxu0 %v2178
        %v2550 = vpop.f32.mrb[0].mxu0
        %v2551 = vadd.f32 0.0, %v2550
        %v2552 = vpop.f32.mrb[0].mxu0
        %v2553 = vpop.f32.mrb[0].mxu0
        %v2554 = vadd.f32 0.0, %v2553
        %v2555 = vpop.f32.mrb[0].mxu0
        %2556 = vmatprep.mubr.bf16.mxu0 0
        %2557 = vmatmul.mubr.bf16.gmra.mrb[0].mxu0 %v2179
        %v2558 = vpop.f32.mrb[0].mxu0
        %v2559 = vadd.f32 0.0, %v2558
        %v2560 = vpop.f32.mrb[0].mxu0
        %v2561 = vpop.f32.mrb[0].mxu0
        %v2562 = vadd.f32 0.0, %v2561
        %v2563 = vpop.f32.mrb[0].mxu0
        %2564 = vmatprep.mubr.bf16.mxu0 0
        %2565 = vmatmul.mubr.bf16.gmra.mrb[0].mxu0 %v2180
        %v2566 = vpop.f32.mrb[0].mxu0
        %v2567 = vadd.f32 0.0, %v2566
        %v2568 = vpop.f32.mrb[0].mxu0
        %v2569 = vpop.f32.mrb[0].mxu0
        %v2570 = vadd.f32 0.0, %v2569
        %v2571 = vpop.f32.mrb[0].mxu0
        %2572 = vmatprep.mubr.bf16.mxu0 0
        %2573 = vmatmul.mubr.bf16.gmra.mrb[0].mxu0 %v2181
        %v2574 = vpop.f32.mrb[0].mxu0
        %v2575 = vadd.f32 0.0, %v2574
        %v2576 = vpop.f32.mrb[0].mxu0
        %v2577 = vpop.f32.mrb[0].mxu0
        %v2578 = vadd.f32 0.0, %v2577
        %v2579 = vpop.f32.mrb[0].mxu0
        %2580 = vmatprep.mubr.bf16.mxu0 0
        %2581 = vmatmul.mubr.bf16.gmra.mrb[0].mxu0 %v2182
        %v2582 = vpop.f32.mrb[0].mxu0
        %v2583 = vadd.f32 0.0, %v2582
        %v2584 = vpop.f32.mrb[0].mxu0
        %v2585 = vpop.f32.mrb[0].mxu0
        %v2586 = vadd.f32 0.0, %v2585
        %v2587 = vpop.f32.mrb[0].mxu0
        %2588 = vmatprep.mubr.bf16.mxu0 0
        %2589 = vmatmul.mubr.bf16.gmra.mrb[0].mxu0 %v2183
        %v2590 = vpop.f32.mrb[0].mxu0
        %v2591 = vadd.f32 0.0, %v2590
        %v2592 = vpop.f32.mrb[0].mxu0
        %v2593 = vpop.f32.mrb[0].mxu0
        %v2594 = vadd.f32 0.0, %v2593
        %v2595 = vpop.f32.mrb[0].mxu0
        %2596 = vmatprep.mubr.bf16.mxu0 0
        %2597 = vmatmul.mubr.bf16.gmra.mrb[0].mxu0 %v2184
        %v2598 = vpop.f32.mrb[0].mxu0
        %v2599 = vadd.f32 0.0, %v2598
        %v2600 = vpop.f32.mrb[0].mxu0
        %v2601 = vpop.f32.mrb[0].mxu0
        %v2602 = vadd.f32 0.0, %v2601
        %v2603 = vpop.f32.mrb[0].mxu0
        %2604 = vmatprep.mubr.bf16.mxu0 0
        %2605 = vmatmul.mubr.bf16.gmra.mrb[0].mxu0 %v2185
        %v2606 = vpop.f32.mrb[0].mxu0
        %v2607 = vadd.f32 0.0, %v2606
        %v2608 = vpop.f32.mrb[0].mxu0
        %v2609 = vpop.f32.mrb[0].mxu0
        %v2610 = vadd.f32 0.0, %v2609
        %v2611 = vpop.f32.mrb[0].mxu0
        %2612 = vmatprep.mubr.bf16.mxu0 0
        %2613 = vmatmul.mubr.bf16.gmra.mrb[0].mxu0 %v2186
        %v2614 = vpop.f32.mrb[0].mxu0
        %v2615 = vadd.f32 0.0, %v2614
        %v2616 = vpop.f32.mrb[0].mxu0
        %v2617 = vpop.f32.mrb[0].mxu0
        %v2618 = vadd.f32 0.0, %v2617
        %v2619 = vpop.f32.mrb[0].mxu0
        %2620 = vmatprep.mubr.bf16.mxu0 0
        %2621 = vmatmul.mubr.bf16.gmra.mrb[0].mxu0 %v2187
        %v2622 = vpop.f32.mrb[0].mxu0
        %v2623 = vadd.f32 0.0, %v2622
        %v2624 = vpop.f32.mrb[0].mxu0
        %v2625 = vpop.f32.mrb[0].mxu0
        %v2626 = vadd.f32 0.0, %v2625
        %v2627 = vpop.f32.mrb[0].mxu0
        %2628 = vmatprep.mubr.bf16.mxu0 0
        %2629 = vmatmul.mubr.bf16.gmra.mrb[0].mxu0 %v2188
        %v2630 = vpop.f32.mrb[0].mxu0
        %v2631 = vadd.f32 0.0, %v2630
        %v2632 = vpop.f32.mrb[0].mxu0
        %v2633 = vpop.f32.mrb[0].mxu0
        %v2634 = vadd.f32 0.0, %v2633
        %v2635 = vpop.f32.mrb[0].mxu0
        %2636 = vmatprep.mubr.bf16.mxu0 0
        %2637 = vmatmul.mubr.bf16.gmra.mrb[0].mxu0 %v2189
        %v2638 = vpop.f32.mrb[0].mxu0
        %v2639 = vadd.f32 0.0, %v2638
        %v2640 = vpop.f32.mrb[0].mxu0
        %v2641 = vpop.f32.mrb[0].mxu0
        %v2642 = vadd.f32 0.0, %v2641
        %v2643 = vpop.f32.mrb[0].mxu0
        %2644 = vmatprep.mubr.bf16.mxu0 0
        %2645 = vmatmul.mubr.bf16.gmra.mrb[0].mxu0 %v2190
        %v2646 = vpop.f32.mrb[0].mxu0
        %v2647 = vadd.f32 0.0, %v2646
        %v2648 = vpop.f32.mrb[0].mxu0
        %v2649 = vpop.f32.mrb[0].mxu0
        %v2650 = vadd.f32 0.0, %v2649
        %v2651 = vpop.f32.mrb[0].mxu0
        %2652 = vmatprep.mubr.bf16.mxu0 0
        %2653 = vmatmul.mubr.bf16.gmra.mrb[0].mxu0 %v2191
        %v2654 = vpop.f32.mrb[0].mxu0
        %v2655 = vadd.f32 0.0, %v2654
        %v2656 = vpop.f32.mrb[0].mxu0
        %v2657 = vpop.f32.mrb[0].mxu0
        %v2658 = vadd.f32 0.0, %v2657
        %v2659 = vpop.f32.mrb[0].mxu0
        %2660 = vmatprep.mubr.bf16.mxu0 0
        %2661 = vmatmul.mubr.bf16.gmra.mrb[0].mxu0 %v2192
        %v2662 = vpop.f32.mrb[0].mxu0
        %v2663 = vadd.f32 0.0, %v2662
        %v2664 = vpop.f32.mrb[0].mxu0
        %v2665 = vpop.f32.mrb[0].mxu0
        %v2666 = vadd.f32 0.0, %v2665
        %v2667 = vpop.f32.mrb[0].mxu0
        %2668 = vmatprep.mubr.bf16.mxu0 0
        %2669 = vmatmul.mubr.bf16.gmra.mrb[0].mxu0 %v2193
        %v2670 = vpop.f32.mrb[0].mxu0
        %v2671 = vadd.f32 0.0, %v2670
        %v2672 = vpop.f32.mrb[0].mxu0
        %v2673 = vpop.f32.mrb[0].mxu0
        %v2674 = vadd.f32 0.0, %v2673
        %v2675 = vpop.f32.mrb[0].mxu0
        %2676 = vmatprep.mubr.bf16.mxu0 0
        %2677 = vmatmul.mubr.bf16.gmra.mrb[0].mxu0 %v2194
        %v2678 = vpop.f32.mrb[0].mxu0
        %v2679 = vadd.f32 0.0, %v2678
        %v2680 = vpop.f32.mrb[0].mxu0
        %v2681 = vpop.f32.mrb[0].mxu0
        %v2682 = vadd.f32 0.0, %v2681
        %v2683 = vpop.f32.mrb[0].mxu0
        %2684 = vmatprep.mubr.bf16.mxu0 0
        %2685 = vmatmul.mubr.bf16.gmra.mrb[0].mxu0 %v2195
        %v2686 = vpop.f32.mrb[0].mxu0
        %v2687 = vadd.f32 0.0, %v2686
        %v2688 = vpop.f32.mrb[0].mxu0
        %v2689 = vpop.f32.mrb[0].mxu0
        %v2690 = vadd.f32 0.0, %v2689
        %v2691 = vpop.f32.mrb[0].mxu0
        %2692 = vmatprep.mubr.bf16.mxu0 0
        %2693 = vmatmul.mubr.bf16.gmra.mrb[0].mxu0 %v2196
        %v2694 = vpop.f32.mrb[0].mxu0
        %v2695 = vadd.f32 0.0, %v2694
        %v2696 = vpop.f32.mrb[0].mxu0
        %v2697 = vpop.f32.mrb[0].mxu0
        %v2698 = vadd.f32 0.0, %v2697
        %v2699 = vpop.f32.mrb[0].mxu0
        %2700 = vmatprep.mubr.bf16.mxu0 0
        %2701 = vmatmul.mubr.bf16.gmra.mrb[0].mxu0 %v2197
        %v2702 = vpop.f32.mrb[0].mxu0
        %v2703 = vadd.f32 0.0, %v2702
        %v2704 = vpop.f32.mrb[0].mxu0
        %v2705 = vpop.f32.mrb[0].mxu0
        %v2706 = vadd.f32 0.0, %v2705
        %v2707 = vpop.f32.mrb[0].mxu0
        %2708 = vmatprep.mubr.bf16.mxu0 0
        %2709 = vmatmul.mubr.bf16.gmra.mrb[0].mxu0 %v2198
        %v2710 = vpop.f32.mrb[0].mxu0
        %v2711 = vadd.f32 0.0, %v2710
        %v2712 = vpop.f32.mrb[0].mxu0
        %v2713 = vpop.f32.mrb[0].mxu0
        %v2714 = vadd.f32 0.0, %v2713
        %v2715 = vpop.f32.mrb[0].mxu0
        %2716 = vmatprep.mubr.bf16.mxu0 0
        %2717 = vmatmul.mubr.bf16.gmra.mrb[0].mxu0 %v2199
        %v2718 = vpop.f32.mrb[0].mxu0
        %v2719 = vadd.f32 0.0, %v2718
        %v2720 = vpop.f32.mrb[0].mxu0
        %v2721 = vpop.f32.mrb[0].mxu0
        %v2722 = vadd.f32 0.0, %v2721
        %v2723 = vpop.f32.mrb[0].mxu0
        %2724 = vmatprep.mubr.bf16.mxu0 0
        %2725 = vmatmul.mubr.bf16.gmra.mrb[0].mxu0 %v2200
        %v2726 = vpop.f32.mrb[0].mxu0
        %v2727 = vadd.f32 0.0, %v2726
        %v2728 = vpop.f32.mrb[0].mxu0
        %v2729 = vpop.f32.mrb[0].mxu0
        %v2730 = vadd.f32 0.0, %v2729
        %v2731 = vpop.f32.mrb[0].mxu0
        %2732 = vmatprep.mubr.bf16.mxu0 0
        %2733 = vmatmul.mubr.bf16.gmra.mrb[0].mxu0 %v2201
        %v2734 = vpop.f32.mrb[0].mxu0
        %v2735 = vadd.f32 0.0, %v2734
        %v2736 = vpop.f32.mrb[0].mxu0
        %v2737 = vpop.f32.mrb[0].mxu0
        %v2738 = vadd.f32 0.0, %v2737
        %v2739 = vpop.f32.mrb[0].mxu0
        %2740 = vmatprep.mubr.bf16.mxu0 0
        %2741 = vmatmul.mubr.bf16.gmra.mrb[0].mxu0 %v2202
        %v2742 = vpop.f32.mrb[0].mxu0
        %v2743 = vadd.f32 0.0, %v2742
        %v2744 = vpop.f32.mrb[0].mxu0
        %v2745 = vpop.f32.mrb[0].mxu0
        %v2746 = vadd.f32 0.0, %v2745
        %v2747 = vpop.f32.mrb[0].mxu0
        %2748 = vmatprep.mubr.bf16.mxu0 0
        %2749 = vmatmul.mubr.bf16.gmra.mrb[0].mxu0 %v2203
        %v2750 = vpop.f32.mrb[0].mxu0
        %v2751 = vadd.f32 0.0, %v2750
        %v2752 = vpop.f32.mrb[0].mxu0
        %v2753 = vpop.f32.mrb[0].mxu0
        %v2754 = vadd.f32 0.0, %v2753
        %v2755 = vpop.f32.mrb[0].mxu0
        %2756 = vmatprep.mubr.bf16.mxu0 0
        %2757 = vmatmul.mubr.bf16.gmra.mrb[0].mxu0 %v2204
        %v2758 = vpop.f32.mrb[0].mxu0
        %v2759 = vadd.f32 0.0, %v2758
        %v2760 = vpop.f32.mrb[0].mxu0
        %v2761 = vpop.f32.mrb[0].mxu0
        %v2762 = vadd.f32 0.0, %v2761
        %v2763 = vpop.f32.mrb[0].mxu0
        %2764 = vmatprep.mubr.bf16.mxu0 0
        %2765 = vmatmul.mubr.bf16.gmra.mrb[0].mxu0 %v2205
        %v2766 = vpop.f32.mrb[0].mxu0
        %v2767 = vadd.f32 0.0, %v2766
        %v2768 = vpop.f32.mrb[0].mxu0
        %v2769 = vpop.f32.mrb[0].mxu0
        %v2770 = vadd.f32 0.0, %v2769
        %v2771 = vpop.f32.mrb[0].mxu0
        %2772 = vmatprep.mubr.bf16.mxu0 0
        %2773 = vmatmul.mubr.bf16.gmra.mrb[0].mxu0 %v2206
        %v2774 = vpop.f32.mrb[0].mxu0
        %v2775 = vadd.f32 0.0, %v2774
        %v2776 = vpop.f32.mrb[0].mxu0
        %v2777 = vpop.f32.mrb[0].mxu0
        %v2778 = vadd.f32 0.0, %v2777
        %v2779 = vpop.f32.mrb[0].mxu0
        %2780 = vmatprep.mubr.bf16.mxu0 0
        %2781 = vmatmul.mubr.bf16.gmra.mrb[0].mxu0 %v2207
        %v2782 = vpop.f32.mrb[0].mxu0
        %v2783 = vadd.f32 0.0, %v2782
        %v2784 = vpop.f32.mrb[0].mxu0
        %v2785 = vpop.f32.mrb[0].mxu0
        %v2786 = vadd.f32 0.0, %v2785
        %v2787 = vpop.f32.mrb[0].mxu0
        %2788 = vmatprep.mubr.bf16.mxu0 0
        %2789 = vmatmul.mubr.bf16.gmra.mrb[0].mxu0 %v2208
        %v2790 = vpop.f32.mrb[0].mxu0
        %v2791 = vadd.f32 0.0, %v2790
        %v2792 = vpop.f32.mrb[0].mxu0
        %v2793 = vpop.f32.mrb[0].mxu0
        %v2794 = vadd.f32 0.0, %v2793
        %v2795 = vpop.f32.mrb[0].mxu0
        %2796 = vmatprep.mubr.bf16.mxu0 0
        %2797 = vmatmul.mubr.bf16.gmra.mrb[0].mxu0 %v2209
        %v2798 = vpop.f32.mrb[0].mxu0
        %v2799 = vadd.f32 0.0, %v2798
        %v2800 = vpop.f32.mrb[0].mxu0
        %v2801 = vpop.f32.mrb[0].mxu0
        %v2802 = vadd.f32 0.0, %v2801
        %v2803 = vpop.f32.mrb[0].mxu0
        %2804 = vmatprep.mubr.bf16.mxu0 0
        %2805 = vmatmul.mubr.bf16.gmra.mrb[0].mxu0 %v2210
        %v2806 = vpop.f32.mrb[0].mxu0
        %v2807 = vadd.f32 0.0, %v2806
        %v2808 = vpop.f32.mrb[0].mxu0
        %v2809 = vpop.f32.mrb[0].mxu0
        %v2810 = vadd.f32 0.0, %v2809
        %v2811 = vpop.f32.mrb[0].mxu0
        %2812 = vmatprep.mubr.bf16.mxu0 0
        %2813 = vmatmul.mubr.bf16.gmra.mrb[0].mxu0 %v2211
        %v2814 = vpop.f32.mrb[0].mxu0
        %v2815 = vadd.f32 0.0, %v2814
        %v2816 = vpop.f32.mrb[0].mxu0
        %v2817 = vpop.f32.mrb[0].mxu0
        %v2818 = vadd.f32 0.0, %v2817
        %v2819 = vpop.f32.mrb[0].mxu0
        %2820 = vdwg.mxu0
        %vm2821 = vcmask 523264
        %2822 = vst.msk [vmem:[#allocation3] sm:$0xff] %vm2821, %v2311
        %2823 = vst.msk [vmem:[#allocation3 + $0x8] sm:$0xff] %vm2821, %v2314
        %2824 = vst.msk [vmem:[#allocation3 + $0x10] sm:$0xff] %vm2821, %v2319
        %2825 = vst.msk [vmem:[#allocation3 + $0x18] sm:$0xff] %vm2821, %v2322
        %2826 = vst.msk [vmem:[#allocation3 + $0x20] sm:$0xff] %vm2821, %v2327
        %2827 = vst.msk [vmem:[#allocation3 + $0x28] sm:$0xff] %vm2821, %v2330
        %2828 = vst.msk [vmem:[#allocation3 + $0x30] sm:$0xff] %vm2821, %v2335
        %2829 = vst.msk [vmem:[#allocation3 + $0x38] sm:$0xff] %vm2821, %v2338
        %2830 = vst.msk [vmem:[#allocation3 + $0x40] sm:$0xff] %vm2821, %v2343
        %2831 = vst.msk [vmem:[#allocation3 + $0x48] sm:$0xff] %vm2821, %v2346
        %2832 = vst.msk [vmem:[#allocation3 + $0x50] sm:$0xff] %vm2821, %v2351
        %2833 = vst.msk [vmem:[#allocation3 + $0x58] sm:$0xff] %vm2821, %v2354
        %2834 = vst.msk [vmem:[#allocation3 + $0x60] sm:$0xff] %vm2821, %v2359
        %2835 = vst.msk [vmem:[#allocation3 + $0x68] sm:$0xff] %vm2821, %v2362
        %2836 = vst.msk [vmem:[#allocation3 + $0x70] sm:$0xff] %vm2821, %v2367
        %2837 = vst.msk [vmem:[#allocation3 + $0x78] sm:$0xff] %vm2821, %v2370
        %2838 = vst.msk [vmem:[#allocation3 + $0x80] sm:$0xff] %vm2821, %v2375
        %2839 = vst.msk [vmem:[#allocation3 + $0x88] sm:$0xff] %vm2821, %v2378
        %2840 = vst.msk [vmem:[#allocation3 + $0x90] sm:$0xff] %vm2821, %v2383
        %2841 = vst.msk [vmem:[#allocation3 + $0x98] sm:$0xff] %vm2821, %v2386
        %2842 = vst.msk [vmem:[#allocation3 + $0xa0] sm:$0xff] %vm2821, %v2391
        %2843 = vst.msk [vmem:[#allocation3 + $0xa8] sm:$0xff] %vm2821, %v2394
        %2844 = vst.msk [vmem:[#allocation3 + $0xb0] sm:$0xff] %vm2821, %v2399
        %2845 = vst.msk [vmem:[#allocation3 + $0xb8] sm:$0xff] %vm2821, %v2402
        %2846 = vst.msk [vmem:[#allocation3 + $0xc0] sm:$0xff] %vm2821, %v2407
        %2847 = vst.msk [vmem:[#allocation3 + $0xc8] sm:$0xff] %vm2821, %v2410
        %2848 = vst.msk [vmem:[#allocation3 + $0xd0] sm:$0xff] %vm2821, %v2415
        %2849 = vst.msk [vmem:[#allocation3 + $0xd8] sm:$0xff] %vm2821, %v2418
        %2850 = vst.msk [vmem:[#allocation3 + $0xe0] sm:$0xff] %vm2821, %v2423
        %2851 = vst.msk [vmem:[#allocation3 + $0xe8] sm:$0xff] %vm2821, %v2426
        %2852 = vst.msk [vmem:[#allocation3 + $0xf0] sm:$0xff] %vm2821, %v2431
        %2853 = vst.msk [vmem:[#allocation3 + $0xf8] sm:$0xff] %vm2821, %v2434
        %2854 = vst.msk [vmem:[#allocation3 + $0x100] sm:$0xff] %vm2821, %v2439
        %2855 = vst.msk [vmem:[#allocation3 + $0x108] sm:$0xff] %vm2821, %v2442
        %2856 = vst.msk [vmem:[#allocation3 + $0x110] sm:$0xff] %vm2821, %v2447
        %2857 = vst.msk [vmem:[#allocation3 + $0x118] sm:$0xff] %vm2821, %v2450
        %2858 = vst.msk [vmem:[#allocation3 + $0x120] sm:$0xff] %vm2821, %v2455
        %2859 = vst.msk [vmem:[#allocation3 + $0x128] sm:$0xff] %vm2821, %v2458
        %2860 = vst.msk [vmem:[#allocation3 + $0x130] sm:$0xff] %vm2821, %v2463
        %2861 = vst.msk [vmem:[#allocation3 + $0x138] sm:$0xff] %vm2821, %v2466
        %2862 = vst.msk [vmem:[#allocation3 + $0x140] sm:$0xff] %vm2821, %v2471
        %2863 = vst.msk [vmem:[#allocation3 + $0x148] sm:$0xff] %vm2821, %v2474
        %2864 = vst.msk [vmem:[#allocation3 + $0x150] sm:$0xff] %vm2821, %v2479
        %2865 = vst.msk [vmem:[#allocation3 + $0x158] sm:$0xff] %vm2821, %v2482
        %2866 = vst.msk [vmem:[#allocation3 + $0x160] sm:$0xff] %vm2821, %v2487
        %2867 = vst.msk [vmem:[#allocation3 + $0x168] sm:$0xff] %vm2821, %v2490
        %2868 = vst.msk [vmem:[#allocation3 + $0x170] sm:$0xff] %vm2821, %v2495
        %2869 = vst.msk [vmem:[#allocation3 + $0x178] sm:$0xff] %vm2821, %v2498
        %2870 = vst.msk [vmem:[#allocation3 + $0x180] sm:$0xff] %vm2821, %v2503
        %2871 = vst.msk [vmem:[#allocation3 + $0x188] sm:$0xff] %vm2821, %v2506
        %2872 = vst.msk [vmem:[#allocation3 + $0x190] sm:$0xff] %vm2821, %v2511
        %2873 = vst.msk [vmem:[#allocation3 + $0x198] sm:$0xff] %vm2821, %v2514
        %2874 = vst.msk [vmem:[#allocation3 + $0x1a0] sm:$0xff] %vm2821, %v2519
        %2875 = vst.msk [vmem:[#allocation3 + $0x1a8] sm:$0xff] %vm2821, %v2522
        %2876 = vst.msk [vmem:[#allocation3 + $0x1b0] sm:$0xff] %vm2821, %v2527
        %2877 = vst.msk [vmem:[#allocation3 + $0x1b8] sm:$0xff] %vm2821, %v2530
        %2878 = vst.msk [vmem:[#allocation3 + $0x1c0] sm:$0xff] %vm2821, %v2535
        %2879 = vst.msk [vmem:[#allocation3 + $0x1c8] sm:$0xff] %vm2821, %v2538
        %2880 = vst.msk [vmem:[#allocation3 + $0x1d0] sm:$0xff] %vm2821, %v2543
        %2881 = vst.msk [vmem:[#allocation3 + $0x1d8] sm:$0xff] %vm2821, %v2546
        %2882 = vst.msk [vmem:[#allocation3 + $0x1e0] sm:$0xff] %vm2821, %v2551
        %2883 = vst.msk [vmem:[#allocation3 + $0x1e8] sm:$0xff] %vm2821, %v2554
        %2884 = vst.msk [vmem:[#allocation3 + $0x1f0] sm:$0xff] %vm2821, %v2559
        %2885 = vst.msk [vmem:[#allocation3 + $0x1f8] sm:$0xff] %vm2821, %v2562
        %2886 = vst.msk [vmem:[#allocation3 + $0x200] sm:$0xff] %vm2821, %v2567
        %2887 = vst.msk [vmem:[#allocation3 + $0x208] sm:$0xff] %vm2821, %v2570
        %2888 = vst.msk [vmem:[#allocation3 + $0x210] sm:$0xff] %vm2821, %v2575
        %2889 = vst.msk [vmem:[#allocation3 + $0x218] sm:$0xff] %vm2821, %v2578
        %2890 = vst.msk [vmem:[#allocation3 + $0x220] sm:$0xff] %vm2821, %v2583
        %2891 = vst.msk [vmem:[#allocation3 + $0x228] sm:$0xff] %vm2821, %v2586
        %2892 = vst.msk [vmem:[#allocation3 + $0x230] sm:$0xff] %vm2821, %v2591
        %2893 = vst.msk [vmem:[#allocation3 + $0x238] sm:$0xff] %vm2821, %v2594
        %2894 = vst.msk [vmem:[#allocation3 + $0x240] sm:$0xff] %vm2821, %v2599
        %2895 = vst.msk [vmem:[#allocation3 + $0x248] sm:$0xff] %vm2821, %v2602
        %2896 = vst.msk [vmem:[#allocation3 + $0x250] sm:$0xff] %vm2821, %v2607
        %2897 = vst.msk [vmem:[#allocation3 + $0x258] sm:$0xff] %vm2821, %v2610
        %2898 = vst.msk [vmem:[#allocation3 + $0x260] sm:$0xff] %vm2821, %v2615
        %2899 = vst.msk [vmem:[#allocation3 + $0x268] sm:$0xff] %vm2821, %v2618
        %2900 = vst.msk [vmem:[#allocation3 + $0x270] sm:$0xff] %vm2821, %v2623
        %2901 = vst.msk [vmem:[#allocation3 + $0x278] sm:$0xff] %vm2821, %v2626
        %2902 = vst.msk [vmem:[#allocation3 + $0x280] sm:$0xff] %vm2821, %v2631
        %2903 = vst.msk [vmem:[#allocation3 + $0x288] sm:$0xff] %vm2821, %v2634
        %2904 = vst.msk [vmem:[#allocation3 + $0x290] sm:$0xff] %vm2821, %v2639
        %2905 = vst.msk [vmem:[#allocation3 + $0x298] sm:$0xff] %vm2821, %v2642
        %2906 = vst.msk [vmem:[#allocation3 + $0x2a0] sm:$0xff] %vm2821, %v2647
        %2907 = vst.msk [vmem:[#allocation3 + $0x2a8] sm:$0xff] %vm2821, %v2650
        %2908 = vst.msk [vmem:[#allocation3 + $0x2b0] sm:$0xff] %vm2821, %v2655
        %2909 = vst.msk [vmem:[#allocation3 + $0x2b8] sm:$0xff] %vm2821, %v2658
        %2910 = vst.msk [vmem:[#allocation3 + $0x2c0] sm:$0xff] %vm2821, %v2663
        %2911 = vst.msk [vmem:[#allocation3 + $0x2c8] sm:$0xff] %vm2821, %v2666
        %2912 = vst.msk [vmem:[#allocation3 + $0x2d0] sm:$0xff] %vm2821, %v2671
        %2913 = vst.msk [vmem:[#allocation3 + $0x2d8] sm:$0xff] %vm2821, %v2674
        %2914 = vst.msk [vmem:[#allocation3 + $0x2e0] sm:$0xff] %vm2821, %v2679
        %2915 = vst.msk [vmem:[#allocation3 + $0x2e8] sm:$0xff] %vm2821, %v2682
        %2916 = vst.msk [vmem:[#allocation3 + $0x2f0] sm:$0xff] %vm2821, %v2687
        %2917 = vst.msk [vmem:[#allocation3 + $0x2f8] sm:$0xff] %vm2821, %v2690
        %2918 = vst.msk [vmem:[#allocation3 + $0x300] sm:$0xff] %vm2821, %v2695
        %2919 = vst.msk [vmem:[#allocation3 + $0x308] sm:$0xff] %vm2821, %v2698
        %2920 = vst.msk [vmem:[#allocation3 + $0x310] sm:$0xff] %vm2821, %v2703
        %2921 = vst.msk [vmem:[#allocation3 + $0x318] sm:$0xff] %vm2821, %v2706
        %2922 = vst.msk [vmem:[#allocation3 + $0x320] sm:$0xff] %vm2821, %v2711
        %2923 = vst.msk [vmem:[#allocation3 + $0x328] sm:$0xff] %vm2821, %v2714
        %2924 = vst.msk [vmem:[#allocation3 + $0x330] sm:$0xff] %vm2821, %v2719
        %2925 = vst.msk [vmem:[#allocation3 + $0x338] sm:$0xff] %vm2821, %v2722
        %2926 = vst.msk [vmem:[#allocation3 + $0x340] sm:$0xff] %vm2821, %v2727
        %2927 = vst.msk [vmem:[#allocation3 + $0x348] sm:$0xff] %vm2821, %v2730
        %2928 = vst.msk [vmem:[#allocation3 + $0x350] sm:$0xff] %vm2821, %v2735
        %2929 = vst.msk [vmem:[#allocation3 + $0x358] sm:$0xff] %vm2821, %v2738
        %2930 = vst.msk [vmem:[#allocation3 + $0x360] sm:$0xff] %vm2821, %v2743
        %2931 = vst.msk [vmem:[#allocation3 + $0x368] sm:$0xff] %vm2821, %v2746
        %2932 = vst.msk [vmem:[#allocation3 + $0x370] sm:$0xff] %vm2821, %v2751
        %2933 = vst.msk [vmem:[#allocation3 + $0x378] sm:$0xff] %vm2821, %v2754
        %2934 = vst.msk [vmem:[#allocation3 + $0x380] sm:$0xff] %vm2821, %v2759
        %2935 = vst.msk [vmem:[#allocation3 + $0x388] sm:$0xff] %vm2821, %v2762
        %2936 = vst.msk [vmem:[#allocation3 + $0x390] sm:$0xff] %vm2821, %v2767
        %2937 = vst.msk [vmem:[#allocation3 + $0x398] sm:$0xff] %vm2821, %v2770
        %2938 = vst.msk [vmem:[#allocation3 + $0x3a0] sm:$0xff] %vm2821, %v2775
        %2939 = vst.msk [vmem:[#allocation3 + $0x3a8] sm:$0xff] %vm2821, %v2778
        %2940 = vst.msk [vmem:[#allocation3 + $0x3b0] sm:$0xff] %vm2821, %v2783
        %2941 = vst.msk [vmem:[#allocation3 + $0x3b8] sm:$0xff] %vm2821, %v2786
        %2942 = vst.msk [vmem:[#allocation3 + $0x3c0] sm:$0xff] %vm2821, %v2791
        %2943 = vst.msk [vmem:[#allocation3 + $0x3c8] sm:$0xff] %vm2821, %v2794
        %2944 = vst.msk [vmem:[#allocation3 + $0x3d0] sm:$0xff] %vm2821, %v2799
        %2945 = vst.msk [vmem:[#allocation3 + $0x3d8] sm:$0xff] %vm2821, %v2802
        %2946 = vst.msk [vmem:[#allocation3 + $0x3e0] sm:$0xff] %vm2821, %v2807
        %2947 = vst.msk [vmem:[#allocation3 + $0x3e8] sm:$0xff] %vm2821, %v2810
        %2948 = vst.msk [vmem:[#allocation3 + $0x3f0] sm:$0xff] %vm2821, %v2815
        %2949 = vst.msk [vmem:[#allocation3 + $0x3f8] sm:$0xff] %vm2821, %v2818
        %v2950 = vld [vmem:[#allocation3 + $0x80] sm:$0xff]
        %v2951 = vld [vmem:[#allocation3 + $0x88] sm:$0xff]
        %v2952 = vld [vmem:[#allocation3 + $0x90] sm:$0xff]
        %v2953 = vld [vmem:[#allocation3 + $0x98] sm:$0xff]
        %v2954 = vld [vmem:[#allocation3 + $0xa0] sm:$0xff]
        %v2955 = vld [vmem:[#allocation3 + $0xa8] sm:$0xff]
        %v2956 = vld [vmem:[#allocation3 + $0xb0] sm:$0xff]
        %v2957 = vld [vmem:[#allocation3 + $0xb8] sm:$0xff]
        %v2958 = vld [vmem:[#allocation3 + $0xc0] sm:$0xff]
        %v2959 = vld [vmem:[#allocation3 + $0xc8] sm:$0xff]
        %v2960 = vld [vmem:[#allocation3 + $0xd0] sm:$0xff]
        %v2961 = vld [vmem:[#allocation3 + $0xd8] sm:$0xff]
        %v2962 = vld [vmem:[#allocation3 + $0xe0] sm:$0xff]
        %v2963 = vld [vmem:[#allocation3 + $0xe8] sm:$0xff]
        %v2964 = vld [vmem:[#allocation3 + $0xf0] sm:$0xff]
        %v2965 = vld [vmem:[#allocation3 + $0xf8] sm:$0xff]
        %v2966 = vld [vmem:[#allocation3 + $0x100] sm:$0xff]
        %v2967 = vld [vmem:[#allocation3 + $0x108] sm:$0xff]
        %v2968 = vld [vmem:[#allocation3 + $0x110] sm:$0xff]
        %v2969 = vld [vmem:[#allocation3 + $0x118] sm:$0xff]
        %v2970 = vld [vmem:[#allocation3 + $0x120] sm:$0xff]
        %v2971 = vld [vmem:[#allocation3 + $0x128] sm:$0xff]
        %v2972 = vld [vmem:[#allocation3 + $0x130] sm:$0xff]
        %v2973 = vld [vmem:[#allocation3 + $0x138] sm:$0xff]
        %v2974 = vld [vmem:[#allocation3 + $0x140] sm:$0xff]
        %v2975 = vld [vmem:[#allocation3 + $0x148] sm:$0xff]
        %v2976 = vld [vmem:[#allocation3 + $0x150] sm:$0xff]
        %v2977 = vld [vmem:[#allocation3 + $0x158] sm:$0xff]
        %v2978 = vld [vmem:[#allocation3 + $0x160] sm:$0xff]
        %v2979 = vld [vmem:[#allocation3 + $0x168] sm:$0xff]
        %v2980 = vld [vmem:[#allocation3 + $0x170] sm:$0xff]
        %v2981 = vld [vmem:[#allocation3 + $0x178] sm:$0xff]
        %v2982 = vld [vmem:[#allocation3 + $0x180] sm:$0xff]
        %v2983 = vld [vmem:[#allocation3 + $0x188] sm:$0xff]
        %v2984 = vld [vmem:[#allocation3 + $0x190] sm:$0xff]
        %v2985 = vld [vmem:[#allocation3 + $0x198] sm:$0xff]
        %v2986 = vld [vmem:[#allocation3 + $0x1a0] sm:$0xff]
        %v2987 = vld [vmem:[#allocation3 + $0x1a8] sm:$0xff]
        %v2988 = vld [vmem:[#allocation3 + $0x1b0] sm:$0xff]
        %v2989 = vld [vmem:[#allocation3 + $0x1b8] sm:$0xff]
        %v2990 = vld [vmem:[#allocation3 + $0x1c0] sm:$0xff]
        %v2991 = vld [vmem:[#allocation3 + $0x1c8] sm:$0xff]
        %v2992 = vld [vmem:[#allocation3 + $0x1d0] sm:$0xff]
        %v2993 = vld [vmem:[#allocation3 + $0x1d8] sm:$0xff]
        %v2994 = vld [vmem:[#allocation3 + $0x1e0] sm:$0xff]
        %v2995 = vld [vmem:[#allocation3 + $0x1e8] sm:$0xff]
        %v2996 = vld [vmem:[#allocation3 + $0x1f0] sm:$0xff]
        %v2997 = vld [vmem:[#allocation3 + $0x1f8] sm:$0xff]
        %v2998 = vld [vmem:[#allocation3 + $0x200] sm:$0xff]
        %v2999 = vld [vmem:[#allocation3 + $0x208] sm:$0xff]
        %v3000 = vld [vmem:[#allocation3 + $0x210] sm:$0xff]
        %v3001 = vld [vmem:[#allocation3 + $0x218] sm:$0xff]
        %v3002 = vld [vmem:[#allocation3 + $0x220] sm:$0xff]
        %v3003 = vld [vmem:[#allocation3 + $0x228] sm:$0xff]
        %v3004 = vld [vmem:[#allocation3 + $0x230] sm:$0xff]
        %v3005 = vld [vmem:[#allocation3 + $0x238] sm:$0xff]
        %v3006 = vld [vmem:[#allocation3 + $0x240] sm:$0xff]
        %v3007 = vld [vmem:[#allocation3 + $0x248] sm:$0xff]
        %v3008 = vld [vmem:[#allocation3 + $0x250] sm:$0xff]
        %v3009 = vld [vmem:[#allocation3 + $0x258] sm:$0xff]
        %v3010 = vld [vmem:[#allocation3 + $0x260] sm:$0xff]
        %v3011 = vld [vmem:[#allocation3 + $0x268] sm:$0xff]
        %v3012 = vld [vmem:[#allocation3 + $0x270] sm:$0xff]
        %v3013 = vld [vmem:[#allocation3 + $0x278] sm:$0xff]
        %v3014 = vld [vmem:[#allocation3 + $0x280] sm:$0xff]
        %v3015 = vld [vmem:[#allocation3 + $0x288] sm:$0xff]
        %v3016 = vld [vmem:[#allocation3 + $0x290] sm:$0xff]
        %v3017 = vld [vmem:[#allocation3 + $0x298] sm:$0xff]
        %v3018 = vld [vmem:[#allocation3 + $0x2a0] sm:$0xff]
        %v3019 = vld [vmem:[#allocation3 + $0x2a8] sm:$0xff]
        %v3020 = vld [vmem:[#allocation3 + $0x2b0] sm:$0xff]
        %v3021 = vld [vmem:[#allocation3 + $0x2b8] sm:$0xff]
        %v3022 = vld [vmem:[#allocation3 + $0x2c0] sm:$0xff]
        %v3023 = vld [vmem:[#allocation3 + $0x2c8] sm:$0xff]
        %v3024 = vld [vmem:[#allocation3 + $0x2d0] sm:$0xff]
        %v3025 = vld [vmem:[#allocation3 + $0x2d8] sm:$0xff]
        %v3026 = vld [vmem:[#allocation3 + $0x2e0] sm:$0xff]
        %v3027 = vld [vmem:[#allocation3 + $0x2e8] sm:$0xff]
        %v3028 = vld [vmem:[#allocation3 + $0x2f0] sm:$0xff]
        %v3029 = vld [vmem:[#allocation3 + $0x2f8] sm:$0xff]
        %v3030 = vld [vmem:[#allocation3 + $0x300] sm:$0xff]
        %v3031 = vld [vmem:[#allocation3 + $0x308] sm:$0xff]
        %v3032 = vld [vmem:[#allocation3 + $0x310] sm:$0xff]
        %v3033 = vld [vmem:[#allocation3 + $0x318] sm:$0xff]
        %v3034 = vld [vmem:[#allocation3 + $0x320] sm:$0xff]
        %v3035 = vld [vmem:[#allocation3 + $0x328] sm:$0xff]
        %v3036 = vld [vmem:[#allocation3 + $0x330] sm:$0xff]
        %v3037 = vld [vmem:[#allocation3 + $0x338] sm:$0xff]
        %v3038 = vld [vmem:[#allocation3 + $0x340] sm:$0xff]
        %v3039 = vld [vmem:[#allocation3 + $0x348] sm:$0xff]
        %v3040 = vld [vmem:[#allocation3 + $0x350] sm:$0xff]
        %v3041 = vld [vmem:[#allocation3 + $0x358] sm:$0xff]
        %v3042 = vld [vmem:[#allocation3 + $0x360] sm:$0xff]
        %v3043 = vld [vmem:[#allocation3 + $0x368] sm:$0xff]
        %v3044 = vld [vmem:[#allocation3 + $0x370] sm:$0xff]
        %v3045 = vld [vmem:[#allocation3 + $0x378] sm:$0xff]
        %v3046 = vld [vmem:[#allocation3 + $0x380] sm:$0xff]
        %v3047 = vld [vmem:[#allocation3 + $0x388] sm:$0xff]
        %v3048 = vld [vmem:[#allocation3 + $0x390] sm:$0xff]
        %v3049 = vld [vmem:[#allocation3 + $0x398] sm:$0xff]
        %v3050 = vld [vmem:[#allocation3 + $0x3a0] sm:$0xff]
        %v3051 = vld [vmem:[#allocation3 + $0x3a8] sm:$0xff]
        %v3052 = vld [vmem:[#allocation3 + $0x3b0] sm:$0xff]
        %v3053 = vld [vmem:[#allocation3 + $0x3b8] sm:$0xff]
        %v3054 = vld [vmem:[#allocation3 + $0x3c0] sm:$0xff]
        %v3055 = vld [vmem:[#allocation3 + $0x3c8] sm:$0xff]
        %v3056 = vld [vmem:[#allocation3 + $0x3d0] sm:$0xff]
        %v3057 = vld [vmem:[#allocation3 + $0x3d8] sm:$0xff]
        %v3058 = vld [vmem:[#allocation3 + $0x3e0] sm:$0xff]
        %v3059 = vld [vmem:[#allocation3 + $0x3e8] sm:$0xff]
        %v3060 = vld [vmem:[#allocation3 + $0x3f0] sm:$0xff]
        %v3061 = vld [vmem:[#allocation3 + $0x3f8] sm:$0xff]
        %v3062 = vld [vmem:[#allocation2] sm:$0xff]
        %v3063 = vld [vmem:[#allocation2 + $0x8] sm:$0xff]
        %v3064 = vld [vmem:[#allocation2 + $0x10] sm:$0xff]
        %v3065 = vld [vmem:[#allocation2 + $0x18] sm:$0xff]
        %v3066 = vld [vmem:[#allocation2 + $0x20] sm:$0xff]
        %v3067 = vld [vmem:[#allocation2 + $0x28] sm:$0xff]
        %v3068 = vld [vmem:[#allocation2 + $0x30] sm:$0xff]
        %v3069 = vld [vmem:[#allocation2 + $0x38] sm:$0xff]
        %v3070 = vld [vmem:[#allocation2 + $0x40] sm:$0xff]
        %v3071 = vld [vmem:[#allocation2 + $0x48] sm:$0xff]
        %v3072 = vld [vmem:[#allocation2 + $0x50] sm:$0xff]
        %v3073 = vld [vmem:[#allocation2 + $0x58] sm:$0xff]
        %v3074 = vld [vmem:[#allocation2 + $0x60] sm:$0xff]
        %v3075 = vld [vmem:[#allocation2 + $0x68] sm:$0xff]
        %v3076 = vld [vmem:[#allocation2 + $0x70] sm:$0xff]
        %v3077 = vld [vmem:[#allocation2 + $0x78] sm:$0xff]
        %v3078 = vld [vmem:[#allocation2 + $0x80] sm:$0xff]
        %v3079 = vld [vmem:[#allocation2 + $0x88] sm:$0xff]
        %v3080 = vld [vmem:[#allocation2 + $0x90] sm:$0xff]
        %v3081 = vld [vmem:[#allocation2 + $0x98] sm:$0xff]
        %v3082 = vld [vmem:[#allocation2 + $0xa0] sm:$0xff]
        %v3083 = vld [vmem:[#allocation2 + $0xa8] sm:$0xff]
        %v3084 = vld [vmem:[#allocation2 + $0xb0] sm:$0xff]
        %v3085 = vld [vmem:[#allocation2 + $0xb8] sm:$0xff]
        %v3086 = vld [vmem:[#allocation2 + $0xc0] sm:$0xff]
        %v3087 = vld [vmem:[#allocation2 + $0xc8] sm:$0xff]
        %v3088 = vld [vmem:[#allocation2 + $0xd0] sm:$0xff]
        %v3089 = vld [vmem:[#allocation2 + $0xd8] sm:$0xff]
        %v3090 = vld [vmem:[#allocation2 + $0xe0] sm:$0xff]
        %v3091 = vld [vmem:[#allocation2 + $0xe8] sm:$0xff]
        %v3092 = vld [vmem:[#allocation2 + $0xf0] sm:$0xff]
        %v3093 = vld [vmem:[#allocation2 + $0xf8] sm:$0xff]
        %v3094 = vld [vmem:[#allocation2 + $0x100] sm:$0xff]
        %v3095 = vld [vmem:[#allocation2 + $0x108] sm:$0xff]
        %v3096 = vld [vmem:[#allocation2 + $0x110] sm:$0xff]
        %v3097 = vld [vmem:[#allocation2 + $0x118] sm:$0xff]
        %v3098 = vld [vmem:[#allocation2 + $0x120] sm:$0xff]
        %v3099 = vld [vmem:[#allocation2 + $0x128] sm:$0xff]
        %v3100 = vld [vmem:[#allocation2 + $0x130] sm:$0xff]
        %v3101 = vld [vmem:[#allocation2 + $0x138] sm:$0xff]
        %v3102 = vld [vmem:[#allocation2 + $0x140] sm:$0xff]
        %v3103 = vld [vmem:[#allocation2 + $0x148] sm:$0xff]
        %v3104 = vld [vmem:[#allocation2 + $0x150] sm:$0xff]
        %v3105 = vld [vmem:[#allocation2 + $0x158] sm:$0xff]
        %v3106 = vld [vmem:[#allocation2 + $0x160] sm:$0xff]
        %v3107 = vld [vmem:[#allocation2 + $0x168] sm:$0xff]
        %v3108 = vld [vmem:[#allocation2 + $0x170] sm:$0xff]
        %v3109 = vld [vmem:[#allocation2 + $0x178] sm:$0xff]
        %v3110 = vld [vmem:[#allocation2 + $0x180] sm:$0xff]
        %v3111 = vld [vmem:[#allocation2 + $0x188] sm:$0xff]
        %v3112 = vld [vmem:[#allocation2 + $0x190] sm:$0xff]
        %v3113 = vld [vmem:[#allocation2 + $0x198] sm:$0xff]
        %v3114 = vld [vmem:[#allocation2 + $0x1a0] sm:$0xff]
        %v3115 = vld [vmem:[#allocation2 + $0x1a8] sm:$0xff]
        %v3116 = vld [vmem:[#allocation2 + $0x1b0] sm:$0xff]
        %v3117 = vld [vmem:[#allocation2 + $0x1b8] sm:$0xff]
        %v3118 = vld [vmem:[%s3] sm:$0xf]
        %v3119 = vld [vmem:[%s3 + $0x4] sm:$0xf]
        %v3120 = vld [vmem:[%s3 + $0x8] sm:$0xf]
        %v3121 = vld [vmem:[%s3 + $0xc] sm:$0xf]
        %v3122 = vld [vmem:[%s3 + $0x10] sm:$0xf]
        %v3123 = vld [vmem:[%s3 + $0x14] sm:$0xf]
        %v3124 = vld [vmem:[%s3 + $0x18] sm:$0xf]
        %v3125 = vld [vmem:[%s3 + $0x1c] sm:$0xf]
        %v3126 = vld [vmem:[%s3 + $0x20] sm:$0xf]
        %v3127 = vld [vmem:[%s3 + $0x24] sm:$0xf]
        %v3128 = vld [vmem:[%s3 + $0x28] sm:$0xf]
        %v3129 = vld [vmem:[%s3 + $0x2c] sm:$0xf]
        %v3130 = vld [vmem:[%s3 + $0x30] sm:$0xf]
        %v3131 = vld [vmem:[%s3 + $0x34] sm:$0xf]
        %v3132 = vld [vmem:[%s3 + $0x38] sm:$0xf]
        %v3133 = vld [vmem:[%s3 + $0x3c] sm:$0xf]
        %v3150 = vunpack.c.l.b16 %v3118
        %v3151 = vunpack.c.l.b16 %v3119
        %v3152 = vunpack.c.l.b16 %v3120
        %v3153 = vunpack.c.l.b16 %v3121
        %v3154 = vunpack.c.l.b16 %v3122
        %v3155 = vunpack.c.l.b16 %v3123
        %v3156 = vunpack.c.l.b16 %v3124
        %v3157 = vunpack.c.l.b16 %v3125
        %v3158 = vunpack.c.l.b16 %v3126
        %v3159 = vunpack.c.l.b16 %v3127
        %v3160 = vunpack.c.l.b16 %v3128
        %v3161 = vunpack.c.l.b16 %v3129
        %v3162 = vunpack.c.l.b16 %v3130
        %v3163 = vunpack.c.l.b16 %v3131
        %v3164 = vunpack.c.l.b16 %v3132
        %v3165 = vunpack.c.l.b16 %v3133
        %v3166 = vpack.c.b16 %v3151, %v3150
        %v3167 = vpack.c.b16 %v3153, %v3152
        %v3168 = vpack.c.b16 %v3155, %v3154
        %v3169 = vpack.c.b16 %v3157, %v3156
        %v3170 = vpack.c.b16 %v3159, %v3158
        %v3171 = vpack.c.b16 %v3161, %v3160
        %v3172 = vpack.c.b16 %v3163, %v3162
        %v3173 = vpack.c.b16 %v3165, %v3164
        %3182 = vmatprep.subr.bf16.mxu0 0
        %3183 = vmatpush1.bf16.msra.mxu0 %v3166
        %3184 = vmatprep.subr.bf16.mxu0 0
        %3185 = vmatpush1.bf16.msra.mxu0 %v3167
        %3186 = vmatprep.subr.bf16.mxu0 0
        %3187 = vmatpush1.bf16.msra.mxu0 %v3168
        %3188 = vmatprep.subr.bf16.mxu0 0
        %3189 = vmatpush1.bf16.msra.mxu0 %v3169
        %3190 = vmatprep.subr.bf16.mxu0 0
        %3191 = vmatpush1.bf16.msra.mxu0 %v3170
        %3192 = vmatprep.subr.bf16.mxu0 0
        %3193 = vmatpush1.bf16.msra.mxu0 %v3171
        %3194 = vmatprep.subr.bf16.mxu0 0
        %3195 = vmatpush1.bf16.msra.mxu0 %v3172
        %3196 = vmatprep.subr.bf16.mxu0 0
        %3197 = vmatpush1.bf16.msra.mxu0 %v3173
        %3198 = vmatprep.subr.bf16.mxu0 0
        %3199 = vmatpush1.bf16.msra.mxu0 0
        %3200 = vmatprep.subr.bf16.mxu0 0
        %3201 = vmatpush1.bf16.msra.mxu0 0
        %3202 = vmatprep.subr.bf16.mxu0 0
        %3203 = vmatpush1.bf16.msra.mxu0 0
        %3204 = vmatprep.subr.bf16.mxu0 0
        %3205 = vmatpush1.bf16.msra.mxu0 0
        %3206 = vmatprep.subr.bf16.mxu0 0
        %3207 = vmatpush1.bf16.msra.mxu0 0
        %3208 = vmatprep.subr.bf16.mxu0 0
        %3209 = vmatpush1.bf16.msra.mxu0 0
        %3210 = vmatprep.subr.bf16.mxu0 0
        %3211 = vmatpush1.bf16.msra.mxu0 0
        %3212 = vmatprep.subr.bf16.mxu0 0
        %3213 = vmatpush1.bf16.msra.mxu0 0
        %3214 = vmatprep.mubr.bf16.mxu0 0
        %3215 = vmatmul.mubr.bf16.gmra.mrb[0].mxu0 %v3062
        %v3216 = vpop.f32.mrb[0].mxu0
        %v3217 = vadd.f32 0.0, %v3216
        %v3218 = vpop.f32.mrb[0].mxu0
        %v3219 = vpop.f32.mrb[0].mxu0
        %v3220 = vadd.f32 0.0, %v3219
        %v3221 = vpop.f32.mrb[0].mxu0
        %3222 = vmatprep.mubr.bf16.mxu0 0
        %3223 = vmatmul.mubr.bf16.gmra.mrb[0].mxu0 %v3063
        %v3224 = vpop.f32.mrb[0].mxu0
        %v3225 = vadd.f32 0.0, %v3224
        %v3226 = vpop.f32.mrb[0].mxu0
        %v3227 = vpop.f32.mrb[0].mxu0
        %v3228 = vadd.f32 0.0, %v3227
        %v3229 = vpop.f32.mrb[0].mxu0
        %3230 = vmatprep.mubr.bf16.mxu0 0
        %3231 = vmatmul.mubr.bf16.gmra.mrb[0].mxu0 %v3064
        %v3232 = vpop.f32.mrb[0].mxu0
        %v3233 = vadd.f32 0.0, %v3232
        %v3234 = vpop.f32.mrb[0].mxu0
        %v3235 = vpop.f32.mrb[0].mxu0
        %v3236 = vadd.f32 0.0, %v3235
        %v3237 = vpop.f32.mrb[0].mxu0
        %3238 = vmatprep.mubr.bf16.mxu0 0
        %3239 = vmatmul.mubr.bf16.gmra.mrb[0].mxu0 %v3065
        %v3240 = vpop.f32.mrb[0].mxu0
        %v3241 = vadd.f32 0.0, %v3240
        %v3242 = vpop.f32.mrb[0].mxu0
        %v3243 = vpop.f32.mrb[0].mxu0
        %v3244 = vadd.f32 0.0, %v3243
        %v3245 = vpop.f32.mrb[0].mxu0
        %3246 = vmatprep.mubr.bf16.mxu0 0
        %3247 = vmatmul.mubr.bf16.gmra.mrb[0].mxu0 %v3066
        %v3248 = vpop.f32.mrb[0].mxu0
        %v3249 = vadd.f32 0.0, %v3248
        %v3250 = vpop.f32.mrb[0].mxu0
        %v3251 = vpop.f32.mrb[0].mxu0
        %v3252 = vadd.f32 0.0, %v3251
        %v3253 = vpop.f32.mrb[0].mxu0
        %3254 = vmatprep.mubr.bf16.mxu0 0
        %3255 = vmatmul.mubr.bf16.gmra.mrb[0].mxu0 %v3067
        %v3256 = vpop.f32.mrb[0].mxu0
        %v3257 = vadd.f32 0.0, %v3256
        %v3258 = vpop.f32.mrb[0].mxu0
        %v3259 = vpop.f32.mrb[0].mxu0
        %v3260 = vadd.f32 0.0, %v3259
        %v3261 = vpop.f32.mrb[0].mxu0
        %3262 = vmatprep.mubr.bf16.mxu0 0
        %3263 = vmatmul.mubr.bf16.gmra.mrb[0].mxu0 %v3068
        %v3264 = vpop.f32.mrb[0].mxu0
        %v3265 = vadd.f32 0.0, %v3264
        %v3266 = vpop.f32.mrb[0].mxu0
        %v3267 = vpop.f32.mrb[0].mxu0
        %v3268 = vadd.f32 0.0, %v3267
        %v3269 = vpop.f32.mrb[0].mxu0
        %3270 = vmatprep.mubr.bf16.mxu0 0
        %3271 = vmatmul.mubr.bf16.gmra.mrb[0].mxu0 %v3069
        %v3272 = vpop.f32.mrb[0].mxu0
        %v3273 = vadd.f32 0.0, %v3272
        %v3274 = vpop.f32.mrb[0].mxu0
        %v3275 = vpop.f32.mrb[0].mxu0
        %v3276 = vadd.f32 0.0, %v3275
        %v3277 = vpop.f32.mrb[0].mxu0
        %3278 = vmatprep.mubr.bf16.mxu0 0
        %3279 = vmatmul.mubr.bf16.gmra.mrb[0].mxu0 %v3070
        %v3280 = vpop.f32.mrb[0].mxu0
        %v3281 = vadd.f32 0.0, %v3280
        %v3282 = vpop.f32.mrb[0].mxu0
        %v3283 = vpop.f32.mrb[0].mxu0
        %v3284 = vadd.f32 0.0, %v3283
        %v3285 = vpop.f32.mrb[0].mxu0
        %3286 = vmatprep.mubr.bf16.mxu0 0
        %3287 = vmatmul.mubr.bf16.gmra.mrb[0].mxu0 %v3071
        %v3288 = vpop.f32.mrb[0].mxu0
        %v3289 = vadd.f32 0.0, %v3288
        %v3290 = vpop.f32.mrb[0].mxu0
        %v3291 = vpop.f32.mrb[0].mxu0
        %v3292 = vadd.f32 0.0, %v3291
        %v3293 = vpop.f32.mrb[0].mxu0
        %3294 = vmatprep.mubr.bf16.mxu0 0
        %3295 = vmatmul.mubr.bf16.gmra.mrb[0].mxu0 %v3072
        %v3296 = vpop.f32.mrb[0].mxu0
        %v3297 = vadd.f32 0.0, %v3296
        %v3298 = vpop.f32.mrb[0].mxu0
        %v3299 = vpop.f32.mrb[0].mxu0
        %v3300 = vadd.f32 0.0, %v3299
        %v3301 = vpop.f32.mrb[0].mxu0
        %3302 = vmatprep.mubr.bf16.mxu0 0
        %3303 = vmatmul.mubr.bf16.gmra.mrb[0].mxu0 %v3073
        %v3304 = vpop.f32.mrb[0].mxu0
        %v3305 = vadd.f32 0.0, %v3304
        %v3306 = vpop.f32.mrb[0].mxu0
        %v3307 = vpop.f32.mrb[0].mxu0
        %v3308 = vadd.f32 0.0, %v3307
        %v3309 = vpop.f32.mrb[0].mxu0
        %3310 = vmatprep.mubr.bf16.mxu0 0
        %3311 = vmatmul.mubr.bf16.gmra.mrb[0].mxu0 %v3074
        %v3312 = vpop.f32.mrb[0].mxu0
        %v3313 = vadd.f32 0.0, %v3312
        %v3314 = vpop.f32.mrb[0].mxu0
        %v3315 = vpop.f32.mrb[0].mxu0
        %v3316 = vadd.f32 0.0, %v3315
        %v3317 = vpop.f32.mrb[0].mxu0
        %3318 = vmatprep.mubr.bf16.mxu0 0
        %3319 = vmatmul.mubr.bf16.gmra.mrb[0].mxu0 %v3075
        %v3320 = vpop.f32.mrb[0].mxu0
        %v3321 = vadd.f32 0.0, %v3320
        %v3322 = vpop.f32.mrb[0].mxu0
        %v3323 = vpop.f32.mrb[0].mxu0
        %v3324 = vadd.f32 0.0, %v3323
        %v3325 = vpop.f32.mrb[0].mxu0
        %3326 = vmatprep.mubr.bf16.mxu0 0
        %3327 = vmatmul.mubr.bf16.gmra.mrb[0].mxu0 %v3076
        %v3328 = vpop.f32.mrb[0].mxu0
        %v3329 = vadd.f32 0.0, %v3328
        %v3330 = vpop.f32.mrb[0].mxu0
        %v3331 = vpop.f32.mrb[0].mxu0
        %v3332 = vadd.f32 0.0, %v3331
        %v3333 = vpop.f32.mrb[0].mxu0
        %3334 = vmatprep.mubr.bf16.mxu0 0
        %3335 = vmatmul.mubr.bf16.gmra.mrb[0].mxu0 %v3077
        %v3336 = vpop.f32.mrb[0].mxu0
        %v3337 = vadd.f32 0.0, %v3336
        %v3338 = vpop.f32.mrb[0].mxu0
        %v3339 = vpop.f32.mrb[0].mxu0
        %v3340 = vadd.f32 0.0, %v3339
        %v3341 = vpop.f32.mrb[0].mxu0
        %3342 = vmatprep.mubr.bf16.mxu0 0
        %3343 = vmatmul.mubr.bf16.gmra.mrb[0].mxu0 %v3078
        %v3344 = vpop.f32.mrb[0].mxu0
        %v3345 = vadd.f32 0.0, %v3344
        %v3346 = vpop.f32.mrb[0].mxu0
        %v3347 = vpop.f32.mrb[0].mxu0
        %v3348 = vadd.f32 0.0, %v3347
        %v3349 = vpop.f32.mrb[0].mxu0
        %3350 = vmatprep.mubr.bf16.mxu0 0
        %3351 = vmatmul.mubr.bf16.gmra.mrb[0].mxu0 %v3079
        %v3352 = vpop.f32.mrb[0].mxu0
        %v3353 = vadd.f32 0.0, %v3352
        %v3354 = vpop.f32.mrb[0].mxu0
        %v3355 = vpop.f32.mrb[0].mxu0
        %v3356 = vadd.f32 0.0, %v3355
        %v3357 = vpop.f32.mrb[0].mxu0
        %3358 = vmatprep.mubr.bf16.mxu0 0
        %3359 = vmatmul.mubr.bf16.gmra.mrb[0].mxu0 %v3080
        %v3360 = vpop.f32.mrb[0].mxu0
        %v3361 = vadd.f32 0.0, %v3360
        %v3362 = vpop.f32.mrb[0].mxu0
        %v3363 = vpop.f32.mrb[0].mxu0
        %v3364 = vadd.f32 0.0, %v3363
        %v3365 = vpop.f32.mrb[0].mxu0
        %3366 = vmatprep.mubr.bf16.mxu0 0
        %3367 = vmatmul.mubr.bf16.gmra.mrb[0].mxu0 %v3081
        %v3368 = vpop.f32.mrb[0].mxu0
        %v3369 = vadd.f32 0.0, %v3368
        %v3370 = vpop.f32.mrb[0].mxu0
        %v3371 = vpop.f32.mrb[0].mxu0
        %v3372 = vadd.f32 0.0, %v3371
        %v3373 = vpop.f32.mrb[0].mxu0
        %3374 = vmatprep.mubr.bf16.mxu0 0
        %3375 = vmatmul.mubr.bf16.gmra.mrb[0].mxu0 %v3082
        %v3376 = vpop.f32.mrb[0].mxu0
        %v3377 = vadd.f32 0.0, %v3376
        %v3378 = vpop.f32.mrb[0].mxu0
        %v3379 = vpop.f32.mrb[0].mxu0
        %v3380 = vadd.f32 0.0, %v3379
        %v3381 = vpop.f32.mrb[0].mxu0
        %3382 = vmatprep.mubr.bf16.mxu0 0
        %3383 = vmatmul.mubr.bf16.gmra.mrb[0].mxu0 %v3083
        %v3384 = vpop.f32.mrb[0].mxu0
        %v3385 = vadd.f32 0.0, %v3384
        %v3386 = vpop.f32.mrb[0].mxu0
        %v3387 = vpop.f32.mrb[0].mxu0
        %v3388 = vadd.f32 0.0, %v3387
        %v3389 = vpop.f32.mrb[0].mxu0
        %3390 = vmatprep.mubr.bf16.mxu0 0
        %3391 = vmatmul.mubr.bf16.gmra.mrb[0].mxu0 %v3084
        %v3392 = vpop.f32.mrb[0].mxu0
        %v3393 = vadd.f32 0.0, %v3392
        %v3394 = vpop.f32.mrb[0].mxu0
        %v3395 = vpop.f32.mrb[0].mxu0
        %v3396 = vadd.f32 0.0, %v3395
        %v3397 = vpop.f32.mrb[0].mxu0
        %3398 = vmatprep.mubr.bf16.mxu0 0
        %3399 = vmatmul.mubr.bf16.gmra.mrb[0].mxu0 %v3085
        %v3400 = vpop.f32.mrb[0].mxu0
        %v3401 = vadd.f32 0.0, %v3400
        %v3402 = vpop.f32.mrb[0].mxu0
        %v3403 = vpop.f32.mrb[0].mxu0
        %v3404 = vadd.f32 0.0, %v3403
        %v3405 = vpop.f32.mrb[0].mxu0
        %3406 = vmatprep.mubr.bf16.mxu0 0
        %3407 = vmatmul.mubr.bf16.gmra.mrb[0].mxu0 %v3086
        %v3408 = vpop.f32.mrb[0].mxu0
        %v3409 = vadd.f32 0.0, %v3408
        %v3410 = vpop.f32.mrb[0].mxu0
        %v3411 = vpop.f32.mrb[0].mxu0
        %v3412 = vadd.f32 0.0, %v3411
        %v3413 = vpop.f32.mrb[0].mxu0
        %3414 = vmatprep.mubr.bf16.mxu0 0
        %3415 = vmatmul.mubr.bf16.gmra.mrb[0].mxu0 %v3087
        %v3416 = vpop.f32.mrb[0].mxu0
        %v3417 = vadd.f32 0.0, %v3416
        %v3418 = vpop.f32.mrb[0].mxu0
        %v3419 = vpop.f32.mrb[0].mxu0
        %v3420 = vadd.f32 0.0, %v3419
        %v3421 = vpop.f32.mrb[0].mxu0
        %3422 = vmatprep.mubr.bf16.mxu0 0
        %3423 = vmatmul.mubr.bf16.gmra.mrb[0].mxu0 %v3088
        %v3424 = vpop.f32.mrb[0].mxu0
        %v3425 = vadd.f32 0.0, %v3424
        %v3426 = vpop.f32.mrb[0].mxu0
        %v3427 = vpop.f32.mrb[0].mxu0
        %v3428 = vadd.f32 0.0, %v3427
        %v3429 = vpop.f32.mrb[0].mxu0
        %3430 = vmatprep.mubr.bf16.mxu0 0
        %3431 = vmatmul.mubr.bf16.gmra.mrb[0].mxu0 %v3089
        %v3432 = vpop.f32.mrb[0].mxu0
        %v3433 = vadd.f32 0.0, %v3432
        %v3434 = vpop.f32.mrb[0].mxu0
        %v3435 = vpop.f32.mrb[0].mxu0
        %v3436 = vadd.f32 0.0, %v3435
        %v3437 = vpop.f32.mrb[0].mxu0
        %3438 = vmatprep.mubr.bf16.mxu0 0
        %3439 = vmatmul.mubr.bf16.gmra.mrb[0].mxu0 %v3090
        %v3440 = vpop.f32.mrb[0].mxu0
        %v3441 = vadd.f32 0.0, %v3440
        %v3442 = vpop.f32.mrb[0].mxu0
        %v3443 = vpop.f32.mrb[0].mxu0
        %v3444 = vadd.f32 0.0, %v3443
        %v3445 = vpop.f32.mrb[0].mxu0
        %3446 = vmatprep.mubr.bf16.mxu0 0
        %3447 = vmatmul.mubr.bf16.gmra.mrb[0].mxu0 %v3091
        %v3448 = vpop.f32.mrb[0].mxu0
        %v3449 = vadd.f32 0.0, %v3448
        %v3450 = vpop.f32.mrb[0].mxu0
        %v3451 = vpop.f32.mrb[0].mxu0
        %v3452 = vadd.f32 0.0, %v3451
        %v3453 = vpop.f32.mrb[0].mxu0
        %3454 = vmatprep.mubr.bf16.mxu0 0
        %3455 = vmatmul.mubr.bf16.gmra.mrb[0].mxu0 %v3092
        %v3456 = vpop.f32.mrb[0].mxu0
        %v3457 = vadd.f32 0.0, %v3456
        %v3458 = vpop.f32.mrb[0].mxu0
        %v3459 = vpop.f32.mrb[0].mxu0
        %v3460 = vadd.f32 0.0, %v3459
        %v3461 = vpop.f32.mrb[0].mxu0
        %3462 = vmatprep.mubr.bf16.mxu0 0
        %3463 = vmatmul.mubr.bf16.gmra.mrb[0].mxu0 %v3093
        %v3464 = vpop.f32.mrb[0].mxu0
        %v3465 = vadd.f32 0.0, %v3464
        %v3466 = vpop.f32.mrb[0].mxu0
        %v3467 = vpop.f32.mrb[0].mxu0
        %v3468 = vadd.f32 0.0, %v3467
        %v3469 = vpop.f32.mrb[0].mxu0
        %3470 = vmatprep.mubr.bf16.mxu0 0
        %3471 = vmatmul.mubr.bf16.gmra.mrb[0].mxu0 %v3094
        %v3472 = vpop.f32.mrb[0].mxu0
        %v3473 = vadd.f32 0.0, %v3472
        %v3474 = vpop.f32.mrb[0].mxu0
        %v3475 = vpop.f32.mrb[0].mxu0
        %v3476 = vadd.f32 0.0, %v3475
        %v3477 = vpop.f32.mrb[0].mxu0
        %3478 = vmatprep.mubr.bf16.mxu0 0
        %3479 = vmatmul.mubr.bf16.gmra.mrb[0].mxu0 %v3095
        %v3480 = vpop.f32.mrb[0].mxu0
        %v3481 = vadd.f32 0.0, %v3480
        %v3482 = vpop.f32.mrb[0].mxu0
        %v3483 = vpop.f32.mrb[0].mxu0
        %v3484 = vadd.f32 0.0, %v3483
        %v3485 = vpop.f32.mrb[0].mxu0
        %3486 = vmatprep.mubr.bf16.mxu0 0
        %3487 = vmatmul.mubr.bf16.gmra.mrb[0].mxu0 %v3096
        %v3488 = vpop.f32.mrb[0].mxu0
        %v3489 = vadd.f32 0.0, %v3488
        %v3490 = vpop.f32.mrb[0].mxu0
        %v3491 = vpop.f32.mrb[0].mxu0
        %v3492 = vadd.f32 0.0, %v3491
        %v3493 = vpop.f32.mrb[0].mxu0
        %3494 = vmatprep.mubr.bf16.mxu0 0
        %3495 = vmatmul.mubr.bf16.gmra.mrb[0].mxu0 %v3097
        %v3496 = vpop.f32.mrb[0].mxu0
        %v3497 = vadd.f32 0.0, %v3496
        %v3498 = vpop.f32.mrb[0].mxu0
        %v3499 = vpop.f32.mrb[0].mxu0
        %v3500 = vadd.f32 0.0, %v3499
        %v3501 = vpop.f32.mrb[0].mxu0
        %3502 = vmatprep.mubr.bf16.mxu0 0
        %3503 = vmatmul.mubr.bf16.gmra.mrb[0].mxu0 %v3098
        %v3504 = vpop.f32.mrb[0].mxu0
        %v3505 = vadd.f32 0.0, %v3504
        %v3506 = vpop.f32.mrb[0].mxu0
        %v3507 = vpop.f32.mrb[0].mxu0
        %v3508 = vadd.f32 0.0, %v3507
        %v3509 = vpop.f32.mrb[0].mxu0
        %3510 = vmatprep.mubr.bf16.mxu0 0
        %3511 = vmatmul.mubr.bf16.gmra.mrb[0].mxu0 %v3099
        %v3512 = vpop.f32.mrb[0].mxu0
        %v3513 = vadd.f32 0.0, %v3512
        %v3514 = vpop.f32.mrb[0].mxu0
        %v3515 = vpop.f32.mrb[0].mxu0
        %v3516 = vadd.f32 0.0, %v3515
        %v3517 = vpop.f32.mrb[0].mxu0
        %3518 = vmatprep.mubr.bf16.mxu0 0
        %3519 = vmatmul.mubr.bf16.gmra.mrb[0].mxu0 %v3100
        %v3520 = vpop.f32.mrb[0].mxu0
        %v3521 = vadd.f32 0.0, %v3520
        %v3522 = vpop.f32.mrb[0].mxu0
        %v3523 = vpop.f32.mrb[0].mxu0
        %v3524 = vadd.f32 0.0, %v3523
        %v3525 = vpop.f32.mrb[0].mxu0
        %3526 = vmatprep.mubr.bf16.mxu0 0
        %3527 = vmatmul.mubr.bf16.gmra.mrb[0].mxu0 %v3101
        %v3528 = vpop.f32.mrb[0].mxu0
        %v3529 = vadd.f32 0.0, %v3528
        %v3530 = vpop.f32.mrb[0].mxu0
        %v3531 = vpop.f32.mrb[0].mxu0
        %v3532 = vadd.f32 0.0, %v3531
        %v3533 = vpop.f32.mrb[0].mxu0
        %3534 = vmatprep.mubr.bf16.mxu0 0
        %3535 = vmatmul.mubr.bf16.gmra.mrb[0].mxu0 %v3102
        %v3536 = vpop.f32.mrb[0].mxu0
        %v3537 = vadd.f32 0.0, %v3536
        %v3538 = vpop.f32.mrb[0].mxu0
        %v3539 = vpop.f32.mrb[0].mxu0
        %v3540 = vadd.f32 0.0, %v3539
        %v3541 = vpop.f32.mrb[0].mxu0
        %3542 = vmatprep.mubr.bf16.mxu0 0
        %3543 = vmatmul.mubr.bf16.gmra.mrb[0].mxu0 %v3103
        %v3544 = vpop.f32.mrb[0].mxu0
        %v3545 = vadd.f32 0.0, %v3544
        %v3546 = vpop.f32.mrb[0].mxu0
        %v3547 = vpop.f32.mrb[0].mxu0
        %v3548 = vadd.f32 0.0, %v3547
        %v3549 = vpop.f32.mrb[0].mxu0
        %3550 = vmatprep.mubr.bf16.mxu0 0
        %3551 = vmatmul.mubr.bf16.gmra.mrb[0].mxu0 %v3104
        %v3552 = vpop.f32.mrb[0].mxu0
        %v3553 = vadd.f32 0.0, %v3552
        %v3554 = vpop.f32.mrb[0].mxu0
        %v3555 = vpop.f32.mrb[0].mxu0
        %v3556 = vadd.f32 0.0, %v3555
        %v3557 = vpop.f32.mrb[0].mxu0
        %3558 = vmatprep.mubr.bf16.mxu0 0
        %3559 = vmatmul.mubr.bf16.gmra.mrb[0].mxu0 %v3105
        %v3560 = vpop.f32.mrb[0].mxu0
        %v3561 = vadd.f32 0.0, %v3560
        %v3562 = vpop.f32.mrb[0].mxu0
        %v3563 = vpop.f32.mrb[0].mxu0
        %v3564 = vadd.f32 0.0, %v3563
        %v3565 = vpop.f32.mrb[0].mxu0
        %3566 = vmatprep.mubr.bf16.mxu0 0
        %3567 = vmatmul.mubr.bf16.gmra.mrb[0].mxu0 %v3106
        %v3568 = vpop.f32.mrb[0].mxu0
        %v3569 = vadd.f32 0.0, %v3568
        %v3570 = vpop.f32.mrb[0].mxu0
        %v3571 = vpop.f32.mrb[0].mxu0
        %v3572 = vadd.f32 0.0, %v3571
        %v3573 = vpop.f32.mrb[0].mxu0
        %3574 = vmatprep.mubr.bf16.mxu0 0
        %3575 = vmatmul.mubr.bf16.gmra.mrb[0].mxu0 %v3107
        %v3576 = vpop.f32.mrb[0].mxu0
        %v3577 = vadd.f32 0.0, %v3576
        %v3578 = vpop.f32.mrb[0].mxu0
        %v3579 = vpop.f32.mrb[0].mxu0
        %v3580 = vadd.f32 0.0, %v3579
        %v3581 = vpop.f32.mrb[0].mxu0
        %3582 = vmatprep.mubr.bf16.mxu0 0
        %3583 = vmatmul.mubr.bf16.gmra.mrb[0].mxu0 %v3108
        %v3584 = vpop.f32.mrb[0].mxu0
        %v3585 = vadd.f32 0.0, %v3584
        %v3586 = vpop.f32.mrb[0].mxu0
        %v3587 = vpop.f32.mrb[0].mxu0
        %v3588 = vadd.f32 0.0, %v3587
        %v3589 = vpop.f32.mrb[0].mxu0
        %3590 = vmatprep.mubr.bf16.mxu0 0
        %3591 = vmatmul.mubr.bf16.gmra.mrb[0].mxu0 %v3109
        %v3592 = vpop.f32.mrb[0].mxu0
        %v3593 = vadd.f32 0.0, %v3592
        %v3594 = vpop.f32.mrb[0].mxu0
        %v3595 = vpop.f32.mrb[0].mxu0
        %v3596 = vadd.f32 0.0, %v3595
        %v3597 = vpop.f32.mrb[0].mxu0
        %3598 = vmatprep.mubr.bf16.mxu0 0
        %3599 = vmatmul.mubr.bf16.gmra.mrb[0].mxu0 %v3110
        %v3600 = vpop.f32.mrb[0].mxu0
        %v3601 = vadd.f32 0.0, %v3600
        %v3602 = vpop.f32.mrb[0].mxu0
        %v3603 = vpop.f32.mrb[0].mxu0
        %v3604 = vadd.f32 0.0, %v3603
        %v3605 = vpop.f32.mrb[0].mxu0
        %3606 = vmatprep.mubr.bf16.mxu0 0
        %3607 = vmatmul.mubr.bf16.gmra.mrb[0].mxu0 %v3111
        %v3608 = vpop.f32.mrb[0].mxu0
        %v3609 = vadd.f32 0.0, %v3608
        %v3610 = vpop.f32.mrb[0].mxu0
        %v3611 = vpop.f32.mrb[0].mxu0
        %v3612 = vadd.f32 0.0, %v3611
        %v3613 = vpop.f32.mrb[0].mxu0
        %3614 = vmatprep.mubr.bf16.mxu0 0
        %3615 = vmatmul.mubr.bf16.gmra.mrb[0].mxu0 %v3112
        %v3616 = vpop.f32.mrb[0].mxu0
        %v3617 = vadd.f32 0.0, %v3616
        %v3618 = vpop.f32.mrb[0].mxu0
        %v3619 = vpop.f32.mrb[0].mxu0
        %v3620 = vadd.f32 0.0, %v3619
        %v3621 = vpop.f32.mrb[0].mxu0
        %3622 = vmatprep.mubr.bf16.mxu0 0
        %3623 = vmatmul.mubr.bf16.gmra.mrb[0].mxu0 %v3113
        %v3624 = vpop.f32.mrb[0].mxu0
        %v3625 = vadd.f32 0.0, %v3624
        %v3626 = vpop.f32.mrb[0].mxu0
        %v3627 = vpop.f32.mrb[0].mxu0
        %v3628 = vadd.f32 0.0, %v3627
        %v3629 = vpop.f32.mrb[0].mxu0
        %3630 = vmatprep.mubr.bf16.mxu0 0
        %3631 = vmatmul.mubr.bf16.gmra.mrb[0].mxu0 %v3114
        %v3632 = vpop.f32.mrb[0].mxu0
        %v3633 = vadd.f32 0.0, %v3632
        %v3634 = vpop.f32.mrb[0].mxu0
        %v3635 = vpop.f32.mrb[0].mxu0
        %v3636 = vadd.f32 0.0, %v3635
        %v3637 = vpop.f32.mrb[0].mxu0
        %3638 = vmatprep.mubr.bf16.mxu0 0
        %3639 = vmatmul.mubr.bf16.gmra.mrb[0].mxu0 %v3115
        %v3640 = vpop.f32.mrb[0].mxu0
        %v3641 = vadd.f32 0.0, %v3640
        %v3642 = vpop.f32.mrb[0].mxu0
        %v3643 = vpop.f32.mrb[0].mxu0
        %v3644 = vadd.f32 0.0, %v3643
        %v3645 = vpop.f32.mrb[0].mxu0
        %3646 = vmatprep.mubr.bf16.mxu0 0
        %3647 = vmatmul.mubr.bf16.gmra.mrb[0].mxu0 %v3116
        %v3648 = vpop.f32.mrb[0].mxu0
        %v3649 = vadd.f32 0.0, %v3648
        %v3650 = vpop.f32.mrb[0].mxu0
        %v3651 = vpop.f32.mrb[0].mxu0
        %v3652 = vadd.f32 0.0, %v3651
        %v3653 = vpop.f32.mrb[0].mxu0
        %3654 = vmatprep.mubr.bf16.mxu0 0
        %3655 = vmatmul.mubr.bf16.gmra.mrb[0].mxu0 %v3117
        %v3656 = vpop.f32.mrb[0].mxu0
        %v3657 = vadd.f32 0.0, %v3656
        %v3658 = vpop.f32.mrb[0].mxu0
        %v3659 = vpop.f32.mrb[0].mxu0
        %v3660 = vadd.f32 0.0, %v3659
        %v3661 = vpop.f32.mrb[0].mxu0
        %3662 = vdwg.mxu0
        %v3663 = vadd.f32 %v2950, %v3217
        %v3664 = vadd.f32 %v2951, %v3220
        %v3665 = vadd.f32 %v2952, %v3225
        %v3666 = vadd.f32 %v2953, %v3228
        %v3667 = vadd.f32 %v2954, %v3233
        %v3668 = vadd.f32 %v2955, %v3236
        %v3669 = vadd.f32 %v2956, %v3241
        %v3670 = vadd.f32 %v2957, %v3244
        %v3671 = vadd.f32 %v2958, %v3249
        %v3672 = vadd.f32 %v2959, %v3252
        %v3673 = vadd.f32 %v2960, %v3257
        %v3674 = vadd.f32 %v2961, %v3260
        %v3675 = vadd.f32 %v2962, %v3265
        %v3676 = vadd.f32 %v2963, %v3268
        %v3677 = vadd.f32 %v2964, %v3273
        %v3678 = vadd.f32 %v2965, %v3276
        %v3679 = vadd.f32 %v2966, %v3281
        %v3680 = vadd.f32 %v2967, %v3284
        %v3681 = vadd.f32 %v2968, %v3289
        %v3682 = vadd.f32 %v2969, %v3292
        %v3683 = vadd.f32 %v2970, %v3297
        %v3684 = vadd.f32 %v2971, %v3300
        %v3685 = vadd.f32 %v2972, %v3305
        %v3686 = vadd.f32 %v2973, %v3308
        %v3687 = vadd.f32 %v2974, %v3313
        %v3688 = vadd.f32 %v2975, %v3316
        %v3689 = vadd.f32 %v2976, %v3321
        %v3690 = vadd.f32 %v2977, %v3324
        %v3691 = vadd.f32 %v2978, %v3329
        %v3692 = vadd.f32 %v2979, %v3332
        %v3693 = vadd.f32 %v2980, %v3337
        %v3694 = vadd.f32 %v2981, %v3340
        %v3695 = vadd.f32 %v2982, %v3345
        %v3696 = vadd.f32 %v2983, %v3348
        %v3697 = vadd.f32 %v2984, %v3353
        %v3698 = vadd.f32 %v2985, %v3356
        %v3699 = vadd.f32 %v2986, %v3361
        %v3700 = vadd.f32 %v2987, %v3364
        %v3701 = vadd.f32 %v2988, %v3369
        %v3702 = vadd.f32 %v2989, %v3372
        %v3703 = vadd.f32 %v2990, %v3377
        %v3704 = vadd.f32 %v2991, %v3380
        %v3705 = vadd.f32 %v2992, %v3385
        %v3706 = vadd.f32 %v2993, %v3388
        %v3707 = vadd.f32 %v2994, %v3393
        %v3708 = vadd.f32 %v2995, %v3396
        %v3709 = vadd.f32 %v2996, %v3401
        %v3710 = vadd.f32 %v2997, %v3404
        %v3711 = vadd.f32 %v2998, %v3409
        %v3712 = vadd.f32 %v2999, %v3412
        %v3713 = vadd.f32 %v3000, %v3417
        %v3714 = vadd.f32 %v3001, %v3420
        %v3715 = vadd.f32 %v3002, %v3425
        %v3716 = vadd.f32 %v3003, %v3428
        %v3717 = vadd.f32 %v3004, %v3433
        %v3718 = vadd.f32 %v3005, %v3436
        %v3719 = vadd.f32 %v3006, %v3441
        %v3720 = vadd.f32 %v3007, %v3444
        %v3721 = vadd.f32 %v3008, %v3449
        %v3722 = vadd.f32 %v3009, %v3452
        %v3723 = vadd.f32 %v3010, %v3457
        %v3724 = vadd.f32 %v3011, %v3460
        %v3725 = vadd.f32 %v3012, %v3465
        %v3726 = vadd.f32 %v3013, %v3468
        %v3727 = vadd.f32 %v3014, %v3473
        %v3728 = vadd.f32 %v3015, %v3476
        %v3729 = vadd.f32 %v3016, %v3481
        %v3730 = vadd.f32 %v3017, %v3484
        %v3731 = vadd.f32 %v3018, %v3489
        %v3732 = vadd.f32 %v3019, %v3492
        %v3733 = vadd.f32 %v3020, %v3497
        %v3734 = vadd.f32 %v3021, %v3500
        %v3735 = vadd.f32 %v3022, %v3505
        %v3736 = vadd.f32 %v3023, %v3508
        %v3737 = vadd.f32 %v3024, %v3513
        %v3738 = vadd.f32 %v3025, %v3516
        %v3739 = vadd.f32 %v3026, %v3521
        %v3740 = vadd.f32 %v3027, %v3524
        %v3741 = vadd.f32 %v3028, %v3529
        %v3742 = vadd.f32 %v3029, %v3532
        %v3743 = vadd.f32 %v3030, %v3537
        %v3744 = vadd.f32 %v3031, %v3540
        %v3745 = vadd.f32 %v3032, %v3545
        %v3746 = vadd.f32 %v3033, %v3548
        %v3747 = vadd.f32 %v3034, %v3553
        %v3748 = vadd.f32 %v3035, %v3556
        %v3749 = vadd.f32 %v3036, %v3561
        %v3750 = vadd.f32 %v3037, %v3564
        %v3751 = vadd.f32 %v3038, %v3569
        %v3752 = vadd.f32 %v3039, %v3572
        %v3753 = vadd.f32 %v3040, %v3577
        %v3754 = vadd.f32 %v3041, %v3580
        %v3755 = vadd.f32 %v3042, %v3585
        %v3756 = vadd.f32 %v3043, %v3588
        %v3757 = vadd.f32 %v3044, %v3593
        %v3758 = vadd.f32 %v3045, %v3596
        %v3759 = vadd.f32 %v3046, %v3601
        %v3760 = vadd.f32 %v3047, %v3604
        %v3761 = vadd.f32 %v3048, %v3609
        %v3762 = vadd.f32 %v3049, %v3612
        %v3763 = vadd.f32 %v3050, %v3617
        %v3764 = vadd.f32 %v3051, %v3620
        %v3765 = vadd.f32 %v3052, %v3625
        %v3766 = vadd.f32 %v3053, %v3628
        %v3767 = vadd.f32 %v3054, %v3633
        %v3768 = vadd.f32 %v3055, %v3636
        %v3769 = vadd.f32 %v3056, %v3641
        %v3770 = vadd.f32 %v3057, %v3644
        %v3771 = vadd.f32 %v3058, %v3649
        %v3772 = vadd.f32 %v3059, %v3652
        %v3773 = vadd.f32 %v3060, %v3657
        %v3774 = vadd.f32 %v3061, %v3660
        %3775 = vst.msk [vmem:[#allocation3 + $0x80] sm:$0xff] %vm2821, %v3663
        %3776 = vst.msk [vmem:[#allocation3 + $0x88] sm:$0xff] %vm2821, %v3664
        %3777 = vst.msk [vmem:[#allocation3 + $0x90] sm:$0xff] %vm2821, %v3665
        %3778 = vst.msk [vmem:[#allocation3 + $0x98] sm:$0xff] %vm2821, %v3666
        %3779 = vst.msk [vmem:[#allocation3 + $0xa0] sm:$0xff] %vm2821, %v3667
        %3780 = vst.msk [vmem:[#allocation3 + $0xa8] sm:$0xff] %vm2821, %v3668
        %3781 = vst.msk [vmem:[#allocation3 + $0xb0] sm:$0xff] %vm2821, %v3669
        %3782 = vst.msk [vmem:[#allocation3 + $0xb8] sm:$0xff] %vm2821, %v3670
        %3783 = vst.msk [vmem:[#allocation3 + $0xc0] sm:$0xff] %vm2821, %v3671
        %3784 = vst.msk [vmem:[#allocation3 + $0xc8] sm:$0xff] %vm2821, %v3672
        %3785 = vst.msk [vmem:[#allocation3 + $0xd0] sm:$0xff] %vm2821, %v3673
        %3786 = vst.msk [vmem:[#allocation3 + $0xd8] sm:$0xff] %vm2821, %v3674
        %3787 = vst.msk [vmem:[#allocation3 + $0xe0] sm:$0xff] %vm2821, %v3675
        %3788 = vst.msk [vmem:[#allocation3 + $0xe8] sm:$0xff] %vm2821, %v3676
        %3789 = vst.msk [vmem:[#allocation3 + $0xf0] sm:$0xff] %vm2821, %v3677
        %3790 = vst.msk [vmem:[#allocation3 + $0xf8] sm:$0xff] %vm2821, %v3678
        %3791 = vst.msk [vmem:[#allocation3 + $0x100] sm:$0xff] %vm2821, %v3679
        %3792 = vst.msk [vmem:[#allocation3 + $0x108] sm:$0xff] %vm2821, %v3680
        %3793 = vst.msk [vmem:[#allocation3 + $0x110] sm:$0xff] %vm2821, %v3681
        %3794 = vst.msk [vmem:[#allocation3 + $0x118] sm:$0xff] %vm2821, %v3682
        %3795 = vst.msk [vmem:[#allocation3 + $0x120] sm:$0xff] %vm2821, %v3683
        %3796 = vst.msk [vmem:[#allocation3 + $0x128] sm:$0xff] %vm2821, %v3684
        %3797 = vst.msk [vmem:[#allocation3 + $0x130] sm:$0xff] %vm2821, %v3685
        %3798 = vst.msk [vmem:[#allocation3 + $0x138] sm:$0xff] %vm2821, %v3686
        %3799 = vst.msk [vmem:[#allocation3 + $0x140] sm:$0xff] %vm2821, %v3687
        %3800 = vst.msk [vmem:[#allocation3 + $0x148] sm:$0xff] %vm2821, %v3688
        %3801 = vst.msk [vmem:[#allocation3 + $0x150] sm:$0xff] %vm2821, %v3689
        %3802 = vst.msk [vmem:[#allocation3 + $0x158] sm:$0xff] %vm2821, %v3690
        %3803 = vst.msk [vmem:[#allocation3 + $0x160] sm:$0xff] %vm2821, %v3691
        %3804 = vst.msk [vmem:[#allocation3 + $0x168] sm:$0xff] %vm2821, %v3692
        %3805 = vst.msk [vmem:[#allocation3 + $0x170] sm:$0xff] %vm2821, %v3693
        %3806 = vst.msk [vmem:[#allocation3 + $0x178] sm:$0xff] %vm2821, %v3694
        %3807 = vst.msk [vmem:[#allocation3 + $0x180] sm:$0xff] %vm2821, %v3695
        %3808 = vst.msk [vmem:[#allocation3 + $0x188] sm:$0xff] %vm2821, %v3696
        %3809 = vst.msk [vmem:[#allocation3 + $0x190] sm:$0xff] %vm2821, %v3697
        %3810 = vst.msk [vmem:[#allocation3 + $0x198] sm:$0xff] %vm2821, %v3698
        %3811 = vst.msk [vmem:[#allocation3 + $0x1a0] sm:$0xff] %vm2821, %v3699
        %3812 = vst.msk [vmem:[#allocation3 + $0x1a8] sm:$0xff] %vm2821, %v3700
        %3813 = vst.msk [vmem:[#allocation3 + $0x1b0] sm:$0xff] %vm2821, %v3701
        %3814 = vst.msk [vmem:[#allocation3 + $0x1b8] sm:$0xff] %vm2821, %v3702
        %3815 = vst.msk [vmem:[#allocation3 + $0x1c0] sm:$0xff] %vm2821, %v3703
        %3816 = vst.msk [vmem:[#allocation3 + $0x1c8] sm:$0xff] %vm2821, %v3704
        %3817 = vst.msk [vmem:[#allocation3 + $0x1d0] sm:$0xff] %vm2821, %v3705
        %3818 = vst.msk [vmem:[#allocation3 + $0x1d8] sm:$0xff] %vm2821, %v3706
        %3819 = vst.msk [vmem:[#allocation3 + $0x1e0] sm:$0xff] %vm2821, %v3707
        %3820 = vst.msk [vmem:[#allocation3 + $0x1e8] sm:$0xff] %vm2821, %v3708
        %3821 = vst.msk [vmem:[#allocation3 + $0x1f0] sm:$0xff] %vm2821, %v3709
        %3822 = vst.msk [vmem:[#allocation3 + $0x1f8] sm:$0xff] %vm2821, %v3710
        %3823 = vst.msk [vmem:[#allocation3 + $0x200] sm:$0xff] %vm2821, %v3711
        %3824 = vst.msk [vmem:[#allocation3 + $0x208] sm:$0xff] %vm2821, %v3712
        %3825 = vst.msk [vmem:[#allocation3 + $0x210] sm:$0xff] %vm2821, %v3713
        %3826 = vst.msk [vmem:[#allocation3 + $0x218] sm:$0xff] %vm2821, %v3714
        %3827 = vst.msk [vmem:[#allocation3 + $0x220] sm:$0xff] %vm2821, %v3715
        %3828 = vst.msk [vmem:[#allocation3 + $0x228] sm:$0xff] %vm2821, %v3716
        %3829 = vst.msk [vmem:[#allocation3 + $0x230] sm:$0xff] %vm2821, %v3717
        %3830 = vst.msk [vmem:[#allocation3 + $0x238] sm:$0xff] %vm2821, %v3718
        %3831 = vst.msk [vmem:[#allocation3 + $0x240] sm:$0xff] %vm2821, %v3719
        %3832 = vst.msk [vmem:[#allocation3 + $0x248] sm:$0xff] %vm2821, %v3720
        %3833 = vst.msk [vmem:[#allocation3 + $0x250] sm:$0xff] %vm2821, %v3721
        %3834 = vst.msk [vmem:[#allocation3 + $0x258] sm:$0xff] %vm2821, %v3722
        %3835 = vst.msk [vmem:[#allocation3 + $0x260] sm:$0xff] %vm2821, %v3723
        %3836 = vst.msk [vmem:[#allocation3 + $0x268] sm:$0xff] %vm2821, %v3724
        %3837 = vst.msk [vmem:[#allocation3 + $0x270] sm:$0xff] %vm2821, %v3725
        %3838 = vst.msk [vmem:[#allocation3 + $0x278] sm:$0xff] %vm2821, %v3726
        %3839 = vst.msk [vmem:[#allocation3 + $0x280] sm:$0xff] %vm2821, %v3727
        %3840 = vst.msk [vmem:[#allocation3 + $0x288] sm:$0xff] %vm2821, %v3728
        %3841 = vst.msk [vmem:[#allocation3 + $0x290] sm:$0xff] %vm2821, %v3729
        %3842 = vst.msk [vmem:[#allocation3 + $0x298] sm:$0xff] %vm2821, %v3730
        %3843 = vst.msk [vmem:[#allocation3 + $0x2a0] sm:$0xff] %vm2821, %v3731
        %3844 = vst.msk [vmem:[#allocation3 + $0x2a8] sm:$0xff] %vm2821, %v3732
        %3845 = vst.msk [vmem:[#allocation3 + $0x2b0] sm:$0xff] %vm2821, %v3733
        %3846 = vst.msk [vmem:[#allocation3 + $0x2b8] sm:$0xff] %vm2821, %v3734
        %3847 = vst.msk [vmem:[#allocation3 + $0x2c0] sm:$0xff] %vm2821, %v3735
        %3848 = vst.msk [vmem:[#allocation3 + $0x2c8] sm:$0xff] %vm2821, %v3736
        %3849 = vst.msk [vmem:[#allocation3 + $0x2d0] sm:$0xff] %vm2821, %v3737
        %3850 = vst.msk [vmem:[#allocation3 + $0x2d8] sm:$0xff] %vm2821, %v3738
        %3851 = vst.msk [vmem:[#allocation3 + $0x2e0] sm:$0xff] %vm2821, %v3739
        %3852 = vst.msk [vmem:[#allocation3 + $0x2e8] sm:$0xff] %vm2821, %v3740
        %3853 = vst.msk [vmem:[#allocation3 + $0x2f0] sm:$0xff] %vm2821, %v3741
        %3854 = vst.msk [vmem:[#allocation3 + $0x2f8] sm:$0xff] %vm2821, %v3742
        %3855 = vst.msk [vmem:[#allocation3 + $0x300] sm:$0xff] %vm2821, %v3743
        %3856 = vst.msk [vmem:[#allocation3 + $0x308] sm:$0xff] %vm2821, %v3744
        %3857 = vst.msk [vmem:[#allocation3 + $0x310] sm:$0xff] %vm2821, %v3745
        %3858 = vst.msk [vmem:[#allocation3 + $0x318] sm:$0xff] %vm2821, %v3746
        %3859 = vst.msk [vmem:[#allocation3 + $0x320] sm:$0xff] %vm2821, %v3747
        %3860 = vst.msk [vmem:[#allocation3 + $0x328] sm:$0xff] %vm2821, %v3748
        %3861 = vst.msk [vmem:[#allocation3 + $0x330] sm:$0xff] %vm2821, %v3749
        %3862 = vst.msk [vmem:[#allocation3 + $0x338] sm:$0xff] %vm2821, %v3750
        %3863 = vst.msk [vmem:[#allocation3 + $0x340] sm:$0xff] %vm2821, %v3751
        %3864 = vst.msk [vmem:[#allocation3 + $0x348] sm:$0xff] %vm2821, %v3752
        %3865 = vst.msk [vmem:[#allocation3 + $0x350] sm:$0xff] %vm2821, %v3753
        %3866 = vst.msk [vmem:[#allocation3 + $0x358] sm:$0xff] %vm2821, %v3754
        %3867 = vst.msk [vmem:[#allocation3 + $0x360] sm:$0xff] %vm2821, %v3755
        %3868 = vst.msk [vmem:[#allocation3 + $0x368] sm:$0xff] %vm2821, %v3756
        %3869 = vst.msk [vmem:[#allocation3 + $0x370] sm:$0xff] %vm2821, %v3757
        %3870 = vst.msk [vmem:[#allocation3 + $0x378] sm:$0xff] %vm2821, %v3758
        %3871 = vst.msk [vmem:[#allocation3 + $0x380] sm:$0xff] %vm2821, %v3759
        %3872 = vst.msk [vmem:[#allocation3 + $0x388] sm:$0xff] %vm2821, %v3760
        %3873 = vst.msk [vmem:[#allocation3 + $0x390] sm:$0xff] %vm2821, %v3761
        %3874 = vst.msk [vmem:[#allocation3 + $0x398] sm:$0xff] %vm2821, %v3762
        %3875 = vst.msk [vmem:[#allocation3 + $0x3a0] sm:$0xff] %vm2821, %v3763
        %3876 = vst.msk [vmem:[#allocation3 + $0x3a8] sm:$0xff] %vm2821, %v3764
        %3877 = vst.msk [vmem:[#allocation3 + $0x3b0] sm:$0xff] %vm2821, %v3765
        %3878 = vst.msk [vmem:[#allocation3 + $0x3b8] sm:$0xff] %vm2821, %v3766
        %3879 = vst.msk [vmem:[#allocation3 + $0x3c0] sm:$0xff] %vm2821, %v3767
        %3880 = vst.msk [vmem:[#allocation3 + $0x3c8] sm:$0xff] %vm2821, %v3768
        %3881 = vst.msk [vmem:[#allocation3 + $0x3d0] sm:$0xff] %vm2821, %v3769
        %3882 = vst.msk [vmem:[#allocation3 + $0x3d8] sm:$0xff] %vm2821, %v3770
        %3883 = vst.msk [vmem:[#allocation3 + $0x3e0] sm:$0xff] %vm2821, %v3771
        %3884 = vst.msk [vmem:[#allocation3 + $0x3e8] sm:$0xff] %vm2821, %v3772
        %3885 = vst.msk [vmem:[#allocation3 + $0x3f0] sm:$0xff] %vm2821, %v3773
        %3886 = vst.msk [vmem:[#allocation3 + $0x3f8] sm:$0xff] %vm2821, %v3774
        %v3887 = vld [vmem:[#allocation3] sm:$0xff]
        %v3888 = vld [vmem:[#allocation3 + $0x8] sm:$0xff]
        %v3889 = vld [vmem:[#allocation3 + $0x10] sm:$0xff]
        %v3890 = vld [vmem:[#allocation3 + $0x18] sm:$0xff]
        %v3891 = vld [vmem:[#allocation3 + $0x20] sm:$0xff]
        %v3892 = vld [vmem:[#allocation3 + $0x28] sm:$0xff]
        %v3893 = vld [vmem:[#allocation3 + $0x30] sm:$0xff]
        %v3894 = vld [vmem:[#allocation3 + $0x38] sm:$0xff]
        %v3895 = vld [vmem:[#allocation3 + $0x40] sm:$0xff]
        %v3896 = vld [vmem:[#allocation3 + $0x48] sm:$0xff]
        %v3897 = vld [vmem:[#allocation3 + $0x50] sm:$0xff]
        %v3898 = vld [vmem:[#allocation3 + $0x58] sm:$0xff]
        %v3899 = vld [vmem:[#allocation3 + $0x60] sm:$0xff]
        %v3900 = vld [vmem:[#allocation3 + $0x68] sm:$0xff]
        %v3901 = vld [vmem:[#allocation3 + $0x70] sm:$0xff]
        %v3902 = vld [vmem:[#allocation3 + $0x78] sm:$0xff]
        %v3903 = vld [vmem:[#allocation3 + $0x80] sm:$0xff]
        %v3904 = vld [vmem:[#allocation3 + $0x88] sm:$0xff]
        %v3905 = vld [vmem:[#allocation3 + $0x90] sm:$0xff]
        %v3906 = vld [vmem:[#allocation3 + $0x98] sm:$0xff]
        %v3907 = vld [vmem:[#allocation3 + $0xa0] sm:$0xff]
        %v3908 = vld [vmem:[#allocation3 + $0xa8] sm:$0xff]
        %v3909 = vld [vmem:[#allocation3 + $0xb0] sm:$0xff]
        %v3910 = vld [vmem:[#allocation3 + $0xb8] sm:$0xff]
        %v3911 = vld [vmem:[#allocation3 + $0xc0] sm:$0xff]
        %v3912 = vld [vmem:[#allocation3 + $0xc8] sm:$0xff]
        %v3913 = vld [vmem:[#allocation3 + $0xd0] sm:$0xff]
        %v3914 = vld [vmem:[#allocation3 + $0xd8] sm:$0xff]
        %v3915 = vld [vmem:[#allocation3 + $0xe0] sm:$0xff]
        %v3916 = vld [vmem:[#allocation3 + $0xe8] sm:$0xff]
        %v3917 = vld [vmem:[#allocation3 + $0xf0] sm:$0xff]
        %v3918 = vld [vmem:[#allocation3 + $0xf8] sm:$0xff]
        %v3919 = vld [vmem:[#allocation3 + $0x100] sm:$0xff]
        %v3920 = vld [vmem:[#allocation3 + $0x108] sm:$0xff]
        %v3921 = vld [vmem:[#allocation3 + $0x110] sm:$0xff]
        %v3922 = vld [vmem:[#allocation3 + $0x118] sm:$0xff]
        %v3923 = vld [vmem:[#allocation3 + $0x120] sm:$0xff]
        %v3924 = vld [vmem:[#allocation3 + $0x128] sm:$0xff]
        %v3925 = vld [vmem:[#allocation3 + $0x130] sm:$0xff]
        %v3926 = vld [vmem:[#allocation3 + $0x138] sm:$0xff]
        %v3927 = vld [vmem:[#allocation3 + $0x140] sm:$0xff]
        %v3928 = vld [vmem:[#allocation3 + $0x148] sm:$0xff]
        %v3929 = vld [vmem:[#allocation3 + $0x150] sm:$0xff]
        %v3930 = vld [vmem:[#allocation3 + $0x158] sm:$0xff]
        %v3931 = vld [vmem:[#allocation3 + $0x160] sm:$0xff]
        %v3932 = vld [vmem:[#allocation3 + $0x168] sm:$0xff]
        %v3933 = vld [vmem:[#allocation3 + $0x170] sm:$0xff]
        %v3934 = vld [vmem:[#allocation3 + $0x178] sm:$0xff]
        %v3935 = vld [vmem:[#allocation3 + $0x180] sm:$0xff]
        %v3936 = vld [vmem:[#allocation3 + $0x188] sm:$0xff]
        %v3937 = vld [vmem:[#allocation3 + $0x190] sm:$0xff]
        %v3938 = vld [vmem:[#allocation3 + $0x198] sm:$0xff]
        %v3939 = vld [vmem:[#allocation3 + $0x1a0] sm:$0xff]
        %v3940 = vld [vmem:[#allocation3 + $0x1a8] sm:$0xff]
        %v3941 = vld [vmem:[#allocation3 + $0x1b0] sm:$0xff]
        %v3942 = vld [vmem:[#allocation3 + $0x1b8] sm:$0xff]
        %v3943 = vld [vmem:[#allocation3 + $0x1c0] sm:$0xff]
        %v3944 = vld [vmem:[#allocation3 + $0x1c8] sm:$0xff]
        %v3945 = vld [vmem:[#allocation3 + $0x1d0] sm:$0xff]
        %v3946 = vld [vmem:[#allocation3 + $0x1d8] sm:$0xff]
        %v3947 = vld [vmem:[#allocation3 + $0x1e0] sm:$0xff]
        %v3948 = vld [vmem:[#allocation3 + $0x1e8] sm:$0xff]
        %v3949 = vld [vmem:[#allocation3 + $0x1f0] sm:$0xff]
        %v3950 = vld [vmem:[#allocation3 + $0x1f8] sm:$0xff]
        %v3951 = vld [vmem:[#allocation3 + $0x200] sm:$0xff]
        %v3952 = vld [vmem:[#allocation3 + $0x208] sm:$0xff]
        %v3953 = vld [vmem:[#allocation3 + $0x210] sm:$0xff]
        %v3954 = vld [vmem:[#allocation3 + $0x218] sm:$0xff]
        %v3955 = vld [vmem:[#allocation3 + $0x220] sm:$0xff]
        %v3956 = vld [vmem:[#allocation3 + $0x228] sm:$0xff]
        %v3957 = vld [vmem:[#allocation3 + $0x230] sm:$0xff]
        %v3958 = vld [vmem:[#allocation3 + $0x238] sm:$0xff]
        %v3959 = vld [vmem:[#allocation3 + $0x240] sm:$0xff]
        %v3960 = vld [vmem:[#allocation3 + $0x248] sm:$0xff]
        %v3961 = vld [vmem:[#allocation3 + $0x250] sm:$0xff]
        %v3962 = vld [vmem:[#allocation3 + $0x258] sm:$0xff]
        %v3963 = vld [vmem:[#allocation3 + $0x260] sm:$0xff]
        %v3964 = vld [vmem:[#allocation3 + $0x268] sm:$0xff]
        %v3965 = vld [vmem:[#allocation3 + $0x270] sm:$0xff]
        %v3966 = vld [vmem:[#allocation3 + $0x278] sm:$0xff]
        %v3967 = vld [vmem:[#allocation3 + $0x280] sm:$0xff]
        %v3968 = vld [vmem:[#allocation3 + $0x288] sm:$0xff]
        %v3969 = vld [vmem:[#allocation3 + $0x290] sm:$0xff]
        %v3970 = vld [vmem:[#allocation3 + $0x298] sm:$0xff]
        %v3971 = vld [vmem:[#allocation3 + $0x2a0] sm:$0xff]
        %v3972 = vld [vmem:[#allocation3 + $0x2a8] sm:$0xff]
        %v3973 = vld [vmem:[#allocation3 + $0x2b0] sm:$0xff]
        %v3974 = vld [vmem:[#allocation3 + $0x2b8] sm:$0xff]
        %v3975 = vld [vmem:[#allocation3 + $0x2c0] sm:$0xff]
        %v3976 = vld [vmem:[#allocation3 + $0x2c8] sm:$0xff]
        %v3977 = vld [vmem:[#allocation3 + $0x2d0] sm:$0xff]
        %v3978 = vld [vmem:[#allocation3 + $0x2d8] sm:$0xff]
        %v3979 = vld [vmem:[#allocation3 + $0x2e0] sm:$0xff]
        %v3980 = vld [vmem:[#allocation3 + $0x2e8] sm:$0xff]
        %v3981 = vld [vmem:[#allocation3 + $0x2f0] sm:$0xff]
        %v3982 = vld [vmem:[#allocation3 + $0x2f8] sm:$0xff]
        %v3983 = vld [vmem:[#allocation3 + $0x300] sm:$0xff]
        %v3984 = vld [vmem:[#allocation3 + $0x308] sm:$0xff]
        %v3985 = vld [vmem:[#allocation3 + $0x310] sm:$0xff]
        %v3986 = vld [vmem:[#allocation3 + $0x318] sm:$0xff]
        %v3987 = vld [vmem:[#allocation3 + $0x320] sm:$0xff]
        %v3988 = vld [vmem:[#allocation3 + $0x328] sm:$0xff]
        %v3989 = vld [vmem:[#allocation3 + $0x330] sm:$0xff]
        %v3990 = vld [vmem:[#allocation3 + $0x338] sm:$0xff]
        %v3991 = vld [vmem:[#allocation3 + $0x340] sm:$0xff]
        %v3992 = vld [vmem:[#allocation3 + $0x348] sm:$0xff]
        %v3993 = vld [vmem:[#allocation3 + $0x350] sm:$0xff]
        %v3994 = vld [vmem:[#allocation3 + $0x358] sm:$0xff]
        %v3995 = vld [vmem:[#allocation3 + $0x360] sm:$0xff]
        %v3996 = vld [vmem:[#allocation3 + $0x368] sm:$0xff]
        %v3997 = vld [vmem:[#allocation3 + $0x370] sm:$0xff]
        %v3998 = vld [vmem:[#allocation3 + $0x378] sm:$0xff]
        %v3999 = vld [vmem:[#allocation2 + $0x40] sm:$0xff]
        %v4000 = vld [vmem:[#allocation2 + $0x48] sm:$0xff]
        %v4001 = vld [vmem:[#allocation2 + $0x50] sm:$0xff]
        %v4002 = vld [vmem:[#allocation2 + $0x58] sm:$0xff]
        %v4003 = vld [vmem:[#allocation2 + $0x60] sm:$0xff]
        %v4004 = vld [vmem:[#allocation2 + $0x68] sm:$0xff]
        %v4005 = vld [vmem:[#allocation2 + $0x70] sm:$0xff]
        %v4006 = vld [vmem:[#allocation2 + $0x78] sm:$0xff]
        %v4007 = vld [vmem:[#allocation2 + $0x80] sm:$0xff]
        %v4008 = vld [vmem:[#allocation2 + $0x88] sm:$0xff]
        %v4009 = vld [vmem:[#allocation2 + $0x90] sm:$0xff]
        %v4010 = vld [vmem:[#allocation2 + $0x98] sm:$0xff]
        %v4011 = vld [vmem:[#allocation2 + $0xa0] sm:$0xff]
        %v4012 = vld [vmem:[#allocation2 + $0xa8] sm:$0xff]
        %v4013 = vld [vmem:[#allocation2 + $0xb0] sm:$0xff]
        %v4014 = vld [vmem:[#allocation2 + $0xb8] sm:$0xff]
        %v4015 = vld [vmem:[#allocation2 + $0xc0] sm:$0xff]
        %v4016 = vld [vmem:[#allocation2 + $0xc8] sm:$0xff]
        %v4017 = vld [vmem:[#allocation2 + $0xd0] sm:$0xff]
        %v4018 = vld [vmem:[#allocation2 + $0xd8] sm:$0xff]
        %v4019 = vld [vmem:[#allocation2 + $0xe0] sm:$0xff]
        %v4020 = vld [vmem:[#allocation2 + $0xe8] sm:$0xff]
        %v4021 = vld [vmem:[#allocation2 + $0xf0] sm:$0xff]
        %v4022 = vld [vmem:[#allocation2 + $0xf8] sm:$0xff]
        %v4023 = vld [vmem:[#allocation2 + $0x100] sm:$0xff]
        %v4024 = vld [vmem:[#allocation2 + $0x108] sm:$0xff]
        %v4025 = vld [vmem:[#allocation2 + $0x110] sm:$0xff]
        %v4026 = vld [vmem:[#allocation2 + $0x118] sm:$0xff]
        %v4027 = vld [vmem:[#allocation2 + $0x120] sm:$0xff]
        %v4028 = vld [vmem:[#allocation2 + $0x128] sm:$0xff]
        %v4029 = vld [vmem:[#allocation2 + $0x130] sm:$0xff]
        %v4030 = vld [vmem:[#allocation2 + $0x138] sm:$0xff]
        %v4031 = vld [vmem:[#allocation2 + $0x140] sm:$0xff]
        %v4032 = vld [vmem:[#allocation2 + $0x148] sm:$0xff]
        %v4033 = vld [vmem:[#allocation2 + $0x150] sm:$0xff]
        %v4034 = vld [vmem:[#allocation2 + $0x158] sm:$0xff]
        %v4035 = vld [vmem:[#allocation2 + $0x160] sm:$0xff]
        %v4036 = vld [vmem:[#allocation2 + $0x168] sm:$0xff]
        %v4037 = vld [vmem:[#allocation2 + $0x170] sm:$0xff]
        %v4038 = vld [vmem:[#allocation2 + $0x178] sm:$0xff]
        %v4039 = vld [vmem:[#allocation2 + $0x180] sm:$0xff]
        %v4040 = vld [vmem:[#allocation2 + $0x188] sm:$0xff]
        %v4041 = vld [vmem:[#allocation2 + $0x190] sm:$0xff]
        %v4042 = vld [vmem:[#allocation2 + $0x198] sm:$0xff]
        %v4043 = vld [vmem:[#allocation2 + $0x1a0] sm:$0xff]
        %v4044 = vld [vmem:[#allocation2 + $0x1a8] sm:$0xff]
        %v4045 = vld [vmem:[#allocation2 + $0x1b0] sm:$0xff]
        %v4046 = vld [vmem:[#allocation2 + $0x1b8] sm:$0xff]
        %v4047 = vld [vmem:[#allocation2 + $0x1c0] sm:$0xff]
        %v4048 = vld [vmem:[#allocation2 + $0x1c8] sm:$0xff]
        %v4049 = vld [vmem:[#allocation2 + $0x1d0] sm:$0xff]
        %v4050 = vld [vmem:[#allocation2 + $0x1d8] sm:$0xff]
        %v4051 = vld [vmem:[#allocation2 + $0x1e0] sm:$0xff]
        %v4052 = vld [vmem:[#allocation2 + $0x1e8] sm:$0xff]
        %v4053 = vld [vmem:[#allocation2 + $0x1f0] sm:$0xff]
        %v4054 = vld [vmem:[#allocation2 + $0x1f8] sm:$0xff]
        %s4055 = scalar_lea.vmem %s3, 64
        %v4056 = vld [vmem:[%s4055] sm:$0xf]
        %v4057 = vld [vmem:[%s4055 + $0x4] sm:$0xf]
        %v4058 = vld [vmem:[%s4055 + $0x8] sm:$0xf]
        %v4059 = vld [vmem:[%s4055 + $0xc] sm:$0xf]
        %v4060 = vld [vmem:[%s4055 + $0x10] sm:$0xf]
        %v4061 = vld [vmem:[%s4055 + $0x14] sm:$0xf]
        %v4062 = vld [vmem:[%s4055 + $0x18] sm:$0xf]
        %v4063 = vld [vmem:[%s4055 + $0x1c] sm:$0xf]
        %v4064 = vld [vmem:[%s4055 + $0x20] sm:$0xf]
        %v4065 = vld [vmem:[%s4055 + $0x24] sm:$0xf]
        %v4066 = vld [vmem:[%s4055 + $0x28] sm:$0xf]
        %v4067 = vld [vmem:[%s4055 + $0x2c] sm:$0xf]
        %v4068 = vld [vmem:[%s4055 + $0x30] sm:$0xf]
        %v4069 = vld [vmem:[%s4055 + $0x34] sm:$0xf]
        %v4070 = vld [vmem:[%s4055 + $0x38] sm:$0xf]
        %v4071 = vld [vmem:[%s4055 + $0x3c] sm:$0xf]
        %v4088 = vunpack.c.l.b16 %v4056
        %v4089 = vunpack.c.l.b16 %v4057
        %v4090 = vunpack.c.l.b16 %v4058
        %v4091 = vunpack.c.l.b16 %v4059
        %v4092 = vunpack.c.l.b16 %v4060
        %v4093 = vunpack.c.l.b16 %v4061
        %v4094 = vunpack.c.l.b16 %v4062
        %v4095 = vunpack.c.l.b16 %v4063
        %v4096 = vunpack.c.l.b16 %v4064
        %v4097 = vunpack.c.l.b16 %v4065
        %v4098 = vunpack.c.l.b16 %v4066
        %v4099 = vunpack.c.l.b16 %v4067
        %v4100 = vunpack.c.l.b16 %v4068
        %v4101 = vunpack.c.l.b16 %v4069
        %v4102 = vunpack.c.l.b16 %v4070
        %v4103 = vunpack.c.l.b16 %v4071
        %v4104 = vpack.c.b16 %v4089, %v4088
        %v4105 = vpack.c.b16 %v4091, %v4090
        %v4106 = vpack.c.b16 %v4093, %v4092
        %v4107 = vpack.c.b16 %v4095, %v4094
        %v4108 = vpack.c.b16 %v4097, %v4096
        %v4109 = vpack.c.b16 %v4099, %v4098
        %v4110 = vpack.c.b16 %v4101, %v4100
        %v4111 = vpack.c.b16 %v4103, %v4102
        %4120 = vmatprep.subr.bf16.mxu0 0
        %4121 = vmatpush1.bf16.msra.mxu0 %v4104
        %4122 = vmatprep.subr.bf16.mxu0 0
        %4123 = vmatpush1.bf16.msra.mxu0 %v4105
        %4124 = vmatprep.subr.bf16.mxu0 0
        %4125 = vmatpush1.bf16.msra.mxu0 %v4106
        %4126 = vmatprep.subr.bf16.mxu0 0
        %4127 = vmatpush1.bf16.msra.mxu0 %v4107
        %4128 = vmatprep.subr.bf16.mxu0 0
        %4129 = vmatpush1.bf16.msra.mxu0 %v4108
        %4130 = vmatprep.subr.bf16.mxu0 0
        %4131 = vmatpush1.bf16.msra.mxu0 %v4109
        %4132 = vmatprep.subr.bf16.mxu0 0
        %4133 = vmatpush1.bf16.msra.mxu0 %v4110
        %4134 = vmatprep.subr.bf16.mxu0 0
        %4135 = vmatpush1.bf16.msra.mxu0 %v4111
        %4136 = vmatprep.subr.bf16.mxu0 0
        %4137 = vmatpush1.bf16.msra.mxu0 0
        %4138 = vmatprep.subr.bf16.mxu0 0
        %4139 = vmatpush1.bf16.msra.mxu0 0
        %4140 = vmatprep.subr.bf16.mxu0 0
        %4141 = vmatpush1.bf16.msra.mxu0 0
        %4142 = vmatprep.subr.bf16.mxu0 0
        %4143 = vmatpush1.bf16.msra.mxu0 0
        %4144 = vmatprep.subr.bf16.mxu0 0
        %4145 = vmatpush1.bf16.msra.mxu0 0
        %4146 = vmatprep.subr.bf16.mxu0 0
        %4147 = vmatpush1.bf16.msra.mxu0 0
        %4148 = vmatprep.subr.bf16.mxu0 0
        %4149 = vmatpush1.bf16.msra.mxu0 0
        %4150 = vmatprep.subr.bf16.mxu0 0
        %4151 = vmatpush1.bf16.msra.mxu0 0
        %4152 = vmatprep.mubr.bf16.mxu0 0
        %4153 = vmatmul.mubr.bf16.gmra.mrb[0].mxu0 %v3999
        %v4154 = vpop.f32.mrb[0].mxu0
        %v4155 = vadd.f32 0.0, %v4154
        %v4156 = vpop.f32.mrb[0].mxu0
        %v4157 = vpop.f32.mrb[0].mxu0
        %v4158 = vadd.f32 0.0, %v4157
        %v4159 = vpop.f32.mrb[0].mxu0
        %4160 = vmatprep.mubr.bf16.mxu0 0
        %4161 = vmatmul.mubr.bf16.gmra.mrb[0].mxu0 %v4000
        %v4162 = vpop.f32.mrb[0].mxu0
        %v4163 = vadd.f32 0.0, %v4162
        %v4164 = vpop.f32.mrb[0].mxu0
        %v4165 = vpop.f32.mrb[0].mxu0
        %v4166 = vadd.f32 0.0, %v4165
        %v4167 = vpop.f32.mrb[0].mxu0
        %4168 = vmatprep.mubr.bf16.mxu0 0
        %4169 = vmatmul.mubr.bf16.gmra.mrb[0].mxu0 %v4001
        %v4170 = vpop.f32.mrb[0].mxu0
        %v4171 = vadd.f32 0.0, %v4170
        %v4172 = vpop.f32.mrb[0].mxu0
        %v4173 = vpop.f32.mrb[0].mxu0
        %v4174 = vadd.f32 0.0, %v4173
        %v4175 = vpop.f32.mrb[0].mxu0
        %4176 = vmatprep.mubr.bf16.mxu0 0
        %4177 = vmatmul.mubr.bf16.gmra.mrb[0].mxu0 %v4002
        %v4178 = vpop.f32.mrb[0].mxu0
        %v4179 = vadd.f32 0.0, %v4178
        %v4180 = vpop.f32.mrb[0].mxu0
        %v4181 = vpop.f32.mrb[0].mxu0
        %v4182 = vadd.f32 0.0, %v4181
        %v4183 = vpop.f32.mrb[0].mxu0
        %4184 = vmatprep.mubr.bf16.mxu0 0
        %4185 = vmatmul.mubr.bf16.gmra.mrb[0].mxu0 %v4003
        %v4186 = vpop.f32.mrb[0].mxu0
        %v4187 = vadd.f32 0.0, %v4186
        %v4188 = vpop.f32.mrb[0].mxu0
        %v4189 = vpop.f32.mrb[0].mxu0
        %v4190 = vadd.f32 0.0, %v4189
        %v4191 = vpop.f32.mrb[0].mxu0
        %4192 = vmatprep.mubr.bf16.mxu0 0
        %4193 = vmatmul.mubr.bf16.gmra.mrb[0].mxu0 %v4004
        %v4194 = vpop.f32.mrb[0].mxu0
        %v4195 = vadd.f32 0.0, %v4194
        %v4196 = vpop.f32.mrb[0].mxu0
        %v4197 = vpop.f32.mrb[0].mxu0
        %v4198 = vadd.f32 0.0, %v4197
        %v4199 = vpop.f32.mrb[0].mxu0
        %4200 = vmatprep.mubr.bf16.mxu0 0
        %4201 = vmatmul.mubr.bf16.gmra.mrb[0].mxu0 %v4005
        %v4202 = vpop.f32.mrb[0].mxu0
        %v4203 = vadd.f32 0.0, %v4202
        %v4204 = vpop.f32.mrb[0].mxu0
        %v4205 = vpop.f32.mrb[0].mxu0
        %v4206 = vadd.f32 0.0, %v4205
        %v4207 = vpop.f32.mrb[0].mxu0
        %4208 = vmatprep.mubr.bf16.mxu0 0
        %4209 = vmatmul.mubr.bf16.gmra.mrb[0].mxu0 %v4006
        %v4210 = vpop.f32.mrb[0].mxu0
        %v4211 = vadd.f32 0.0, %v4210
        %v4212 = vpop.f32.mrb[0].mxu0
        %v4213 = vpop.f32.mrb[0].mxu0
        %v4214 = vadd.f32 0.0, %v4213
        %v4215 = vpop.f32.mrb[0].mxu0
        %4216 = vmatprep.mubr.bf16.mxu0 0
        %4217 = vmatmul.mubr.bf16.gmra.mrb[0].mxu0 %v4007
        %v4218 = vpop.f32.mrb[0].mxu0
        %v4219 = vadd.f32 0.0, %v4218
        %v4220 = vpop.f32.mrb[0].mxu0
        %v4221 = vpop.f32.mrb[0].mxu0
        %v4222 = vadd.f32 0.0, %v4221
        %v4223 = vpop.f32.mrb[0].mxu0
        %4224 = vmatprep.mubr.bf16.mxu0 0
        %4225 = vmatmul.mubr.bf16.gmra.mrb[0].mxu0 %v4008
        %v4226 = vpop.f32.mrb[0].mxu0
        %v4227 = vadd.f32 0.0, %v4226
        %v4228 = vpop.f32.mrb[0].mxu0
        %v4229 = vpop.f32.mrb[0].mxu0
        %v4230 = vadd.f32 0.0, %v4229
        %v4231 = vpop.f32.mrb[0].mxu0
        %4232 = vmatprep.mubr.bf16.mxu0 0
        %4233 = vmatmul.mubr.bf16.gmra.mrb[0].mxu0 %v4009
        %v4234 = vpop.f32.mrb[0].mxu0
        %v4235 = vadd.f32 0.0, %v4234
        %v4236 = vpop.f32.mrb[0].mxu0
        %v4237 = vpop.f32.mrb[0].mxu0
        %v4238 = vadd.f32 0.0, %v4237
        %v4239 = vpop.f32.mrb[0].mxu0
        %4240 = vmatprep.mubr.bf16.mxu0 0
        %4241 = vmatmul.mubr.bf16.gmra.mrb[0].mxu0 %v4010
        %v4242 = vpop.f32.mrb[0].mxu0
        %v4243 = vadd.f32 0.0, %v4242
        %v4244 = vpop.f32.mrb[0].mxu0
        %v4245 = vpop.f32.mrb[0].mxu0
        %v4246 = vadd.f32 0.0, %v4245
        %v4247 = vpop.f32.mrb[0].mxu0
        %4248 = vmatprep.mubr.bf16.mxu0 0
        %4249 = vmatmul.mubr.bf16.gmra.mrb[0].mxu0 %v4011
        %v4250 = vpop.f32.mrb[0].mxu0
        %v4251 = vadd.f32 0.0, %v4250
        %v4252 = vpop.f32.mrb[0].mxu0
        %v4253 = vpop.f32.mrb[0].mxu0
        %v4254 = vadd.f32 0.0, %v4253
        %v4255 = vpop.f32.mrb[0].mxu0
        %4256 = vmatprep.mubr.bf16.mxu0 0
        %4257 = vmatmul.mubr.bf16.gmra.mrb[0].mxu0 %v4012
        %v4258 = vpop.f32.mrb[0].mxu0
        %v4259 = vadd.f32 0.0, %v4258
        %v4260 = vpop.f32.mrb[0].mxu0
        %v4261 = vpop.f32.mrb[0].mxu0
        %v4262 = vadd.f32 0.0, %v4261
        %v4263 = vpop.f32.mrb[0].mxu0
        %4264 = vmatprep.mubr.bf16.mxu0 0
        %4265 = vmatmul.mubr.bf16.gmra.mrb[0].mxu0 %v4013
        %v4266 = vpop.f32.mrb[0].mxu0
        %v4267 = vadd.f32 0.0, %v4266
        %v4268 = vpop.f32.mrb[0].mxu0
        %v4269 = vpop.f32.mrb[0].mxu0
        %v4270 = vadd.f32 0.0, %v4269
        %v4271 = vpop.f32.mrb[0].mxu0
        %4272 = vmatprep.mubr.bf16.mxu0 0
        %4273 = vmatmul.mubr.bf16.gmra.mrb[0].mxu0 %v4014
        %v4274 = vpop.f32.mrb[0].mxu0
        %v4275 = vadd.f32 0.0, %v4274
        %v4276 = vpop.f32.mrb[0].mxu0
        %v4277 = vpop.f32.mrb[0].mxu0
        %v4278 = vadd.f32 0.0, %v4277
        %v4279 = vpop.f32.mrb[0].mxu0
        %4280 = vmatprep.mubr.bf16.mxu0 0
        %4281 = vmatmul.mubr.bf16.gmra.mrb[0].mxu0 %v4015
        %v4282 = vpop.f32.mrb[0].mxu0
        %v4283 = vadd.f32 0.0, %v4282
        %v4284 = vpop.f32.mrb[0].mxu0
        %v4285 = vpop.f32.mrb[0].mxu0
        %v4286 = vadd.f32 0.0, %v4285
        %v4287 = vpop.f32.mrb[0].mxu0
        %4288 = vmatprep.mubr.bf16.mxu0 0
        %4289 = vmatmul.mubr.bf16.gmra.mrb[0].mxu0 %v4016
        %v4290 = vpop.f32.mrb[0].mxu0
        %v4291 = vadd.f32 0.0, %v4290
        %v4292 = vpop.f32.mrb[0].mxu0
        %v4293 = vpop.f32.mrb[0].mxu0
        %v4294 = vadd.f32 0.0, %v4293
        %v4295 = vpop.f32.mrb[0].mxu0
        %4296 = vmatprep.mubr.bf16.mxu0 0
        %4297 = vmatmul.mubr.bf16.gmra.mrb[0].mxu0 %v4017
        %v4298 = vpop.f32.mrb[0].mxu0
        %v4299 = vadd.f32 0.0, %v4298
        %v4300 = vpop.f32.mrb[0].mxu0
        %v4301 = vpop.f32.mrb[0].mxu0
        %v4302 = vadd.f32 0.0, %v4301
        %v4303 = vpop.f32.mrb[0].mxu0
        %4304 = vmatprep.mubr.bf16.mxu0 0
        %4305 = vmatmul.mubr.bf16.gmra.mrb[0].mxu0 %v4018
        %v4306 = vpop.f32.mrb[0].mxu0
        %v4307 = vadd.f32 0.0, %v4306
        %v4308 = vpop.f32.mrb[0].mxu0
        %v4309 = vpop.f32.mrb[0].mxu0
        %v4310 = vadd.f32 0.0, %v4309
        %v4311 = vpop.f32.mrb[0].mxu0
        %4312 = vmatprep.mubr.bf16.mxu0 0
        %4313 = vmatmul.mubr.bf16.gmra.mrb[0].mxu0 %v4019
        %v4314 = vpop.f32.mrb[0].mxu0
        %v4315 = vadd.f32 0.0, %v4314
        %v4316 = vpop.f32.mrb[0].mxu0
        %v4317 = vpop.f32.mrb[0].mxu0
        %v4318 = vadd.f32 0.0, %v4317
        %v4319 = vpop.f32.mrb[0].mxu0
        %4320 = vmatprep.mubr.bf16.mxu0 0
        %4321 = vmatmul.mubr.bf16.gmra.mrb[0].mxu0 %v4020
        %v4322 = vpop.f32.mrb[0].mxu0
        %v4323 = vadd.f32 0.0, %v4322
        %v4324 = vpop.f32.mrb[0].mxu0
        %v4325 = vpop.f32.mrb[0].mxu0
        %v4326 = vadd.f32 0.0, %v4325
        %v4327 = vpop.f32.mrb[0].mxu0
        %4328 = vmatprep.mubr.bf16.mxu0 0
        %4329 = vmatmul.mubr.bf16.gmra.mrb[0].mxu0 %v4021
        %v4330 = vpop.f32.mrb[0].mxu0
        %v4331 = vadd.f32 0.0, %v4330
        %v4332 = vpop.f32.mrb[0].mxu0
        %v4333 = vpop.f32.mrb[0].mxu0
        %v4334 = vadd.f32 0.0, %v4333
        %v4335 = vpop.f32.mrb[0].mxu0
        %4336 = vmatprep.mubr.bf16.mxu0 0
        %4337 = vmatmul.mubr.bf16.gmra.mrb[0].mxu0 %v4022
        %v4338 = vpop.f32.mrb[0].mxu0
        %v4339 = vadd.f32 0.0, %v4338
        %v4340 = vpop.f32.mrb[0].mxu0
        %v4341 = vpop.f32.mrb[0].mxu0
        %v4342 = vadd.f32 0.0, %v4341
        %v4343 = vpop.f32.mrb[0].mxu0
        %4344 = vmatprep.mubr.bf16.mxu0 0
        %4345 = vmatmul.mubr.bf16.gmra.mrb[0].mxu0 %v4023
        %v4346 = vpop.f32.mrb[0].mxu0
        %v4347 = vadd.f32 0.0, %v4346
        %v4348 = vpop.f32.mrb[0].mxu0
        %v4349 = vpop.f32.mrb[0].mxu0
        %v4350 = vadd.f32 0.0, %v4349
        %v4351 = vpop.f32.mrb[0].mxu0
        %4352 = vmatprep.mubr.bf16.mxu0 0
        %4353 = vmatmul.mubr.bf16.gmra.mrb[0].mxu0 %v4024
        %v4354 = vpop.f32.mrb[0].mxu0
        %v4355 = vadd.f32 0.0, %v4354
        %v4356 = vpop.f32.mrb[0].mxu0
        %v4357 = vpop.f32.mrb[0].mxu0
        %v4358 = vadd.f32 0.0, %v4357
        %v4359 = vpop.f32.mrb[0].mxu0
        %4360 = vmatprep.mubr.bf16.mxu0 0
        %4361 = vmatmul.mubr.bf16.gmra.mrb[0].mxu0 %v4025
        %v4362 = vpop.f32.mrb[0].mxu0
        %v4363 = vadd.f32 0.0, %v4362
        %v4364 = vpop.f32.mrb[0].mxu0
        %v4365 = vpop.f32.mrb[0].mxu0
        %v4366 = vadd.f32 0.0, %v4365
        %v4367 = vpop.f32.mrb[0].mxu0
        %4368 = vmatprep.mubr.bf16.mxu0 0
        %4369 = vmatmul.mubr.bf16.gmra.mrb[0].mxu0 %v4026
        %v4370 = vpop.f32.mrb[0].mxu0
        %v4371 = vadd.f32 0.0, %v4370
        %v4372 = vpop.f32.mrb[0].mxu0
        %v4373 = vpop.f32.mrb[0].mxu0
        %v4374 = vadd.f32 0.0, %v4373
        %v4375 = vpop.f32.mrb[0].mxu0
        %4376 = vmatprep.mubr.bf16.mxu0 0
        %4377 = vmatmul.mubr.bf16.gmra.mrb[0].mxu0 %v4027
        %v4378 = vpop.f32.mrb[0].mxu0
        %v4379 = vadd.f32 0.0, %v4378
        %v4380 = vpop.f32.mrb[0].mxu0
        %v4381 = vpop.f32.mrb[0].mxu0
        %v4382 = vadd.f32 0.0, %v4381
        %v4383 = vpop.f32.mrb[0].mxu0
        %4384 = vmatprep.mubr.bf16.mxu0 0
        %4385 = vmatmul.mubr.bf16.gmra.mrb[0].mxu0 %v4028
        %v4386 = vpop.f32.mrb[0].mxu0
        %v4387 = vadd.f32 0.0, %v4386
        %v4388 = vpop.f32.mrb[0].mxu0
        %v4389 = vpop.f32.mrb[0].mxu0
        %v4390 = vadd.f32 0.0, %v4389
        %v4391 = vpop.f32.mrb[0].mxu0
        %4392 = vmatprep.mubr.bf16.mxu0 0
        %4393 = vmatmul.mubr.bf16.gmra.mrb[0].mxu0 %v4029
        %v4394 = vpop.f32.mrb[0].mxu0
        %v4395 = vadd.f32 0.0, %v4394
        %v4396 = vpop.f32.mrb[0].mxu0
        %v4397 = vpop.f32.mrb[0].mxu0
        %v4398 = vadd.f32 0.0, %v4397
        %v4399 = vpop.f32.mrb[0].mxu0
        %4400 = vmatprep.mubr.bf16.mxu0 0
        %4401 = vmatmul.mubr.bf16.gmra.mrb[0].mxu0 %v4030
        %v4402 = vpop.f32.mrb[0].mxu0
        %v4403 = vadd.f32 0.0, %v4402
        %v4404 = vpop.f32.mrb[0].mxu0
        %v4405 = vpop.f32.mrb[0].mxu0
        %v4406 = vadd.f32 0.0, %v4405
        %v4407 = vpop.f32.mrb[0].mxu0
        %4408 = vmatprep.mubr.bf16.mxu0 0
        %4409 = vmatmul.mubr.bf16.gmra.mrb[0].mxu0 %v4031
        %v4410 = vpop.f32.mrb[0].mxu0
        %v4411 = vadd.f32 0.0, %v4410
        %v4412 = vpop.f32.mrb[0].mxu0
        %v4413 = vpop.f32.mrb[0].mxu0
        %v4414 = vadd.f32 0.0, %v4413
        %v4415 = vpop.f32.mrb[0].mxu0
        %4416 = vmatprep.mubr.bf16.mxu0 0
        %4417 = vmatmul.mubr.bf16.gmra.mrb[0].mxu0 %v4032
        %v4418 = vpop.f32.mrb[0].mxu0
        %v4419 = vadd.f32 0.0, %v4418
        %v4420 = vpop.f32.mrb[0].mxu0
        %v4421 = vpop.f32.mrb[0].mxu0
        %v4422 = vadd.f32 0.0, %v4421
        %v4423 = vpop.f32.mrb[0].mxu0
        %4424 = vmatprep.mubr.bf16.mxu0 0
        %4425 = vmatmul.mubr.bf16.gmra.mrb[0].mxu0 %v4033
        %v4426 = vpop.f32.mrb[0].mxu0
        %v4427 = vadd.f32 0.0, %v4426
        %v4428 = vpop.f32.mrb[0].mxu0
        %v4429 = vpop.f32.mrb[0].mxu0
        %v4430 = vadd.f32 0.0, %v4429
        %v4431 = vpop.f32.mrb[0].mxu0
        %4432 = vmatprep.mubr.bf16.mxu0 0
        %4433 = vmatmul.mubr.bf16.gmra.mrb[0].mxu0 %v4034
        %v4434 = vpop.f32.mrb[0].mxu0
        %v4435 = vadd.f32 0.0, %v4434
        %v4436 = vpop.f32.mrb[0].mxu0
        %v4437 = vpop.f32.mrb[0].mxu0
        %v4438 = vadd.f32 0.0, %v4437
        %v4439 = vpop.f32.mrb[0].mxu0
        %4440 = vmatprep.mubr.bf16.mxu0 0
        %4441 = vmatmul.mubr.bf16.gmra.mrb[0].mxu0 %v4035
        %v4442 = vpop.f32.mrb[0].mxu0
        %v4443 = vadd.f32 0.0, %v4442
        %v4444 = vpop.f32.mrb[0].mxu0
        %v4445 = vpop.f32.mrb[0].mxu0
        %v4446 = vadd.f32 0.0, %v4445
        %v4447 = vpop.f32.mrb[0].mxu0
        %4448 = vmatprep.mubr.bf16.mxu0 0
        %4449 = vmatmul.mubr.bf16.gmra.mrb[0].mxu0 %v4036
        %v4450 = vpop.f32.mrb[0].mxu0
        %v4451 = vadd.f32 0.0, %v4450
        %v4452 = vpop.f32.mrb[0].mxu0
        %v4453 = vpop.f32.mrb[0].mxu0
        %v4454 = vadd.f32 0.0, %v4453
        %v4455 = vpop.f32.mrb[0].mxu0
        %4456 = vmatprep.mubr.bf16.mxu0 0
        %4457 = vmatmul.mubr.bf16.gmra.mrb[0].mxu0 %v4037
        %v4458 = vpop.f32.mrb[0].mxu0
        %v4459 = vadd.f32 0.0, %v4458
        %v4460 = vpop.f32.mrb[0].mxu0
        %v4461 = vpop.f32.mrb[0].mxu0
        %v4462 = vadd.f32 0.0, %v4461
        %v4463 = vpop.f32.mrb[0].mxu0
        %4464 = vmatprep.mubr.bf16.mxu0 0
        %4465 = vmatmul.mubr.bf16.gmra.mrb[0].mxu0 %v4038
        %v4466 = vpop.f32.mrb[0].mxu0
        %v4467 = vadd.f32 0.0, %v4466
        %v4468 = vpop.f32.mrb[0].mxu0
        %v4469 = vpop.f32.mrb[0].mxu0
        %v4470 = vadd.f32 0.0, %v4469
        %v4471 = vpop.f32.mrb[0].mxu0
        %4472 = vmatprep.mubr.bf16.mxu0 0
        %4473 = vmatmul.mubr.bf16.gmra.mrb[0].mxu0 %v4039
        %v4474 = vpop.f32.mrb[0].mxu0
        %v4475 = vadd.f32 0.0, %v4474
        %v4476 = vpop.f32.mrb[0].mxu0
        %v4477 = vpop.f32.mrb[0].mxu0
        %v4478 = vadd.f32 0.0, %v4477
        %v4479 = vpop.f32.mrb[0].mxu0
        %4480 = vmatprep.mubr.bf16.mxu0 0
        %4481 = vmatmul.mubr.bf16.gmra.mrb[0].mxu0 %v4040
        %v4482 = vpop.f32.mrb[0].mxu0
        %v4483 = vadd.f32 0.0, %v4482
        %v4484 = vpop.f32.mrb[0].mxu0
        %v4485 = vpop.f32.mrb[0].mxu0
        %v4486 = vadd.f32 0.0, %v4485
        %v4487 = vpop.f32.mrb[0].mxu0
        %4488 = vmatprep.mubr.bf16.mxu0 0
        %4489 = vmatmul.mubr.bf16.gmra.mrb[0].mxu0 %v4041
        %v4490 = vpop.f32.mrb[0].mxu0
        %v4491 = vadd.f32 0.0, %v4490
        %v4492 = vpop.f32.mrb[0].mxu0
        %v4493 = vpop.f32.mrb[0].mxu0
        %v4494 = vadd.f32 0.0, %v4493
        %v4495 = vpop.f32.mrb[0].mxu0
        %4496 = vmatprep.mubr.bf16.mxu0 0
        %4497 = vmatmul.mubr.bf16.gmra.mrb[0].mxu0 %v4042
        %v4498 = vpop.f32.mrb[0].mxu0
        %v4499 = vadd.f32 0.0, %v4498
        %v4500 = vpop.f32.mrb[0].mxu0
        %v4501 = vpop.f32.mrb[0].mxu0
        %v4502 = vadd.f32 0.0, %v4501
        %v4503 = vpop.f32.mrb[0].mxu0
        %4504 = vmatprep.mubr.bf16.mxu0 0
        %4505 = vmatmul.mubr.bf16.gmra.mrb[0].mxu0 %v4043
        %v4506 = vpop.f32.mrb[0].mxu0
        %v4507 = vadd.f32 0.0, %v4506
        %v4508 = vpop.f32.mrb[0].mxu0
        %v4509 = vpop.f32.mrb[0].mxu0
        %v4510 = vadd.f32 0.0, %v4509
        %v4511 = vpop.f32.mrb[0].mxu0
        %4512 = vmatprep.mubr.bf16.mxu0 0
        %4513 = vmatmul.mubr.bf16.gmra.mrb[0].mxu0 %v4044
        %v4514 = vpop.f32.mrb[0].mxu0
        %v4515 = vadd.f32 0.0, %v4514
        %v4516 = vpop.f32.mrb[0].mxu0
        %v4517 = vpop.f32.mrb[0].mxu0
        %v4518 = vadd.f32 0.0, %v4517
        %v4519 = vpop.f32.mrb[0].mxu0
        %4520 = vmatprep.mubr.bf16.mxu0 0
        %4521 = vmatmul.mubr.bf16.gmra.mrb[0].mxu0 %v4045
        %v4522 = vpop.f32.mrb[0].mxu0
        %v4523 = vadd.f32 0.0, %v4522
        %v4524 = vpop.f32.mrb[0].mxu0
        %v4525 = vpop.f32.mrb[0].mxu0
        %v4526 = vadd.f32 0.0, %v4525
        %v4527 = vpop.f32.mrb[0].mxu0
        %4528 = vmatprep.mubr.bf16.mxu0 0
        %4529 = vmatmul.mubr.bf16.gmra.mrb[0].mxu0 %v4046
        %v4530 = vpop.f32.mrb[0].mxu0
        %v4531 = vadd.f32 0.0, %v4530
        %v4532 = vpop.f32.mrb[0].mxu0
        %v4533 = vpop.f32.mrb[0].mxu0
        %v4534 = vadd.f32 0.0, %v4533
        %v4535 = vpop.f32.mrb[0].mxu0
        %4536 = vmatprep.mubr.bf16.mxu0 0
        %4537 = vmatmul.mubr.bf16.gmra.mrb[0].mxu0 %v4047
        %v4538 = vpop.f32.mrb[0].mxu0
        %v4539 = vadd.f32 0.0, %v4538
        %v4540 = vpop.f32.mrb[0].mxu0
        %v4541 = vpop.f32.mrb[0].mxu0
        %v4542 = vadd.f32 0.0, %v4541
        %v4543 = vpop.f32.mrb[0].mxu0
        %4544 = vmatprep.mubr.bf16.mxu0 0
        %4545 = vmatmul.mubr.bf16.gmra.mrb[0].mxu0 %v4048
        %v4546 = vpop.f32.mrb[0].mxu0
        %v4547 = vadd.f32 0.0, %v4546
        %v4548 = vpop.f32.mrb[0].mxu0
        %v4549 = vpop.f32.mrb[0].mxu0
        %v4550 = vadd.f32 0.0, %v4549
        %v4551 = vpop.f32.mrb[0].mxu0
        %4552 = vmatprep.mubr.bf16.mxu0 0
        %4553 = vmatmul.mubr.bf16.gmra.mrb[0].mxu0 %v4049
        %v4554 = vpop.f32.mrb[0].mxu0
        %v4555 = vadd.f32 0.0, %v4554
        %v4556 = vpop.f32.mrb[0].mxu0
        %v4557 = vpop.f32.mrb[0].mxu0
        %v4558 = vadd.f32 0.0, %v4557
        %v4559 = vpop.f32.mrb[0].mxu0
        %4560 = vmatprep.mubr.bf16.mxu0 0
        %4561 = vmatmul.mubr.bf16.gmra.mrb[0].mxu0 %v4050
        %v4562 = vpop.f32.mrb[0].mxu0
        %v4563 = vadd.f32 0.0, %v4562
        %v4564 = vpop.f32.mrb[0].mxu0
        %v4565 = vpop.f32.mrb[0].mxu0
        %v4566 = vadd.f32 0.0, %v4565
        %v4567 = vpop.f32.mrb[0].mxu0
        %4568 = vmatprep.mubr.bf16.mxu0 0
        %4569 = vmatmul.mubr.bf16.gmra.mrb[0].mxu0 %v4051
        %v4570 = vpop.f32.mrb[0].mxu0
        %v4571 = vadd.f32 0.0, %v4570
        %v4572 = vpop.f32.mrb[0].mxu0
        %v4573 = vpop.f32.mrb[0].mxu0
        %v4574 = vadd.f32 0.0, %v4573
        %v4575 = vpop.f32.mrb[0].mxu0
        %4576 = vmatprep.mubr.bf16.mxu0 0
        %4577 = vmatmul.mubr.bf16.gmra.mrb[0].mxu0 %v4052
        %v4578 = vpop.f32.mrb[0].mxu0
        %v4579 = vadd.f32 0.0, %v4578
        %v4580 = vpop.f32.mrb[0].mxu0
        %v4581 = vpop.f32.mrb[0].mxu0
        %v4582 = vadd.f32 0.0, %v4581
        %v4583 = vpop.f32.mrb[0].mxu0
        %4584 = vmatprep.mubr.bf16.mxu0 0
        %4585 = vmatmul.mubr.bf16.gmra.mrb[0].mxu0 %v4053
        %v4586 = vpop.f32.mrb[0].mxu0
        %v4587 = vadd.f32 0.0, %v4586
        %v4588 = vpop.f32.mrb[0].mxu0
        %v4589 = vpop.f32.mrb[0].mxu0
        %v4590 = vadd.f32 0.0, %v4589
        %v4591 = vpop.f32.mrb[0].mxu0
        %4592 = vmatprep.mubr.bf16.mxu0 0
        %4593 = vmatmul.mubr.bf16.gmra.mrb[0].mxu0 %v4054
        %v4594 = vpop.f32.mrb[0].mxu0
        %v4595 = vadd.f32 0.0, %v4594
        %v4596 = vpop.f32.mrb[0].mxu0
        %v4597 = vpop.f32.mrb[0].mxu0
        %v4598 = vadd.f32 0.0, %v4597
        %v4599 = vpop.f32.mrb[0].mxu0
        %4600 = vdwg.mxu0
        %v4601 = vadd.f32 %v3887, %v4155
        %v4602 = vadd.f32 %v3888, %v4158
        %v4603 = vadd.f32 %v3889, %v4163
        %v4604 = vadd.f32 %v3890, %v4166
        %v4605 = vadd.f32 %v3891, %v4171
        %v4606 = vadd.f32 %v3892, %v4174
        %v4607 = vadd.f32 %v3893, %v4179
        %v4608 = vadd.f32 %v3894, %v4182
        %v4609 = vadd.f32 %v3895, %v4187
        %v4610 = vadd.f32 %v3896, %v4190
        %v4611 = vadd.f32 %v3897, %v4195
        %v4612 = vadd.f32 %v3898, %v4198
        %v4613 = vadd.f32 %v3899, %v4203
        %v4614 = vadd.f32 %v3900, %v4206
        %v4615 = vadd.f32 %v3901, %v4211
        %v4616 = vadd.f32 %v3902, %v4214
        %v4617 = vadd.f32 %v3903, %v4219
        %v4618 = vadd.f32 %v3904, %v4222
        %v4619 = vadd.f32 %v3905, %v4227
        %v4620 = vadd.f32 %v3906, %v4230
        %v4621 = vadd.f32 %v3907, %v4235
        %v4622 = vadd.f32 %v3908, %v4238
        %v4623 = vadd.f32 %v3909, %v4243
        %v4624 = vadd.f32 %v3910, %v4246
        %v4625 = vadd.f32 %v3911, %v4251
        %v4626 = vadd.f32 %v3912, %v4254
        %v4627 = vadd.f32 %v3913, %v4259
        %v4628 = vadd.f32 %v3914, %v4262
        %v4629 = vadd.f32 %v3915, %v4267
        %v4630 = vadd.f32 %v3916, %v4270
        %v4631 = vadd.f32 %v3917, %v4275
        %v4632 = vadd.f32 %v3918, %v4278
        %v4633 = vadd.f32 %v3919, %v4283
        %v4634 = vadd.f32 %v3920, %v4286
        %v4635 = vadd.f32 %v3921, %v4291
        %v4636 = vadd.f32 %v3922, %v4294
        %v4637 = vadd.f32 %v3923, %v4299
        %v4638 = vadd.f32 %v3924, %v4302
        %v4639 = vadd.f32 %v3925, %v4307
        %v4640 = vadd.f32 %v3926, %v4310
        %v4641 = vadd.f32 %v3927, %v4315
        %v4642 = vadd.f32 %v3928, %v4318
        %v4643 = vadd.f32 %v3929, %v4323
        %v4644 = vadd.f32 %v3930, %v4326
        %v4645 = vadd.f32 %v3931, %v4331
        %v4646 = vadd.f32 %v3932, %v4334
        %v4647 = vadd.f32 %v3933, %v4339
        %v4648 = vadd.f32 %v3934, %v4342
        %v4649 = vadd.f32 %v3935, %v4347
        %v4650 = vadd.f32 %v3936, %v4350
        %v4651 = vadd.f32 %v3937, %v4355
        %v4652 = vadd.f32 %v3938, %v4358
        %v4653 = vadd.f32 %v3939, %v4363
        %v4654 = vadd.f32 %v3940, %v4366
        %v4655 = vadd.f32 %v3941, %v4371
        %v4656 = vadd.f32 %v3942, %v4374
        %v4657 = vadd.f32 %v3943, %v4379
        %v4658 = vadd.f32 %v3944, %v4382
        %v4659 = vadd.f32 %v3945, %v4387
        %v4660 = vadd.f32 %v3946, %v4390
        %v4661 = vadd.f32 %v3947, %v4395
        %v4662 = vadd.f32 %v3948, %v4398
        %v4663 = vadd.f32 %v3949, %v4403
        %v4664 = vadd.f32 %v3950, %v4406
        %v4665 = vadd.f32 %v3951, %v4411
        %v4666 = vadd.f32 %v3952, %v4414
        %v4667 = vadd.f32 %v3953, %v4419
        %v4668 = vadd.f32 %v3954, %v4422
        %v4669 = vadd.f32 %v3955, %v4427
        %v4670 = vadd.f32 %v3956, %v4430
        %v4671 = vadd.f32 %v3957, %v4435
        %v4672 = vadd.f32 %v3958, %v4438
        %v4673 = vadd.f32 %v3959, %v4443
        %v4674 = vadd.f32 %v3960, %v4446
        %v4675 = vadd.f32 %v3961, %v4451
        %v4676 = vadd.f32 %v3962, %v4454
        %v4677 = vadd.f32 %v3963, %v4459
        %v4678 = vadd.f32 %v3964, %v4462
        %v4679 = vadd.f32 %v3965, %v4467
        %v4680 = vadd.f32 %v3966, %v4470
        %v4681 = vadd.f32 %v3967, %v4475
        %v4682 = vadd.f32 %v3968, %v4478
        %v4683 = vadd.f32 %v3969, %v4483
        %v4684 = vadd.f32 %v3970, %v4486
        %v4685 = vadd.f32 %v3971, %v4491
        %v4686 = vadd.f32 %v3972, %v4494
        %v4687 = vadd.f32 %v3973, %v4499
        %v4688 = vadd.f32 %v3974, %v4502
        %v4689 = vadd.f32 %v3975, %v4507
        %v4690 = vadd.f32 %v3976, %v4510
        %v4691 = vadd.f32 %v3977, %v4515
        %v4692 = vadd.f32 %v3978, %v4518
        %v4693 = vadd.f32 %v3979, %v4523
        %v4694 = vadd.f32 %v3980, %v4526
        %v4695 = vadd.f32 %v3981, %v4531
        %v4696 = vadd.f32 %v3982, %v4534
        %v4697 = vadd.f32 %v3983, %v4539
        %v4698 = vadd.f32 %v3984, %v4542
        %v4699 = vadd.f32 %v3985, %v4547
        %v4700 = vadd.f32 %v3986, %v4550
        %v4701 = vadd.f32 %v3987, %v4555
        %v4702 = vadd.f32 %v3988, %v4558
        %v4703 = vadd.f32 %v3989, %v4563
        %v4704 = vadd.f32 %v3990, %v4566
        %v4705 = vadd.f32 %v3991, %v4571
        %v4706 = vadd.f32 %v3992, %v4574
        %v4707 = vadd.f32 %v3993, %v4579
        %v4708 = vadd.f32 %v3994, %v4582
        %v4709 = vadd.f32 %v3995, %v4587
        %v4710 = vadd.f32 %v3996, %v4590
        %v4711 = vadd.f32 %v3997, %v4595
        %v4712 = vadd.f32 %v3998, %v4598
        %4713 = vst.msk [vmem:[#allocation3] sm:$0xff] %vm2821, %v4601
        %4714 = vst.msk [vmem:[#allocation3 + $0x8] sm:$0xff] %vm2821, %v4602
        %4715 = vst.msk [vmem:[#allocation3 + $0x10] sm:$0xff] %vm2821, %v4603
        %4716 = vst.msk [vmem:[#allocation3 + $0x18] sm:$0xff] %vm2821, %v4604
        %4717 = vst.msk [vmem:[#allocation3 + $0x20] sm:$0xff] %vm2821, %v4605
        %4718 = vst.msk [vmem:[#allocation3 + $0x28] sm:$0xff] %vm2821, %v4606
        %4719 = vst.msk [vmem:[#allocation3 + $0x30] sm:$0xff] %vm2821, %v4607
        %4720 = vst.msk [vmem:[#allocation3 + $0x38] sm:$0xff] %vm2821, %v4608
        %4721 = vst.msk [vmem:[#allocation3 + $0x40] sm:$0xff] %vm2821, %v4609
        %4722 = vst.msk [vmem:[#allocation3 + $0x48] sm:$0xff] %vm2821, %v4610
        %4723 = vst.msk [vmem:[#allocation3 + $0x50] sm:$0xff] %vm2821, %v4611
        %4724 = vst.msk [vmem:[#allocation3 + $0x58] sm:$0xff] %vm2821, %v4612
        %4725 = vst.msk [vmem:[#allocation3 + $0x60] sm:$0xff] %vm2821, %v4613
        %4726 = vst.msk [vmem:[#allocation3 + $0x68] sm:$0xff] %vm2821, %v4614
        %4727 = vst.msk [vmem:[#allocation3 + $0x70] sm:$0xff] %vm2821, %v4615
        %4728 = vst.msk [vmem:[#allocation3 + $0x78] sm:$0xff] %vm2821, %v4616
        %4729 = vst.msk [vmem:[#allocation3 + $0x80] sm:$0xff] %vm2821, %v4617
        %4730 = vst.msk [vmem:[#allocation3 + $0x88] sm:$0xff] %vm2821, %v4618
        %4731 = vst.msk [vmem:[#allocation3 + $0x90] sm:$0xff] %vm2821, %v4619
        %4732 = vst.msk [vmem:[#allocation3 + $0x98] sm:$0xff] %vm2821, %v4620
        %4733 = vst.msk [vmem:[#allocation3 + $0xa0] sm:$0xff] %vm2821, %v4621
        %4734 = vst.msk [vmem:[#allocation3 + $0xa8] sm:$0xff] %vm2821, %v4622
        %4735 = vst.msk [vmem:[#allocation3 + $0xb0] sm:$0xff] %vm2821, %v4623
        %4736 = vst.msk [vmem:[#allocation3 + $0xb8] sm:$0xff] %vm2821, %v4624
        %4737 = vst.msk [vmem:[#allocation3 + $0xc0] sm:$0xff] %vm2821, %v4625
        %4738 = vst.msk [vmem:[#allocation3 + $0xc8] sm:$0xff] %vm2821, %v4626
        %4739 = vst.msk [vmem:[#allocation3 + $0xd0] sm:$0xff] %vm2821, %v4627
        %4740 = vst.msk [vmem:[#allocation3 + $0xd8] sm:$0xff] %vm2821, %v4628
        %4741 = vst.msk [vmem:[#allocation3 + $0xe0] sm:$0xff] %vm2821, %v4629
        %4742 = vst.msk [vmem:[#allocation3 + $0xe8] sm:$0xff] %vm2821, %v4630
        %4743 = vst.msk [vmem:[#allocation3 + $0xf0] sm:$0xff] %vm2821, %v4631
        %4744 = vst.msk [vmem:[#allocation3 + $0xf8] sm:$0xff] %vm2821, %v4632
        %4745 = vst.msk [vmem:[#allocation3 + $0x100] sm:$0xff] %vm2821, %v4633
        %4746 = vst.msk [vmem:[#allocation3 + $0x108] sm:$0xff] %vm2821, %v4634
        %4747 = vst.msk [vmem:[#allocation3 + $0x110] sm:$0xff] %vm2821, %v4635
        %4748 = vst.msk [vmem:[#allocation3 + $0x118] sm:$0xff] %vm2821, %v4636
        %4749 = vst.msk [vmem:[#allocation3 + $0x120] sm:$0xff] %vm2821, %v4637
        %4750 = vst.msk [vmem:[#allocation3 + $0x128] sm:$0xff] %vm2821, %v4638
        %4751 = vst.msk [vmem:[#allocation3 + $0x130] sm:$0xff] %vm2821, %v4639
        %4752 = vst.msk [vmem:[#allocation3 + $0x138] sm:$0xff] %vm2821, %v4640
        %4753 = vst.msk [vmem:[#allocation3 + $0x140] sm:$0xff] %vm2821, %v4641
        %4754 = vst.msk [vmem:[#allocation3 + $0x148] sm:$0xff] %vm2821, %v4642
        %4755 = vst.msk [vmem:[#allocation3 + $0x150] sm:$0xff] %vm2821, %v4643
        %4756 = vst.msk [vmem:[#allocation3 + $0x158] sm:$0xff] %vm2821, %v4644
        %4757 = vst.msk [vmem:[#allocation3 + $0x160] sm:$0xff] %vm2821, %v4645
        %4758 = vst.msk [vmem:[#allocation3 + $0x168] sm:$0xff] %vm2821, %v4646
        %4759 = vst.msk [vmem:[#allocation3 + $0x170] sm:$0xff] %vm2821, %v4647
        %4760 = vst.msk [vmem:[#allocation3 + $0x178] sm:$0xff] %vm2821, %v4648
        %4761 = vst.msk [vmem:[#allocation3 + $0x180] sm:$0xff] %vm2821, %v4649
        %4762 = vst.msk [vmem:[#allocation3 + $0x188] sm:$0xff] %vm2821, %v4650
        %4763 = vst.msk [vmem:[#allocation3 + $0x190] sm:$0xff] %vm2821, %v4651
        %4764 = vst.msk [vmem:[#allocation3 + $0x198] sm:$0xff] %vm2821, %v4652
        %4765 = vst.msk [vmem:[#allocation3 + $0x1a0] sm:$0xff] %vm2821, %v4653
        %4766 = vst.msk [vmem:[#allocation3 + $0x1a8] sm:$0xff] %vm2821, %v4654
        %4767 = vst.msk [vmem:[#allocation3 + $0x1b0] sm:$0xff] %vm2821, %v4655
        %4768 = vst.msk [vmem:[#allocation3 + $0x1b8] sm:$0xff] %vm2821, %v4656
        %4769 = vst.msk [vmem:[#allocation3 + $0x1c0] sm:$0xff] %vm2821, %v4657
        %4770 = vst.msk [vmem:[#allocation3 + $0x1c8] sm:$0xff] %vm2821, %v4658
        %4771 = vst.msk [vmem:[#allocation3 + $0x1d0] sm:$0xff] %vm2821, %v4659
        %4772 = vst.msk [vmem:[#allocation3 + $0x1d8] sm:$0xff] %vm2821, %v4660
        %4773 = vst.msk [vmem:[#allocation3 + $0x1e0] sm:$0xff] %vm2821, %v4661
        %4774 = vst.msk [vmem:[#allocation3 + $0x1e8] sm:$0xff] %vm2821, %v4662
        %4775 = vst.msk [vmem:[#allocation3 + $0x1f0] sm:$0xff] %vm2821, %v4663
        %4776 = vst.msk [vmem:[#allocation3 + $0x1f8] sm:$0xff] %vm2821, %v4664
        %4777 = vst.msk [vmem:[#allocation3 + $0x200] sm:$0xff] %vm2821, %v4665
        %4778 = vst.msk [vmem:[#allocation3 + $0x208] sm:$0xff] %vm2821, %v4666
        %4779 = vst.msk [vmem:[#allocation3 + $0x210] sm:$0xff] %vm2821, %v4667
        %4780 = vst.msk [vmem:[#allocation3 + $0x218] sm:$0xff] %vm2821, %v4668
        %4781 = vst.msk [vmem:[#allocation3 + $0x220] sm:$0xff] %vm2821, %v4669
        %4782 = vst.msk [vmem:[#allocation3 + $0x228] sm:$0xff] %vm2821, %v4670
        %4783 = vst.msk [vmem:[#allocation3 + $0x230] sm:$0xff] %vm2821, %v4671
        %4784 = vst.msk [vmem:[#allocation3 + $0x238] sm:$0xff] %vm2821, %v4672
        %4785 = vst.msk [vmem:[#allocation3 + $0x240] sm:$0xff] %vm2821, %v4673
        %4786 = vst.msk [vmem:[#allocation3 + $0x248] sm:$0xff] %vm2821, %v4674
        %4787 = vst.msk [vmem:[#allocation3 + $0x250] sm:$0xff] %vm2821, %v4675
        %4788 = vst.msk [vmem:[#allocation3 + $0x258] sm:$0xff] %vm2821, %v4676
        %4789 = vst.msk [vmem:[#allocation3 + $0x260] sm:$0xff] %vm2821, %v4677
        %4790 = vst.msk [vmem:[#allocation3 + $0x268] sm:$0xff] %vm2821, %v4678
        %4791 = vst.msk [vmem:[#allocation3 + $0x270] sm:$0xff] %vm2821, %v4679
        %4792 = vst.msk [vmem:[#allocation3 + $0x278] sm:$0xff] %vm2821, %v4680
        %4793 = vst.msk [vmem:[#allocation3 + $0x280] sm:$0xff] %vm2821, %v4681
        %4794 = vst.msk [vmem:[#allocation3 + $0x288] sm:$0xff] %vm2821, %v4682
        %4795 = vst.msk [vmem:[#allocation3 + $0x290] sm:$0xff] %vm2821, %v4683
        %4796 = vst.msk [vmem:[#allocation3 + $0x298] sm:$0xff] %vm2821, %v4684
        %4797 = vst.msk [vmem:[#allocation3 + $0x2a0] sm:$0xff] %vm2821, %v4685
        %4798 = vst.msk [vmem:[#allocation3 + $0x2a8] sm:$0xff] %vm2821, %v4686
        %4799 = vst.msk [vmem:[#allocation3 + $0x2b0] sm:$0xff] %vm2821, %v4687
        %4800 = vst.msk [vmem:[#allocation3 + $0x2b8] sm:$0xff] %vm2821, %v4688
        %4801 = vst.msk [vmem:[#allocation3 + $0x2c0] sm:$0xff] %vm2821, %v4689
        %4802 = vst.msk [vmem:[#allocation3 + $0x2c8] sm:$0xff] %vm2821, %v4690
        %4803 = vst.msk [vmem:[#allocation3 + $0x2d0] sm:$0xff] %vm2821, %v4691
        %4804 = vst.msk [vmem:[#allocation3 + $0x2d8] sm:$0xff] %vm2821, %v4692
        %4805 = vst.msk [vmem:[#allocation3 + $0x2e0] sm:$0xff] %vm2821, %v4693
        %4806 = vst.msk [vmem:[#allocation3 + $0x2e8] sm:$0xff] %vm2821, %v4694
        %4807 = vst.msk [vmem:[#allocation3 + $0x2f0] sm:$0xff] %vm2821, %v4695
        %4808 = vst.msk [vmem:[#allocation3 + $0x2f8] sm:$0xff] %vm2821, %v4696
        %4809 = vst.msk [vmem:[#allocation3 + $0x300] sm:$0xff] %vm2821, %v4697
        %4810 = vst.msk [vmem:[#allocation3 + $0x308] sm:$0xff] %vm2821, %v4698
        %4811 = vst.msk [vmem:[#allocation3 + $0x310] sm:$0xff] %vm2821, %v4699
        %4812 = vst.msk [vmem:[#allocation3 + $0x318] sm:$0xff] %vm2821, %v4700
        %4813 = vst.msk [vmem:[#allocation3 + $0x320] sm:$0xff] %vm2821, %v4701
        %4814 = vst.msk [vmem:[#allocation3 + $0x328] sm:$0xff] %vm2821, %v4702
        %4815 = vst.msk [vmem:[#allocation3 + $0x330] sm:$0xff] %vm2821, %v4703
        %4816 = vst.msk [vmem:[#allocation3 + $0x338] sm:$0xff] %vm2821, %v4704
        %4817 = vst.msk [vmem:[#allocation3 + $0x340] sm:$0xff] %vm2821, %v4705
        %4818 = vst.msk [vmem:[#allocation3 + $0x348] sm:$0xff] %vm2821, %v4706
        %4819 = vst.msk [vmem:[#allocation3 + $0x350] sm:$0xff] %vm2821, %v4707
        %4820 = vst.msk [vmem:[#allocation3 + $0x358] sm:$0xff] %vm2821, %v4708
        %4821 = vst.msk [vmem:[#allocation3 + $0x360] sm:$0xff] %vm2821, %v4709
        %4822 = vst.msk [vmem:[#allocation3 + $0x368] sm:$0xff] %vm2821, %v4710
        %4823 = vst.msk [vmem:[#allocation3 + $0x370] sm:$0xff] %vm2821, %v4711
        %4824 = vst.msk [vmem:[#allocation3 + $0x378] sm:$0xff] %vm2821, %v4712
        %v4825 = vld [vmem:[#allocation3 + $0x100] sm:$0xff]
        %v4826 = vld [vmem:[#allocation3 + $0x108] sm:$0xff]
        %v4827 = vld [vmem:[#allocation3 + $0x110] sm:$0xff]
        %v4828 = vld [vmem:[#allocation3 + $0x118] sm:$0xff]
        %v4829 = vld [vmem:[#allocation3 + $0x120] sm:$0xff]
        %v4830 = vld [vmem:[#allocation3 + $0x128] sm:$0xff]
        %v4831 = vld [vmem:[#allocation3 + $0x130] sm:$0xff]
        %v4832 = vld [vmem:[#allocation3 + $0x138] sm:$0xff]
        %v4833 = vld [vmem:[#allocation3 + $0x140] sm:$0xff]
        %v4834 = vld [vmem:[#allocation3 + $0x148] sm:$0xff]
        %v4835 = vld [vmem:[#allocation3 + $0x150] sm:$0xff]
        %v4836 = vld [vmem:[#allocation3 + $0x158] sm:$0xff]
        %v4837 = vld [vmem:[#allocation3 + $0x160] sm:$0xff]
        %v4838 = vld [vmem:[#allocation3 + $0x168] sm:$0xff]
        %v4839 = vld [vmem:[#allocation3 + $0x170] sm:$0xff]
        %v4840 = vld [vmem:[#allocation3 + $0x178] sm:$0xff]
        %v4841 = vld [vmem:[#allocation3 + $0x180] sm:$0xff]
        %v4842 = vld [vmem:[#allocation3 + $0x188] sm:$0xff]
        %v4843 = vld [vmem:[#allocation3 + $0x190] sm:$0xff]
        %v4844 = vld [vmem:[#allocation3 + $0x198] sm:$0xff]
        %v4845 = vld [vmem:[#allocation3 + $0x1a0] sm:$0xff]
        %v4846 = vld [vmem:[#allocation3 + $0x1a8] sm:$0xff]
        %v4847 = vld [vmem:[#allocation3 + $0x1b0] sm:$0xff]
        %v4848 = vld [vmem:[#allocation3 + $0x1b8] sm:$0xff]
        %v4849 = vld [vmem:[#allocation3 + $0x1c0] sm:$0xff]
        %v4850 = vld [vmem:[#allocation3 + $0x1c8] sm:$0xff]
        %v4851 = vld [vmem:[#allocation3 + $0x1d0] sm:$0xff]
        %v4852 = vld [vmem:[#allocation3 + $0x1d8] sm:$0xff]
        %v4853 = vld [vmem:[#allocation3 + $0x1e0] sm:$0xff]
        %v4854 = vld [vmem:[#allocation3 + $0x1e8] sm:$0xff]
        %v4855 = vld [vmem:[#allocation3 + $0x1f0] sm:$0xff]
        %v4856 = vld [vmem:[#allocation3 + $0x1f8] sm:$0xff]
        %v4857 = vld [vmem:[#allocation3 + $0x200] sm:$0xff]
        %v4858 = vld [vmem:[#allocation3 + $0x208] sm:$0xff]
        %v4859 = vld [vmem:[#allocation3 + $0x210] sm:$0xff]
        %v4860 = vld [vmem:[#allocation3 + $0x218] sm:$0xff]
        %v4861 = vld [vmem:[#allocation3 + $0x220] sm:$0xff]
        %v4862 = vld [vmem:[#allocation3 + $0x228] sm:$0xff]
        %v4863 = vld [vmem:[#allocation3 + $0x230] sm:$0xff]
        %v4864 = vld [vmem:[#allocation3 + $0x238] sm:$0xff]
        %v4865 = vld [vmem:[#allocation3 + $0x240] sm:$0xff]
        %v4866 = vld [vmem:[#allocation3 + $0x248] sm:$0xff]
        %v4867 = vld [vmem:[#allocation3 + $0x250] sm:$0xff]
        %v4868 = vld [vmem:[#allocation3 + $0x258] sm:$0xff]
        %v4869 = vld [vmem:[#allocation3 + $0x260] sm:$0xff]
        %v4870 = vld [vmem:[#allocation3 + $0x268] sm:$0xff]
        %v4871 = vld [vmem:[#allocation3 + $0x270] sm:$0xff]
        %v4872 = vld [vmem:[#allocation3 + $0x278] sm:$0xff]
        %v4873 = vld [vmem:[#allocation3 + $0x280] sm:$0xff]
        %v4874 = vld [vmem:[#allocation3 + $0x288] sm:$0xff]
        %v4875 = vld [vmem:[#allocation3 + $0x290] sm:$0xff]
        %v4876 = vld [vmem:[#allocation3 + $0x298] sm:$0xff]
        %v4877 = vld [vmem:[#allocation3 + $0x2a0] sm:$0xff]
        %v4878 = vld [vmem:[#allocation3 + $0x2a8] sm:$0xff]
        %v4879 = vld [vmem:[#allocation3 + $0x2b0] sm:$0xff]
        %v4880 = vld [vmem:[#allocation3 + $0x2b8] sm:$0xff]
        %v4881 = vld [vmem:[#allocation3 + $0x2c0] sm:$0xff]
        %v4882 = vld [vmem:[#allocation3 + $0x2c8] sm:$0xff]
        %v4883 = vld [vmem:[#allocation3 + $0x2d0] sm:$0xff]
        %v4884 = vld [vmem:[#allocation3 + $0x2d8] sm:$0xff]
        %v4885 = vld [vmem:[#allocation3 + $0x2e0] sm:$0xff]
        %v4886 = vld [vmem:[#allocation3 + $0x2e8] sm:$0xff]
        %v4887 = vld [vmem:[#allocation3 + $0x2f0] sm:$0xff]
        %v4888 = vld [vmem:[#allocation3 + $0x2f8] sm:$0xff]
        %v4889 = vld [vmem:[#allocation3 + $0x300] sm:$0xff]
        %v4890 = vld [vmem:[#allocation3 + $0x308] sm:$0xff]
        %v4891 = vld [vmem:[#allocation3 + $0x310] sm:$0xff]
        %v4892 = vld [vmem:[#allocation3 + $0x318] sm:$0xff]
        %v4893 = vld [vmem:[#allocation3 + $0x320] sm:$0xff]
        %v4894 = vld [vmem:[#allocation3 + $0x328] sm:$0xff]
        %v4895 = vld [vmem:[#allocation3 + $0x330] sm:$0xff]
        %v4896 = vld [vmem:[#allocation3 + $0x338] sm:$0xff]
        %v4897 = vld [vmem:[#allocation3 + $0x340] sm:$0xff]
        %v4898 = vld [vmem:[#allocation3 + $0x348] sm:$0xff]
        %v4899 = vld [vmem:[#allocation3 + $0x350] sm:$0xff]
        %v4900 = vld [vmem:[#allocation3 + $0x358] sm:$0xff]
        %v4901 = vld [vmem:[#allocation3 + $0x360] sm:$0xff]
        %v4902 = vld [vmem:[#allocation3 + $0x368] sm:$0xff]
        %v4903 = vld [vmem:[#allocation3 + $0x370] sm:$0xff]
        %v4904 = vld [vmem:[#allocation3 + $0x378] sm:$0xff]
        %v4905 = vld [vmem:[#allocation3 + $0x380] sm:$0xff]
        %v4906 = vld [vmem:[#allocation3 + $0x388] sm:$0xff]
        %v4907 = vld [vmem:[#allocation3 + $0x390] sm:$0xff]
        %v4908 = vld [vmem:[#allocation3 + $0x398] sm:$0xff]
        %v4909 = vld [vmem:[#allocation3 + $0x3a0] sm:$0xff]
        %v4910 = vld [vmem:[#allocation3 + $0x3a8] sm:$0xff]
        %v4911 = vld [vmem:[#allocation3 + $0x3b0] sm:$0xff]
        %v4912 = vld [vmem:[#allocation3 + $0x3b8] sm:$0xff]
        %v4913 = vld [vmem:[#allocation3 + $0x3c0] sm:$0xff]
        %v4914 = vld [vmem:[#allocation3 + $0x3c8] sm:$0xff]
        %v4915 = vld [vmem:[#allocation3 + $0x3d0] sm:$0xff]
        %v4916 = vld [vmem:[#allocation3 + $0x3d8] sm:$0xff]
        %v4917 = vld [vmem:[#allocation3 + $0x3e0] sm:$0xff]
        %v4918 = vld [vmem:[#allocation3 + $0x3e8] sm:$0xff]
        %v4919 = vld [vmem:[#allocation3 + $0x3f0] sm:$0xff]
        %v4920 = vld [vmem:[#allocation3 + $0x3f8] sm:$0xff]
        %v4921 = vld [vmem:[#allocation2] sm:$0xff]
        %v4922 = vld [vmem:[#allocation2 + $0x8] sm:$0xff]
        %v4923 = vld [vmem:[#allocation2 + $0x10] sm:$0xff]
        %v4924 = vld [vmem:[#allocation2 + $0x18] sm:$0xff]
        %v4925 = vld [vmem:[#allocation2 + $0x20] sm:$0xff]
        %v4926 = vld [vmem:[#allocation2 + $0x28] sm:$0xff]
        %v4927 = vld [vmem:[#allocation2 + $0x30] sm:$0xff]
        %v4928 = vld [vmem:[#allocation2 + $0x38] sm:$0xff]
        %v4929 = vld [vmem:[#allocation2 + $0x40] sm:$0xff]
        %v4930 = vld [vmem:[#allocation2 + $0x48] sm:$0xff]
        %v4931 = vld [vmem:[#allocation2 + $0x50] sm:$0xff]
        %v4932 = vld [vmem:[#allocation2 + $0x58] sm:$0xff]
        %v4933 = vld [vmem:[#allocation2 + $0x60] sm:$0xff]
        %v4934 = vld [vmem:[#allocation2 + $0x68] sm:$0xff]
        %v4935 = vld [vmem:[#allocation2 + $0x70] sm:$0xff]
        %v4936 = vld [vmem:[#allocation2 + $0x78] sm:$0xff]
        %v4937 = vld [vmem:[#allocation2 + $0x80] sm:$0xff]
        %v4938 = vld [vmem:[#allocation2 + $0x88] sm:$0xff]
        %v4939 = vld [vmem:[#allocation2 + $0x90] sm:$0xff]
        %v4940 = vld [vmem:[#allocation2 + $0x98] sm:$0xff]
        %v4941 = vld [vmem:[#allocation2 + $0xa0] sm:$0xff]
        %v4942 = vld [vmem:[#allocation2 + $0xa8] sm:$0xff]
        %v4943 = vld [vmem:[#allocation2 + $0xb0] sm:$0xff]
        %v4944 = vld [vmem:[#allocation2 + $0xb8] sm:$0xff]
        %v4945 = vld [vmem:[#allocation2 + $0xc0] sm:$0xff]
        %v4946 = vld [vmem:[#allocation2 + $0xc8] sm:$0xff]
        %v4947 = vld [vmem:[#allocation2 + $0xd0] sm:$0xff]
        %v4948 = vld [vmem:[#allocation2 + $0xd8] sm:$0xff]
        %v4949 = vld [vmem:[#allocation2 + $0xe0] sm:$0xff]
        %v4950 = vld [vmem:[#allocation2 + $0xe8] sm:$0xff]
        %v4951 = vld [vmem:[#allocation2 + $0xf0] sm:$0xff]
        %v4952 = vld [vmem:[#allocation2 + $0xf8] sm:$0xff]
        %v4953 = vld [vmem:[#allocation2 + $0x100] sm:$0xff]
        %v4954 = vld [vmem:[#allocation2 + $0x108] sm:$0xff]
        %v4955 = vld [vmem:[#allocation2 + $0x110] sm:$0xff]
        %v4956 = vld [vmem:[#allocation2 + $0x118] sm:$0xff]
        %v4957 = vld [vmem:[#allocation2 + $0x120] sm:$0xff]
        %v4958 = vld [vmem:[#allocation2 + $0x128] sm:$0xff]
        %v4959 = vld [vmem:[#allocation2 + $0x130] sm:$0xff]
        %v4960 = vld [vmem:[#allocation2 + $0x138] sm:$0xff]
        %v4961 = vld [vmem:[#allocation2 + $0x140] sm:$0xff]
        %v4962 = vld [vmem:[#allocation2 + $0x148] sm:$0xff]
        %v4963 = vld [vmem:[#allocation2 + $0x150] sm:$0xff]
        %v4964 = vld [vmem:[#allocation2 + $0x158] sm:$0xff]
        %v4965 = vld [vmem:[#allocation2 + $0x160] sm:$0xff]
        %v4966 = vld [vmem:[#allocation2 + $0x168] sm:$0xff]
        %v4967 = vld [vmem:[#allocation2 + $0x170] sm:$0xff]
        %v4968 = vld [vmem:[#allocation2 + $0x178] sm:$0xff]
        %s4969 = scalar_lea.vmem %s3, 128
        %v4970 = vld [vmem:[%s4969] sm:$0xf]
        %v4971 = vld [vmem:[%s4969 + $0x4] sm:$0xf]
        %v4972 = vld [vmem:[%s4969 + $0x8] sm:$0xf]
        %v4973 = vld [vmem:[%s4969 + $0xc] sm:$0xf]
        %v4974 = vld [vmem:[%s4969 + $0x10] sm:$0xf]
        %v4975 = vld [vmem:[%s4969 + $0x14] sm:$0xf]
        %v4976 = vld [vmem:[%s4969 + $0x18] sm:$0xf]
        %v4977 = vld [vmem:[%s4969 + $0x1c] sm:$0xf]
        %v4978 = vld [vmem:[%s4969 + $0x20] sm:$0xf]
        %v4979 = vld [vmem:[%s4969 + $0x24] sm:$0xf]
        %v4980 = vld [vmem:[%s4969 + $0x28] sm:$0xf]
        %v4981 = vld [vmem:[%s4969 + $0x2c] sm:$0xf]
        %v4982 = vld [vmem:[%s4969 + $0x30] sm:$0xf]
        %v4983 = vld [vmem:[%s4969 + $0x34] sm:$0xf]
        %v4984 = vld [vmem:[%s4969 + $0x38] sm:$0xf]
        %v4985 = vld [vmem:[%s4969 + $0x3c] sm:$0xf]
        %v5002 = vunpack.c.l.b16 %v4970
        %v5003 = vunpack.c.l.b16 %v4971
        %v5004 = vunpack.c.l.b16 %v4972
        %v5005 = vunpack.c.l.b16 %v4973
        %v5006 = vunpack.c.l.b16 %v4974
        %v5007 = vunpack.c.l.b16 %v4975
        %v5008 = vunpack.c.l.b16 %v4976
        %v5009 = vunpack.c.l.b16 %v4977
        %v5010 = vunpack.c.l.b16 %v4978
        %v5011 = vunpack.c.l.b16 %v4979
        %v5012 = vunpack.c.l.b16 %v4980
        %v5013 = vunpack.c.l.b16 %v4981
        %v5014 = vunpack.c.l.b16 %v4982
        %v5015 = vunpack.c.l.b16 %v4983
        %v5016 = vunpack.c.l.b16 %v4984
        %v5017 = vunpack.c.l.b16 %v4985
        %v5018 = vpack.c.b16 %v5003, %v5002
        %v5019 = vpack.c.b16 %v5005, %v5004
        %v5020 = vpack.c.b16 %v5007, %v5006
        %v5021 = vpack.c.b16 %v5009, %v5008
        %v5022 = vpack.c.b16 %v5011, %v5010
        %v5023 = vpack.c.b16 %v5013, %v5012
        %v5024 = vpack.c.b16 %v5015, %v5014
        %v5025 = vpack.c.b16 %v5017, %v5016
        %5034 = vmatprep.subr.bf16.mxu0 0
        %5035 = vmatpush1.bf16.msra.mxu0 %v5018
        %5036 = vmatprep.subr.bf16.mxu0 0
        %5037 = vmatpush1.bf16.msra.mxu0 %v5019
        %5038 = vmatprep.subr.bf16.mxu0 0
        %5039 = vmatpush1.bf16.msra.mxu0 %v5020
        %5040 = vmatprep.subr.bf16.mxu0 0
        %5041 = vmatpush1.bf16.msra.mxu0 %v5021
        %5042 = vmatprep.subr.bf16.mxu0 0
        %5043 = vmatpush1.bf16.msra.mxu0 %v5022
        %5044 = vmatprep.subr.bf16.mxu0 0
        %5045 = vmatpush1.bf16.msra.mxu0 %v5023
        %5046 = vmatprep.subr.bf16.mxu0 0
        %5047 = vmatpush1.bf16.msra.mxu0 %v5024
        %5048 = vmatprep.subr.bf16.mxu0 0
        %5049 = vmatpush1.bf16.msra.mxu0 %v5025
        %5050 = vmatprep.subr.bf16.mxu0 0
        %5051 = vmatpush1.bf16.msra.mxu0 0
        %5052 = vmatprep.subr.bf16.mxu0 0
        %5053 = vmatpush1.bf16.msra.mxu0 0
        %5054 = vmatprep.subr.bf16.mxu0 0
        %5055 = vmatpush1.bf16.msra.mxu0 0
        %5056 = vmatprep.subr.bf16.mxu0 0
        %5057 = vmatpush1.bf16.msra.mxu0 0
        %5058 = vmatprep.subr.bf16.mxu0 0
        %5059 = vmatpush1.bf16.msra.mxu0 0
        %5060 = vmatprep.subr.bf16.mxu0 0
        %5061 = vmatpush1.bf16.msra.mxu0 0
        %5062 = vmatprep.subr.bf16.mxu0 0
        %5063 = vmatpush1.bf16.msra.mxu0 0
        %5064 = vmatprep.subr.bf16.mxu0 0
        %5065 = vmatpush1.bf16.msra.mxu0 0
        %5066 = vmatprep.mubr.bf16.mxu0 0
        %5067 = vmatmul.mubr.bf16.gmra.mrb[0].mxu0 %v4921
        %v5068 = vpop.f32.mrb[0].mxu0
        %v5069 = vadd.f32 0.0, %v5068
        %v5070 = vpop.f32.mrb[0].mxu0
        %v5071 = vpop.f32.mrb[0].mxu0
        %v5072 = vadd.f32 0.0, %v5071
        %v5073 = vpop.f32.mrb[0].mxu0
        %5074 = vmatprep.mubr.bf16.mxu0 0
        %5075 = vmatmul.mubr.bf16.gmra.mrb[0].mxu0 %v4922
        %v5076 = vpop.f32.mrb[0].mxu0
        %v5077 = vadd.f32 0.0, %v5076
        %v5078 = vpop.f32.mrb[0].mxu0
        %v5079 = vpop.f32.mrb[0].mxu0
        %v5080 = vadd.f32 0.0, %v5079
        %v5081 = vpop.f32.mrb[0].mxu0
        %5082 = vmatprep.mubr.bf16.mxu0 0
        %5083 = vmatmul.mubr.bf16.gmra.mrb[0].mxu0 %v4923
        %v5084 = vpop.f32.mrb[0].mxu0
        %v5085 = vadd.f32 0.0, %v5084
        %v5086 = vpop.f32.mrb[0].mxu0
        %v5087 = vpop.f32.mrb[0].mxu0
        %v5088 = vadd.f32 0.0, %v5087
        %v5089 = vpop.f32.mrb[0].mxu0
        %5090 = vmatprep.mubr.bf16.mxu0 0
        %5091 = vmatmul.mubr.bf16.gmra.mrb[0].mxu0 %v4924
        %v5092 = vpop.f32.mrb[0].mxu0
        %v5093 = vadd.f32 0.0, %v5092
        %v5094 = vpop.f32.mrb[0].mxu0
        %v5095 = vpop.f32.mrb[0].mxu0
        %v5096 = vadd.f32 0.0, %v5095
        %v5097 = vpop.f32.mrb[0].mxu0
        %5098 = vmatprep.mubr.bf16.mxu0 0
        %5099 = vmatmul.mubr.bf16.gmra.mrb[0].mxu0 %v4925
        %v5100 = vpop.f32.mrb[0].mxu0
        %v5101 = vadd.f32 0.0, %v5100
        %v5102 = vpop.f32.mrb[0].mxu0
        %v5103 = vpop.f32.mrb[0].mxu0
        %v5104 = vadd.f32 0.0, %v5103
        %v5105 = vpop.f32.mrb[0].mxu0
        %5106 = vmatprep.mubr.bf16.mxu0 0
        %5107 = vmatmul.mubr.bf16.gmra.mrb[0].mxu0 %v4926
        %v5108 = vpop.f32.mrb[0].mxu0
        %v5109 = vadd.f32 0.0, %v5108
        %v5110 = vpop.f32.mrb[0].mxu0
        %v5111 = vpop.f32.mrb[0].mxu0
        %v5112 = vadd.f32 0.0, %v5111
        %v5113 = vpop.f32.mrb[0].mxu0
        %5114 = vmatprep.mubr.bf16.mxu0 0
        %5115 = vmatmul.mubr.bf16.gmra.mrb[0].mxu0 %v4927
        %v5116 = vpop.f32.mrb[0].mxu0
        %v5117 = vadd.f32 0.0, %v5116
        %v5118 = vpop.f32.mrb[0].mxu0
        %v5119 = vpop.f32.mrb[0].mxu0
        %v5120 = vadd.f32 0.0, %v5119
        %v5121 = vpop.f32.mrb[0].mxu0
        %5122 = vmatprep.mubr.bf16.mxu0 0
        %5123 = vmatmul.mubr.bf16.gmra.mrb[0].mxu0 %v4928
        %v5124 = vpop.f32.mrb[0].mxu0
        %v5125 = vadd.f32 0.0, %v5124
        %v5126 = vpop.f32.mrb[0].mxu0
        %v5127 = vpop.f32.mrb[0].mxu0
        %v5128 = vadd.f32 0.0, %v5127
        %v5129 = vpop.f32.mrb[0].mxu0
        %5130 = vmatprep.mubr.bf16.mxu0 0
        %5131 = vmatmul.mubr.bf16.gmra.mrb[0].mxu0 %v4929
        %v5132 = vpop.f32.mrb[0].mxu0
        %v5133 = vadd.f32 0.0, %v5132
        %v5134 = vpop.f32.mrb[0].mxu0
        %v5135 = vpop.f32.mrb[0].mxu0
        %v5136 = vadd.f32 0.0, %v5135
        %v5137 = vpop.f32.mrb[0].mxu0
        %5138 = vmatprep.mubr.bf16.mxu0 0
        %5139 = vmatmul.mubr.bf16.gmra.mrb[0].mxu0 %v4930
        %v5140 = vpop.f32.mrb[0].mxu0
        %v5141 = vadd.f32 0.0, %v5140
        %v5142 = vpop.f32.mrb[0].mxu0
        %v5143 = vpop.f32.mrb[0].mxu0
        %v5144 = vadd.f32 0.0, %v5143
        %v5145 = vpop.f32.mrb[0].mxu0
        %5146 = vmatprep.mubr.bf16.mxu0 0
        %5147 = vmatmul.mubr.bf16.gmra.mrb[0].mxu0 %v4931
        %v5148 = vpop.f32.mrb[0].mxu0
        %v5149 = vadd.f32 0.0, %v5148
        %v5150 = vpop.f32.mrb[0].mxu0
        %v5151 = vpop.f32.mrb[0].mxu0
        %v5152 = vadd.f32 0.0, %v5151
        %v5153 = vpop.f32.mrb[0].mxu0
        %5154 = vmatprep.mubr.bf16.mxu0 0
        %5155 = vmatmul.mubr.bf16.gmra.mrb[0].mxu0 %v4932
        %v5156 = vpop.f32.mrb[0].mxu0
        %v5157 = vadd.f32 0.0, %v5156
        %v5158 = vpop.f32.mrb[0].mxu0
        %v5159 = vpop.f32.mrb[0].mxu0
        %v5160 = vadd.f32 0.0, %v5159
        %v5161 = vpop.f32.mrb[0].mxu0
        %5162 = vmatprep.mubr.bf16.mxu0 0
        %5163 = vmatmul.mubr.bf16.gmra.mrb[0].mxu0 %v4933
        %v5164 = vpop.f32.mrb[0].mxu0
        %v5165 = vadd.f32 0.0, %v5164
        %v5166 = vpop.f32.mrb[0].mxu0
        %v5167 = vpop.f32.mrb[0].mxu0
        %v5168 = vadd.f32 0.0, %v5167
        %v5169 = vpop.f32.mrb[0].mxu0
        %5170 = vmatprep.mubr.bf16.mxu0 0
        %5171 = vmatmul.mubr.bf16.gmra.mrb[0].mxu0 %v4934
        %v5172 = vpop.f32.mrb[0].mxu0
        %v5173 = vadd.f32 0.0, %v5172
        %v5174 = vpop.f32.mrb[0].mxu0
        %v5175 = vpop.f32.mrb[0].mxu0
        %v5176 = vadd.f32 0.0, %v5175
        %v5177 = vpop.f32.mrb[0].mxu0
        %5178 = vmatprep.mubr.bf16.mxu0 0
        %5179 = vmatmul.mubr.bf16.gmra.mrb[0].mxu0 %v4935
        %v5180 = vpop.f32.mrb[0].mxu0
        %v5181 = vadd.f32 0.0, %v5180
        %v5182 = vpop.f32.mrb[0].mxu0
        %v5183 = vpop.f32.mrb[0].mxu0
        %v5184 = vadd.f32 0.0, %v5183
        %v5185 = vpop.f32.mrb[0].mxu0
        %5186 = vmatprep.mubr.bf16.mxu0 0
        %5187 = vmatmul.mubr.bf16.gmra.mrb[0].mxu0 %v4936
        %v5188 = vpop.f32.mrb[0].mxu0
        %v5189 = vadd.f32 0.0, %v5188
        %v5190 = vpop.f32.mrb[0].mxu0
        %v5191 = vpop.f32.mrb[0].mxu0
        %v5192 = vadd.f32 0.0, %v5191
        %v5193 = vpop.f32.mrb[0].mxu0
        %5194 = vmatprep.mubr.bf16.mxu0 0
        %5195 = vmatmul.mubr.bf16.gmra.mrb[0].mxu0 %v4937
        %v5196 = vpop.f32.mrb[0].mxu0
        %v5197 = vadd.f32 0.0, %v5196
        %v5198 = vpop.f32.mrb[0].mxu0
        %v5199 = vpop.f32.mrb[0].mxu0
        %v5200 = vadd.f32 0.0, %v5199
        %v5201 = vpop.f32.mrb[0].mxu0
        %5202 = vmatprep.mubr.bf16.mxu0 0
        %5203 = vmatmul.mubr.bf16.gmra.mrb[0].mxu0 %v4938
        %v5204 = vpop.f32.mrb[0].mxu0
        %v5205 = vadd.f32 0.0, %v5204
        %v5206 = vpop.f32.mrb[0].mxu0
        %v5207 = vpop.f32.mrb[0].mxu0
        %v5208 = vadd.f32 0.0, %v5207
        %v5209 = vpop.f32.mrb[0].mxu0
        %5210 = vmatprep.mubr.bf16.mxu0 0
        %5211 = vmatmul.mubr.bf16.gmra.mrb[0].mxu0 %v4939
        %v5212 = vpop.f32.mrb[0].mxu0
        %v5213 = vadd.f32 0.0, %v5212
        %v5214 = vpop.f32.mrb[0].mxu0
        %v5215 = vpop.f32.mrb[0].mxu0
        %v5216 = vadd.f32 0.0, %v5215
        %v5217 = vpop.f32.mrb[0].mxu0
        %5218 = vmatprep.mubr.bf16.mxu0 0
        %5219 = vmatmul.mubr.bf16.gmra.mrb[0].mxu0 %v4940
        %v5220 = vpop.f32.mrb[0].mxu0
        %v5221 = vadd.f32 0.0, %v5220
        %v5222 = vpop.f32.mrb[0].mxu0
        %v5223 = vpop.f32.mrb[0].mxu0
        %v5224 = vadd.f32 0.0, %v5223
        %v5225 = vpop.f32.mrb[0].mxu0
        %5226 = vmatprep.mubr.bf16.mxu0 0
        %5227 = vmatmul.mubr.bf16.gmra.mrb[0].mxu0 %v4941
        %v5228 = vpop.f32.mrb[0].mxu0
        %v5229 = vadd.f32 0.0, %v5228
        %v5230 = vpop.f32.mrb[0].mxu0
        %v5231 = vpop.f32.mrb[0].mxu0
        %v5232 = vadd.f32 0.0, %v5231
        %v5233 = vpop.f32.mrb[0].mxu0
        %5234 = vmatprep.mubr.bf16.mxu0 0
        %5235 = vmatmul.mubr.bf16.gmra.mrb[0].mxu0 %v4942
        %v5236 = vpop.f32.mrb[0].mxu0
        %v5237 = vadd.f32 0.0, %v5236
        %v5238 = vpop.f32.mrb[0].mxu0
        %v5239 = vpop.f32.mrb[0].mxu0
        %v5240 = vadd.f32 0.0, %v5239
        %v5241 = vpop.f32.mrb[0].mxu0
        %5242 = vmatprep.mubr.bf16.mxu0 0
        %5243 = vmatmul.mubr.bf16.gmra.mrb[0].mxu0 %v4943
        %v5244 = vpop.f32.mrb[0].mxu0
        %v5245 = vadd.f32 0.0, %v5244
        %v5246 = vpop.f32.mrb[0].mxu0
        %v5247 = vpop.f32.mrb[0].mxu0
        %v5248 = vadd.f32 0.0, %v5247
        %v5249 = vpop.f32.mrb[0].mxu0
        %5250 = vmatprep.mubr.bf16.mxu0 0
        %5251 = vmatmul.mubr.bf16.gmra.mrb[0].mxu0 %v4944
        %v5252 = vpop.f32.mrb[0].mxu0
        %v5253 = vadd.f32 0.0, %v5252
        %v5254 = vpop.f32.mrb[0].mxu0
        %v5255 = vpop.f32.mrb[0].mxu0
        %v5256 = vadd.f32 0.0, %v5255
        %v5257 = vpop.f32.mrb[0].mxu0
        %5258 = vmatprep.mubr.bf16.mxu0 0
        %5259 = vmatmul.mubr.bf16.gmra.mrb[0].mxu0 %v4945
        %v5260 = vpop.f32.mrb[0].mxu0
        %v5261 = vadd.f32 0.0, %v5260
        %v5262 = vpop.f32.mrb[0].mxu0
        %v5263 = vpop.f32.mrb[0].mxu0
        %v5264 = vadd.f32 0.0, %v5263
        %v5265 = vpop.f32.mrb[0].mxu0
        %5266 = vmatprep.mubr.bf16.mxu0 0
        %5267 = vmatmul.mubr.bf16.gmra.mrb[0].mxu0 %v4946
        %v5268 = vpop.f32.mrb[0].mxu0
        %v5269 = vadd.f32 0.0, %v5268
        %v5270 = vpop.f32.mrb[0].mxu0
        %v5271 = vpop.f32.mrb[0].mxu0
        %v5272 = vadd.f32 0.0, %v5271
        %v5273 = vpop.f32.mrb[0].mxu0
        %5274 = vmatprep.mubr.bf16.mxu0 0
        %5275 = vmatmul.mubr.bf16.gmra.mrb[0].mxu0 %v4947
        %v5276 = vpop.f32.mrb[0].mxu0
        %v5277 = vadd.f32 0.0, %v5276
        %v5278 = vpop.f32.mrb[0].mxu0
        %v5279 = vpop.f32.mrb[0].mxu0
        %v5280 = vadd.f32 0.0, %v5279
        %v5281 = vpop.f32.mrb[0].mxu0
        %5282 = vmatprep.mubr.bf16.mxu0 0
        %5283 = vmatmul.mubr.bf16.gmra.mrb[0].mxu0 %v4948
        %v5284 = vpop.f32.mrb[0].mxu0
        %v5285 = vadd.f32 0.0, %v5284
        %v5286 = vpop.f32.mrb[0].mxu0
        %v5287 = vpop.f32.mrb[0].mxu0
        %v5288 = vadd.f32 0.0, %v5287
        %v5289 = vpop.f32.mrb[0].mxu0
        %5290 = vmatprep.mubr.bf16.mxu0 0
        %5291 = vmatmul.mubr.bf16.gmra.mrb[0].mxu0 %v4949
        %v5292 = vpop.f32.mrb[0].mxu0
        %v5293 = vadd.f32 0.0, %v5292
        %v5294 = vpop.f32.mrb[0].mxu0
        %v5295 = vpop.f32.mrb[0].mxu0
        %v5296 = vadd.f32 0.0, %v5295
        %v5297 = vpop.f32.mrb[0].mxu0
        %5298 = vmatprep.mubr.bf16.mxu0 0
        %5299 = vmatmul.mubr.bf16.gmra.mrb[0].mxu0 %v4950
        %v5300 = vpop.f32.mrb[0].mxu0
        %v5301 = vadd.f32 0.0, %v5300
        %v5302 = vpop.f32.mrb[0].mxu0
        %v5303 = vpop.f32.mrb[0].mxu0
        %v5304 = vadd.f32 0.0, %v5303
        %v5305 = vpop.f32.mrb[0].mxu0
        %5306 = vmatprep.mubr.bf16.mxu0 0
        %5307 = vmatmul.mubr.bf16.gmra.mrb[0].mxu0 %v4951
        %v5308 = vpop.f32.mrb[0].mxu0
        %v5309 = vadd.f32 0.0, %v5308
        %v5310 = vpop.f32.mrb[0].mxu0
        %v5311 = vpop.f32.mrb[0].mxu0
        %v5312 = vadd.f32 0.0, %v5311
        %v5313 = vpop.f32.mrb[0].mxu0
        %5314 = vmatprep.mubr.bf16.mxu0 0
        %5315 = vmatmul.mubr.bf16.gmra.mrb[0].mxu0 %v4952
        %v5316 = vpop.f32.mrb[0].mxu0
        %v5317 = vadd.f32 0.0, %v5316
        %v5318 = vpop.f32.mrb[0].mxu0
        %v5319 = vpop.f32.mrb[0].mxu0
        %v5320 = vadd.f32 0.0, %v5319
        %v5321 = vpop.f32.mrb[0].mxu0
        %5322 = vmatprep.mubr.bf16.mxu0 0
        %5323 = vmatmul.mubr.bf16.gmra.mrb[0].mxu0 %v4953
        %v5324 = vpop.f32.mrb[0].mxu0
        %v5325 = vadd.f32 0.0, %v5324
        %v5326 = vpop.f32.mrb[0].mxu0
        %v5327 = vpop.f32.mrb[0].mxu0
        %v5328 = vadd.f32 0.0, %v5327
        %v5329 = vpop.f32.mrb[0].mxu0
        %5330 = vmatprep.mubr.bf16.mxu0 0
        %5331 = vmatmul.mubr.bf16.gmra.mrb[0].mxu0 %v4954
        %v5332 = vpop.f32.mrb[0].mxu0
        %v5333 = vadd.f32 0.0, %v5332
        %v5334 = vpop.f32.mrb[0].mxu0
        %v5335 = vpop.f32.mrb[0].mxu0
        %v5336 = vadd.f32 0.0, %v5335
        %v5337 = vpop.f32.mrb[0].mxu0
        %5338 = vmatprep.mubr.bf16.mxu0 0
        %5339 = vmatmul.mubr.bf16.gmra.mrb[0].mxu0 %v4955
        %v5340 = vpop.f32.mrb[0].mxu0
        %v5341 = vadd.f32 0.0, %v5340
        %v5342 = vpop.f32.mrb[0].mxu0
        %v5343 = vpop.f32.mrb[0].mxu0
        %v5344 = vadd.f32 0.0, %v5343
        %v5345 = vpop.f32.mrb[0].mxu0
        %5346 = vmatprep.mubr.bf16.mxu0 0
        %5347 = vmatmul.mubr.bf16.gmra.mrb[0].mxu0 %v4956
        %v5348 = vpop.f32.mrb[0].mxu0
        %v5349 = vadd.f32 0.0, %v5348
        %v5350 = vpop.f32.mrb[0].mxu0
        %v5351 = vpop.f32.mrb[0].mxu0
        %v5352 = vadd.f32 0.0, %v5351
        %v5353 = vpop.f32.mrb[0].mxu0
        %5354 = vmatprep.mubr.bf16.mxu0 0
        %5355 = vmatmul.mubr.bf16.gmra.mrb[0].mxu0 %v4957
        %v5356 = vpop.f32.mrb[0].mxu0
        %v5357 = vadd.f32 0.0, %v5356
        %v5358 = vpop.f32.mrb[0].mxu0
        %v5359 = vpop.f32.mrb[0].mxu0
        %v5360 = vadd.f32 0.0, %v5359
        %v5361 = vpop.f32.mrb[0].mxu0
        %5362 = vmatprep.mubr.bf16.mxu0 0
        %5363 = vmatmul.mubr.bf16.gmra.mrb[0].mxu0 %v4958
        %v5364 = vpop.f32.mrb[0].mxu0
        %v5365 = vadd.f32 0.0, %v5364
        %v5366 = vpop.f32.mrb[0].mxu0
        %v5367 = vpop.f32.mrb[0].mxu0
        %v5368 = vadd.f32 0.0, %v5367
        %v5369 = vpop.f32.mrb[0].mxu0
        %5370 = vmatprep.mubr.bf16.mxu0 0
        %5371 = vmatmul.mubr.bf16.gmra.mrb[0].mxu0 %v4959
        %v5372 = vpop.f32.mrb[0].mxu0
        %v5373 = vadd.f32 0.0, %v5372
        %v5374 = vpop.f32.mrb[0].mxu0
        %v5375 = vpop.f32.mrb[0].mxu0
        %v5376 = vadd.f32 0.0, %v5375
        %v5377 = vpop.f32.mrb[0].mxu0
        %5378 = vmatprep.mubr.bf16.mxu0 0
        %5379 = vmatmul.mubr.bf16.gmra.mrb[0].mxu0 %v4960
        %v5380 = vpop.f32.mrb[0].mxu0
        %v5381 = vadd.f32 0.0, %v5380
        %v5382 = vpop.f32.mrb[0].mxu0
        %v5383 = vpop.f32.mrb[0].mxu0
        %v5384 = vadd.f32 0.0, %v5383
        %v5385 = vpop.f32.mrb[0].mxu0
        %5386 = vmatprep.mubr.bf16.mxu0 0
        %5387 = vmatmul.mubr.bf16.gmra.mrb[0].mxu0 %v4961
        %v5388 = vpop.f32.mrb[0].mxu0
        %v5389 = vadd.f32 0.0, %v5388
        %v5390 = vpop.f32.mrb[0].mxu0
        %v5391 = vpop.f32.mrb[0].mxu0
        %v5392 = vadd.f32 0.0, %v5391
        %v5393 = vpop.f32.mrb[0].mxu0
        %5394 = vmatprep.mubr.bf16.mxu0 0
        %5395 = vmatmul.mubr.bf16.gmra.mrb[0].mxu0 %v4962
        %v5396 = vpop.f32.mrb[0].mxu0
        %v5397 = vadd.f32 0.0, %v5396
        %v5398 = vpop.f32.mrb[0].mxu0
        %v5399 = vpop.f32.mrb[0].mxu0
        %v5400 = vadd.f32 0.0, %v5399
        %v5401 = vpop.f32.mrb[0].mxu0
        %5402 = vmatprep.mubr.bf16.mxu0 0
        %5403 = vmatmul.mubr.bf16.gmra.mrb[0].mxu0 %v4963
        %v5404 = vpop.f32.mrb[0].mxu0
        %v5405 = vadd.f32 0.0, %v5404
        %v5406 = vpop.f32.mrb[0].mxu0
        %v5407 = vpop.f32.mrb[0].mxu0
        %v5408 = vadd.f32 0.0, %v5407
        %v5409 = vpop.f32.mrb[0].mxu0
        %5410 = vmatprep.mubr.bf16.mxu0 0
        %5411 = vmatmul.mubr.bf16.gmra.mrb[0].mxu0 %v4964
        %v5412 = vpop.f32.mrb[0].mxu0
        %v5413 = vadd.f32 0.0, %v5412
        %v5414 = vpop.f32.mrb[0].mxu0
        %v5415 = vpop.f32.mrb[0].mxu0
        %v5416 = vadd.f32 0.0, %v5415
        %v5417 = vpop.f32.mrb[0].mxu0
        %5418 = vmatprep.mubr.bf16.mxu0 0
        %5419 = vmatmul.mubr.bf16.gmra.mrb[0].mxu0 %v4965
        %v5420 = vpop.f32.mrb[0].mxu0
        %v5421 = vadd.f32 0.0, %v5420
        %v5422 = vpop.f32.mrb[0].mxu0
        %v5423 = vpop.f32.mrb[0].mxu0
        %v5424 = vadd.f32 0.0, %v5423
        %v5425 = vpop.f32.mrb[0].mxu0
        %5426 = vmatprep.mubr.bf16.mxu0 0
        %5427 = vmatmul.mubr.bf16.gmra.mrb[0].mxu0 %v4966
        %v5428 = vpop.f32.mrb[0].mxu0
        %v5429 = vadd.f32 0.0, %v5428
        %v5430 = vpop.f32.mrb[0].mxu0
        %v5431 = vpop.f32.mrb[0].mxu0
        %v5432 = vadd.f32 0.0, %v5431
        %v5433 = vpop.f32.mrb[0].mxu0
        %5434 = vmatprep.mubr.bf16.mxu0 0
        %5435 = vmatmul.mubr.bf16.gmra.mrb[0].mxu0 %v4967
        %v5436 = vpop.f32.mrb[0].mxu0
        %v5437 = vadd.f32 0.0, %v5436
        %v5438 = vpop.f32.mrb[0].mxu0
        %v5439 = vpop.f32.mrb[0].mxu0
        %v5440 = vadd.f32 0.0, %v5439
        %v5441 = vpop.f32.mrb[0].mxu0
        %5442 = vmatprep.mubr.bf16.mxu0 0
        %5443 = vmatmul.mubr.bf16.gmra.mrb[0].mxu0 %v4968
        %v5444 = vpop.f32.mrb[0].mxu0
        %v5445 = vadd.f32 0.0, %v5444
        %v5446 = vpop.f32.mrb[0].mxu0
        %v5447 = vpop.f32.mrb[0].mxu0
        %v5448 = vadd.f32 0.0, %v5447
        %v5449 = vpop.f32.mrb[0].mxu0
        %5450 = vdwg.mxu0
        %v5451 = vadd.f32 %v4825, %v5069
        %v5452 = vadd.f32 %v4826, %v5072
        %v5453 = vadd.f32 %v4827, %v5077
        %v5454 = vadd.f32 %v4828, %v5080
        %v5455 = vadd.f32 %v4829, %v5085
        %v5456 = vadd.f32 %v4830, %v5088
        %v5457 = vadd.f32 %v4831, %v5093
        %v5458 = vadd.f32 %v4832, %v5096
        %v5459 = vadd.f32 %v4833, %v5101
        %v5460 = vadd.f32 %v4834, %v5104
        %v5461 = vadd.f32 %v4835, %v5109
        %v5462 = vadd.f32 %v4836, %v5112
        %v5463 = vadd.f32 %v4837, %v5117
        %v5464 = vadd.f32 %v4838, %v5120
        %v5465 = vadd.f32 %v4839, %v5125
        %v5466 = vadd.f32 %v4840, %v5128
        %v5467 = vadd.f32 %v4841, %v5133
        %v5468 = vadd.f32 %v4842, %v5136
        %v5469 = vadd.f32 %v4843, %v5141
        %v5470 = vadd.f32 %v4844, %v5144
        %v5471 = vadd.f32 %v4845, %v5149
        %v5472 = vadd.f32 %v4846, %v5152
        %v5473 = vadd.f32 %v4847, %v5157
        %v5474 = vadd.f32 %v4848, %v5160
        %v5475 = vadd.f32 %v4849, %v5165
        %v5476 = vadd.f32 %v4850, %v5168
        %v5477 = vadd.f32 %v4851, %v5173
        %v5478 = vadd.f32 %v4852, %v5176
        %v5479 = vadd.f32 %v4853, %v5181
        %v5480 = vadd.f32 %v4854, %v5184
        %v5481 = vadd.f32 %v4855, %v5189
        %v5482 = vadd.f32 %v4856, %v5192
        %v5483 = vadd.f32 %v4857, %v5197
        %v5484 = vadd.f32 %v4858, %v5200
        %v5485 = vadd.f32 %v4859, %v5205
        %v5486 = vadd.f32 %v4860, %v5208
        %v5487 = vadd.f32 %v4861, %v5213
        %v5488 = vadd.f32 %v4862, %v5216
        %v5489 = vadd.f32 %v4863, %v5221
        %v5490 = vadd.f32 %v4864, %v5224
        %v5491 = vadd.f32 %v4865, %v5229
        %v5492 = vadd.f32 %v4866, %v5232
        %v5493 = vadd.f32 %v4867, %v5237
        %v5494 = vadd.f32 %v4868, %v5240
        %v5495 = vadd.f32 %v4869, %v5245
        %v5496 = vadd.f32 %v4870, %v5248
        %v5497 = vadd.f32 %v4871, %v5253
        %v5498 = vadd.f32 %v4872, %v5256
        %v5499 = vadd.f32 %v4873, %v5261
        %v5500 = vadd.f32 %v4874, %v5264
        %v5501 = vadd.f32 %v4875, %v5269
        %v5502 = vadd.f32 %v4876, %v5272
        %v5503 = vadd.f32 %v4877, %v5277
        %v5504 = vadd.f32 %v4878, %v5280
        %v5505 = vadd.f32 %v4879, %v5285
        %v5506 = vadd.f32 %v4880, %v5288
        %v5507 = vadd.f32 %v4881, %v5293
        %v5508 = vadd.f32 %v4882, %v5296
        %v5509 = vadd.f32 %v4883, %v5301
        %v5510 = vadd.f32 %v4884, %v5304
        %v5511 = vadd.f32 %v4885, %v5309
        %v5512 = vadd.f32 %v4886, %v5312
        %v5513 = vadd.f32 %v4887, %v5317
        %v5514 = vadd.f32 %v4888, %v5320
        %v5515 = vadd.f32 %v4889, %v5325
        %v5516 = vadd.f32 %v4890, %v5328
        %v5517 = vadd.f32 %v4891, %v5333
        %v5518 = vadd.f32 %v4892, %v5336
        %v5519 = vadd.f32 %v4893, %v5341
        %v5520 = vadd.f32 %v4894, %v5344
        %v5521 = vadd.f32 %v4895, %v5349
        %v5522 = vadd.f32 %v4896, %v5352
        %v5523 = vadd.f32 %v4897, %v5357
        %v5524 = vadd.f32 %v4898, %v5360
        %v5525 = vadd.f32 %v4899, %v5365
        %v5526 = vadd.f32 %v4900, %v5368
        %v5527 = vadd.f32 %v4901, %v5373
        %v5528 = vadd.f32 %v4902, %v5376
        %v5529 = vadd.f32 %v4903, %v5381
        %v5530 = vadd.f32 %v4904, %v5384
        %v5531 = vadd.f32 %v4905, %v5389
        %v5532 = vadd.f32 %v4906, %v5392
        %v5533 = vadd.f32 %v4907, %v5397
        %v5534 = vadd.f32 %v4908, %v5400
        %v5535 = vadd.f32 %v4909, %v5405
        %v5536 = vadd.f32 %v4910, %v5408
        %v5537 = vadd.f32 %v4911, %v5413
        %v5538 = vadd.f32 %v4912, %v5416
        %v5539 = vadd.f32 %v4913, %v5421
        %v5540 = vadd.f32 %v4914, %v5424
        %v5541 = vadd.f32 %v4915, %v5429
        %v5542 = vadd.f32 %v4916, %v5432
        %v5543 = vadd.f32 %v4917, %v5437
        %v5544 = vadd.f32 %v4918, %v5440
        %v5545 = vadd.f32 %v4919, %v5445
        %v5546 = vadd.f32 %v4920, %v5448
        %5547 = vst.msk [vmem:[#allocation3 + $0x100] sm:$0xff] %vm2821, %v5451
        %5548 = vst.msk [vmem:[#allocation3 + $0x108] sm:$0xff] %vm2821, %v5452
        %5549 = vst.msk [vmem:[#allocation3 + $0x110] sm:$0xff] %vm2821, %v5453
        %5550 = vst.msk [vmem:[#allocation3 + $0x118] sm:$0xff] %vm2821, %v5454
        %5551 = vst.msk [vmem:[#allocation3 + $0x120] sm:$0xff] %vm2821, %v5455
        %5552 = vst.msk [vmem:[#allocation3 + $0x128] sm:$0xff] %vm2821, %v5456
        %5553 = vst.msk [vmem:[#allocation3 + $0x130] sm:$0xff] %vm2821, %v5457
        %5554 = vst.msk [vmem:[#allocation3 + $0x138] sm:$0xff] %vm2821, %v5458
        %5555 = vst.msk [vmem:[#allocation3 + $0x140] sm:$0xff] %vm2821, %v5459
        %5556 = vst.msk [vmem:[#allocation3 + $0x148] sm:$0xff] %vm2821, %v5460
        %5557 = vst.msk [vmem:[#allocation3 + $0x150] sm:$0xff] %vm2821, %v5461
        %5558 = vst.msk [vmem:[#allocation3 + $0x158] sm:$0xff] %vm2821, %v5462
        %5559 = vst.msk [vmem:[#allocation3 + $0x160] sm:$0xff] %vm2821, %v5463
        %5560 = vst.msk [vmem:[#allocation3 + $0x168] sm:$0xff] %vm2821, %v5464
        %5561 = vst.msk [vmem:[#allocation3 + $0x170] sm:$0xff] %vm2821, %v5465
        %5562 = vst.msk [vmem:[#allocation3 + $0x178] sm:$0xff] %vm2821, %v5466
        %5563 = vst.msk [vmem:[#allocation3 + $0x180] sm:$0xff] %vm2821, %v5467
        %5564 = vst.msk [vmem:[#allocation3 + $0x188] sm:$0xff] %vm2821, %v5468
        %5565 = vst.msk [vmem:[#allocation3 + $0x190] sm:$0xff] %vm2821, %v5469
        %5566 = vst.msk [vmem:[#allocation3 + $0x198] sm:$0xff] %vm2821, %v5470
        %5567 = vst.msk [vmem:[#allocation3 + $0x1a0] sm:$0xff] %vm2821, %v5471
        %5568 = vst.msk [vmem:[#allocation3 + $0x1a8] sm:$0xff] %vm2821, %v5472
        %5569 = vst.msk [vmem:[#allocation3 + $0x1b0] sm:$0xff] %vm2821, %v5473
        %5570 = vst.msk [vmem:[#allocation3 + $0x1b8] sm:$0xff] %vm2821, %v5474
        %5571 = vst.msk [vmem:[#allocation3 + $0x1c0] sm:$0xff] %vm2821, %v5475
        %5572 = vst.msk [vmem:[#allocation3 + $0x1c8] sm:$0xff] %vm2821, %v5476
        %5573 = vst.msk [vmem:[#allocation3 + $0x1d0] sm:$0xff] %vm2821, %v5477
        %5574 = vst.msk [vmem:[#allocation3 + $0x1d8] sm:$0xff] %vm2821, %v5478
        %5575 = vst.msk [vmem:[#allocation3 + $0x1e0] sm:$0xff] %vm2821, %v5479
        %5576 = vst.msk [vmem:[#allocation3 + $0x1e8] sm:$0xff] %vm2821, %v5480
        %5577 = vst.msk [vmem:[#allocation3 + $0x1f0] sm:$0xff] %vm2821, %v5481
        %5578 = vst.msk [vmem:[#allocation3 + $0x1f8] sm:$0xff] %vm2821, %v5482
        %5579 = vst.msk [vmem:[#allocation3 + $0x200] sm:$0xff] %vm2821, %v5483
        %5580 = vst.msk [vmem:[#allocation3 + $0x208] sm:$0xff] %vm2821, %v5484
        %5581 = vst.msk [vmem:[#allocation3 + $0x210] sm:$0xff] %vm2821, %v5485
        %5582 = vst.msk [vmem:[#allocation3 + $0x218] sm:$0xff] %vm2821, %v5486
        %5583 = vst.msk [vmem:[#allocation3 + $0x220] sm:$0xff] %vm2821, %v5487
        %5584 = vst.msk [vmem:[#allocation3 + $0x228] sm:$0xff] %vm2821, %v5488
        %5585 = vst.msk [vmem:[#allocation3 + $0x230] sm:$0xff] %vm2821, %v5489
        %5586 = vst.msk [vmem:[#allocation3 + $0x238] sm:$0xff] %vm2821, %v5490
        %5587 = vst.msk [vmem:[#allocation3 + $0x240] sm:$0xff] %vm2821, %v5491
        %5588 = vst.msk [vmem:[#allocation3 + $0x248] sm:$0xff] %vm2821, %v5492
        %5589 = vst.msk [vmem:[#allocation3 + $0x250] sm:$0xff] %vm2821, %v5493
        %5590 = vst.msk [vmem:[#allocation3 + $0x258] sm:$0xff] %vm2821, %v5494
        %5591 = vst.msk [vmem:[#allocation3 + $0x260] sm:$0xff] %vm2821, %v5495
        %5592 = vst.msk [vmem:[#allocation3 + $0x268] sm:$0xff] %vm2821, %v5496
        %5593 = vst.msk [vmem:[#allocation3 + $0x270] sm:$0xff] %vm2821, %v5497
        %5594 = vst.msk [vmem:[#allocation3 + $0x278] sm:$0xff] %vm2821, %v5498
        %5595 = vst.msk [vmem:[#allocation3 + $0x280] sm:$0xff] %vm2821, %v5499
        %5596 = vst.msk [vmem:[#allocation3 + $0x288] sm:$0xff] %vm2821, %v5500
        %5597 = vst.msk [vmem:[#allocation3 + $0x290] sm:$0xff] %vm2821, %v5501
        %5598 = vst.msk [vmem:[#allocation3 + $0x298] sm:$0xff] %vm2821, %v5502
        %5599 = vst.msk [vmem:[#allocation3 + $0x2a0] sm:$0xff] %vm2821, %v5503
        %5600 = vst.msk [vmem:[#allocation3 + $0x2a8] sm:$0xff] %vm2821, %v5504
        %5601 = vst.msk [vmem:[#allocation3 + $0x2b0] sm:$0xff] %vm2821, %v5505
        %5602 = vst.msk [vmem:[#allocation3 + $0x2b8] sm:$0xff] %vm2821, %v5506
        %5603 = vst.msk [vmem:[#allocation3 + $0x2c0] sm:$0xff] %vm2821, %v5507
        %5604 = vst.msk [vmem:[#allocation3 + $0x2c8] sm:$0xff] %vm2821, %v5508
        %5605 = vst.msk [vmem:[#allocation3 + $0x2d0] sm:$0xff] %vm2821, %v5509
        %5606 = vst.msk [vmem:[#allocation3 + $0x2d8] sm:$0xff] %vm2821, %v5510
        %5607 = vst.msk [vmem:[#allocation3 + $0x2e0] sm:$0xff] %vm2821, %v5511
        %5608 = vst.msk [vmem:[#allocation3 + $0x2e8] sm:$0xff] %vm2821, %v5512
        %5609 = vst.msk [vmem:[#allocation3 + $0x2f0] sm:$0xff] %vm2821, %v5513
        %5610 = vst.msk [vmem:[#allocation3 + $0x2f8] sm:$0xff] %vm2821, %v5514
        %5611 = vst.msk [vmem:[#allocation3 + $0x300] sm:$0xff] %vm2821, %v5515
        %5612 = vst.msk [vmem:[#allocation3 + $0x308] sm:$0xff] %vm2821, %v5516
        %5613 = vst.msk [vmem:[#allocation3 + $0x310] sm:$0xff] %vm2821, %v5517
        %5614 = vst.msk [vmem:[#allocation3 + $0x318] sm:$0xff] %vm2821, %v5518
        %5615 = vst.msk [vmem:[#allocation3 + $0x320] sm:$0xff] %vm2821, %v5519
        %5616 = vst.msk [vmem:[#allocation3 + $0x328] sm:$0xff] %vm2821, %v5520
        %5617 = vst.msk [vmem:[#allocation3 + $0x330] sm:$0xff] %vm2821, %v5521
        %5618 = vst.msk [vmem:[#allocation3 + $0x338] sm:$0xff] %vm2821, %v5522
        %5619 = vst.msk [vmem:[#allocation3 + $0x340] sm:$0xff] %vm2821, %v5523
        %5620 = vst.msk [vmem:[#allocation3 + $0x348] sm:$0xff] %vm2821, %v5524
        %5621 = vst.msk [vmem:[#allocation3 + $0x350] sm:$0xff] %vm2821, %v5525
        %5622 = vst.msk [vmem:[#allocation3 + $0x358] sm:$0xff] %vm2821, %v5526
        %5623 = vst.msk [vmem:[#allocation3 + $0x360] sm:$0xff] %vm2821, %v5527
        %5624 = vst.msk [vmem:[#allocation3 + $0x368] sm:$0xff] %vm2821, %v5528
        %5625 = vst.msk [vmem:[#allocation3 + $0x370] sm:$0xff] %vm2821, %v5529
        %5626 = vst.msk [vmem:[#allocation3 + $0x378] sm:$0xff] %vm2821, %v5530
        %5627 = vst.msk [vmem:[#allocation3 + $0x380] sm:$0xff] %vm2821, %v5531
        %5628 = vst.msk [vmem:[#allocation3 + $0x388] sm:$0xff] %vm2821, %v5532
        %5629 = vst.msk [vmem:[#allocation3 + $0x390] sm:$0xff] %vm2821, %v5533
        %5630 = vst.msk [vmem:[#allocation3 + $0x398] sm:$0xff] %vm2821, %v5534
        %5631 = vst.msk [vmem:[#allocation3 + $0x3a0] sm:$0xff] %vm2821, %v5535
        %5632 = vst.msk [vmem:[#allocation3 + $0x3a8] sm:$0xff] %vm2821, %v5536
        %5633 = vst.msk [vmem:[#allocation3 + $0x3b0] sm:$0xff] %vm2821, %v5537
        %5634 = vst.msk [vmem:[#allocation3 + $0x3b8] sm:$0xff] %vm2821, %v5538
        %5635 = vst.msk [vmem:[#allocation3 + $0x3c0] sm:$0xff] %vm2821, %v5539
        %5636 = vst.msk [vmem:[#allocation3 + $0x3c8] sm:$0xff] %vm2821, %v5540
        %5637 = vst.msk [vmem:[#allocation3 + $0x3d0] sm:$0xff] %vm2821, %v5541
        %5638 = vst.msk [vmem:[#allocation3 + $0x3d8] sm:$0xff] %vm2821, %v5542
        %5639 = vst.msk [vmem:[#allocation3 + $0x3e0] sm:$0xff] %vm2821, %v5543
        %5640 = vst.msk [vmem:[#allocation3 + $0x3e8] sm:$0xff] %vm2821, %v5544
        %5641 = vst.msk [vmem:[#allocation3 + $0x3f0] sm:$0xff] %vm2821, %v5545
        %5642 = vst.msk [vmem:[#allocation3 + $0x3f8] sm:$0xff] %vm2821, %v5546
        %v5643 = vld [vmem:[#allocation3] sm:$0xff]
        %v5644 = vld [vmem:[#allocation3 + $0x8] sm:$0xff]
        %v5645 = vld [vmem:[#allocation3 + $0x10] sm:$0xff]
        %v5646 = vld [vmem:[#allocation3 + $0x18] sm:$0xff]
        %v5647 = vld [vmem:[#allocation3 + $0x20] sm:$0xff]
        %v5648 = vld [vmem:[#allocation3 + $0x28] sm:$0xff]
        %v5649 = vld [vmem:[#allocation3 + $0x30] sm:$0xff]
        %v5650 = vld [vmem:[#allocation3 + $0x38] sm:$0xff]
        %v5651 = vld [vmem:[#allocation3 + $0x40] sm:$0xff]
        %v5652 = vld [vmem:[#allocation3 + $0x48] sm:$0xff]
        %v5653 = vld [vmem:[#allocation3 + $0x50] sm:$0xff]
        %v5654 = vld [vmem:[#allocation3 + $0x58] sm:$0xff]
        %v5655 = vld [vmem:[#allocation3 + $0x60] sm:$0xff]
        %v5656 = vld [vmem:[#allocation3 + $0x68] sm:$0xff]
        %v5657 = vld [vmem:[#allocation3 + $0x70] sm:$0xff]
        %v5658 = vld [vmem:[#allocation3 + $0x78] sm:$0xff]
        %v5659 = vld [vmem:[#allocation3 + $0x80] sm:$0xff]
        %v5660 = vld [vmem:[#allocation3 + $0x88] sm:$0xff]
        %v5661 = vld [vmem:[#allocation3 + $0x90] sm:$0xff]
        %v5662 = vld [vmem:[#allocation3 + $0x98] sm:$0xff]
        %v5663 = vld [vmem:[#allocation3 + $0xa0] sm:$0xff]
        %v5664 = vld [vmem:[#allocation3 + $0xa8] sm:$0xff]
        %v5665 = vld [vmem:[#allocation3 + $0xb0] sm:$0xff]
        %v5666 = vld [vmem:[#allocation3 + $0xb8] sm:$0xff]
        %v5667 = vld [vmem:[#allocation3 + $0xc0] sm:$0xff]
        %v5668 = vld [vmem:[#allocation3 + $0xc8] sm:$0xff]
        %v5669 = vld [vmem:[#allocation3 + $0xd0] sm:$0xff]
        %v5670 = vld [vmem:[#allocation3 + $0xd8] sm:$0xff]
        %v5671 = vld [vmem:[#allocation3 + $0xe0] sm:$0xff]
        %v5672 = vld [vmem:[#allocation3 + $0xe8] sm:$0xff]
        %v5673 = vld [vmem:[#allocation3 + $0xf0] sm:$0xff]
        %v5674 = vld [vmem:[#allocation3 + $0xf8] sm:$0xff]
        %v5675 = vld [vmem:[#allocation3 + $0x100] sm:$0xff]
        %v5676 = vld [vmem:[#allocation3 + $0x108] sm:$0xff]
        %v5677 = vld [vmem:[#allocation3 + $0x110] sm:$0xff]
        %v5678 = vld [vmem:[#allocation3 + $0x118] sm:$0xff]
        %v5679 = vld [vmem:[#allocation3 + $0x120] sm:$0xff]
        %v5680 = vld [vmem:[#allocation3 + $0x128] sm:$0xff]
        %v5681 = vld [vmem:[#allocation3 + $0x130] sm:$0xff]
        %v5682 = vld [vmem:[#allocation3 + $0x138] sm:$0xff]
        %v5683 = vld [vmem:[#allocation3 + $0x140] sm:$0xff]
        %v5684 = vld [vmem:[#allocation3 + $0x148] sm:$0xff]
        %v5685 = vld [vmem:[#allocation3 + $0x150] sm:$0xff]
        %v5686 = vld [vmem:[#allocation3 + $0x158] sm:$0xff]
        %v5687 = vld [vmem:[#allocation3 + $0x160] sm:$0xff]
        %v5688 = vld [vmem:[#allocation3 + $0x168] sm:$0xff]
        %v5689 = vld [vmem:[#allocation3 + $0x170] sm:$0xff]
        %v5690 = vld [vmem:[#allocation3 + $0x178] sm:$0xff]
        %v5691 = vld [vmem:[#allocation3 + $0x180] sm:$0xff]
        %v5692 = vld [vmem:[#allocation3 + $0x188] sm:$0xff]
        %v5693 = vld [vmem:[#allocation3 + $0x190] sm:$0xff]
        %v5694 = vld [vmem:[#allocation3 + $0x198] sm:$0xff]
        %v5695 = vld [vmem:[#allocation3 + $0x1a0] sm:$0xff]
        %v5696 = vld [vmem:[#allocation3 + $0x1a8] sm:$0xff]
        %v5697 = vld [vmem:[#allocation3 + $0x1b0] sm:$0xff]
        %v5698 = vld [vmem:[#allocation3 + $0x1b8] sm:$0xff]
        %v5699 = vld [vmem:[#allocation3 + $0x1c0] sm:$0xff]
        %v5700 = vld [vmem:[#allocation3 + $0x1c8] sm:$0xff]
        %v5701 = vld [vmem:[#allocation3 + $0x1d0] sm:$0xff]
        %v5702 = vld [vmem:[#allocation3 + $0x1d8] sm:$0xff]
        %v5703 = vld [vmem:[#allocation3 + $0x1e0] sm:$0xff]
        %v5704 = vld [vmem:[#allocation3 + $0x1e8] sm:$0xff]
        %v5705 = vld [vmem:[#allocation3 + $0x1f0] sm:$0xff]
        %v5706 = vld [vmem:[#allocation3 + $0x1f8] sm:$0xff]
        %v5707 = vld [vmem:[#allocation3 + $0x200] sm:$0xff]
        %v5708 = vld [vmem:[#allocation3 + $0x208] sm:$0xff]
        %v5709 = vld [vmem:[#allocation3 + $0x210] sm:$0xff]
        %v5710 = vld [vmem:[#allocation3 + $0x218] sm:$0xff]
        %v5711 = vld [vmem:[#allocation3 + $0x220] sm:$0xff]
        %v5712 = vld [vmem:[#allocation3 + $0x228] sm:$0xff]
        %v5713 = vld [vmem:[#allocation3 + $0x230] sm:$0xff]
        %v5714 = vld [vmem:[#allocation3 + $0x238] sm:$0xff]
        %v5715 = vld [vmem:[#allocation3 + $0x240] sm:$0xff]
        %v5716 = vld [vmem:[#allocation3 + $0x248] sm:$0xff]
        %v5717 = vld [vmem:[#allocation3 + $0x250] sm:$0xff]
        %v5718 = vld [vmem:[#allocation3 + $0x258] sm:$0xff]
        %v5719 = vld [vmem:[#allocation3 + $0x260] sm:$0xff]
        %v5720 = vld [vmem:[#allocation3 + $0x268] sm:$0xff]
        %v5721 = vld [vmem:[#allocation3 + $0x270] sm:$0xff]
        %v5722 = vld [vmem:[#allocation3 + $0x278] sm:$0xff]
        %v5723 = vld [vmem:[#allocation3 + $0x280] sm:$0xff]
        %v5724 = vld [vmem:[#allocation3 + $0x288] sm:$0xff]
        %v5725 = vld [vmem:[#allocation3 + $0x290] sm:$0xff]
        %v5726 = vld [vmem:[#allocation3 + $0x298] sm:$0xff]
        %v5727 = vld [vmem:[#allocation3 + $0x2a0] sm:$0xff]
        %v5728 = vld [vmem:[#allocation3 + $0x2a8] sm:$0xff]
        %v5729 = vld [vmem:[#allocation3 + $0x2b0] sm:$0xff]
        %v5730 = vld [vmem:[#allocation3 + $0x2b8] sm:$0xff]
        %v5731 = vld [vmem:[#allocation3 + $0x2c0] sm:$0xff]
        %v5732 = vld [vmem:[#allocation3 + $0x2c8] sm:$0xff]
        %v5733 = vld [vmem:[#allocation3 + $0x2d0] sm:$0xff]
        %v5734 = vld [vmem:[#allocation3 + $0x2d8] sm:$0xff]
        %v5735 = vld [vmem:[#allocation3 + $0x2e0] sm:$0xff]
        %v5736 = vld [vmem:[#allocation3 + $0x2e8] sm:$0xff]
        %v5737 = vld [vmem:[#allocation3 + $0x2f0] sm:$0xff]
        %v5738 = vld [vmem:[#allocation3 + $0x2f8] sm:$0xff]
        %v5739 = vld [vmem:[#allocation2 + $0x80] sm:$0xff]
        %v5740 = vld [vmem:[#allocation2 + $0x88] sm:$0xff]
        %v5741 = vld [vmem:[#allocation2 + $0x90] sm:$0xff]
        %v5742 = vld [vmem:[#allocation2 + $0x98] sm:$0xff]
        %v5743 = vld [vmem:[#allocation2 + $0xa0] sm:$0xff]
        %v5744 = vld [vmem:[#allocation2 + $0xa8] sm:$0xff]
        %v5745 = vld [vmem:[#allocation2 + $0xb0] sm:$0xff]
        %v5746 = vld [vmem:[#allocation2 + $0xb8] sm:$0xff]
        %v5747 = vld [vmem:[#allocation2 + $0xc0] sm:$0xff]
        %v5748 = vld [vmem:[#allocation2 + $0xc8] sm:$0xff]
        %v5749 = vld [vmem:[#allocation2 + $0xd0] sm:$0xff]
        %v5750 = vld [vmem:[#allocation2 + $0xd8] sm:$0xff]
        %v5751 = vld [vmem:[#allocation2 + $0xe0] sm:$0xff]
        %v5752 = vld [vmem:[#allocation2 + $0xe8] sm:$0xff]
        %v5753 = vld [vmem:[#allocation2 + $0xf0] sm:$0xff]
        %v5754 = vld [vmem:[#allocation2 + $0xf8] sm:$0xff]
        %v5755 = vld [vmem:[#allocation2 + $0x100] sm:$0xff]
        %v5756 = vld [vmem:[#allocation2 + $0x108] sm:$0xff]
        %v5757 = vld [vmem:[#allocation2 + $0x110] sm:$0xff]
        %v5758 = vld [vmem:[#allocation2 + $0x118] sm:$0xff]
        %v5759 = vld [vmem:[#allocation2 + $0x120] sm:$0xff]
        %v5760 = vld [vmem:[#allocation2 + $0x128] sm:$0xff]
        %v5761 = vld [vmem:[#allocation2 + $0x130] sm:$0xff]
        %v5762 = vld [vmem:[#allocation2 + $0x138] sm:$0xff]
        %v5763 = vld [vmem:[#allocation2 + $0x140] sm:$0xff]
        %v5764 = vld [vmem:[#allocation2 + $0x148] sm:$0xff]
        %v5765 = vld [vmem:[#allocation2 + $0x150] sm:$0xff]
        %v5766 = vld [vmem:[#allocation2 + $0x158] sm:$0xff]
        %v5767 = vld [vmem:[#allocation2 + $0x160] sm:$0xff]
        %v5768 = vld [vmem:[#allocation2 + $0x168] sm:$0xff]
        %v5769 = vld [vmem:[#allocation2 + $0x170] sm:$0xff]
        %v5770 = vld [vmem:[#allocation2 + $0x178] sm:$0xff]
        %v5771 = vld [vmem:[#allocation2 + $0x180] sm:$0xff]
        %v5772 = vld [vmem:[#allocation2 + $0x188] sm:$0xff]
        %v5773 = vld [vmem:[#allocation2 + $0x190] sm:$0xff]
        %v5774 = vld [vmem:[#allocation2 + $0x198] sm:$0xff]
        %v5775 = vld [vmem:[#allocation2 + $0x1a0] sm:$0xff]
        %v5776 = vld [vmem:[#allocation2 + $0x1a8] sm:$0xff]
        %v5777 = vld [vmem:[#allocation2 + $0x1b0] sm:$0xff]
        %v5778 = vld [vmem:[#allocation2 + $0x1b8] sm:$0xff]
        %v5779 = vld [vmem:[#allocation2 + $0x1c0] sm:$0xff]
        %v5780 = vld [vmem:[#allocation2 + $0x1c8] sm:$0xff]
        %v5781 = vld [vmem:[#allocation2 + $0x1d0] sm:$0xff]
        %v5782 = vld [vmem:[#allocation2 + $0x1d8] sm:$0xff]
        %v5783 = vld [vmem:[#allocation2 + $0x1e0] sm:$0xff]
        %v5784 = vld [vmem:[#allocation2 + $0x1e8] sm:$0xff]
        %v5785 = vld [vmem:[#allocation2 + $0x1f0] sm:$0xff]
        %v5786 = vld [vmem:[#allocation2 + $0x1f8] sm:$0xff]
        %s5787 = scalar_lea.vmem %s3, 192
        %v5788 = vld [vmem:[%s5787] sm:$0xf]
        %v5789 = vld [vmem:[%s5787 + $0x4] sm:$0xf]
        %v5790 = vld [vmem:[%s5787 + $0x8] sm:$0xf]
        %v5791 = vld [vmem:[%s5787 + $0xc] sm:$0xf]
        %v5792 = vld [vmem:[%s5787 + $0x10] sm:$0xf]
        %v5793 = vld [vmem:[%s5787 + $0x14] sm:$0xf]
        %v5794 = vld [vmem:[%s5787 + $0x18] sm:$0xf]
        %v5795 = vld [vmem:[%s5787 + $0x1c] sm:$0xf]
        %v5796 = vld [vmem:[%s5787 + $0x20] sm:$0xf]
        %v5797 = vld [vmem:[%s5787 + $0x24] sm:$0xf]
        %v5798 = vld [vmem:[%s5787 + $0x28] sm:$0xf]
        %v5799 = vld [vmem:[%s5787 + $0x2c] sm:$0xf]
        %v5800 = vld [vmem:[%s5787 + $0x30] sm:$0xf]
        %v5801 = vld [vmem:[%s5787 + $0x34] sm:$0xf]
        %v5802 = vld [vmem:[%s5787 + $0x38] sm:$0xf]
        %v5803 = vld [vmem:[%s5787 + $0x3c] sm:$0xf]
        %v5820 = vunpack.c.l.b16 %v5788
        %v5821 = vunpack.c.l.b16 %v5789
        %v5822 = vunpack.c.l.b16 %v5790
        %v5823 = vunpack.c.l.b16 %v5791
        %v5824 = vunpack.c.l.b16 %v5792
        %v5825 = vunpack.c.l.b16 %v5793
        %v5826 = vunpack.c.l.b16 %v5794
        %v5827 = vunpack.c.l.b16 %v5795
        %v5828 = vunpack.c.l.b16 %v5796
        %v5829 = vunpack.c.l.b16 %v5797
        %v5830 = vunpack.c.l.b16 %v5798
        %v5831 = vunpack.c.l.b16 %v5799
        %v5832 = vunpack.c.l.b16 %v5800
        %v5833 = vunpack.c.l.b16 %v5801
        %v5834 = vunpack.c.l.b16 %v5802
        %v5835 = vunpack.c.l.b16 %v5803
        %v5836 = vpack.c.b16 %v5821, %v5820
        %v5837 = vpack.c.b16 %v5823, %v5822
        %v5838 = vpack.c.b16 %v5825, %v5824
        %v5839 = vpack.c.b16 %v5827, %v5826
        %v5840 = vpack.c.b16 %v5829, %v5828
        %v5841 = vpack.c.b16 %v5831, %v5830
        %v5842 = vpack.c.b16 %v5833, %v5832
        %v5843 = vpack.c.b16 %v5835, %v5834
        %5852 = vmatprep.subr.bf16.mxu0 0
        %5853 = vmatpush1.bf16.msra.mxu0 %v5836
        %5854 = vmatprep.subr.bf16.mxu0 0
        %5855 = vmatpush1.bf16.msra.mxu0 %v5837
        %5856 = vmatprep.subr.bf16.mxu0 0
        %5857 = vmatpush1.bf16.msra.mxu0 %v5838
        %5858 = vmatprep.subr.bf16.mxu0 0
        %5859 = vmatpush1.bf16.msra.mxu0 %v5839
        %5860 = vmatprep.subr.bf16.mxu0 0
        %5861 = vmatpush1.bf16.msra.mxu0 %v5840
        %5862 = vmatprep.subr.bf16.mxu0 0
        %5863 = vmatpush1.bf16.msra.mxu0 %v5841
        %5864 = vmatprep.subr.bf16.mxu0 0
        %5865 = vmatpush1.bf16.msra.mxu0 %v5842
        %5866 = vmatprep.subr.bf16.mxu0 0
        %5867 = vmatpush1.bf16.msra.mxu0 %v5843
        %5868 = vmatprep.subr.bf16.mxu0 0
        %5869 = vmatpush1.bf16.msra.mxu0 0
        %5870 = vmatprep.subr.bf16.mxu0 0
        %5871 = vmatpush1.bf16.msra.mxu0 0
        %5872 = vmatprep.subr.bf16.mxu0 0
        %5873 = vmatpush1.bf16.msra.mxu0 0
        %5874 = vmatprep.subr.bf16.mxu0 0
        %5875 = vmatpush1.bf16.msra.mxu0 0
        %5876 = vmatprep.subr.bf16.mxu0 0
        %5877 = vmatpush1.bf16.msra.mxu0 0
        %5878 = vmatprep.subr.bf16.mxu0 0
        %5879 = vmatpush1.bf16.msra.mxu0 0
        %5880 = vmatprep.subr.bf16.mxu0 0
        %5881 = vmatpush1.bf16.msra.mxu0 0
        %5882 = vmatprep.subr.bf16.mxu0 0
        %5883 = vmatpush1.bf16.msra.mxu0 0
        %5884 = vmatprep.mubr.bf16.mxu0 0
        %5885 = vmatmul.mubr.bf16.gmra.mrb[0].mxu0 %v5739
        %v5886 = vpop.f32.mrb[0].mxu0
        %v5887 = vadd.f32 0.0, %v5886
        %v5888 = vpop.f32.mrb[0].mxu0
        %v5889 = vpop.f32.mrb[0].mxu0
        %v5890 = vadd.f32 0.0, %v5889
        %v5891 = vpop.f32.mrb[0].mxu0
        %5892 = vmatprep.mubr.bf16.mxu0 0
        %5893 = vmatmul.mubr.bf16.gmra.mrb[0].mxu0 %v5740
        %v5894 = vpop.f32.mrb[0].mxu0
        %v5895 = vadd.f32 0.0, %v5894
        %v5896 = vpop.f32.mrb[0].mxu0
        %v5897 = vpop.f32.mrb[0].mxu0
        %v5898 = vadd.f32 0.0, %v5897
        %v5899 = vpop.f32.mrb[0].mxu0
        %5900 = vmatprep.mubr.bf16.mxu0 0
        %5901 = vmatmul.mubr.bf16.gmra.mrb[0].mxu0 %v5741
        %v5902 = vpop.f32.mrb[0].mxu0
        %v5903 = vadd.f32 0.0, %v5902
        %v5904 = vpop.f32.mrb[0].mxu0
        %v5905 = vpop.f32.mrb[0].mxu0
        %v5906 = vadd.f32 0.0, %v5905
        %v5907 = vpop.f32.mrb[0].mxu0
        %5908 = vmatprep.mubr.bf16.mxu0 0
        %5909 = vmatmul.mubr.bf16.gmra.mrb[0].mxu0 %v5742
        %v5910 = vpop.f32.mrb[0].mxu0
        %v5911 = vadd.f32 0.0, %v5910
        %v5912 = vpop.f32.mrb[0].mxu0
        %v5913 = vpop.f32.mrb[0].mxu0
        %v5914 = vadd.f32 0.0, %v5913
        %v5915 = vpop.f32.mrb[0].mxu0
        %5916 = vmatprep.mubr.bf16.mxu0 0
        %5917 = vmatmul.mubr.bf16.gmra.mrb[0].mxu0 %v5743
        %v5918 = vpop.f32.mrb[0].mxu0
        %v5919 = vadd.f32 0.0, %v5918
        %v5920 = vpop.f32.mrb[0].mxu0
        %v5921 = vpop.f32.mrb[0].mxu0
        %v5922 = vadd.f32 0.0, %v5921
        %v5923 = vpop.f32.mrb[0].mxu0
        %5924 = vmatprep.mubr.bf16.mxu0 0
        %5925 = vmatmul.mubr.bf16.gmra.mrb[0].mxu0 %v5744
        %v5926 = vpop.f32.mrb[0].mxu0
        %v5927 = vadd.f32 0.0, %v5926
        %v5928 = vpop.f32.mrb[0].mxu0
        %v5929 = vpop.f32.mrb[0].mxu0
        %v5930 = vadd.f32 0.0, %v5929
        %v5931 = vpop.f32.mrb[0].mxu0
        %5932 = vmatprep.mubr.bf16.mxu0 0
        %5933 = vmatmul.mubr.bf16.gmra.mrb[0].mxu0 %v5745
        %v5934 = vpop.f32.mrb[0].mxu0
        %v5935 = vadd.f32 0.0, %v5934
        %v5936 = vpop.f32.mrb[0].mxu0
        %v5937 = vpop.f32.mrb[0].mxu0
        %v5938 = vadd.f32 0.0, %v5937
        %v5939 = vpop.f32.mrb[0].mxu0
        %5940 = vmatprep.mubr.bf16.mxu0 0
        %5941 = vmatmul.mubr.bf16.gmra.mrb[0].mxu0 %v5746
        %v5942 = vpop.f32.mrb[0].mxu0
        %v5943 = vadd.f32 0.0, %v5942
        %v5944 = vpop.f32.mrb[0].mxu0
        %v5945 = vpop.f32.mrb[0].mxu0
        %v5946 = vadd.f32 0.0, %v5945
        %v5947 = vpop.f32.mrb[0].mxu0
        %5948 = vmatprep.mubr.bf16.mxu0 0
        %5949 = vmatmul.mubr.bf16.gmra.mrb[0].mxu0 %v5747
        %v5950 = vpop.f32.mrb[0].mxu0
        %v5951 = vadd.f32 0.0, %v5950
        %v5952 = vpop.f32.mrb[0].mxu0
        %v5953 = vpop.f32.mrb[0].mxu0
        %v5954 = vadd.f32 0.0, %v5953
        %v5955 = vpop.f32.mrb[0].mxu0
        %5956 = vmatprep.mubr.bf16.mxu0 0
        %5957 = vmatmul.mubr.bf16.gmra.mrb[0].mxu0 %v5748
        %v5958 = vpop.f32.mrb[0].mxu0
        %v5959 = vadd.f32 0.0, %v5958
        %v5960 = vpop.f32.mrb[0].mxu0
        %v5961 = vpop.f32.mrb[0].mxu0
        %v5962 = vadd.f32 0.0, %v5961
        %v5963 = vpop.f32.mrb[0].mxu0
        %5964 = vmatprep.mubr.bf16.mxu0 0
        %5965 = vmatmul.mubr.bf16.gmra.mrb[0].mxu0 %v5749
        %v5966 = vpop.f32.mrb[0].mxu0
        %v5967 = vadd.f32 0.0, %v5966
        %v5968 = vpop.f32.mrb[0].mxu0
        %v5969 = vpop.f32.mrb[0].mxu0
        %v5970 = vadd.f32 0.0, %v5969
        %v5971 = vpop.f32.mrb[0].mxu0
        %5972 = vmatprep.mubr.bf16.mxu0 0
        %5973 = vmatmul.mubr.bf16.gmra.mrb[0].mxu0 %v5750
        %v5974 = vpop.f32.mrb[0].mxu0
        %v5975 = vadd.f32 0.0, %v5974
        %v5976 = vpop.f32.mrb[0].mxu0
        %v5977 = vpop.f32.mrb[0].mxu0
        %v5978 = vadd.f32 0.0, %v5977
        %v5979 = vpop.f32.mrb[0].mxu0
        %5980 = vmatprep.mubr.bf16.mxu0 0
        %5981 = vmatmul.mubr.bf16.gmra.mrb[0].mxu0 %v5751
        %v5982 = vpop.f32.mrb[0].mxu0
        %v5983 = vadd.f32 0.0, %v5982
        %v5984 = vpop.f32.mrb[0].mxu0
        %v5985 = vpop.f32.mrb[0].mxu0
        %v5986 = vadd.f32 0.0, %v5985
        %v5987 = vpop.f32.mrb[0].mxu0
        %5988 = vmatprep.mubr.bf16.mxu0 0
        %5989 = vmatmul.mubr.bf16.gmra.mrb[0].mxu0 %v5752
        %v5990 = vpop.f32.mrb[0].mxu0
        %v5991 = vadd.f32 0.0, %v5990
        %v5992 = vpop.f32.mrb[0].mxu0
        %v5993 = vpop.f32.mrb[0].mxu0
        %v5994 = vadd.f32 0.0, %v5993
        %v5995 = vpop.f32.mrb[0].mxu0
        %5996 = vmatprep.mubr.bf16.mxu0 0
        %5997 = vmatmul.mubr.bf16.gmra.mrb[0].mxu0 %v5753
        %v5998 = vpop.f32.mrb[0].mxu0
        %v5999 = vadd.f32 0.0, %v5998
        %v6000 = vpop.f32.mrb[0].mxu0
        %v6001 = vpop.f32.mrb[0].mxu0
        %v6002 = vadd.f32 0.0, %v6001
        %v6003 = vpop.f32.mrb[0].mxu0
        %6004 = vmatprep.mubr.bf16.mxu0 0
        %6005 = vmatmul.mubr.bf16.gmra.mrb[0].mxu0 %v5754
        %v6006 = vpop.f32.mrb[0].mxu0
        %v6007 = vadd.f32 0.0, %v6006
        %v6008 = vpop.f32.mrb[0].mxu0
        %v6009 = vpop.f32.mrb[0].mxu0
        %v6010 = vadd.f32 0.0, %v6009
        %v6011 = vpop.f32.mrb[0].mxu0
        %6012 = vmatprep.mubr.bf16.mxu0 0
        %6013 = vmatmul.mubr.bf16.gmra.mrb[0].mxu0 %v5755
        %v6014 = vpop.f32.mrb[0].mxu0
        %v6015 = vadd.f32 0.0, %v6014
        %v6016 = vpop.f32.mrb[0].mxu0
        %v6017 = vpop.f32.mrb[0].mxu0
        %v6018 = vadd.f32 0.0, %v6017
        %v6019 = vpop.f32.mrb[0].mxu0
        %6020 = vmatprep.mubr.bf16.mxu0 0
        %6021 = vmatmul.mubr.bf16.gmra.mrb[0].mxu0 %v5756
        %v6022 = vpop.f32.mrb[0].mxu0
        %v6023 = vadd.f32 0.0, %v6022
        %v6024 = vpop.f32.mrb[0].mxu0
        %v6025 = vpop.f32.mrb[0].mxu0
        %v6026 = vadd.f32 0.0, %v6025
        %v6027 = vpop.f32.mrb[0].mxu0
        %6028 = vmatprep.mubr.bf16.mxu0 0
        %6029 = vmatmul.mubr.bf16.gmra.mrb[0].mxu0 %v5757
        %v6030 = vpop.f32.mrb[0].mxu0
        %v6031 = vadd.f32 0.0, %v6030
        %v6032 = vpop.f32.mrb[0].mxu0
        %v6033 = vpop.f32.mrb[0].mxu0
        %v6034 = vadd.f32 0.0, %v6033
        %v6035 = vpop.f32.mrb[0].mxu0
        %6036 = vmatprep.mubr.bf16.mxu0 0
        %6037 = vmatmul.mubr.bf16.gmra.mrb[0].mxu0 %v5758
        %v6038 = vpop.f32.mrb[0].mxu0
        %v6039 = vadd.f32 0.0, %v6038
        %v6040 = vpop.f32.mrb[0].mxu0
        %v6041 = vpop.f32.mrb[0].mxu0
        %v6042 = vadd.f32 0.0, %v6041
        %v6043 = vpop.f32.mrb[0].mxu0
        %6044 = vmatprep.mubr.bf16.mxu0 0
        %6045 = vmatmul.mubr.bf16.gmra.mrb[0].mxu0 %v5759
        %v6046 = vpop.f32.mrb[0].mxu0
        %v6047 = vadd.f32 0.0, %v6046
        %v6048 = vpop.f32.mrb[0].mxu0
        %v6049 = vpop.f32.mrb[0].mxu0
        %v6050 = vadd.f32 0.0, %v6049
        %v6051 = vpop.f32.mrb[0].mxu0
        %6052 = vmatprep.mubr.bf16.mxu0 0
        %6053 = vmatmul.mubr.bf16.gmra.mrb[0].mxu0 %v5760
        %v6054 = vpop.f32.mrb[0].mxu0
        %v6055 = vadd.f32 0.0, %v6054
        %v6056 = vpop.f32.mrb[0].mxu0
        %v6057 = vpop.f32.mrb[0].mxu0
        %v6058 = vadd.f32 0.0, %v6057
        %v6059 = vpop.f32.mrb[0].mxu0
        %6060 = vmatprep.mubr.bf16.mxu0 0
        %6061 = vmatmul.mubr.bf16.gmra.mrb[0].mxu0 %v5761
        %v6062 = vpop.f32.mrb[0].mxu0
        %v6063 = vadd.f32 0.0, %v6062
        %v6064 = vpop.f32.mrb[0].mxu0
        %v6065 = vpop.f32.mrb[0].mxu0
        %v6066 = vadd.f32 0.0, %v6065
        %v6067 = vpop.f32.mrb[0].mxu0
        %6068 = vmatprep.mubr.bf16.mxu0 0
        %6069 = vmatmul.mubr.bf16.gmra.mrb[0].mxu0 %v5762
        %v6070 = vpop.f32.mrb[0].mxu0
        %v6071 = vadd.f32 0.0, %v6070
        %v6072 = vpop.f32.mrb[0].mxu0
        %v6073 = vpop.f32.mrb[0].mxu0
        %v6074 = vadd.f32 0.0, %v6073
        %v6075 = vpop.f32.mrb[0].mxu0
        %6076 = vmatprep.mubr.bf16.mxu0 0
        %6077 = vmatmul.mubr.bf16.gmra.mrb[0].mxu0 %v5763
        %v6078 = vpop.f32.mrb[0].mxu0
        %v6079 = vadd.f32 0.0, %v6078
        %v6080 = vpop.f32.mrb[0].mxu0
        %v6081 = vpop.f32.mrb[0].mxu0
        %v6082 = vadd.f32 0.0, %v6081
        %v6083 = vpop.f32.mrb[0].mxu0
        %6084 = vmatprep.mubr.bf16.mxu0 0
        %6085 = vmatmul.mubr.bf16.gmra.mrb[0].mxu0 %v5764
        %v6086 = vpop.f32.mrb[0].mxu0
        %v6087 = vadd.f32 0.0, %v6086
        %v6088 = vpop.f32.mrb[0].mxu0
        %v6089 = vpop.f32.mrb[0].mxu0
        %v6090 = vadd.f32 0.0, %v6089
        %v6091 = vpop.f32.mrb[0].mxu0
        %6092 = vmatprep.mubr.bf16.mxu0 0
        %6093 = vmatmul.mubr.bf16.gmra.mrb[0].mxu0 %v5765
        %v6094 = vpop.f32.mrb[0].mxu0
        %v6095 = vadd.f32 0.0, %v6094
        %v6096 = vpop.f32.mrb[0].mxu0
        %v6097 = vpop.f32.mrb[0].mxu0
        %v6098 = vadd.f32 0.0, %v6097
        %v6099 = vpop.f32.mrb[0].mxu0
        %6100 = vmatprep.mubr.bf16.mxu0 0
        %6101 = vmatmul.mubr.bf16.gmra.mrb[0].mxu0 %v5766
        %v6102 = vpop.f32.mrb[0].mxu0
        %v6103 = vadd.f32 0.0, %v6102
        %v6104 = vpop.f32.mrb[0].mxu0
        %v6105 = vpop.f32.mrb[0].mxu0
        %v6106 = vadd.f32 0.0, %v6105
        %v6107 = vpop.f32.mrb[0].mxu0
        %6108 = vmatprep.mubr.bf16.mxu0 0
        %6109 = vmatmul.mubr.bf16.gmra.mrb[0].mxu0 %v5767
        %v6110 = vpop.f32.mrb[0].mxu0
        %v6111 = vadd.f32 0.0, %v6110
        %v6112 = vpop.f32.mrb[0].mxu0
        %v6113 = vpop.f32.mrb[0].mxu0
        %v6114 = vadd.f32 0.0, %v6113
        %v6115 = vpop.f32.mrb[0].mxu0
        %6116 = vmatprep.mubr.bf16.mxu0 0
        %6117 = vmatmul.mubr.bf16.gmra.mrb[0].mxu0 %v5768
        %v6118 = vpop.f32.mrb[0].mxu0
        %v6119 = vadd.f32 0.0, %v6118
        %v6120 = vpop.f32.mrb[0].mxu0
        %v6121 = vpop.f32.mrb[0].mxu0
        %v6122 = vadd.f32 0.0, %v6121
        %v6123 = vpop.f32.mrb[0].mxu0
        %6124 = vmatprep.mubr.bf16.mxu0 0
        %6125 = vmatmul.mubr.bf16.gmra.mrb[0].mxu0 %v5769
        %v6126 = vpop.f32.mrb[0].mxu0
        %v6127 = vadd.f32 0.0, %v6126
        %v6128 = vpop.f32.mrb[0].mxu0
        %v6129 = vpop.f32.mrb[0].mxu0
        %v6130 = vadd.f32 0.0, %v6129
        %v6131 = vpop.f32.mrb[0].mxu0
        %6132 = vmatprep.mubr.bf16.mxu0 0
        %6133 = vmatmul.mubr.bf16.gmra.mrb[0].mxu0 %v5770
        %v6134 = vpop.f32.mrb[0].mxu0
        %v6135 = vadd.f32 0.0, %v6134
        %v6136 = vpop.f32.mrb[0].mxu0
        %v6137 = vpop.f32.mrb[0].mxu0
        %v6138 = vadd.f32 0.0, %v6137
        %v6139 = vpop.f32.mrb[0].mxu0
        %6140 = vmatprep.mubr.bf16.mxu0 0
        %6141 = vmatmul.mubr.bf16.gmra.mrb[0].mxu0 %v5771
        %v6142 = vpop.f32.mrb[0].mxu0
        %v6143 = vadd.f32 0.0, %v6142
        %v6144 = vpop.f32.mrb[0].mxu0
        %v6145 = vpop.f32.mrb[0].mxu0
        %v6146 = vadd.f32 0.0, %v6145
        %v6147 = vpop.f32.mrb[0].mxu0
        %6148 = vmatprep.mubr.bf16.mxu0 0
        %6149 = vmatmul.mubr.bf16.gmra.mrb[0].mxu0 %v5772
        %v6150 = vpop.f32.mrb[0].mxu0
        %v6151 = vadd.f32 0.0, %v6150
        %v6152 = vpop.f32.mrb[0].mxu0
        %v6153 = vpop.f32.mrb[0].mxu0
        %v6154 = vadd.f32 0.0, %v6153
        %v6155 = vpop.f32.mrb[0].mxu0
        %6156 = vmatprep.mubr.bf16.mxu0 0
        %6157 = vmatmul.mubr.bf16.gmra.mrb[0].mxu0 %v5773
        %v6158 = vpop.f32.mrb[0].mxu0
        %v6159 = vadd.f32 0.0, %v6158
        %v6160 = vpop.f32.mrb[0].mxu0
        %v6161 = vpop.f32.mrb[0].mxu0
        %v6162 = vadd.f32 0.0, %v6161
        %v6163 = vpop.f32.mrb[0].mxu0
        %6164 = vmatprep.mubr.bf16.mxu0 0
        %6165 = vmatmul.mubr.bf16.gmra.mrb[0].mxu0 %v5774
        %v6166 = vpop.f32.mrb[0].mxu0
        %v6167 = vadd.f32 0.0, %v6166
        %v6168 = vpop.f32.mrb[0].mxu0
        %v6169 = vpop.f32.mrb[0].mxu0
        %v6170 = vadd.f32 0.0, %v6169
        %v6171 = vpop.f32.mrb[0].mxu0
        %6172 = vmatprep.mubr.bf16.mxu0 0
        %6173 = vmatmul.mubr.bf16.gmra.mrb[0].mxu0 %v5775
        %v6174 = vpop.f32.mrb[0].mxu0
        %v6175 = vadd.f32 0.0, %v6174
        %v6176 = vpop.f32.mrb[0].mxu0
        %v6177 = vpop.f32.mrb[0].mxu0
        %v6178 = vadd.f32 0.0, %v6177
        %v6179 = vpop.f32.mrb[0].mxu0
        %6180 = vmatprep.mubr.bf16.mxu0 0
        %6181 = vmatmul.mubr.bf16.gmra.mrb[0].mxu0 %v5776
        %v6182 = vpop.f32.mrb[0].mxu0
        %v6183 = vadd.f32 0.0, %v6182
        %v6184 = vpop.f32.mrb[0].mxu0
        %v6185 = vpop.f32.mrb[0].mxu0
        %v6186 = vadd.f32 0.0, %v6185
        %v6187 = vpop.f32.mrb[0].mxu0
        %6188 = vmatprep.mubr.bf16.mxu0 0
        %6189 = vmatmul.mubr.bf16.gmra.mrb[0].mxu0 %v5777
        %v6190 = vpop.f32.mrb[0].mxu0
        %v6191 = vadd.f32 0.0, %v6190
        %v6192 = vpop.f32.mrb[0].mxu0
        %v6193 = vpop.f32.mrb[0].mxu0
        %v6194 = vadd.f32 0.0, %v6193
        %v6195 = vpop.f32.mrb[0].mxu0
        %6196 = vmatprep.mubr.bf16.mxu0 0
        %6197 = vmatmul.mubr.bf16.gmra.mrb[0].mxu0 %v5778
        %v6198 = vpop.f32.mrb[0].mxu0
        %v6199 = vadd.f32 0.0, %v6198
        %v6200 = vpop.f32.mrb[0].mxu0
        %v6201 = vpop.f32.mrb[0].mxu0
        %v6202 = vadd.f32 0.0, %v6201
        %v6203 = vpop.f32.mrb[0].mxu0
        %6204 = vmatprep.mubr.bf16.mxu0 0
        %6205 = vmatmul.mubr.bf16.gmra.mrb[0].mxu0 %v5779
        %v6206 = vpop.f32.mrb[0].mxu0
        %v6207 = vadd.f32 0.0, %v6206
        %v6208 = vpop.f32.mrb[0].mxu0
        %v6209 = vpop.f32.mrb[0].mxu0
        %v6210 = vadd.f32 0.0, %v6209
        %v6211 = vpop.f32.mrb[0].mxu0
        %6212 = vmatprep.mubr.bf16.mxu0 0
        %6213 = vmatmul.mubr.bf16.gmra.mrb[0].mxu0 %v5780
        %v6214 = vpop.f32.mrb[0].mxu0
        %v6215 = vadd.f32 0.0, %v6214
        %v6216 = vpop.f32.mrb[0].mxu0
        %v6217 = vpop.f32.mrb[0].mxu0
        %v6218 = vadd.f32 0.0, %v6217
        %v6219 = vpop.f32.mrb[0].mxu0
        %6220 = vmatprep.mubr.bf16.mxu0 0
        %6221 = vmatmul.mubr.bf16.gmra.mrb[0].mxu0 %v5781
        %v6222 = vpop.f32.mrb[0].mxu0
        %v6223 = vadd.f32 0.0, %v6222
        %v6224 = vpop.f32.mrb[0].mxu0
        %v6225 = vpop.f32.mrb[0].mxu0
        %v6226 = vadd.f32 0.0, %v6225
        %v6227 = vpop.f32.mrb[0].mxu0
        %6228 = vmatprep.mubr.bf16.mxu0 0
        %6229 = vmatmul.mubr.bf16.gmra.mrb[0].mxu0 %v5782
        %v6230 = vpop.f32.mrb[0].mxu0
        %v6231 = vadd.f32 0.0, %v6230
        %v6232 = vpop.f32.mrb[0].mxu0
        %v6233 = vpop.f32.mrb[0].mxu0
        %v6234 = vadd.f32 0.0, %v6233
        %v6235 = vpop.f32.mrb[0].mxu0
        %6236 = vmatprep.mubr.bf16.mxu0 0
        %6237 = vmatmul.mubr.bf16.gmra.mrb[0].mxu0 %v5783
        %v6238 = vpop.f32.mrb[0].mxu0
        %v6239 = vadd.f32 0.0, %v6238
        %v6240 = vpop.f32.mrb[0].mxu0
        %v6241 = vpop.f32.mrb[0].mxu0
        %v6242 = vadd.f32 0.0, %v6241
        %v6243 = vpop.f32.mrb[0].mxu0
        %6244 = vmatprep.mubr.bf16.mxu0 0
        %6245 = vmatmul.mubr.bf16.gmra.mrb[0].mxu0 %v5784
        %v6246 = vpop.f32.mrb[0].mxu0
        %v6247 = vadd.f32 0.0, %v6246
        %v6248 = vpop.f32.mrb[0].mxu0
        %v6249 = vpop.f32.mrb[0].mxu0
        %v6250 = vadd.f32 0.0, %v6249
        %v6251 = vpop.f32.mrb[0].mxu0
        %6252 = vmatprep.mubr.bf16.mxu0 0
        %6253 = vmatmul.mubr.bf16.gmra.mrb[0].mxu0 %v5785
        %v6254 = vpop.f32.mrb[0].mxu0
        %v6255 = vadd.f32 0.0, %v6254
        %v6256 = vpop.f32.mrb[0].mxu0
        %v6257 = vpop.f32.mrb[0].mxu0
        %v6258 = vadd.f32 0.0, %v6257
        %v6259 = vpop.f32.mrb[0].mxu0
        %6260 = vmatprep.mubr.bf16.mxu0 0
        %6261 = vmatmul.mubr.bf16.gmra.mrb[0].mxu0 %v5786
        %v6262 = vpop.f32.mrb[0].mxu0
        %v6263 = vadd.f32 0.0, %v6262
        %v6264 = vpop.f32.mrb[0].mxu0
        %v6265 = vpop.f32.mrb[0].mxu0
        %v6266 = vadd.f32 0.0, %v6265
        %v6267 = vpop.f32.mrb[0].mxu0
        %6268 = vdwg.mxu0
        %v6269 = vadd.f32 %v5643, %v5887
        %v6270 = vadd.f32 %v5644, %v5890
        %v6271 = vadd.f32 %v5645, %v5895
        %v6272 = vadd.f32 %v5646, %v5898
        %v6273 = vadd.f32 %v5647, %v5903
        %v6274 = vadd.f32 %v5648, %v5906
        %v6275 = vadd.f32 %v5649, %v5911
        %v6276 = vadd.f32 %v5650, %v5914
        %v6277 = vadd.f32 %v5651, %v5919
        %v6278 = vadd.f32 %v5652, %v5922
        %v6279 = vadd.f32 %v5653, %v5927
        %v6280 = vadd.f32 %v5654, %v5930
        %v6281 = vadd.f32 %v5655, %v5935
        %v6282 = vadd.f32 %v5656, %v5938
        %v6283 = vadd.f32 %v5657, %v5943
        %v6284 = vadd.f32 %v5658, %v5946
        %v6285 = vadd.f32 %v5659, %v5951
        %v6286 = vadd.f32 %v5660, %v5954
        %v6287 = vadd.f32 %v5661, %v5959
        %v6288 = vadd.f32 %v5662, %v5962
        %v6289 = vadd.f32 %v5663, %v5967
        %v6290 = vadd.f32 %v5664, %v5970
        %v6291 = vadd.f32 %v5665, %v5975
        %v6292 = vadd.f32 %v5666, %v5978
        %v6293 = vadd.f32 %v5667, %v5983
        %v6294 = vadd.f32 %v5668, %v5986
        %v6295 = vadd.f32 %v5669, %v5991
        %v6296 = vadd.f32 %v5670, %v5994
        %v6297 = vadd.f32 %v5671, %v5999
        %v6298 = vadd.f32 %v5672, %v6002
        %v6299 = vadd.f32 %v5673, %v6007
        %v6300 = vadd.f32 %v5674, %v6010
        %v6301 = vadd.f32 %v5675, %v6015
        %v6302 = vadd.f32 %v5676, %v6018
        %v6303 = vadd.f32 %v5677, %v6023
        %v6304 = vadd.f32 %v5678, %v6026
        %v6305 = vadd.f32 %v5679, %v6031
        %v6306 = vadd.f32 %v5680, %v6034
        %v6307 = vadd.f32 %v5681, %v6039
        %v6308 = vadd.f32 %v5682, %v6042
        %v6309 = vadd.f32 %v5683, %v6047
        %v6310 = vadd.f32 %v5684, %v6050
        %v6311 = vadd.f32 %v5685, %v6055
        %v6312 = vadd.f32 %v5686, %v6058
        %v6313 = vadd.f32 %v5687, %v6063
        %v6314 = vadd.f32 %v5688, %v6066
        %v6315 = vadd.f32 %v5689, %v6071
        %v6316 = vadd.f32 %v5690, %v6074
        %v6317 = vadd.f32 %v5691, %v6079
        %v6318 = vadd.f32 %v5692, %v6082
        %v6319 = vadd.f32 %v5693, %v6087
        %v6320 = vadd.f32 %v5694, %v6090
        %v6321 = vadd.f32 %v5695, %v6095
        %v6322 = vadd.f32 %v5696, %v6098
        %v6323 = vadd.f32 %v5697, %v6103
        %v6324 = vadd.f32 %v5698, %v6106
        %v6325 = vadd.f32 %v5699, %v6111
        %v6326 = vadd.f32 %v5700, %v6114
        %v6327 = vadd.f32 %v5701, %v6119
        %v6328 = vadd.f32 %v5702, %v6122
        %v6329 = vadd.f32 %v5703, %v6127
        %v6330 = vadd.f32 %v5704, %v6130
        %v6331 = vadd.f32 %v5705, %v6135
        %v6332 = vadd.f32 %v5706, %v6138
        %v6333 = vadd.f32 %v5707, %v6143
        %v6334 = vadd.f32 %v5708, %v6146
        %v6335 = vadd.f32 %v5709, %v6151
        %v6336 = vadd.f32 %v5710, %v6154
        %v6337 = vadd.f32 %v5711, %v6159
        %v6338 = vadd.f32 %v5712, %v6162
        %v6339 = vadd.f32 %v5713, %v6167
        %v6340 = vadd.f32 %v5714, %v6170
        %v6341 = vadd.f32 %v5715, %v6175
        %v6342 = vadd.f32 %v5716, %v6178
        %v6343 = vadd.f32 %v5717, %v6183
        %v6344 = vadd.f32 %v5718, %v6186
        %v6345 = vadd.f32 %v5719, %v6191
        %v6346 = vadd.f32 %v5720, %v6194
        %v6347 = vadd.f32 %v5721, %v6199
        %v6348 = vadd.f32 %v5722, %v6202
        %v6349 = vadd.f32 %v5723, %v6207
        %v6350 = vadd.f32 %v5724, %v6210
        %v6351 = vadd.f32 %v5725, %v6215
        %v6352 = vadd.f32 %v5726, %v6218
        %v6353 = vadd.f32 %v5727, %v6223
        %v6354 = vadd.f32 %v5728, %v6226
        %v6355 = vadd.f32 %v5729, %v6231
        %v6356 = vadd.f32 %v5730, %v6234
        %v6357 = vadd.f32 %v5731, %v6239
        %v6358 = vadd.f32 %v5732, %v6242
        %v6359 = vadd.f32 %v5733, %v6247
        %v6360 = vadd.f32 %v5734, %v6250
        %v6361 = vadd.f32 %v5735, %v6255
        %v6362 = vadd.f32 %v5736, %v6258
        %v6363 = vadd.f32 %v5737, %v6263
        %v6364 = vadd.f32 %v5738, %v6266
        %6365 = vst.msk [vmem:[#allocation3] sm:$0xff] %vm2821, %v6269
        %6366 = vst.msk [vmem:[#allocation3 + $0x8] sm:$0xff] %vm2821, %v6270
        %6367 = vst.msk [vmem:[#allocation3 + $0x10] sm:$0xff] %vm2821, %v6271
        %6368 = vst.msk [vmem:[#allocation3 + $0x18] sm:$0xff] %vm2821, %v6272
        %6369 = vst.msk [vmem:[#allocation3 + $0x20] sm:$0xff] %vm2821, %v6273
        %6370 = vst.msk [vmem:[#allocation3 + $0x28] sm:$0xff] %vm2821, %v6274
        %6371 = vst.msk [vmem:[#allocation3 + $0x30] sm:$0xff] %vm2821, %v6275
        %6372 = vst.msk [vmem:[#allocation3 + $0x38] sm:$0xff] %vm2821, %v6276
        %6373 = vst.msk [vmem:[#allocation3 + $0x40] sm:$0xff] %vm2821, %v6277
        %6374 = vst.msk [vmem:[#allocation3 + $0x48] sm:$0xff] %vm2821, %v6278
        %6375 = vst.msk [vmem:[#allocation3 + $0x50] sm:$0xff] %vm2821, %v6279
        %6376 = vst.msk [vmem:[#allocation3 + $0x58] sm:$0xff] %vm2821, %v6280
        %6377 = vst.msk [vmem:[#allocation3 + $0x60] sm:$0xff] %vm2821, %v6281
        %6378 = vst.msk [vmem:[#allocation3 + $0x68] sm:$0xff] %vm2821, %v6282
        %6379 = vst.msk [vmem:[#allocation3 + $0x70] sm:$0xff] %vm2821, %v6283
        %6380 = vst.msk [vmem:[#allocation3 + $0x78] sm:$0xff] %vm2821, %v6284
        %6381 = vst.msk [vmem:[#allocation3 + $0x80] sm:$0xff] %vm2821, %v6285
        %6382 = vst.msk [vmem:[#allocation3 + $0x88] sm:$0xff] %vm2821, %v6286
        %6383 = vst.msk [vmem:[#allocation3 + $0x90] sm:$0xff] %vm2821, %v6287
        %6384 = vst.msk [vmem:[#allocation3 + $0x98] sm:$0xff] %vm2821, %v6288
        %6385 = vst.msk [vmem:[#allocation3 + $0xa0] sm:$0xff] %vm2821, %v6289
        %6386 = vst.msk [vmem:[#allocation3 + $0xa8] sm:$0xff] %vm2821, %v6290
        %6387 = vst.msk [vmem:[#allocation3 + $0xb0] sm:$0xff] %vm2821, %v6291
        %6388 = vst.msk [vmem:[#allocation3 + $0xb8] sm:$0xff] %vm2821, %v6292
        %6389 = vst.msk [vmem:[#allocation3 + $0xc0] sm:$0xff] %vm2821, %v6293
        %6390 = vst.msk [vmem:[#allocation3 + $0xc8] sm:$0xff] %vm2821, %v6294
        %6391 = vst.msk [vmem:[#allocation3 + $0xd0] sm:$0xff] %vm2821, %v6295
        %6392 = vst.msk [vmem:[#allocation3 + $0xd8] sm:$0xff] %vm2821, %v6296
        %6393 = vst.msk [vmem:[#allocation3 + $0xe0] sm:$0xff] %vm2821, %v6297
        %6394 = vst.msk [vmem:[#allocation3 + $0xe8] sm:$0xff] %vm2821, %v6298
        %6395 = vst.msk [vmem:[#allocation3 + $0xf0] sm:$0xff] %vm2821, %v6299
        %6396 = vst.msk [vmem:[#allocation3 + $0xf8] sm:$0xff] %vm2821, %v6300
        %6397 = vst.msk [vmem:[#allocation3 + $0x100] sm:$0xff] %vm2821, %v6301
        %6398 = vst.msk [vmem:[#allocation3 + $0x108] sm:$0xff] %vm2821, %v6302
        %6399 = vst.msk [vmem:[#allocation3 + $0x110] sm:$0xff] %vm2821, %v6303
        %6400 = vst.msk [vmem:[#allocation3 + $0x118] sm:$0xff] %vm2821, %v6304
        %6401 = vst.msk [vmem:[#allocation3 + $0x120] sm:$0xff] %vm2821, %v6305
        %6402 = vst.msk [vmem:[#allocation3 + $0x128] sm:$0xff] %vm2821, %v6306
        %6403 = vst.msk [vmem:[#allocation3 + $0x130] sm:$0xff] %vm2821, %v6307
        %6404 = vst.msk [vmem:[#allocation3 + $0x138] sm:$0xff] %vm2821, %v6308
        %6405 = vst.msk [vmem:[#allocation3 + $0x140] sm:$0xff] %vm2821, %v6309
        %6406 = vst.msk [vmem:[#allocation3 + $0x148] sm:$0xff] %vm2821, %v6310
        %6407 = vst.msk [vmem:[#allocation3 + $0x150] sm:$0xff] %vm2821, %v6311
        %6408 = vst.msk [vmem:[#allocation3 + $0x158] sm:$0xff] %vm2821, %v6312
        %6409 = vst.msk [vmem:[#allocation3 + $0x160] sm:$0xff] %vm2821, %v6313
        %6410 = vst.msk [vmem:[#allocation3 + $0x168] sm:$0xff] %vm2821, %v6314
        %6411 = vst.msk [vmem:[#allocation3 + $0x170] sm:$0xff] %vm2821, %v6315
        %6412 = vst.msk [vmem:[#allocation3 + $0x178] sm:$0xff] %vm2821, %v6316
        %6413 = vst.msk [vmem:[#allocation3 + $0x180] sm:$0xff] %vm2821, %v6317
        %6414 = vst.msk [vmem:[#allocation3 + $0x188] sm:$0xff] %vm2821, %v6318
        %6415 = vst.msk [vmem:[#allocation3 + $0x190] sm:$0xff] %vm2821, %v6319
        %6416 = vst.msk [vmem:[#allocation3 + $0x198] sm:$0xff] %vm2821, %v6320
        %6417 = vst.msk [vmem:[#allocation3 + $0x1a0] sm:$0xff] %vm2821, %v6321
        %6418 = vst.msk [vmem:[#allocation3 + $0x1a8] sm:$0xff] %vm2821, %v6322
        %6419 = vst.msk [vmem:[#allocation3 + $0x1b0] sm:$0xff] %vm2821, %v6323
        %6420 = vst.msk [vmem:[#allocation3 + $0x1b8] sm:$0xff] %vm2821, %v6324
        %6421 = vst.msk [vmem:[#allocation3 + $0x1c0] sm:$0xff] %vm2821, %v6325
        %6422 = vst.msk [vmem:[#allocation3 + $0x1c8] sm:$0xff] %vm2821, %v6326
        %6423 = vst.msk [vmem:[#allocation3 + $0x1d0] sm:$0xff] %vm2821, %v6327
        %6424 = vst.msk [vmem:[#allocation3 + $0x1d8] sm:$0xff] %vm2821, %v6328
        %6425 = vst.msk [vmem:[#allocation3 + $0x1e0] sm:$0xff] %vm2821, %v6329
        %6426 = vst.msk [vmem:[#allocation3 + $0x1e8] sm:$0xff] %vm2821, %v6330
        %6427 = vst.msk [vmem:[#allocation3 + $0x1f0] sm:$0xff] %vm2821, %v6331
        %6428 = vst.msk [vmem:[#allocation3 + $0x1f8] sm:$0xff] %vm2821, %v6332
        %6429 = vst.msk [vmem:[#allocation3 + $0x200] sm:$0xff] %vm2821, %v6333
        %6430 = vst.msk [vmem:[#allocation3 + $0x208] sm:$0xff] %vm2821, %v6334
        %6431 = vst.msk [vmem:[#allocation3 + $0x210] sm:$0xff] %vm2821, %v6335
        %6432 = vst.msk [vmem:[#allocation3 + $0x218] sm:$0xff] %vm2821, %v6336
        %6433 = vst.msk [vmem:[#allocation3 + $0x220] sm:$0xff] %vm2821, %v6337
        %6434 = vst.msk [vmem:[#allocation3 + $0x228] sm:$0xff] %vm2821, %v6338
        %6435 = vst.msk [vmem:[#allocation3 + $0x230] sm:$0xff] %vm2821, %v6339
        %6436 = vst.msk [vmem:[#allocation3 + $0x238] sm:$0xff] %vm2821, %v6340
        %6437 = vst.msk [vmem:[#allocation3 + $0x240] sm:$0xff] %vm2821, %v6341
        %6438 = vst.msk [vmem:[#allocation3 + $0x248] sm:$0xff] %vm2821, %v6342
        %6439 = vst.msk [vmem:[#allocation3 + $0x250] sm:$0xff] %vm2821, %v6343
        %6440 = vst.msk [vmem:[#allocation3 + $0x258] sm:$0xff] %vm2821, %v6344
        %6441 = vst.msk [vmem:[#allocation3 + $0x260] sm:$0xff] %vm2821, %v6345
        %6442 = vst.msk [vmem:[#allocation3 + $0x268] sm:$0xff] %vm2821, %v6346
        %6443 = vst.msk [vmem:[#allocation3 + $0x270] sm:$0xff] %vm2821, %v6347
        %6444 = vst.msk [vmem:[#allocation3 + $0x278] sm:$0xff] %vm2821, %v6348
        %6445 = vst.msk [vmem:[#allocation3 + $0x280] sm:$0xff] %vm2821, %v6349
        %6446 = vst.msk [vmem:[#allocation3 + $0x288] sm:$0xff] %vm2821, %v6350
        %6447 = vst.msk [vmem:[#allocation3 + $0x290] sm:$0xff] %vm2821, %v6351
        %6448 = vst.msk [vmem:[#allocation3 + $0x298] sm:$0xff] %vm2821, %v6352
        %6449 = vst.msk [vmem:[#allocation3 + $0x2a0] sm:$0xff] %vm2821, %v6353
        %6450 = vst.msk [vmem:[#allocation3 + $0x2a8] sm:$0xff] %vm2821, %v6354
        %6451 = vst.msk [vmem:[#allocation3 + $0x2b0] sm:$0xff] %vm2821, %v6355
        %6452 = vst.msk [vmem:[#allocation3 + $0x2b8] sm:$0xff] %vm2821, %v6356
        %6453 = vst.msk [vmem:[#allocation3 + $0x2c0] sm:$0xff] %vm2821, %v6357
        %6454 = vst.msk [vmem:[#allocation3 + $0x2c8] sm:$0xff] %vm2821, %v6358
        %6455 = vst.msk [vmem:[#allocation3 + $0x2d0] sm:$0xff] %vm2821, %v6359
        %6456 = vst.msk [vmem:[#allocation3 + $0x2d8] sm:$0xff] %vm2821, %v6360
        %6457 = vst.msk [vmem:[#allocation3 + $0x2e0] sm:$0xff] %vm2821, %v6361
        %6458 = vst.msk [vmem:[#allocation3 + $0x2e8] sm:$0xff] %vm2821, %v6362
        %6459 = vst.msk [vmem:[#allocation3 + $0x2f0] sm:$0xff] %vm2821, %v6363
        %6460 = vst.msk [vmem:[#allocation3 + $0x2f8] sm:$0xff] %vm2821, %v6364
        %v6461 = vld [vmem:[#allocation3 + $0x200] sm:$0xff]
        %v6462 = vld [vmem:[#allocation3 + $0x208] sm:$0xff]
        %v6463 = vld [vmem:[#allocation3 + $0x210] sm:$0xff]
        %v6464 = vld [vmem:[#allocation3 + $0x218] sm:$0xff]
        %v6465 = vld [vmem:[#allocation3 + $0x220] sm:$0xff]
        %v6466 = vld [vmem:[#allocation3 + $0x228] sm:$0xff]
        %v6467 = vld [vmem:[#allocation3 + $0x230] sm:$0xff]
        %v6468 = vld [vmem:[#allocation3 + $0x238] sm:$0xff]
        %v6469 = vld [vmem:[#allocation3 + $0x240] sm:$0xff]
        %v6470 = vld [vmem:[#allocation3 + $0x248] sm:$0xff]
        %v6471 = vld [vmem:[#allocation3 + $0x250] sm:$0xff]
        %v6472 = vld [vmem:[#allocation3 + $0x258] sm:$0xff]
        %v6473 = vld [vmem:[#allocation3 + $0x260] sm:$0xff]
        %v6474 = vld [vmem:[#allocation3 + $0x268] sm:$0xff]
        %v6475 = vld [vmem:[#allocation3 + $0x270] sm:$0xff]
        %v6476 = vld [vmem:[#allocation3 + $0x278] sm:$0xff]
        %v6477 = vld [vmem:[#allocation3 + $0x280] sm:$0xff]
        %v6478 = vld [vmem:[#allocation3 + $0x288] sm:$0xff]
        %v6479 = vld [vmem:[#allocation3 + $0x290] sm:$0xff]
        %v6480 = vld [vmem:[#allocation3 + $0x298] sm:$0xff]
        %v6481 = vld [vmem:[#allocation3 + $0x2a0] sm:$0xff]
        %v6482 = vld [vmem:[#allocation3 + $0x2a8] sm:$0xff]
        %v6483 = vld [vmem:[#allocation3 + $0x2b0] sm:$0xff]
        %v6484 = vld [vmem:[#allocation3 + $0x2b8] sm:$0xff]
        %v6485 = vld [vmem:[#allocation3 + $0x2c0] sm:$0xff]
        %v6486 = vld [vmem:[#allocation3 + $0x2c8] sm:$0xff]
        %v6487 = vld [vmem:[#allocation3 + $0x2d0] sm:$0xff]
        %v6488 = vld [vmem:[#allocation3 + $0x2d8] sm:$0xff]
        %v6489 = vld [vmem:[#allocation3 + $0x2e0] sm:$0xff]
        %v6490 = vld [vmem:[#allocation3 + $0x2e8] sm:$0xff]
        %v6491 = vld [vmem:[#allocation3 + $0x2f0] sm:$0xff]
        %v6492 = vld [vmem:[#allocation3 + $0x2f8] sm:$0xff]
        %v6493 = vld [vmem:[#allocation3 + $0x300] sm:$0xff]
        %v6494 = vld [vmem:[#allocation3 + $0x308] sm:$0xff]
        %v6495 = vld [vmem:[#allocation3 + $0x310] sm:$0xff]
        %v6496 = vld [vmem:[#allocation3 + $0x318] sm:$0xff]
        %v6497 = vld [vmem:[#allocation3 + $0x320] sm:$0xff]
        %v6498 = vld [vmem:[#allocation3 + $0x328] sm:$0xff]
        %v6499 = vld [vmem:[#allocation3 + $0x330] sm:$0xff]
        %v6500 = vld [vmem:[#allocation3 + $0x338] sm:$0xff]
        %v6501 = vld [vmem:[#allocation3 + $0x340] sm:$0xff]
        %v6502 = vld [vmem:[#allocation3 + $0x348] sm:$0xff]
        %v6503 = vld [vmem:[#allocation3 + $0x350] sm:$0xff]
        %v6504 = vld [vmem:[#allocation3 + $0x358] sm:$0xff]
        %v6505 = vld [vmem:[#allocation3 + $0x360] sm:$0xff]
        %v6506 = vld [vmem:[#allocation3 + $0x368] sm:$0xff]
        %v6507 = vld [vmem:[#allocation3 + $0x370] sm:$0xff]
        %v6508 = vld [vmem:[#allocation3 + $0x378] sm:$0xff]
        %v6509 = vld [vmem:[#allocation3 + $0x380] sm:$0xff]
        %v6510 = vld [vmem:[#allocation3 + $0x388] sm:$0xff]
        %v6511 = vld [vmem:[#allocation3 + $0x390] sm:$0xff]
        %v6512 = vld [vmem:[#allocation3 + $0x398] sm:$0xff]
        %v6513 = vld [vmem:[#allocation3 + $0x3a0] sm:$0xff]
        %v6514 = vld [vmem:[#allocation3 + $0x3a8] sm:$0xff]
        %v6515 = vld [vmem:[#allocation3 + $0x3b0] sm:$0xff]
        %v6516 = vld [vmem:[#allocation3 + $0x3b8] sm:$0xff]
        %v6517 = vld [vmem:[#allocation3 + $0x3c0] sm:$0xff]
        %v6518 = vld [vmem:[#allocation3 + $0x3c8] sm:$0xff]
        %v6519 = vld [vmem:[#allocation3 + $0x3d0] sm:$0xff]
        %v6520 = vld [vmem:[#allocation3 + $0x3d8] sm:$0xff]
        %v6521 = vld [vmem:[#allocation3 + $0x3e0] sm:$0xff]
        %v6522 = vld [vmem:[#allocation3 + $0x3e8] sm:$0xff]
        %v6523 = vld [vmem:[#allocation3 + $0x3f0] sm:$0xff]
        %v6524 = vld [vmem:[#allocation3 + $0x3f8] sm:$0xff]
        %v6525 = vld [vmem:[#allocation2] sm:$0xff]
        %v6526 = vld [vmem:[#allocation2 + $0x8] sm:$0xff]
        %v6527 = vld [vmem:[#allocation2 + $0x10] sm:$0xff]
        %v6528 = vld [vmem:[#allocation2 + $0x18] sm:$0xff]
        %v6529 = vld [vmem:[#allocation2 + $0x20] sm:$0xff]
        %v6530 = vld [vmem:[#allocation2 + $0x28] sm:$0xff]
        %v6531 = vld [vmem:[#allocation2 + $0x30] sm:$0xff]
        %v6532 = vld [vmem:[#allocation2 + $0x38] sm:$0xff]
        %v6533 = vld [vmem:[#allocation2 + $0x40] sm:$0xff]
        %v6534 = vld [vmem:[#allocation2 + $0x48] sm:$0xff]
        %v6535 = vld [vmem:[#allocation2 + $0x50] sm:$0xff]
        %v6536 = vld [vmem:[#allocation2 + $0x58] sm:$0xff]
        %v6537 = vld [vmem:[#allocation2 + $0x60] sm:$0xff]
        %v6538 = vld [vmem:[#allocation2 + $0x68] sm:$0xff]
        %v6539 = vld [vmem:[#allocation2 + $0x70] sm:$0xff]
        %v6540 = vld [vmem:[#allocation2 + $0x78] sm:$0xff]
        %v6541 = vld [vmem:[#allocation2 + $0x80] sm:$0xff]
        %v6542 = vld [vmem:[#allocation2 + $0x88] sm:$0xff]
        %v6543 = vld [vmem:[#allocation2 + $0x90] sm:$0xff]
        %v6544 = vld [vmem:[#allocation2 + $0x98] sm:$0xff]
        %v6545 = vld [vmem:[#allocation2 + $0xa0] sm:$0xff]
        %v6546 = vld [vmem:[#allocation2 + $0xa8] sm:$0xff]
        %v6547 = vld [vmem:[#allocation2 + $0xb0] sm:$0xff]
        %v6548 = vld [vmem:[#allocation2 + $0xb8] sm:$0xff]
        %v6549 = vld [vmem:[#allocation2 + $0xc0] sm:$0xff]
        %v6550 = vld [vmem:[#allocation2 + $0xc8] sm:$0xff]
        %v6551 = vld [vmem:[#allocation2 + $0xd0] sm:$0xff]
        %v6552 = vld [vmem:[#allocation2 + $0xd8] sm:$0xff]
        %v6553 = vld [vmem:[#allocation2 + $0xe0] sm:$0xff]
        %v6554 = vld [vmem:[#allocation2 + $0xe8] sm:$0xff]
        %v6555 = vld [vmem:[#allocation2 + $0xf0] sm:$0xff]
        %v6556 = vld [vmem:[#allocation2 + $0xf8] sm:$0xff]
        %s6557 = scalar_lea.vmem %s3, 256
        %v6558 = vld [vmem:[%s6557] sm:$0xf]
        %v6559 = vld [vmem:[%s6557 + $0x4] sm:$0xf]
        %v6560 = vld [vmem:[%s6557 + $0x8] sm:$0xf]
        %v6561 = vld [vmem:[%s6557 + $0xc] sm:$0xf]
        %v6562 = vld [vmem:[%s6557 + $0x10] sm:$0xf]
        %v6563 = vld [vmem:[%s6557 + $0x14] sm:$0xf]
        %v6564 = vld [vmem:[%s6557 + $0x18] sm:$0xf]
        %v6565 = vld [vmem:[%s6557 + $0x1c] sm:$0xf]
        %v6566 = vld [vmem:[%s6557 + $0x20] sm:$0xf]
        %v6567 = vld [vmem:[%s6557 + $0x24] sm:$0xf]
        %v6568 = vld [vmem:[%s6557 + $0x28] sm:$0xf]
        %v6569 = vld [vmem:[%s6557 + $0x2c] sm:$0xf]
        %v6570 = vld [vmem:[%s6557 + $0x30] sm:$0xf]
        %v6571 = vld [vmem:[%s6557 + $0x34] sm:$0xf]
        %v6572 = vld [vmem:[%s6557 + $0x38] sm:$0xf]
        %v6573 = vld [vmem:[%s6557 + $0x3c] sm:$0xf]
        %v6590 = vunpack.c.l.b16 %v6558
        %v6591 = vunpack.c.l.b16 %v6559
        %v6592 = vunpack.c.l.b16 %v6560
        %v6593 = vunpack.c.l.b16 %v6561
        %v6594 = vunpack.c.l.b16 %v6562
        %v6595 = vunpack.c.l.b16 %v6563
        %v6596 = vunpack.c.l.b16 %v6564
        %v6597 = vunpack.c.l.b16 %v6565
        %v6598 = vunpack.c.l.b16 %v6566
        %v6599 = vunpack.c.l.b16 %v6567
        %v6600 = vunpack.c.l.b16 %v6568
        %v6601 = vunpack.c.l.b16 %v6569
        %v6602 = vunpack.c.l.b16 %v6570
        %v6603 = vunpack.c.l.b16 %v6571
        %v6604 = vunpack.c.l.b16 %v6572
        %v6605 = vunpack.c.l.b16 %v6573
        %v6606 = vpack.c.b16 %v6591, %v6590
        %v6607 = vpack.c.b16 %v6593, %v6592
        %v6608 = vpack.c.b16 %v6595, %v6594
        %v6609 = vpack.c.b16 %v6597, %v6596
        %v6610 = vpack.c.b16 %v6599, %v6598
        %v6611 = vpack.c.b16 %v6601, %v6600
        %v6612 = vpack.c.b16 %v6603, %v6602
        %v6613 = vpack.c.b16 %v6605, %v6604
        %6622 = vmatprep.subr.bf16.mxu0 0
        %6623 = vmatpush1.bf16.msra.mxu0 %v6606
        %6624 = vmatprep.subr.bf16.mxu0 0
        %6625 = vmatpush1.bf16.msra.mxu0 %v6607
        %6626 = vmatprep.subr.bf16.mxu0 0
        %6627 = vmatpush1.bf16.msra.mxu0 %v6608
        %6628 = vmatprep.subr.bf16.mxu0 0
        %6629 = vmatpush1.bf16.msra.mxu0 %v6609
        %6630 = vmatprep.subr.bf16.mxu0 0
        %6631 = vmatpush1.bf16.msra.mxu0 %v6610
        %6632 = vmatprep.subr.bf16.mxu0 0
        %6633 = vmatpush1.bf16.msra.mxu0 %v6611
        %6634 = vmatprep.subr.bf16.mxu0 0
        %6635 = vmatpush1.bf16.msra.mxu0 %v6612
        %6636 = vmatprep.subr.bf16.mxu0 0
        %6637 = vmatpush1.bf16.msra.mxu0 %v6613
        %6638 = vmatprep.subr.bf16.mxu0 0
        %6639 = vmatpush1.bf16.msra.mxu0 0
        %6640 = vmatprep.subr.bf16.mxu0 0
        %6641 = vmatpush1.bf16.msra.mxu0 0
        %6642 = vmatprep.subr.bf16.mxu0 0
        %6643 = vmatpush1.bf16.msra.mxu0 0
        %6644 = vmatprep.subr.bf16.mxu0 0
        %6645 = vmatpush1.bf16.msra.mxu0 0
        %6646 = vmatprep.subr.bf16.mxu0 0
        %6647 = vmatpush1.bf16.msra.mxu0 0
        %6648 = vmatprep.subr.bf16.mxu0 0
        %6649 = vmatpush1.bf16.msra.mxu0 0
        %6650 = vmatprep.subr.bf16.mxu0 0
        %6651 = vmatpush1.bf16.msra.mxu0 0
        %6652 = vmatprep.subr.bf16.mxu0 0
        %6653 = vmatpush1.bf16.msra.mxu0 0
        %6654 = vmatprep.mubr.bf16.mxu0 0
        %6655 = vmatmul.mubr.bf16.gmra.mrb[0].mxu0 %v6525
        %v6656 = vpop.f32.mrb[0].mxu0
        %v6657 = vadd.f32 0.0, %v6656
        %v6658 = vpop.f32.mrb[0].mxu0
        %v6659 = vpop.f32.mrb[0].mxu0
        %v6660 = vadd.f32 0.0, %v6659
        %v6661 = vpop.f32.mrb[0].mxu0
        %6662 = vmatprep.mubr.bf16.mxu0 0
        %6663 = vmatmul.mubr.bf16.gmra.mrb[0].mxu0 %v6526
        %v6664 = vpop.f32.mrb[0].mxu0
        %v6665 = vadd.f32 0.0, %v6664
        %v6666 = vpop.f32.mrb[0].mxu0
        %v6667 = vpop.f32.mrb[0].mxu0
        %v6668 = vadd.f32 0.0, %v6667
        %v6669 = vpop.f32.mrb[0].mxu0
        %6670 = vmatprep.mubr.bf16.mxu0 0
        %6671 = vmatmul.mubr.bf16.gmra.mrb[0].mxu0 %v6527
        %v6672 = vpop.f32.mrb[0].mxu0
        %v6673 = vadd.f32 0.0, %v6672
        %v6674 = vpop.f32.mrb[0].mxu0
        %v6675 = vpop.f32.mrb[0].mxu0
        %v6676 = vadd.f32 0.0, %v6675
        %v6677 = vpop.f32.mrb[0].mxu0
        %6678 = vmatprep.mubr.bf16.mxu0 0
        %6679 = vmatmul.mubr.bf16.gmra.mrb[0].mxu0 %v6528
        %v6680 = vpop.f32.mrb[0].mxu0
        %v6681 = vadd.f32 0.0, %v6680
        %v6682 = vpop.f32.mrb[0].mxu0
        %v6683 = vpop.f32.mrb[0].mxu0
        %v6684 = vadd.f32 0.0, %v6683
        %v6685 = vpop.f32.mrb[0].mxu0
        %6686 = vmatprep.mubr.bf16.mxu0 0
        %6687 = vmatmul.mubr.bf16.gmra.mrb[0].mxu0 %v6529
        %v6688 = vpop.f32.mrb[0].mxu0
        %v6689 = vadd.f32 0.0, %v6688
        %v6690 = vpop.f32.mrb[0].mxu0
        %v6691 = vpop.f32.mrb[0].mxu0
        %v6692 = vadd.f32 0.0, %v6691
        %v6693 = vpop.f32.mrb[0].mxu0
        %6694 = vmatprep.mubr.bf16.mxu0 0
        %6695 = vmatmul.mubr.bf16.gmra.mrb[0].mxu0 %v6530
        %v6696 = vpop.f32.mrb[0].mxu0
        %v6697 = vadd.f32 0.0, %v6696
        %v6698 = vpop.f32.mrb[0].mxu0
        %v6699 = vpop.f32.mrb[0].mxu0
        %v6700 = vadd.f32 0.0, %v6699
        %v6701 = vpop.f32.mrb[0].mxu0
        %6702 = vmatprep.mubr.bf16.mxu0 0
        %6703 = vmatmul.mubr.bf16.gmra.mrb[0].mxu0 %v6531
        %v6704 = vpop.f32.mrb[0].mxu0
        %v6705 = vadd.f32 0.0, %v6704
        %v6706 = vpop.f32.mrb[0].mxu0
        %v6707 = vpop.f32.mrb[0].mxu0
        %v6708 = vadd.f32 0.0, %v6707
        %v6709 = vpop.f32.mrb[0].mxu0
        %6710 = vmatprep.mubr.bf16.mxu0 0
        %6711 = vmatmul.mubr.bf16.gmra.mrb[0].mxu0 %v6532
        %v6712 = vpop.f32.mrb[0].mxu0
        %v6713 = vadd.f32 0.0, %v6712
        %v6714 = vpop.f32.mrb[0].mxu0
        %v6715 = vpop.f32.mrb[0].mxu0
        %v6716 = vadd.f32 0.0, %v6715
        %v6717 = vpop.f32.mrb[0].mxu0
        %6718 = vmatprep.mubr.bf16.mxu0 0
        %6719 = vmatmul.mubr.bf16.gmra.mrb[0].mxu0 %v6533
        %v6720 = vpop.f32.mrb[0].mxu0
        %v6721 = vadd.f32 0.0, %v6720
        %v6722 = vpop.f32.mrb[0].mxu0
        %v6723 = vpop.f32.mrb[0].mxu0
        %v6724 = vadd.f32 0.0, %v6723
        %v6725 = vpop.f32.mrb[0].mxu0
        %6726 = vmatprep.mubr.bf16.mxu0 0
        %6727 = vmatmul.mubr.bf16.gmra.mrb[0].mxu0 %v6534
        %v6728 = vpop.f32.mrb[0].mxu0
        %v6729 = vadd.f32 0.0, %v6728
        %v6730 = vpop.f32.mrb[0].mxu0
        %v6731 = vpop.f32.mrb[0].mxu0
        %v6732 = vadd.f32 0.0, %v6731
        %v6733 = vpop.f32.mrb[0].mxu0
        %6734 = vmatprep.mubr.bf16.mxu0 0
        %6735 = vmatmul.mubr.bf16.gmra.mrb[0].mxu0 %v6535
        %v6736 = vpop.f32.mrb[0].mxu0
        %v6737 = vadd.f32 0.0, %v6736
        %v6738 = vpop.f32.mrb[0].mxu0
        %v6739 = vpop.f32.mrb[0].mxu0
        %v6740 = vadd.f32 0.0, %v6739
        %v6741 = vpop.f32.mrb[0].mxu0
        %6742 = vmatprep.mubr.bf16.mxu0 0
        %6743 = vmatmul.mubr.bf16.gmra.mrb[0].mxu0 %v6536
        %v6744 = vpop.f32.mrb[0].mxu0
        %v6745 = vadd.f32 0.0, %v6744
        %v6746 = vpop.f32.mrb[0].mxu0
        %v6747 = vpop.f32.mrb[0].mxu0
        %v6748 = vadd.f32 0.0, %v6747
        %v6749 = vpop.f32.mrb[0].mxu0
        %6750 = vmatprep.mubr.bf16.mxu0 0
        %6751 = vmatmul.mubr.bf16.gmra.mrb[0].mxu0 %v6537
        %v6752 = vpop.f32.mrb[0].mxu0
        %v6753 = vadd.f32 0.0, %v6752
        %v6754 = vpop.f32.mrb[0].mxu0
        %v6755 = vpop.f32.mrb[0].mxu0
        %v6756 = vadd.f32 0.0, %v6755
        %v6757 = vpop.f32.mrb[0].mxu0
        %6758 = vmatprep.mubr.bf16.mxu0 0
        %6759 = vmatmul.mubr.bf16.gmra.mrb[0].mxu0 %v6538
        %v6760 = vpop.f32.mrb[0].mxu0
        %v6761 = vadd.f32 0.0, %v6760
        %v6762 = vpop.f32.mrb[0].mxu0
        %v6763 = vpop.f32.mrb[0].mxu0
        %v6764 = vadd.f32 0.0, %v6763
        %v6765 = vpop.f32.mrb[0].mxu0
        %6766 = vmatprep.mubr.bf16.mxu0 0
        %6767 = vmatmul.mubr.bf16.gmra.mrb[0].mxu0 %v6539
        %v6768 = vpop.f32.mrb[0].mxu0
        %v6769 = vadd.f32 0.0, %v6768
        %v6770 = vpop.f32.mrb[0].mxu0
        %v6771 = vpop.f32.mrb[0].mxu0
        %v6772 = vadd.f32 0.0, %v6771
        %v6773 = vpop.f32.mrb[0].mxu0
        %6774 = vmatprep.mubr.bf16.mxu0 0
        %6775 = vmatmul.mubr.bf16.gmra.mrb[0].mxu0 %v6540
        %v6776 = vpop.f32.mrb[0].mxu0
        %v6777 = vadd.f32 0.0, %v6776
        %v6778 = vpop.f32.mrb[0].mxu0
        %v6779 = vpop.f32.mrb[0].mxu0
        %v6780 = vadd.f32 0.0, %v6779
        %v6781 = vpop.f32.mrb[0].mxu0
        %6782 = vmatprep.mubr.bf16.mxu0 0
        %6783 = vmatmul.mubr.bf16.gmra.mrb[0].mxu0 %v6541
        %v6784 = vpop.f32.mrb[0].mxu0
        %v6785 = vadd.f32 0.0, %v6784
        %v6786 = vpop.f32.mrb[0].mxu0
        %v6787 = vpop.f32.mrb[0].mxu0
        %v6788 = vadd.f32 0.0, %v6787
        %v6789 = vpop.f32.mrb[0].mxu0
        %6790 = vmatprep.mubr.bf16.mxu0 0
        %6791 = vmatmul.mubr.bf16.gmra.mrb[0].mxu0 %v6542
        %v6792 = vpop.f32.mrb[0].mxu0
        %v6793 = vadd.f32 0.0, %v6792
        %v6794 = vpop.f32.mrb[0].mxu0
        %v6795 = vpop.f32.mrb[0].mxu0
        %v6796 = vadd.f32 0.0, %v6795
        %v6797 = vpop.f32.mrb[0].mxu0
        %6798 = vmatprep.mubr.bf16.mxu0 0
        %6799 = vmatmul.mubr.bf16.gmra.mrb[0].mxu0 %v6543
        %v6800 = vpop.f32.mrb[0].mxu0
        %v6801 = vadd.f32 0.0, %v6800
        %v6802 = vpop.f32.mrb[0].mxu0
        %v6803 = vpop.f32.mrb[0].mxu0
        %v6804 = vadd.f32 0.0, %v6803
        %v6805 = vpop.f32.mrb[0].mxu0
        %6806 = vmatprep.mubr.bf16.mxu0 0
        %6807 = vmatmul.mubr.bf16.gmra.mrb[0].mxu0 %v6544
        %v6808 = vpop.f32.mrb[0].mxu0
        %v6809 = vadd.f32 0.0, %v6808
        %v6810 = vpop.f32.mrb[0].mxu0
        %v6811 = vpop.f32.mrb[0].mxu0
        %v6812 = vadd.f32 0.0, %v6811
        %v6813 = vpop.f32.mrb[0].mxu0
        %6814 = vmatprep.mubr.bf16.mxu0 0
        %6815 = vmatmul.mubr.bf16.gmra.mrb[0].mxu0 %v6545
        %v6816 = vpop.f32.mrb[0].mxu0
        %v6817 = vadd.f32 0.0, %v6816
        %v6818 = vpop.f32.mrb[0].mxu0
        %v6819 = vpop.f32.mrb[0].mxu0
        %v6820 = vadd.f32 0.0, %v6819
        %v6821 = vpop.f32.mrb[0].mxu0
        %6822 = vmatprep.mubr.bf16.mxu0 0
        %6823 = vmatmul.mubr.bf16.gmra.mrb[0].mxu0 %v6546
        %v6824 = vpop.f32.mrb[0].mxu0
        %v6825 = vadd.f32 0.0, %v6824
        %v6826 = vpop.f32.mrb[0].mxu0
        %v6827 = vpop.f32.mrb[0].mxu0
        %v6828 = vadd.f32 0.0, %v6827
        %v6829 = vpop.f32.mrb[0].mxu0
        %6830 = vmatprep.mubr.bf16.mxu0 0
        %6831 = vmatmul.mubr.bf16.gmra.mrb[0].mxu0 %v6547
        %v6832 = vpop.f32.mrb[0].mxu0
        %v6833 = vadd.f32 0.0, %v6832
        %v6834 = vpop.f32.mrb[0].mxu0
        %v6835 = vpop.f32.mrb[0].mxu0
        %v6836 = vadd.f32 0.0, %v6835
        %v6837 = vpop.f32.mrb[0].mxu0
        %6838 = vmatprep.mubr.bf16.mxu0 0
        %6839 = vmatmul.mubr.bf16.gmra.mrb[0].mxu0 %v6548
        %v6840 = vpop.f32.mrb[0].mxu0
        %v6841 = vadd.f32 0.0, %v6840
        %v6842 = vpop.f32.mrb[0].mxu0
        %v6843 = vpop.f32.mrb[0].mxu0
        %v6844 = vadd.f32 0.0, %v6843
        %v6845 = vpop.f32.mrb[0].mxu0
        %6846 = vmatprep.mubr.bf16.mxu0 0
        %6847 = vmatmul.mubr.bf16.gmra.mrb[0].mxu0 %v6549
        %v6848 = vpop.f32.mrb[0].mxu0
        %v6849 = vadd.f32 0.0, %v6848
        %v6850 = vpop.f32.mrb[0].mxu0
        %v6851 = vpop.f32.mrb[0].mxu0
        %v6852 = vadd.f32 0.0, %v6851
        %v6853 = vpop.f32.mrb[0].mxu0
        %6854 = vmatprep.mubr.bf16.mxu0 0
        %6855 = vmatmul.mubr.bf16.gmra.mrb[0].mxu0 %v6550
        %v6856 = vpop.f32.mrb[0].mxu0
        %v6857 = vadd.f32 0.0, %v6856
        %v6858 = vpop.f32.mrb[0].mxu0
        %v6859 = vpop.f32.mrb[0].mxu0
        %v6860 = vadd.f32 0.0, %v6859
        %v6861 = vpop.f32.mrb[0].mxu0
        %6862 = vmatprep.mubr.bf16.mxu0 0
        %6863 = vmatmul.mubr.bf16.gmra.mrb[0].mxu0 %v6551
        %v6864 = vpop.f32.mrb[0].mxu0
        %v6865 = vadd.f32 0.0, %v6864
        %v6866 = vpop.f32.mrb[0].mxu0
        %v6867 = vpop.f32.mrb[0].mxu0
        %v6868 = vadd.f32 0.0, %v6867
        %v6869 = vpop.f32.mrb[0].mxu0
        %6870 = vmatprep.mubr.bf16.mxu0 0
        %6871 = vmatmul.mubr.bf16.gmra.mrb[0].mxu0 %v6552
        %v6872 = vpop.f32.mrb[0].mxu0
        %v6873 = vadd.f32 0.0, %v6872
        %v6874 = vpop.f32.mrb[0].mxu0
        %v6875 = vpop.f32.mrb[0].mxu0
        %v6876 = vadd.f32 0.0, %v6875
        %v6877 = vpop.f32.mrb[0].mxu0
        %6878 = vmatprep.mubr.bf16.mxu0 0
        %6879 = vmatmul.mubr.bf16.gmra.mrb[0].mxu0 %v6553
        %v6880 = vpop.f32.mrb[0].mxu0
        %v6881 = vadd.f32 0.0, %v6880
        %v6882 = vpop.f32.mrb[0].mxu0
        %v6883 = vpop.f32.mrb[0].mxu0
        %v6884 = vadd.f32 0.0, %v6883
        %v6885 = vpop.f32.mrb[0].mxu0
        %6886 = vmatprep.mubr.bf16.mxu0 0
        %6887 = vmatmul.mubr.bf16.gmra.mrb[0].mxu0 %v6554
        %v6888 = vpop.f32.mrb[0].mxu0
        %v6889 = vadd.f32 0.0, %v6888
        %v6890 = vpop.f32.mrb[0].mxu0
        %v6891 = vpop.f32.mrb[0].mxu0
        %v6892 = vadd.f32 0.0, %v6891
        %v6893 = vpop.f32.mrb[0].mxu0
        %6894 = vmatprep.mubr.bf16.mxu0 0
        %6895 = vmatmul.mubr.bf16.gmra.mrb[0].mxu0 %v6555
        %v6896 = vpop.f32.mrb[0].mxu0
        %v6897 = vadd.f32 0.0, %v6896
        %v6898 = vpop.f32.mrb[0].mxu0
        %v6899 = vpop.f32.mrb[0].mxu0
        %v6900 = vadd.f32 0.0, %v6899
        %v6901 = vpop.f32.mrb[0].mxu0
        %6902 = vmatprep.mubr.bf16.mxu0 0
        %6903 = vmatmul.mubr.bf16.gmra.mrb[0].mxu0 %v6556
        %v6904 = vpop.f32.mrb[0].mxu0
        %v6905 = vadd.f32 0.0, %v6904
        %v6906 = vpop.f32.mrb[0].mxu0
        %v6907 = vpop.f32.mrb[0].mxu0
        %v6908 = vadd.f32 0.0, %v6907
        %v6909 = vpop.f32.mrb[0].mxu0
        %6910 = vdwg.mxu0
        %v6911 = vadd.f32 %v6461, %v6657
        %v6912 = vadd.f32 %v6462, %v6660
        %v6913 = vadd.f32 %v6463, %v6665
        %v6914 = vadd.f32 %v6464, %v6668
        %v6915 = vadd.f32 %v6465, %v6673
        %v6916 = vadd.f32 %v6466, %v6676
        %v6917 = vadd.f32 %v6467, %v6681
        %v6918 = vadd.f32 %v6468, %v6684
        %v6919 = vadd.f32 %v6469, %v6689
        %v6920 = vadd.f32 %v6470, %v6692
        %v6921 = vadd.f32 %v6471, %v6697
        %v6922 = vadd.f32 %v6472, %v6700
        %v6923 = vadd.f32 %v6473, %v6705
        %v6924 = vadd.f32 %v6474, %v6708
        %v6925 = vadd.f32 %v6475, %v6713
        %v6926 = vadd.f32 %v6476, %v6716
        %v6927 = vadd.f32 %v6477, %v6721
        %v6928 = vadd.f32 %v6478, %v6724
        %v6929 = vadd.f32 %v6479, %v6729
        %v6930 = vadd.f32 %v6480, %v6732
        %v6931 = vadd.f32 %v6481, %v6737
        %v6932 = vadd.f32 %v6482, %v6740
        %v6933 = vadd.f32 %v6483, %v6745
        %v6934 = vadd.f32 %v6484, %v6748
        %v6935 = vadd.f32 %v6485, %v6753
        %v6936 = vadd.f32 %v6486, %v6756
        %v6937 = vadd.f32 %v6487, %v6761
        %v6938 = vadd.f32 %v6488, %v6764
        %v6939 = vadd.f32 %v6489, %v6769
        %v6940 = vadd.f32 %v6490, %v6772
        %v6941 = vadd.f32 %v6491, %v6777
        %v6942 = vadd.f32 %v6492, %v6780
        %v6943 = vadd.f32 %v6493, %v6785
        %v6944 = vadd.f32 %v6494, %v6788
        %v6945 = vadd.f32 %v6495, %v6793
        %v6946 = vadd.f32 %v6496, %v6796
        %v6947 = vadd.f32 %v6497, %v6801
        %v6948 = vadd.f32 %v6498, %v6804
        %v6949 = vadd.f32 %v6499, %v6809
        %v6950 = vadd.f32 %v6500, %v6812
        %v6951 = vadd.f32 %v6501, %v6817
        %v6952 = vadd.f32 %v6502, %v6820
        %v6953 = vadd.f32 %v6503, %v6825
        %v6954 = vadd.f32 %v6504, %v6828
        %v6955 = vadd.f32 %v6505, %v6833
        %v6956 = vadd.f32 %v6506, %v6836
        %v6957 = vadd.f32 %v6507, %v6841
        %v6958 = vadd.f32 %v6508, %v6844
        %v6959 = vadd.f32 %v6509, %v6849
        %v6960 = vadd.f32 %v6510, %v6852
        %v6961 = vadd.f32 %v6511, %v6857
        %v6962 = vadd.f32 %v6512, %v6860
        %v6963 = vadd.f32 %v6513, %v6865
        %v6964 = vadd.f32 %v6514, %v6868
        %v6965 = vadd.f32 %v6515, %v6873
        %v6966 = vadd.f32 %v6516, %v6876
        %v6967 = vadd.f32 %v6517, %v6881
        %v6968 = vadd.f32 %v6518, %v6884
        %v6969 = vadd.f32 %v6519, %v6889
        %v6970 = vadd.f32 %v6520, %v6892
        %v6971 = vadd.f32 %v6521, %v6897
        %v6972 = vadd.f32 %v6522, %v6900
        %v6973 = vadd.f32 %v6523, %v6905
        %v6974 = vadd.f32 %v6524, %v6908
        %6975 = vst.msk [vmem:[#allocation3 + $0x200] sm:$0xff] %vm2821, %v6911
        %6976 = vst.msk [vmem:[#allocation3 + $0x208] sm:$0xff] %vm2821, %v6912
        %6977 = vst.msk [vmem:[#allocation3 + $0x210] sm:$0xff] %vm2821, %v6913
        %6978 = vst.msk [vmem:[#allocation3 + $0x218] sm:$0xff] %vm2821, %v6914
        %6979 = vst.msk [vmem:[#allocation3 + $0x220] sm:$0xff] %vm2821, %v6915
        %6980 = vst.msk [vmem:[#allocation3 + $0x228] sm:$0xff] %vm2821, %v6916
        %6981 = vst.msk [vmem:[#allocation3 + $0x230] sm:$0xff] %vm2821, %v6917
        %6982 = vst.msk [vmem:[#allocation3 + $0x238] sm:$0xff] %vm2821, %v6918
        %6983 = vst.msk [vmem:[#allocation3 + $0x240] sm:$0xff] %vm2821, %v6919
        %6984 = vst.msk [vmem:[#allocation3 + $0x248] sm:$0xff] %vm2821, %v6920
        %6985 = vst.msk [vmem:[#allocation3 + $0x250] sm:$0xff] %vm2821, %v6921
        %6986 = vst.msk [vmem:[#allocation3 + $0x258] sm:$0xff] %vm2821, %v6922
        %6987 = vst.msk [vmem:[#allocation3 + $0x260] sm:$0xff] %vm2821, %v6923
        %6988 = vst.msk [vmem:[#allocation3 + $0x268] sm:$0xff] %vm2821, %v6924
        %6989 = vst.msk [vmem:[#allocation3 + $0x270] sm:$0xff] %vm2821, %v6925
        %6990 = vst.msk [vmem:[#allocation3 + $0x278] sm:$0xff] %vm2821, %v6926
        %6991 = vst.msk [vmem:[#allocation3 + $0x280] sm:$0xff] %vm2821, %v6927
        %6992 = vst.msk [vmem:[#allocation3 + $0x288] sm:$0xff] %vm2821, %v6928
        %6993 = vst.msk [vmem:[#allocation3 + $0x290] sm:$0xff] %vm2821, %v6929
        %6994 = vst.msk [vmem:[#allocation3 + $0x298] sm:$0xff] %vm2821, %v6930
        %6995 = vst.msk [vmem:[#allocation3 + $0x2a0] sm:$0xff] %vm2821, %v6931
        %6996 = vst.msk [vmem:[#allocation3 + $0x2a8] sm:$0xff] %vm2821, %v6932
        %6997 = vst.msk [vmem:[#allocation3 + $0x2b0] sm:$0xff] %vm2821, %v6933
        %6998 = vst.msk [vmem:[#allocation3 + $0x2b8] sm:$0xff] %vm2821, %v6934
        %6999 = vst.msk [vmem:[#allocation3 + $0x2c0] sm:$0xff] %vm2821, %v6935
        %7000 = vst.msk [vmem:[#allocation3 + $0x2c8] sm:$0xff] %vm2821, %v6936
        %7001 = vst.msk [vmem:[#allocation3 + $0x2d0] sm:$0xff] %vm2821, %v6937
        %7002 = vst.msk [vmem:[#allocation3 + $0x2d8] sm:$0xff] %vm2821, %v6938
        %7003 = vst.msk [vmem:[#allocation3 + $0x2e0] sm:$0xff] %vm2821, %v6939
        %7004 = vst.msk [vmem:[#allocation3 + $0x2e8] sm:$0xff] %vm2821, %v6940
        %7005 = vst.msk [vmem:[#allocation3 + $0x2f0] sm:$0xff] %vm2821, %v6941
        %7006 = vst.msk [vmem:[#allocation3 + $0x2f8] sm:$0xff] %vm2821, %v6942
        %7007 = vst.msk [vmem:[#allocation3 + $0x300] sm:$0xff] %vm2821, %v6943
        %7008 = vst.msk [vmem:[#allocation3 + $0x308] sm:$0xff] %vm2821, %v6944
        %7009 = vst.msk [vmem:[#allocation3 + $0x310] sm:$0xff] %vm2821, %v6945
        %7010 = vst.msk [vmem:[#allocation3 + $0x318] sm:$0xff] %vm2821, %v6946
        %7011 = vst.msk [vmem:[#allocation3 + $0x320] sm:$0xff] %vm2821, %v6947
        %7012 = vst.msk [vmem:[#allocation3 + $0x328] sm:$0xff] %vm2821, %v6948
        %7013 = vst.msk [vmem:[#allocation3 + $0x330] sm:$0xff] %vm2821, %v6949
        %7014 = vst.msk [vmem:[#allocation3 + $0x338] sm:$0xff] %vm2821, %v6950
        %7015 = vst.msk [vmem:[#allocation3 + $0x340] sm:$0xff] %vm2821, %v6951
        %7016 = vst.msk [vmem:[#allocation3 + $0x348] sm:$0xff] %vm2821, %v6952
        %7017 = vst.msk [vmem:[#allocation3 + $0x350] sm:$0xff] %vm2821, %v6953
        %7018 = vst.msk [vmem:[#allocation3 + $0x358] sm:$0xff] %vm2821, %v6954
        %7019 = vst.msk [vmem:[#allocation3 + $0x360] sm:$0xff] %vm2821, %v6955
        %7020 = vst.msk [vmem:[#allocation3 + $0x368] sm:$0xff] %vm2821, %v6956
        %7021 = vst.msk [vmem:[#allocation3 + $0x370] sm:$0xff] %vm2821, %v6957
        %7022 = vst.msk [vmem:[#allocation3 + $0x378] sm:$0xff] %vm2821, %v6958
        %7023 = vst.msk [vmem:[#allocation3 + $0x380] sm:$0xff] %vm2821, %v6959
        %7024 = vst.msk [vmem:[#allocation3 + $0x388] sm:$0xff] %vm2821, %v6960
        %7025 = vst.msk [vmem:[#allocation3 + $0x390] sm:$0xff] %vm2821, %v6961
        %7026 = vst.msk [vmem:[#allocation3 + $0x398] sm:$0xff] %vm2821, %v6962
        %7027 = vst.msk [vmem:[#allocation3 + $0x3a0] sm:$0xff] %vm2821, %v6963
        %7028 = vst.msk [vmem:[#allocation3 + $0x3a8] sm:$0xff] %vm2821, %v6964
        %7029 = vst.msk [vmem:[#allocation3 + $0x3b0] sm:$0xff] %vm2821, %v6965
        %7030 = vst.msk [vmem:[#allocation3 + $0x3b8] sm:$0xff] %vm2821, %v6966
        %7031 = vst.msk [vmem:[#allocation3 + $0x3c0] sm:$0xff] %vm2821, %v6967
        %7032 = vst.msk [vmem:[#allocation3 + $0x3c8] sm:$0xff] %vm2821, %v6968
        %7033 = vst.msk [vmem:[#allocation3 + $0x3d0] sm:$0xff] %vm2821, %v6969
        %7034 = vst.msk [vmem:[#allocation3 + $0x3d8] sm:$0xff] %vm2821, %v6970
        %7035 = vst.msk [vmem:[#allocation3 + $0x3e0] sm:$0xff] %vm2821, %v6971
        %7036 = vst.msk [vmem:[#allocation3 + $0x3e8] sm:$0xff] %vm2821, %v6972
        %7037 = vst.msk [vmem:[#allocation3 + $0x3f0] sm:$0xff] %vm2821, %v6973
        %7038 = vst.msk [vmem:[#allocation3 + $0x3f8] sm:$0xff] %vm2821, %v6974
        %v7039 = vld [vmem:[#allocation3] sm:$0xff]
        %v7040 = vld [vmem:[#allocation3 + $0x8] sm:$0xff]
        %v7041 = vld [vmem:[#allocation3 + $0x10] sm:$0xff]
        %v7042 = vld [vmem:[#allocation3 + $0x18] sm:$0xff]
        %v7043 = vld [vmem:[#allocation3 + $0x20] sm:$0xff]
        %v7044 = vld [vmem:[#allocation3 + $0x28] sm:$0xff]
        %v7045 = vld [vmem:[#allocation3 + $0x30] sm:$0xff]
        %v7046 = vld [vmem:[#allocation3 + $0x38] sm:$0xff]
        %v7047 = vld [vmem:[#allocation3 + $0x40] sm:$0xff]
        %v7048 = vld [vmem:[#allocation3 + $0x48] sm:$0xff]
        %v7049 = vld [vmem:[#allocation3 + $0x50] sm:$0xff]
        %v7050 = vld [vmem:[#allocation3 + $0x58] sm:$0xff]
        %v7051 = vld [vmem:[#allocation3 + $0x60] sm:$0xff]
        %v7052 = vld [vmem:[#allocation3 + $0x68] sm:$0xff]
        %v7053 = vld [vmem:[#allocation3 + $0x70] sm:$0xff]
        %v7054 = vld [vmem:[#allocation3 + $0x78] sm:$0xff]
        %v7055 = vld [vmem:[#allocation3 + $0x80] sm:$0xff]
        %v7056 = vld [vmem:[#allocation3 + $0x88] sm:$0xff]
        %v7057 = vld [vmem:[#allocation3 + $0x90] sm:$0xff]
        %v7058 = vld [vmem:[#allocation3 + $0x98] sm:$0xff]
        %v7059 = vld [vmem:[#allocation3 + $0xa0] sm:$0xff]
        %v7060 = vld [vmem:[#allocation3 + $0xa8] sm:$0xff]
        %v7061 = vld [vmem:[#allocation3 + $0xb0] sm:$0xff]
        %v7062 = vld [vmem:[#allocation3 + $0xb8] sm:$0xff]
        %v7063 = vld [vmem:[#allocation3 + $0xc0] sm:$0xff]
        %v7064 = vld [vmem:[#allocation3 + $0xc8] sm:$0xff]
        %v7065 = vld [vmem:[#allocation3 + $0xd0] sm:$0xff]
        %v7066 = vld [vmem:[#allocation3 + $0xd8] sm:$0xff]
        %v7067 = vld [vmem:[#allocation3 + $0xe0] sm:$0xff]
        %v7068 = vld [vmem:[#allocation3 + $0xe8] sm:$0xff]
        %v7069 = vld [vmem:[#allocation3 + $0xf0] sm:$0xff]
        %v7070 = vld [vmem:[#allocation3 + $0xf8] sm:$0xff]
        %v7071 = vld [vmem:[#allocation3 + $0x100] sm:$0xff]
        %v7072 = vld [vmem:[#allocation3 + $0x108] sm:$0xff]
        %v7073 = vld [vmem:[#allocation3 + $0x110] sm:$0xff]
        %v7074 = vld [vmem:[#allocation3 + $0x118] sm:$0xff]
        %v7075 = vld [vmem:[#allocation3 + $0x120] sm:$0xff]
        %v7076 = vld [vmem:[#allocation3 + $0x128] sm:$0xff]
        %v7077 = vld [vmem:[#allocation3 + $0x130] sm:$0xff]
        %v7078 = vld [vmem:[#allocation3 + $0x138] sm:$0xff]
        %v7079 = vld [vmem:[#allocation3 + $0x140] sm:$0xff]
        %v7080 = vld [vmem:[#allocation3 + $0x148] sm:$0xff]
        %v7081 = vld [vmem:[#allocation3 + $0x150] sm:$0xff]
        %v7082 = vld [vmem:[#allocation3 + $0x158] sm:$0xff]
        %v7083 = vld [vmem:[#allocation3 + $0x160] sm:$0xff]
        %v7084 = vld [vmem:[#allocation3 + $0x168] sm:$0xff]
        %v7085 = vld [vmem:[#allocation3 + $0x170] sm:$0xff]
        %v7086 = vld [vmem:[#allocation3 + $0x178] sm:$0xff]
        %v7087 = vld [vmem:[#allocation3 + $0x180] sm:$0xff]
        %v7088 = vld [vmem:[#allocation3 + $0x188] sm:$0xff]
        %v7089 = vld [vmem:[#allocation3 + $0x190] sm:$0xff]
        %v7090 = vld [vmem:[#allocation3 + $0x198] sm:$0xff]
        %v7091 = vld [vmem:[#allocation3 + $0x1a0] sm:$0xff]
        %v7092 = vld [vmem:[#allocation3 + $0x1a8] sm:$0xff]
        %v7093 = vld [vmem:[#allocation3 + $0x1b0] sm:$0xff]
        %v7094 = vld [vmem:[#allocation3 + $0x1b8] sm:$0xff]
        %v7095 = vld [vmem:[#allocation3 + $0x1c0] sm:$0xff]
        %v7096 = vld [vmem:[#allocation3 + $0x1c8] sm:$0xff]
        %v7097 = vld [vmem:[#allocation3 + $0x1d0] sm:$0xff]
        %v7098 = vld [vmem:[#allocation3 + $0x1d8] sm:$0xff]
        %v7099 = vld [vmem:[#allocation3 + $0x1e0] sm:$0xff]
        %v7100 = vld [vmem:[#allocation3 + $0x1e8] sm:$0xff]
        %v7101 = vld [vmem:[#allocation3 + $0x1f0] sm:$0xff]
        %v7102 = vld [vmem:[#allocation3 + $0x1f8] sm:$0xff]
        %v7103 = vld [vmem:[#allocation2 + $0x100] sm:$0xff]
        %v7104 = vld [vmem:[#allocation2 + $0x108] sm:$0xff]
        %v7105 = vld [vmem:[#allocation2 + $0x110] sm:$0xff]
        %v7106 = vld [vmem:[#allocation2 + $0x118] sm:$0xff]
        %v7107 = vld [vmem:[#allocation2 + $0x120] sm:$0xff]
        %v7108 = vld [vmem:[#allocation2 + $0x128] sm:$0xff]
        %v7109 = vld [vmem:[#allocation2 + $0x130] sm:$0xff]
        %v7110 = vld [vmem:[#allocation2 + $0x138] sm:$0xff]
        %v7111 = vld [vmem:[#allocation2 + $0x140] sm:$0xff]
        %v7112 = vld [vmem:[#allocation2 + $0x148] sm:$0xff]
        %v7113 = vld [vmem:[#allocation2 + $0x150] sm:$0xff]
        %v7114 = vld [vmem:[#allocation2 + $0x158] sm:$0xff]
        %v7115 = vld [vmem:[#allocation2 + $0x160] sm:$0xff]
        %v7116 = vld [vmem:[#allocation2 + $0x168] sm:$0xff]
        %v7117 = vld [vmem:[#allocation2 + $0x170] sm:$0xff]
        %v7118 = vld [vmem:[#allocation2 + $0x178] sm:$0xff]
        %v7119 = vld [vmem:[#allocation2 + $0x180] sm:$0xff]
        %v7120 = vld [vmem:[#allocation2 + $0x188] sm:$0xff]
        %v7121 = vld [vmem:[#allocation2 + $0x190] sm:$0xff]
        %v7122 = vld [vmem:[#allocation2 + $0x198] sm:$0xff]
        %v7123 = vld [vmem:[#allocation2 + $0x1a0] sm:$0xff]
        %v7124 = vld [vmem:[#allocation2 + $0x1a8] sm:$0xff]
        %v7125 = vld [vmem:[#allocation2 + $0x1b0] sm:$0xff]
        %v7126 = vld [vmem:[#allocation2 + $0x1b8] sm:$0xff]
        %v7127 = vld [vmem:[#allocation2 + $0x1c0] sm:$0xff]
        %v7128 = vld [vmem:[#allocation2 + $0x1c8] sm:$0xff]
        %v7129 = vld [vmem:[#allocation2 + $0x1d0] sm:$0xff]
        %v7130 = vld [vmem:[#allocation2 + $0x1d8] sm:$0xff]
        %v7131 = vld [vmem:[#allocation2 + $0x1e0] sm:$0xff]
        %v7132 = vld [vmem:[#allocation2 + $0x1e8] sm:$0xff]
        %v7133 = vld [vmem:[#allocation2 + $0x1f0] sm:$0xff]
        %v7134 = vld [vmem:[#allocation2 + $0x1f8] sm:$0xff]
        %s7135 = scalar_lea.vmem %s3, 320
        %v7136 = vld [vmem:[%s7135] sm:$0xf]
        %v7137 = vld [vmem:[%s7135 + $0x4] sm:$0xf]
        %v7138 = vld [vmem:[%s7135 + $0x8] sm:$0xf]
        %v7139 = vld [vmem:[%s7135 + $0xc] sm:$0xf]
        %v7140 = vld [vmem:[%s7135 + $0x10] sm:$0xf]
        %v7141 = vld [vmem:[%s7135 + $0x14] sm:$0xf]
        %v7142 = vld [vmem:[%s7135 + $0x18] sm:$0xf]
        %v7143 = vld [vmem:[%s7135 + $0x1c] sm:$0xf]
        %v7144 = vld [vmem:[%s7135 + $0x20] sm:$0xf]
        %v7145 = vld [vmem:[%s7135 + $0x24] sm:$0xf]
        %v7146 = vld [vmem:[%s7135 + $0x28] sm:$0xf]
        %v7147 = vld [vmem:[%s7135 + $0x2c] sm:$0xf]
        %v7148 = vld [vmem:[%s7135 + $0x30] sm:$0xf]
        %v7149 = vld [vmem:[%s7135 + $0x34] sm:$0xf]
        %v7150 = vld [vmem:[%s7135 + $0x38] sm:$0xf]
        %v7151 = vld [vmem:[%s7135 + $0x3c] sm:$0xf]
        %v7168 = vunpack.c.l.b16 %v7136
        %v7169 = vunpack.c.l.b16 %v7137
        %v7170 = vunpack.c.l.b16 %v7138
        %v7171 = vunpack.c.l.b16 %v7139
        %v7172 = vunpack.c.l.b16 %v7140
        %v7173 = vunpack.c.l.b16 %v7141
        %v7174 = vunpack.c.l.b16 %v7142
        %v7175 = vunpack.c.l.b16 %v7143
        %v7176 = vunpack.c.l.b16 %v7144
        %v7177 = vunpack.c.l.b16 %v7145
        %v7178 = vunpack.c.l.b16 %v7146
        %v7179 = vunpack.c.l.b16 %v7147
        %v7180 = vunpack.c.l.b16 %v7148
        %v7181 = vunpack.c.l.b16 %v7149
        %v7182 = vunpack.c.l.b16 %v7150
        %v7183 = vunpack.c.l.b16 %v7151
        %v7184 = vpack.c.b16 %v7169, %v7168
        %v7185 = vpack.c.b16 %v7171, %v7170
        %v7186 = vpack.c.b16 %v7173, %v7172
        %v7187 = vpack.c.b16 %v7175, %v7174
        %v7188 = vpack.c.b16 %v7177, %v7176
        %v7189 = vpack.c.b16 %v7179, %v7178
        %v7190 = vpack.c.b16 %v7181, %v7180
        %v7191 = vpack.c.b16 %v7183, %v7182
        %7200 = vmatprep.subr.bf16.mxu0 0
        %7201 = vmatpush1.bf16.msra.mxu0 %v7184
        %7202 = vmatprep.subr.bf16.mxu0 0
        %7203 = vmatpush1.bf16.msra.mxu0 %v7185
        %7204 = vmatprep.subr.bf16.mxu0 0
        %7205 = vmatpush1.bf16.msra.mxu0 %v7186
        %7206 = vmatprep.subr.bf16.mxu0 0
        %7207 = vmatpush1.bf16.msra.mxu0 %v7187
        %7208 = vmatprep.subr.bf16.mxu0 0
        %7209 = vmatpush1.bf16.msra.mxu0 %v7188
        %7210 = vmatprep.subr.bf16.mxu0 0
        %7211 = vmatpush1.bf16.msra.mxu0 %v7189
        %7212 = vmatprep.subr.bf16.mxu0 0
        %7213 = vmatpush1.bf16.msra.mxu0 %v7190
        %7214 = vmatprep.subr.bf16.mxu0 0
        %7215 = vmatpush1.bf16.msra.mxu0 %v7191
        %7216 = vmatprep.subr.bf16.mxu0 0
        %7217 = vmatpush1.bf16.msra.mxu0 0
        %7218 = vmatprep.subr.bf16.mxu0 0
        %7219 = vmatpush1.bf16.msra.mxu0 0
        %7220 = vmatprep.subr.bf16.mxu0 0
        %7221 = vmatpush1.bf16.msra.mxu0 0
        %7222 = vmatprep.subr.bf16.mxu0 0
        %7223 = vmatpush1.bf16.msra.mxu0 0
        %7224 = vmatprep.subr.bf16.mxu0 0
        %7225 = vmatpush1.bf16.msra.mxu0 0
        %7226 = vmatprep.subr.bf16.mxu0 0
        %7227 = vmatpush1.bf16.msra.mxu0 0
        %7228 = vmatprep.subr.bf16.mxu0 0
        %7229 = vmatpush1.bf16.msra.mxu0 0
        %7230 = vmatprep.subr.bf16.mxu0 0
        %7231 = vmatpush1.bf16.msra.mxu0 0
        %7232 = vmatprep.mubr.bf16.mxu0 0
        %7233 = vmatmul.mubr.bf16.gmra.mrb[0].mxu0 %v7103
        %v7234 = vpop.f32.mrb[0].mxu0
        %v7235 = vadd.f32 0.0, %v7234
        %v7236 = vpop.f32.mrb[0].mxu0
        %v7237 = vpop.f32.mrb[0].mxu0
        %v7238 = vadd.f32 0.0, %v7237
        %v7239 = vpop.f32.mrb[0].mxu0
        %7240 = vmatprep.mubr.bf16.mxu0 0
        %7241 = vmatmul.mubr.bf16.gmra.mrb[0].mxu0 %v7104
        %v7242 = vpop.f32.mrb[0].mxu0
        %v7243 = vadd.f32 0.0, %v7242
        %v7244 = vpop.f32.mrb[0].mxu0
        %v7245 = vpop.f32.mrb[0].mxu0
        %v7246 = vadd.f32 0.0, %v7245
        %v7247 = vpop.f32.mrb[0].mxu0
        %7248 = vmatprep.mubr.bf16.mxu0 0
        %7249 = vmatmul.mubr.bf16.gmra.mrb[0].mxu0 %v7105
        %v7250 = vpop.f32.mrb[0].mxu0
        %v7251 = vadd.f32 0.0, %v7250
        %v7252 = vpop.f32.mrb[0].mxu0
        %v7253 = vpop.f32.mrb[0].mxu0
        %v7254 = vadd.f32 0.0, %v7253
        %v7255 = vpop.f32.mrb[0].mxu0
        %7256 = vmatprep.mubr.bf16.mxu0 0
        %7257 = vmatmul.mubr.bf16.gmra.mrb[0].mxu0 %v7106
        %v7258 = vpop.f32.mrb[0].mxu0
        %v7259 = vadd.f32 0.0, %v7258
        %v7260 = vpop.f32.mrb[0].mxu0
        %v7261 = vpop.f32.mrb[0].mxu0
        %v7262 = vadd.f32 0.0, %v7261
        %v7263 = vpop.f32.mrb[0].mxu0
        %7264 = vmatprep.mubr.bf16.mxu0 0
        %7265 = vmatmul.mubr.bf16.gmra.mrb[0].mxu0 %v7107
        %v7266 = vpop.f32.mrb[0].mxu0
        %v7267 = vadd.f32 0.0, %v7266
        %v7268 = vpop.f32.mrb[0].mxu0
        %v7269 = vpop.f32.mrb[0].mxu0
        %v7270 = vadd.f32 0.0, %v7269
        %v7271 = vpop.f32.mrb[0].mxu0
        %7272 = vmatprep.mubr.bf16.mxu0 0
        %7273 = vmatmul.mubr.bf16.gmra.mrb[0].mxu0 %v7108
        %v7274 = vpop.f32.mrb[0].mxu0
        %v7275 = vadd.f32 0.0, %v7274
        %v7276 = vpop.f32.mrb[0].mxu0
        %v7277 = vpop.f32.mrb[0].mxu0
        %v7278 = vadd.f32 0.0, %v7277
        %v7279 = vpop.f32.mrb[0].mxu0
        %7280 = vmatprep.mubr.bf16.mxu0 0
        %7281 = vmatmul.mubr.bf16.gmra.mrb[0].mxu0 %v7109
        %v7282 = vpop.f32.mrb[0].mxu0
        %v7283 = vadd.f32 0.0, %v7282
        %v7284 = vpop.f32.mrb[0].mxu0
        %v7285 = vpop.f32.mrb[0].mxu0
        %v7286 = vadd.f32 0.0, %v7285
        %v7287 = vpop.f32.mrb[0].mxu0
        %7288 = vmatprep.mubr.bf16.mxu0 0
        %7289 = vmatmul.mubr.bf16.gmra.mrb[0].mxu0 %v7110
        %v7290 = vpop.f32.mrb[0].mxu0
        %v7291 = vadd.f32 0.0, %v7290
        %v7292 = vpop.f32.mrb[0].mxu0
        %v7293 = vpop.f32.mrb[0].mxu0
        %v7294 = vadd.f32 0.0, %v7293
        %v7295 = vpop.f32.mrb[0].mxu0
        %7296 = vmatprep.mubr.bf16.mxu0 0
        %7297 = vmatmul.mubr.bf16.gmra.mrb[0].mxu0 %v7111
        %v7298 = vpop.f32.mrb[0].mxu0
        %v7299 = vadd.f32 0.0, %v7298
        %v7300 = vpop.f32.mrb[0].mxu0
        %v7301 = vpop.f32.mrb[0].mxu0
        %v7302 = vadd.f32 0.0, %v7301
        %v7303 = vpop.f32.mrb[0].mxu0
        %7304 = vmatprep.mubr.bf16.mxu0 0
        %7305 = vmatmul.mubr.bf16.gmra.mrb[0].mxu0 %v7112
        %v7306 = vpop.f32.mrb[0].mxu0
        %v7307 = vadd.f32 0.0, %v7306
        %v7308 = vpop.f32.mrb[0].mxu0
        %v7309 = vpop.f32.mrb[0].mxu0
        %v7310 = vadd.f32 0.0, %v7309
        %v7311 = vpop.f32.mrb[0].mxu0
        %7312 = vmatprep.mubr.bf16.mxu0 0
        %7313 = vmatmul.mubr.bf16.gmra.mrb[0].mxu0 %v7113
        %v7314 = vpop.f32.mrb[0].mxu0
        %v7315 = vadd.f32 0.0, %v7314
        %v7316 = vpop.f32.mrb[0].mxu0
        %v7317 = vpop.f32.mrb[0].mxu0
        %v7318 = vadd.f32 0.0, %v7317
        %v7319 = vpop.f32.mrb[0].mxu0
        %7320 = vmatprep.mubr.bf16.mxu0 0
        %7321 = vmatmul.mubr.bf16.gmra.mrb[0].mxu0 %v7114
        %v7322 = vpop.f32.mrb[0].mxu0
        %v7323 = vadd.f32 0.0, %v7322
        %v7324 = vpop.f32.mrb[0].mxu0
        %v7325 = vpop.f32.mrb[0].mxu0
        %v7326 = vadd.f32 0.0, %v7325
        %v7327 = vpop.f32.mrb[0].mxu0
        %7328 = vmatprep.mubr.bf16.mxu0 0
        %7329 = vmatmul.mubr.bf16.gmra.mrb[0].mxu0 %v7115
        %v7330 = vpop.f32.mrb[0].mxu0
        %v7331 = vadd.f32 0.0, %v7330
        %v7332 = vpop.f32.mrb[0].mxu0
        %v7333 = vpop.f32.mrb[0].mxu0
        %v7334 = vadd.f32 0.0, %v7333
        %v7335 = vpop.f32.mrb[0].mxu0
        %7336 = vmatprep.mubr.bf16.mxu0 0
        %7337 = vmatmul.mubr.bf16.gmra.mrb[0].mxu0 %v7116
        %v7338 = vpop.f32.mrb[0].mxu0
        %v7339 = vadd.f32 0.0, %v7338
        %v7340 = vpop.f32.mrb[0].mxu0
        %v7341 = vpop.f32.mrb[0].mxu0
        %v7342 = vadd.f32 0.0, %v7341
        %v7343 = vpop.f32.mrb[0].mxu0
        %7344 = vmatprep.mubr.bf16.mxu0 0
        %7345 = vmatmul.mubr.bf16.gmra.mrb[0].mxu0 %v7117
        %v7346 = vpop.f32.mrb[0].mxu0
        %v7347 = vadd.f32 0.0, %v7346
        %v7348 = vpop.f32.mrb[0].mxu0
        %v7349 = vpop.f32.mrb[0].mxu0
        %v7350 = vadd.f32 0.0, %v7349
        %v7351 = vpop.f32.mrb[0].mxu0
        %7352 = vmatprep.mubr.bf16.mxu0 0
        %7353 = vmatmul.mubr.bf16.gmra.mrb[0].mxu0 %v7118
        %v7354 = vpop.f32.mrb[0].mxu0
        %v7355 = vadd.f32 0.0, %v7354
        %v7356 = vpop.f32.mrb[0].mxu0
        %v7357 = vpop.f32.mrb[0].mxu0
        %v7358 = vadd.f32 0.0, %v7357
        %v7359 = vpop.f32.mrb[0].mxu0
        %7360 = vmatprep.mubr.bf16.mxu0 0
        %7361 = vmatmul.mubr.bf16.gmra.mrb[0].mxu0 %v7119
        %v7362 = vpop.f32.mrb[0].mxu0
        %v7363 = vadd.f32 0.0, %v7362
        %v7364 = vpop.f32.mrb[0].mxu0
        %v7365 = vpop.f32.mrb[0].mxu0
        %v7366 = vadd.f32 0.0, %v7365
        %v7367 = vpop.f32.mrb[0].mxu0
        %7368 = vmatprep.mubr.bf16.mxu0 0
        %7369 = vmatmul.mubr.bf16.gmra.mrb[0].mxu0 %v7120
        %v7370 = vpop.f32.mrb[0].mxu0
        %v7371 = vadd.f32 0.0, %v7370
        %v7372 = vpop.f32.mrb[0].mxu0
        %v7373 = vpop.f32.mrb[0].mxu0
        %v7374 = vadd.f32 0.0, %v7373
        %v7375 = vpop.f32.mrb[0].mxu0
        %7376 = vmatprep.mubr.bf16.mxu0 0
        %7377 = vmatmul.mubr.bf16.gmra.mrb[0].mxu0 %v7121
        %v7378 = vpop.f32.mrb[0].mxu0
        %v7379 = vadd.f32 0.0, %v7378
        %v7380 = vpop.f32.mrb[0].mxu0
        %v7381 = vpop.f32.mrb[0].mxu0
        %v7382 = vadd.f32 0.0, %v7381
        %v7383 = vpop.f32.mrb[0].mxu0
        %7384 = vmatprep.mubr.bf16.mxu0 0
        %7385 = vmatmul.mubr.bf16.gmra.mrb[0].mxu0 %v7122
        %v7386 = vpop.f32.mrb[0].mxu0
        %v7387 = vadd.f32 0.0, %v7386
        %v7388 = vpop.f32.mrb[0].mxu0
        %v7389 = vpop.f32.mrb[0].mxu0
        %v7390 = vadd.f32 0.0, %v7389
        %v7391 = vpop.f32.mrb[0].mxu0
        %7392 = vmatprep.mubr.bf16.mxu0 0
        %7393 = vmatmul.mubr.bf16.gmra.mrb[0].mxu0 %v7123
        %v7394 = vpop.f32.mrb[0].mxu0
        %v7395 = vadd.f32 0.0, %v7394
        %v7396 = vpop.f32.mrb[0].mxu0
        %v7397 = vpop.f32.mrb[0].mxu0
        %v7398 = vadd.f32 0.0, %v7397
        %v7399 = vpop.f32.mrb[0].mxu0
        %7400 = vmatprep.mubr.bf16.mxu0 0
        %7401 = vmatmul.mubr.bf16.gmra.mrb[0].mxu0 %v7124
        %v7402 = vpop.f32.mrb[0].mxu0
        %v7403 = vadd.f32 0.0, %v7402
        %v7404 = vpop.f32.mrb[0].mxu0
        %v7405 = vpop.f32.mrb[0].mxu0
        %v7406 = vadd.f32 0.0, %v7405
        %v7407 = vpop.f32.mrb[0].mxu0
        %7408 = vmatprep.mubr.bf16.mxu0 0
        %7409 = vmatmul.mubr.bf16.gmra.mrb[0].mxu0 %v7125
        %v7410 = vpop.f32.mrb[0].mxu0
        %v7411 = vadd.f32 0.0, %v7410
        %v7412 = vpop.f32.mrb[0].mxu0
        %v7413 = vpop.f32.mrb[0].mxu0
        %v7414 = vadd.f32 0.0, %v7413
        %v7415 = vpop.f32.mrb[0].mxu0
        %7416 = vmatprep.mubr.bf16.mxu0 0
        %7417 = vmatmul.mubr.bf16.gmra.mrb[0].mxu0 %v7126
        %v7418 = vpop.f32.mrb[0].mxu0
        %v7419 = vadd.f32 0.0, %v7418
        %v7420 = vpop.f32.mrb[0].mxu0
        %v7421 = vpop.f32.mrb[0].mxu0
        %v7422 = vadd.f32 0.0, %v7421
        %v7423 = vpop.f32.mrb[0].mxu0
        %7424 = vmatprep.mubr.bf16.mxu0 0
        %7425 = vmatmul.mubr.bf16.gmra.mrb[0].mxu0 %v7127
        %v7426 = vpop.f32.mrb[0].mxu0
        %v7427 = vadd.f32 0.0, %v7426
        %v7428 = vpop.f32.mrb[0].mxu0
        %v7429 = vpop.f32.mrb[0].mxu0
        %v7430 = vadd.f32 0.0, %v7429
        %v7431 = vpop.f32.mrb[0].mxu0
        %7432 = vmatprep.mubr.bf16.mxu0 0
        %7433 = vmatmul.mubr.bf16.gmra.mrb[0].mxu0 %v7128
        %v7434 = vpop.f32.mrb[0].mxu0
        %v7435 = vadd.f32 0.0, %v7434
        %v7436 = vpop.f32.mrb[0].mxu0
        %v7437 = vpop.f32.mrb[0].mxu0
        %v7438 = vadd.f32 0.0, %v7437
        %v7439 = vpop.f32.mrb[0].mxu0
        %7440 = vmatprep.mubr.bf16.mxu0 0
        %7441 = vmatmul.mubr.bf16.gmra.mrb[0].mxu0 %v7129
        %v7442 = vpop.f32.mrb[0].mxu0
        %v7443 = vadd.f32 0.0, %v7442
        %v7444 = vpop.f32.mrb[0].mxu0
        %v7445 = vpop.f32.mrb[0].mxu0
        %v7446 = vadd.f32 0.0, %v7445
        %v7447 = vpop.f32.mrb[0].mxu0
        %7448 = vmatprep.mubr.bf16.mxu0 0
        %7449 = vmatmul.mubr.bf16.gmra.mrb[0].mxu0 %v7130
        %v7450 = vpop.f32.mrb[0].mxu0
        %v7451 = vadd.f32 0.0, %v7450
        %v7452 = vpop.f32.mrb[0].mxu0
        %v7453 = vpop.f32.mrb[0].mxu0
        %v7454 = vadd.f32 0.0, %v7453
        %v7455 = vpop.f32.mrb[0].mxu0
        %7456 = vmatprep.mubr.bf16.mxu0 0
        %7457 = vmatmul.mubr.bf16.gmra.mrb[0].mxu0 %v7131
        %v7458 = vpop.f32.mrb[0].mxu0
        %v7459 = vadd.f32 0.0, %v7458
        %v7460 = vpop.f32.mrb[0].mxu0
        %v7461 = vpop.f32.mrb[0].mxu0
        %v7462 = vadd.f32 0.0, %v7461
        %v7463 = vpop.f32.mrb[0].mxu0
        %7464 = vmatprep.mubr.bf16.mxu0 0
        %7465 = vmatmul.mubr.bf16.gmra.mrb[0].mxu0 %v7132
        %v7466 = vpop.f32.mrb[0].mxu0
        %v7467 = vadd.f32 0.0, %v7466
        %v7468 = vpop.f32.mrb[0].mxu0
        %v7469 = vpop.f32.mrb[0].mxu0
        %v7470 = vadd.f32 0.0, %v7469
        %v7471 = vpop.f32.mrb[0].mxu0
        %7472 = vmatprep.mubr.bf16.mxu0 0
        %7473 = vmatmul.mubr.bf16.gmra.mrb[0].mxu0 %v7133
        %v7474 = vpop.f32.mrb[0].mxu0
        %v7475 = vadd.f32 0.0, %v7474
        %v7476 = vpop.f32.mrb[0].mxu0
        %v7477 = vpop.f32.mrb[0].mxu0
        %v7478 = vadd.f32 0.0, %v7477
        %v7479 = vpop.f32.mrb[0].mxu0
        %7480 = vmatprep.mubr.bf16.mxu0 0
        %7481 = vmatmul.mubr.bf16.gmra.mrb[0].mxu0 %v7134
        %v7482 = vpop.f32.mrb[0].mxu0
        %v7483 = vadd.f32 0.0, %v7482
        %v7484 = vpop.f32.mrb[0].mxu0
        %v7485 = vpop.f32.mrb[0].mxu0
        %v7486 = vadd.f32 0.0, %v7485
        %v7487 = vpop.f32.mrb[0].mxu0
        %7488 = vdwg.mxu0
        %v7489 = vadd.f32 %v7039, %v7235
        %v7490 = vadd.f32 %v7040, %v7238
        %v7491 = vadd.f32 %v7041, %v7243
        %v7492 = vadd.f32 %v7042, %v7246
        %v7493 = vadd.f32 %v7043, %v7251
        %v7494 = vadd.f32 %v7044, %v7254
        %v7495 = vadd.f32 %v7045, %v7259
        %v7496 = vadd.f32 %v7046, %v7262
        %v7497 = vadd.f32 %v7047, %v7267
        %v7498 = vadd.f32 %v7048, %v7270
        %v7499 = vadd.f32 %v7049, %v7275
        %v7500 = vadd.f32 %v7050, %v7278
        %v7501 = vadd.f32 %v7051, %v7283
        %v7502 = vadd.f32 %v7052, %v7286
        %v7503 = vadd.f32 %v7053, %v7291
        %v7504 = vadd.f32 %v7054, %v7294
        %v7505 = vadd.f32 %v7055, %v7299
        %v7506 = vadd.f32 %v7056, %v7302
        %v7507 = vadd.f32 %v7057, %v7307
        %v7508 = vadd.f32 %v7058, %v7310
        %v7509 = vadd.f32 %v7059, %v7315
        %v7510 = vadd.f32 %v7060, %v7318
        %v7511 = vadd.f32 %v7061, %v7323
        %v7512 = vadd.f32 %v7062, %v7326
        %v7513 = vadd.f32 %v7063, %v7331
        %v7514 = vadd.f32 %v7064, %v7334
        %v7515 = vadd.f32 %v7065, %v7339
        %v7516 = vadd.f32 %v7066, %v7342
        %v7517 = vadd.f32 %v7067, %v7347
        %v7518 = vadd.f32 %v7068, %v7350
        %v7519 = vadd.f32 %v7069, %v7355
        %v7520 = vadd.f32 %v7070, %v7358
        %v7521 = vadd.f32 %v7071, %v7363
        %v7522 = vadd.f32 %v7072, %v7366
        %v7523 = vadd.f32 %v7073, %v7371
        %v7524 = vadd.f32 %v7074, %v7374
        %v7525 = vadd.f32 %v7075, %v7379
        %v7526 = vadd.f32 %v7076, %v7382
        %v7527 = vadd.f32 %v7077, %v7387
        %v7528 = vadd.f32 %v7078, %v7390
        %v7529 = vadd.f32 %v7079, %v7395
        %v7530 = vadd.f32 %v7080, %v7398
        %v7531 = vadd.f32 %v7081, %v7403
        %v7532 = vadd.f32 %v7082, %v7406
        %v7533 = vadd.f32 %v7083, %v7411
        %v7534 = vadd.f32 %v7084, %v7414
        %v7535 = vadd.f32 %v7085, %v7419
        %v7536 = vadd.f32 %v7086, %v7422
        %v7537 = vadd.f32 %v7087, %v7427
        %v7538 = vadd.f32 %v7088, %v7430
        %v7539 = vadd.f32 %v7089, %v7435
        %v7540 = vadd.f32 %v7090, %v7438
        %v7541 = vadd.f32 %v7091, %v7443
        %v7542 = vadd.f32 %v7092, %v7446
        %v7543 = vadd.f32 %v7093, %v7451
        %v7544 = vadd.f32 %v7094, %v7454
        %v7545 = vadd.f32 %v7095, %v7459
        %v7546 = vadd.f32 %v7096, %v7462
        %v7547 = vadd.f32 %v7097, %v7467
        %v7548 = vadd.f32 %v7098, %v7470
        %v7549 = vadd.f32 %v7099, %v7475
        %v7550 = vadd.f32 %v7100, %v7478
        %v7551 = vadd.f32 %v7101, %v7483
        %v7552 = vadd.f32 %v7102, %v7486
        %7553 = vst.msk [vmem:[#allocation3] sm:$0xff] %vm2821, %v7489
        %7554 = vst.msk [vmem:[#allocation3 + $0x8] sm:$0xff] %vm2821, %v7490
        %7555 = vst.msk [vmem:[#allocation3 + $0x10] sm:$0xff] %vm2821, %v7491
        %7556 = vst.msk [vmem:[#allocation3 + $0x18] sm:$0xff] %vm2821, %v7492
        %7557 = vst.msk [vmem:[#allocation3 + $0x20] sm:$0xff] %vm2821, %v7493
        %7558 = vst.msk [vmem:[#allocation3 + $0x28] sm:$0xff] %vm2821, %v7494
        %7559 = vst.msk [vmem:[#allocation3 + $0x30] sm:$0xff] %vm2821, %v7495
        %7560 = vst.msk [vmem:[#allocation3 + $0x38] sm:$0xff] %vm2821, %v7496
        %7561 = vst.msk [vmem:[#allocation3 + $0x40] sm:$0xff] %vm2821, %v7497
        %7562 = vst.msk [vmem:[#allocation3 + $0x48] sm:$0xff] %vm2821, %v7498
        %7563 = vst.msk [vmem:[#allocation3 + $0x50] sm:$0xff] %vm2821, %v7499
        %7564 = vst.msk [vmem:[#allocation3 + $0x58] sm:$0xff] %vm2821, %v7500
        %7565 = vst.msk [vmem:[#allocation3 + $0x60] sm:$0xff] %vm2821, %v7501
        %7566 = vst.msk [vmem:[#allocation3 + $0x68] sm:$0xff] %vm2821, %v7502
        %7567 = vst.msk [vmem:[#allocation3 + $0x70] sm:$0xff] %vm2821, %v7503
        %7568 = vst.msk [vmem:[#allocation3 + $0x78] sm:$0xff] %vm2821, %v7504
        %7569 = vst.msk [vmem:[#allocation3 + $0x80] sm:$0xff] %vm2821, %v7505
        %7570 = vst.msk [vmem:[#allocation3 + $0x88] sm:$0xff] %vm2821, %v7506
        %7571 = vst.msk [vmem:[#allocation3 + $0x90] sm:$0xff] %vm2821, %v7507
        %7572 = vst.msk [vmem:[#allocation3 + $0x98] sm:$0xff] %vm2821, %v7508
        %7573 = vst.msk [vmem:[#allocation3 + $0xa0] sm:$0xff] %vm2821, %v7509
        %7574 = vst.msk [vmem:[#allocation3 + $0xa8] sm:$0xff] %vm2821, %v7510
        %7575 = vst.msk [vmem:[#allocation3 + $0xb0] sm:$0xff] %vm2821, %v7511
        %7576 = vst.msk [vmem:[#allocation3 + $0xb8] sm:$0xff] %vm2821, %v7512
        %7577 = vst.msk [vmem:[#allocation3 + $0xc0] sm:$0xff] %vm2821, %v7513
        %7578 = vst.msk [vmem:[#allocation3 + $0xc8] sm:$0xff] %vm2821, %v7514
        %7579 = vst.msk [vmem:[#allocation3 + $0xd0] sm:$0xff] %vm2821, %v7515
        %7580 = vst.msk [vmem:[#allocation3 + $0xd8] sm:$0xff] %vm2821, %v7516
        %7581 = vst.msk [vmem:[#allocation3 + $0xe0] sm:$0xff] %vm2821, %v7517
        %7582 = vst.msk [vmem:[#allocation3 + $0xe8] sm:$0xff] %vm2821, %v7518
        %7583 = vst.msk [vmem:[#allocation3 + $0xf0] sm:$0xff] %vm2821, %v7519
        %7584 = vst.msk [vmem:[#allocation3 + $0xf8] sm:$0xff] %vm2821, %v7520
        %7585 = vst.msk [vmem:[#allocation3 + $0x100] sm:$0xff] %vm2821, %v7521
        %7586 = vst.msk [vmem:[#allocation3 + $0x108] sm:$0xff] %vm2821, %v7522
        %7587 = vst.msk [vmem:[#allocation3 + $0x110] sm:$0xff] %vm2821, %v7523
        %7588 = vst.msk [vmem:[#allocation3 + $0x118] sm:$0xff] %vm2821, %v7524
        %7589 = vst.msk [vmem:[#allocation3 + $0x120] sm:$0xff] %vm2821, %v7525
        %7590 = vst.msk [vmem:[#allocation3 + $0x128] sm:$0xff] %vm2821, %v7526
        %7591 = vst.msk [vmem:[#allocation3 + $0x130] sm:$0xff] %vm2821, %v7527
        %7592 = vst.msk [vmem:[#allocation3 + $0x138] sm:$0xff] %vm2821, %v7528
        %7593 = vst.msk [vmem:[#allocation3 + $0x140] sm:$0xff] %vm2821, %v7529
        %7594 = vst.msk [vmem:[#allocation3 + $0x148] sm:$0xff] %vm2821, %v7530
        %7595 = vst.msk [vmem:[#allocation3 + $0x150] sm:$0xff] %vm2821, %v7531
        %7596 = vst.msk [vmem:[#allocation3 + $0x158] sm:$0xff] %vm2821, %v7532
        %7597 = vst.msk [vmem:[#allocation3 + $0x160] sm:$0xff] %vm2821, %v7533
        %7598 = vst.msk [vmem:[#allocation3 + $0x168] sm:$0xff] %vm2821, %v7534
        %7599 = vst.msk [vmem:[#allocation3 + $0x170] sm:$0xff] %vm2821, %v7535
        %7600 = vst.msk [vmem:[#allocation3 + $0x178] sm:$0xff] %vm2821, %v7536
        %7601 = vst.msk [vmem:[#allocation3 + $0x180] sm:$0xff] %vm2821, %v7537
        %7602 = vst.msk [vmem:[#allocation3 + $0x188] sm:$0xff] %vm2821, %v7538
        %7603 = vst.msk [vmem:[#allocation3 + $0x190] sm:$0xff] %vm2821, %v7539
        %7604 = vst.msk [vmem:[#allocation3 + $0x198] sm:$0xff] %vm2821, %v7540
        %7605 = vst.msk [vmem:[#allocation3 + $0x1a0] sm:$0xff] %vm2821, %v7541
        %7606 = vst.msk [vmem:[#allocation3 + $0x1a8] sm:$0xff] %vm2821, %v7542
        %7607 = vst.msk [vmem:[#allocation3 + $0x1b0] sm:$0xff] %vm2821, %v7543
        %7608 = vst.msk [vmem:[#allocation3 + $0x1b8] sm:$0xff] %vm2821, %v7544
        %7609 = vst.msk [vmem:[#allocation3 + $0x1c0] sm:$0xff] %vm2821, %v7545
        %7610 = vst.msk [vmem:[#allocation3 + $0x1c8] sm:$0xff] %vm2821, %v7546
        %7611 = vst.msk [vmem:[#allocation3 + $0x1d0] sm:$0xff] %vm2821, %v7547
        %7612 = vst.msk [vmem:[#allocation3 + $0x1d8] sm:$0xff] %vm2821, %v7548
        %7613 = vst.msk [vmem:[#allocation3 + $0x1e0] sm:$0xff] %vm2821, %v7549
        %7614 = vst.msk [vmem:[#allocation3 + $0x1e8] sm:$0xff] %vm2821, %v7550
        %7615 = vst.msk [vmem:[#allocation3 + $0x1f0] sm:$0xff] %vm2821, %v7551
        %7616 = vst.msk [vmem:[#allocation3 + $0x1f8] sm:$0xff] %vm2821, %v7552
        %v7617 = vld [vmem:[#allocation3] sm:$0xff]
        %v7618 = vld [vmem:[#allocation3 + $0x8] sm:$0xff]
        %v7619 = vld [vmem:[#allocation3 + $0x10] sm:$0xff]
        %v7620 = vld [vmem:[#allocation3 + $0x18] sm:$0xff]
        %v7621 = vld [vmem:[#allocation3 + $0x20] sm:$0xff]
        %v7622 = vld [vmem:[#allocation3 + $0x28] sm:$0xff]
        %v7623 = vld [vmem:[#allocation3 + $0x30] sm:$0xff]
        %v7624 = vld [vmem:[#allocation3 + $0x38] sm:$0xff]
        %v7625 = vld [vmem:[#allocation3 + $0x40] sm:$0xff]
        %v7626 = vld [vmem:[#allocation3 + $0x48] sm:$0xff]
        %v7627 = vld [vmem:[#allocation3 + $0x50] sm:$0xff]
        %v7628 = vld [vmem:[#allocation3 + $0x58] sm:$0xff]
        %v7629 = vld [vmem:[#allocation3 + $0x60] sm:$0xff]
        %v7630 = vld [vmem:[#allocation3 + $0x68] sm:$0xff]
        %v7631 = vld [vmem:[#allocation3 + $0x70] sm:$0xff]
        %v7632 = vld [vmem:[#allocation3 + $0x78] sm:$0xff]
        %v7633 = vld [vmem:[#allocation3 + $0x80] sm:$0xff]
        %v7634 = vld [vmem:[#allocation3 + $0x88] sm:$0xff]
        %v7635 = vld [vmem:[#allocation3 + $0x90] sm:$0xff]
        %v7636 = vld [vmem:[#allocation3 + $0x98] sm:$0xff]
        %v7637 = vld [vmem:[#allocation3 + $0xa0] sm:$0xff]
        %v7638 = vld [vmem:[#allocation3 + $0xa8] sm:$0xff]
        %v7639 = vld [vmem:[#allocation3 + $0xb0] sm:$0xff]
        %v7640 = vld [vmem:[#allocation3 + $0xb8] sm:$0xff]
        %v7641 = vld [vmem:[#allocation3 + $0xc0] sm:$0xff]
        %v7642 = vld [vmem:[#allocation3 + $0xc8] sm:$0xff]
        %v7643 = vld [vmem:[#allocation3 + $0xd0] sm:$0xff]
        %v7644 = vld [vmem:[#allocation3 + $0xd8] sm:$0xff]
        %v7645 = vld [vmem:[#allocation3 + $0xe0] sm:$0xff]
        %v7646 = vld [vmem:[#allocation3 + $0xe8] sm:$0xff]
        %v7647 = vld [vmem:[#allocation3 + $0xf0] sm:$0xff]
        %v7648 = vld [vmem:[#allocation3 + $0xf8] sm:$0xff]
        %v7649 = vld [vmem:[#allocation3 + $0x100] sm:$0xff]
        %v7650 = vld [vmem:[#allocation3 + $0x108] sm:$0xff]
        %v7651 = vld [vmem:[#allocation3 + $0x110] sm:$0xff]
        %v7652 = vld [vmem:[#allocation3 + $0x118] sm:$0xff]
        %v7653 = vld [vmem:[#allocation3 + $0x120] sm:$0xff]
        %v7654 = vld [vmem:[#allocation3 + $0x128] sm:$0xff]
        %v7655 = vld [vmem:[#allocation3 + $0x130] sm:$0xff]
        %v7656 = vld [vmem:[#allocation3 + $0x138] sm:$0xff]
        %v7657 = vld [vmem:[#allocation3 + $0x140] sm:$0xff]
        %v7658 = vld [vmem:[#allocation3 + $0x148] sm:$0xff]
        %v7659 = vld [vmem:[#allocation3 + $0x150] sm:$0xff]
        %v7660 = vld [vmem:[#allocation3 + $0x158] sm:$0xff]
        %v7661 = vld [vmem:[#allocation3 + $0x160] sm:$0xff]
        %v7662 = vld [vmem:[#allocation3 + $0x168] sm:$0xff]
        %v7663 = vld [vmem:[#allocation3 + $0x170] sm:$0xff]
        %v7664 = vld [vmem:[#allocation3 + $0x178] sm:$0xff]
        %v7665 = vld [vmem:[#allocation3 + $0x180] sm:$0xff]
        %v7666 = vld [vmem:[#allocation3 + $0x188] sm:$0xff]
        %v7667 = vld [vmem:[#allocation3 + $0x190] sm:$0xff]
        %v7668 = vld [vmem:[#allocation3 + $0x198] sm:$0xff]
        %v7669 = vld [vmem:[#allocation3 + $0x1a0] sm:$0xff]
        %v7670 = vld [vmem:[#allocation3 + $0x1a8] sm:$0xff]
        %v7671 = vld [vmem:[#allocation3 + $0x1b0] sm:$0xff]
        %v7672 = vld [vmem:[#allocation3 + $0x1b8] sm:$0xff]
        %v7673 = vld [vmem:[#allocation3 + $0x1c0] sm:$0xff]
        %v7674 = vld [vmem:[#allocation3 + $0x1c8] sm:$0xff]
        %v7675 = vld [vmem:[#allocation3 + $0x1d0] sm:$0xff]
        %v7676 = vld [vmem:[#allocation3 + $0x1d8] sm:$0xff]
        %v7677 = vld [vmem:[#allocation3 + $0x1e0] sm:$0xff]
        %v7678 = vld [vmem:[#allocation3 + $0x1e8] sm:$0xff]
        %v7679 = vld [vmem:[#allocation3 + $0x1f0] sm:$0xff]
        %v7680 = vld [vmem:[#allocation3 + $0x1f8] sm:$0xff]
        %v7681 = vld [vmem:[#allocation3 + $0x200] sm:$0xff]
        %v7682 = vld [vmem:[#allocation3 + $0x208] sm:$0xff]
        %v7683 = vld [vmem:[#allocation3 + $0x210] sm:$0xff]
        %v7684 = vld [vmem:[#allocation3 + $0x218] sm:$0xff]
        %v7685 = vld [vmem:[#allocation3 + $0x220] sm:$0xff]
        %v7686 = vld [vmem:[#allocation3 + $0x228] sm:$0xff]
        %v7687 = vld [vmem:[#allocation3 + $0x230] sm:$0xff]
        %v7688 = vld [vmem:[#allocation3 + $0x238] sm:$0xff]
        %v7689 = vld [vmem:[#allocation3 + $0x240] sm:$0xff]
        %v7690 = vld [vmem:[#allocation3 + $0x248] sm:$0xff]
        %v7691 = vld [vmem:[#allocation3 + $0x250] sm:$0xff]
        %v7692 = vld [vmem:[#allocation3 + $0x258] sm:$0xff]
        %v7693 = vld [vmem:[#allocation3 + $0x260] sm:$0xff]
        %v7694 = vld [vmem:[#allocation3 + $0x268] sm:$0xff]
        %v7695 = vld [vmem:[#allocation3 + $0x270] sm:$0xff]
        %v7696 = vld [vmem:[#allocation3 + $0x278] sm:$0xff]
        %v7697 = vld [vmem:[#allocation3 + $0x280] sm:$0xff]
        %v7698 = vld [vmem:[#allocation3 + $0x288] sm:$0xff]
        %v7699 = vld [vmem:[#allocation3 + $0x290] sm:$0xff]
        %v7700 = vld [vmem:[#allocation3 + $0x298] sm:$0xff]
        %v7701 = vld [vmem:[#allocation3 + $0x2a0] sm:$0xff]
        %v7702 = vld [vmem:[#allocation3 + $0x2a8] sm:$0xff]
        %v7703 = vld [vmem:[#allocation3 + $0x2b0] sm:$0xff]
        %v7704 = vld [vmem:[#allocation3 + $0x2b8] sm:$0xff]
        %v7705 = vld [vmem:[#allocation3 + $0x2c0] sm:$0xff]
        %v7706 = vld [vmem:[#allocation3 + $0x2c8] sm:$0xff]
        %v7707 = vld [vmem:[#allocation3 + $0x2d0] sm:$0xff]
        %v7708 = vld [vmem:[#allocation3 + $0x2d8] sm:$0xff]
        %v7709 = vld [vmem:[#allocation3 + $0x2e0] sm:$0xff]
        %v7710 = vld [vmem:[#allocation3 + $0x2e8] sm:$0xff]
        %v7711 = vld [vmem:[#allocation3 + $0x2f0] sm:$0xff]
        %v7712 = vld [vmem:[#allocation3 + $0x2f8] sm:$0xff]
        %v7713 = vld [vmem:[#allocation3 + $0x300] sm:$0xff]
        %v7714 = vld [vmem:[#allocation3 + $0x308] sm:$0xff]
        %v7715 = vld [vmem:[#allocation3 + $0x310] sm:$0xff]
        %v7716 = vld [vmem:[#allocation3 + $0x318] sm:$0xff]
        %v7717 = vld [vmem:[#allocation3 + $0x320] sm:$0xff]
        %v7718 = vld [vmem:[#allocation3 + $0x328] sm:$0xff]
        %v7719 = vld [vmem:[#allocation3 + $0x330] sm:$0xff]
        %v7720 = vld [vmem:[#allocation3 + $0x338] sm:$0xff]
        %v7721 = vld [vmem:[#allocation3 + $0x340] sm:$0xff]
        %v7722 = vld [vmem:[#allocation3 + $0x348] sm:$0xff]
        %v7723 = vld [vmem:[#allocation3 + $0x350] sm:$0xff]
        %v7724 = vld [vmem:[#allocation3 + $0x358] sm:$0xff]
        %v7725 = vld [vmem:[#allocation3 + $0x360] sm:$0xff]
        %v7726 = vld [vmem:[#allocation3 + $0x368] sm:$0xff]
        %v7727 = vld [vmem:[#allocation3 + $0x370] sm:$0xff]
        %v7728 = vld [vmem:[#allocation3 + $0x378] sm:$0xff]
        %v7729 = vld [vmem:[#allocation3 + $0x380] sm:$0xff]
        %v7730 = vld [vmem:[#allocation3 + $0x388] sm:$0xff]
        %v7731 = vld [vmem:[#allocation3 + $0x390] sm:$0xff]
        %v7732 = vld [vmem:[#allocation3 + $0x398] sm:$0xff]
        %v7733 = vld [vmem:[#allocation3 + $0x3a0] sm:$0xff]
        %v7734 = vld [vmem:[#allocation3 + $0x3a8] sm:$0xff]
        %v7735 = vld [vmem:[#allocation3 + $0x3b0] sm:$0xff]
        %v7736 = vld [vmem:[#allocation3 + $0x3b8] sm:$0xff]
        %v7737 = vld [vmem:[#allocation3 + $0x3c0] sm:$0xff]
        %v7738 = vld [vmem:[#allocation3 + $0x3c8] sm:$0xff]
        %v7739 = vld [vmem:[#allocation3 + $0x3d0] sm:$0xff]
        %v7740 = vld [vmem:[#allocation3 + $0x3d8] sm:$0xff]
        %v7741 = vld [vmem:[#allocation3 + $0x3e0] sm:$0xff]
        %v7742 = vld [vmem:[#allocation3 + $0x3e8] sm:$0xff]
        %v7743 = vld [vmem:[#allocation3 + $0x3f0] sm:$0xff]
        %v7744 = vld [vmem:[#allocation3 + $0x3f8] sm:$0xff]
        %v7745 = vld [vmem:[%s4] sm:$0x1]
        %v7747 = vlaneseq
        %v7748 = vshrl.u32 %v7747, 7
        %v7749 = vsub.s32 0, %v7748
        %v7750 = vrot.slane %v7745, %v7749
        %v7752 = vadd.f32 %v7617, %v7750
        %v7753 = vadd.f32 %v7618, %v7750
        %v7754 = vadd.f32 %v7619, %v7750
        %v7755 = vadd.f32 %v7620, %v7750
        %v7756 = vadd.f32 %v7621, %v7750
        %v7757 = vadd.f32 %v7622, %v7750
        %v7758 = vadd.f32 %v7623, %v7750
        %v7759 = vadd.f32 %v7624, %v7750
        %v7760 = vadd.f32 %v7625, %v7750
        %v7761 = vadd.f32 %v7626, %v7750
        %v7762 = vadd.f32 %v7627, %v7750
        %v7763 = vadd.f32 %v7628, %v7750
        %v7764 = vadd.f32 %v7629, %v7750
        %v7765 = vadd.f32 %v7630, %v7750
        %v7766 = vadd.f32 %v7631, %v7750
        %v7767 = vadd.f32 %v7632, %v7750
        %v7768 = vadd.f32 %v7633, %v7750
        %v7769 = vadd.f32 %v7634, %v7750
        %v7770 = vadd.f32 %v7635, %v7750
        %v7771 = vadd.f32 %v7636, %v7750
        %v7772 = vadd.f32 %v7637, %v7750
        %v7773 = vadd.f32 %v7638, %v7750
        %v7774 = vadd.f32 %v7639, %v7750
        %v7775 = vadd.f32 %v7640, %v7750
        %v7776 = vadd.f32 %v7641, %v7750
        %v7777 = vadd.f32 %v7642, %v7750
        %v7778 = vadd.f32 %v7643, %v7750
        %v7779 = vadd.f32 %v7644, %v7750
        %v7780 = vadd.f32 %v7645, %v7750
        %v7781 = vadd.f32 %v7646, %v7750
        %v7782 = vadd.f32 %v7647, %v7750
        %v7783 = vadd.f32 %v7648, %v7750
        %v7784 = vadd.f32 %v7649, %v7750
        %v7785 = vadd.f32 %v7650, %v7750
        %v7786 = vadd.f32 %v7651, %v7750
        %v7787 = vadd.f32 %v7652, %v7750
        %v7788 = vadd.f32 %v7653, %v7750
        %v7789 = vadd.f32 %v7654, %v7750
        %v7790 = vadd.f32 %v7655, %v7750
        %v7791 = vadd.f32 %v7656, %v7750
        %v7792 = vadd.f32 %v7657, %v7750
        %v7793 = vadd.f32 %v7658, %v7750
        %v7794 = vadd.f32 %v7659, %v7750
        %v7795 = vadd.f32 %v7660, %v7750
        %v7796 = vadd.f32 %v7661, %v7750
        %v7797 = vadd.f32 %v7662, %v7750
        %v7798 = vadd.f32 %v7663, %v7750
        %v7799 = vadd.f32 %v7664, %v7750
        %v7800 = vadd.f32 %v7665, %v7750
        %v7801 = vadd.f32 %v7666, %v7750
        %v7802 = vadd.f32 %v7667, %v7750
        %v7803 = vadd.f32 %v7668, %v7750
        %v7804 = vadd.f32 %v7669, %v7750
        %v7805 = vadd.f32 %v7670, %v7750
        %v7806 = vadd.f32 %v7671, %v7750
        %v7807 = vadd.f32 %v7672, %v7750
        %v7808 = vadd.f32 %v7673, %v7750
        %v7809 = vadd.f32 %v7674, %v7750
        %v7810 = vadd.f32 %v7675, %v7750
        %v7811 = vadd.f32 %v7676, %v7750
        %v7812 = vadd.f32 %v7677, %v7750
        %v7813 = vadd.f32 %v7678, %v7750
        %v7814 = vadd.f32 %v7679, %v7750
        %v7815 = vadd.f32 %v7680, %v7750
        %v7816 = vadd.f32 %v7681, %v7750
        %v7817 = vadd.f32 %v7682, %v7750
        %v7818 = vadd.f32 %v7683, %v7750
        %v7819 = vadd.f32 %v7684, %v7750
        %v7820 = vadd.f32 %v7685, %v7750
        %v7821 = vadd.f32 %v7686, %v7750
        %v7822 = vadd.f32 %v7687, %v7750
        %v7823 = vadd.f32 %v7688, %v7750
        %v7824 = vadd.f32 %v7689, %v7750
        %v7825 = vadd.f32 %v7690, %v7750
        %v7826 = vadd.f32 %v7691, %v7750
        %v7827 = vadd.f32 %v7692, %v7750
        %v7828 = vadd.f32 %v7693, %v7750
        %v7829 = vadd.f32 %v7694, %v7750
        %v7830 = vadd.f32 %v7695, %v7750
        %v7831 = vadd.f32 %v7696, %v7750
        %v7832 = vadd.f32 %v7697, %v7750
        %v7833 = vadd.f32 %v7698, %v7750
        %v7834 = vadd.f32 %v7699, %v7750
        %v7835 = vadd.f32 %v7700, %v7750
        %v7836 = vadd.f32 %v7701, %v7750
        %v7837 = vadd.f32 %v7702, %v7750
        %v7838 = vadd.f32 %v7703, %v7750
        %v7839 = vadd.f32 %v7704, %v7750
        %v7840 = vadd.f32 %v7705, %v7750
        %v7841 = vadd.f32 %v7706, %v7750
        %v7842 = vadd.f32 %v7707, %v7750
        %v7843 = vadd.f32 %v7708, %v7750
        %v7844 = vadd.f32 %v7709, %v7750
        %v7845 = vadd.f32 %v7710, %v7750
        %v7846 = vadd.f32 %v7711, %v7750
        %v7847 = vadd.f32 %v7712, %v7750
        %v7848 = vadd.f32 %v7713, %v7750
        %v7849 = vadd.f32 %v7714, %v7750
        %v7850 = vadd.f32 %v7715, %v7750
        %v7851 = vadd.f32 %v7716, %v7750
        %v7852 = vadd.f32 %v7717, %v7750
        %v7853 = vadd.f32 %v7718, %v7750
        %v7854 = vadd.f32 %v7719, %v7750
        %v7855 = vadd.f32 %v7720, %v7750
        %v7856 = vadd.f32 %v7721, %v7750
        %v7857 = vadd.f32 %v7722, %v7750
        %v7858 = vadd.f32 %v7723, %v7750
        %v7859 = vadd.f32 %v7724, %v7750
        %v7860 = vadd.f32 %v7725, %v7750
        %v7861 = vadd.f32 %v7726, %v7750
        %v7862 = vadd.f32 %v7727, %v7750
        %v7863 = vadd.f32 %v7728, %v7750
        %v7864 = vadd.f32 %v7729, %v7750
        %v7865 = vadd.f32 %v7730, %v7750
        %v7866 = vadd.f32 %v7731, %v7750
        %v7867 = vadd.f32 %v7732, %v7750
        %v7868 = vadd.f32 %v7733, %v7750
        %v7869 = vadd.f32 %v7734, %v7750
        %v7870 = vadd.f32 %v7735, %v7750
        %v7871 = vadd.f32 %v7736, %v7750
        %v7872 = vadd.f32 %v7737, %v7750
        %v7873 = vadd.f32 %v7738, %v7750
        %v7874 = vadd.f32 %v7739, %v7750
        %v7875 = vadd.f32 %v7740, %v7750
        %v7876 = vadd.f32 %v7741, %v7750
        %v7877 = vadd.f32 %v7742, %v7750
        %v7878 = vadd.f32 %v7743, %v7750
        %v7879 = vadd.f32 %v7744, %v7750
        %7880 = vst.msk [vmem:[%s790] sm:$0xff] %vm2821, %v7752
        %7881 = vst.msk [vmem:[%s790 + $0x8] sm:$0xff] %vm2821, %v7753
        %7882 = vst.msk [vmem:[%s790 + $0x10] sm:$0xff] %vm2821, %v7754
        %7883 = vst.msk [vmem:[%s790 + $0x18] sm:$0xff] %vm2821, %v7755
        %7884 = vst.msk [vmem:[%s790 + $0x20] sm:$0xff] %vm2821, %v7756
        %7885 = vst.msk [vmem:[%s790 + $0x28] sm:$0xff] %vm2821, %v7757
        %7886 = vst.msk [vmem:[%s790 + $0x30] sm:$0xff] %vm2821, %v7758
        %7887 = vst.msk [vmem:[%s790 + $0x38] sm:$0xff] %vm2821, %v7759
        %7888 = vst.msk [vmem:[%s790 + $0x40] sm:$0xff] %vm2821, %v7760
        %7889 = vst.msk [vmem:[%s790 + $0x48] sm:$0xff] %vm2821, %v7761
        %7890 = vst.msk [vmem:[%s790 + $0x50] sm:$0xff] %vm2821, %v7762
        %7891 = vst.msk [vmem:[%s790 + $0x58] sm:$0xff] %vm2821, %v7763
        %7892 = vst.msk [vmem:[%s790 + $0x60] sm:$0xff] %vm2821, %v7764
        %7893 = vst.msk [vmem:[%s790 + $0x68] sm:$0xff] %vm2821, %v7765
        %7894 = vst.msk [vmem:[%s790 + $0x70] sm:$0xff] %vm2821, %v7766
        %7895 = vst.msk [vmem:[%s790 + $0x78] sm:$0xff] %vm2821, %v7767
        %7896 = vst.msk [vmem:[%s790 + $0x80] sm:$0xff] %vm2821, %v7768
        %7897 = vst.msk [vmem:[%s790 + $0x88] sm:$0xff] %vm2821, %v7769
        %7898 = vst.msk [vmem:[%s790 + $0x90] sm:$0xff] %vm2821, %v7770
        %7899 = vst.msk [vmem:[%s790 + $0x98] sm:$0xff] %vm2821, %v7771
        %7900 = vst.msk [vmem:[%s790 + $0xa0] sm:$0xff] %vm2821, %v7772
        %7901 = vst.msk [vmem:[%s790 + $0xa8] sm:$0xff] %vm2821, %v7773
        %7902 = vst.msk [vmem:[%s790 + $0xb0] sm:$0xff] %vm2821, %v7774
        %7903 = vst.msk [vmem:[%s790 + $0xb8] sm:$0xff] %vm2821, %v7775
        %7904 = vst.msk [vmem:[%s790 + $0xc0] sm:$0xff] %vm2821, %v7776
        %7905 = vst.msk [vmem:[%s790 + $0xc8] sm:$0xff] %vm2821, %v7777
        %7906 = vst.msk [vmem:[%s790 + $0xd0] sm:$0xff] %vm2821, %v7778
        %7907 = vst.msk [vmem:[%s790 + $0xd8] sm:$0xff] %vm2821, %v7779
        %7908 = vst.msk [vmem:[%s790 + $0xe0] sm:$0xff] %vm2821, %v7780
        %7909 = vst.msk [vmem:[%s790 + $0xe8] sm:$0xff] %vm2821, %v7781
        %7910 = vst.msk [vmem:[%s790 + $0xf0] sm:$0xff] %vm2821, %v7782
        %7911 = vst.msk [vmem:[%s790 + $0xf8] sm:$0xff] %vm2821, %v7783
        %7912 = vst.msk [vmem:[%s790 + $0x100] sm:$0xff] %vm2821, %v7784
        %7913 = vst.msk [vmem:[%s790 + $0x108] sm:$0xff] %vm2821, %v7785
        %7914 = vst.msk [vmem:[%s790 + $0x110] sm:$0xff] %vm2821, %v7786
        %7915 = vst.msk [vmem:[%s790 + $0x118] sm:$0xff] %vm2821, %v7787
        %7916 = vst.msk [vmem:[%s790 + $0x120] sm:$0xff] %vm2821, %v7788
        %7917 = vst.msk [vmem:[%s790 + $0x128] sm:$0xff] %vm2821, %v7789
        %7918 = vst.msk [vmem:[%s790 + $0x130] sm:$0xff] %vm2821, %v7790
        %7919 = vst.msk [vmem:[%s790 + $0x138] sm:$0xff] %vm2821, %v7791
        %7920 = vst.msk [vmem:[%s790 + $0x140] sm:$0xff] %vm2821, %v7792
        %7921 = vst.msk [vmem:[%s790 + $0x148] sm:$0xff] %vm2821, %v7793
        %7922 = vst.msk [vmem:[%s790 + $0x150] sm:$0xff] %vm2821, %v7794
        %7923 = vst.msk [vmem:[%s790 + $0x158] sm:$0xff] %vm2821, %v7795
        %7924 = vst.msk [vmem:[%s790 + $0x160] sm:$0xff] %vm2821, %v7796
        %7925 = vst.msk [vmem:[%s790 + $0x168] sm:$0xff] %vm2821, %v7797
        %7926 = vst.msk [vmem:[%s790 + $0x170] sm:$0xff] %vm2821, %v7798
        %7927 = vst.msk [vmem:[%s790 + $0x178] sm:$0xff] %vm2821, %v7799
        %7928 = vst.msk [vmem:[%s790 + $0x180] sm:$0xff] %vm2821, %v7800
        %7929 = vst.msk [vmem:[%s790 + $0x188] sm:$0xff] %vm2821, %v7801
        %7930 = vst.msk [vmem:[%s790 + $0x190] sm:$0xff] %vm2821, %v7802
        %7931 = vst.msk [vmem:[%s790 + $0x198] sm:$0xff] %vm2821, %v7803
        %7932 = vst.msk [vmem:[%s790 + $0x1a0] sm:$0xff] %vm2821, %v7804
        %7933 = vst.msk [vmem:[%s790 + $0x1a8] sm:$0xff] %vm2821, %v7805
        %7934 = vst.msk [vmem:[%s790 + $0x1b0] sm:$0xff] %vm2821, %v7806
        %7935 = vst.msk [vmem:[%s790 + $0x1b8] sm:$0xff] %vm2821, %v7807
        %7936 = vst.msk [vmem:[%s790 + $0x1c0] sm:$0xff] %vm2821, %v7808
        %7937 = vst.msk [vmem:[%s790 + $0x1c8] sm:$0xff] %vm2821, %v7809
        %7938 = vst.msk [vmem:[%s790 + $0x1d0] sm:$0xff] %vm2821, %v7810
        %7939 = vst.msk [vmem:[%s790 + $0x1d8] sm:$0xff] %vm2821, %v7811
        %7940 = vst.msk [vmem:[%s790 + $0x1e0] sm:$0xff] %vm2821, %v7812
        %7941 = vst.msk [vmem:[%s790 + $0x1e8] sm:$0xff] %vm2821, %v7813
        %7942 = vst.msk [vmem:[%s790 + $0x1f0] sm:$0xff] %vm2821, %v7814
        %7943 = vst.msk [vmem:[%s790 + $0x1f8] sm:$0xff] %vm2821, %v7815
        %7944 = vst.msk [vmem:[%s790 + $0x200] sm:$0xff] %vm2821, %v7816
        %7945 = vst.msk [vmem:[%s790 + $0x208] sm:$0xff] %vm2821, %v7817
        %7946 = vst.msk [vmem:[%s790 + $0x210] sm:$0xff] %vm2821, %v7818
        %7947 = vst.msk [vmem:[%s790 + $0x218] sm:$0xff] %vm2821, %v7819
        %7948 = vst.msk [vmem:[%s790 + $0x220] sm:$0xff] %vm2821, %v7820
        %7949 = vst.msk [vmem:[%s790 + $0x228] sm:$0xff] %vm2821, %v7821
        %7950 = vst.msk [vmem:[%s790 + $0x230] sm:$0xff] %vm2821, %v7822
        %7951 = vst.msk [vmem:[%s790 + $0x238] sm:$0xff] %vm2821, %v7823
        %7952 = vst.msk [vmem:[%s790 + $0x240] sm:$0xff] %vm2821, %v7824
        %7953 = vst.msk [vmem:[%s790 + $0x248] sm:$0xff] %vm2821, %v7825
        %7954 = vst.msk [vmem:[%s790 + $0x250] sm:$0xff] %vm2821, %v7826
        %7955 = vst.msk [vmem:[%s790 + $0x258] sm:$0xff] %vm2821, %v7827
        %7956 = vst.msk [vmem:[%s790 + $0x260] sm:$0xff] %vm2821, %v7828
        %7957 = vst.msk [vmem:[%s790 + $0x268] sm:$0xff] %vm2821, %v7829
        %7958 = vst.msk [vmem:[%s790 + $0x270] sm:$0xff] %vm2821, %v7830
        %7959 = vst.msk [vmem:[%s790 + $0x278] sm:$0xff] %vm2821, %v7831
        %7960 = vst.msk [vmem:[%s790 + $0x280] sm:$0xff] %vm2821, %v7832
        %7961 = vst.msk [vmem:[%s790 + $0x288] sm:$0xff] %vm2821, %v7833
        %7962 = vst.msk [vmem:[%s790 + $0x290] sm:$0xff] %vm2821, %v7834
        %7963 = vst.msk [vmem:[%s790 + $0x298] sm:$0xff] %vm2821, %v7835
        %7964 = vst.msk [vmem:[%s790 + $0x2a0] sm:$0xff] %vm2821, %v7836
        %7965 = vst.msk [vmem:[%s790 + $0x2a8] sm:$0xff] %vm2821, %v7837
        %7966 = vst.msk [vmem:[%s790 + $0x2b0] sm:$0xff] %vm2821, %v7838
        %7967 = vst.msk [vmem:[%s790 + $0x2b8] sm:$0xff] %vm2821, %v7839
        %7968 = vst.msk [vmem:[%s790 + $0x2c0] sm:$0xff] %vm2821, %v7840
        %7969 = vst.msk [vmem:[%s790 + $0x2c8] sm:$0xff] %vm2821, %v7841
        %7970 = vst.msk [vmem:[%s790 + $0x2d0] sm:$0xff] %vm2821, %v7842
        %7971 = vst.msk [vmem:[%s790 + $0x2d8] sm:$0xff] %vm2821, %v7843
        %7972 = vst.msk [vmem:[%s790 + $0x2e0] sm:$0xff] %vm2821, %v7844
        %7973 = vst.msk [vmem:[%s790 + $0x2e8] sm:$0xff] %vm2821, %v7845
        %7974 = vst.msk [vmem:[%s790 + $0x2f0] sm:$0xff] %vm2821, %v7846
        %7975 = vst.msk [vmem:[%s790 + $0x2f8] sm:$0xff] %vm2821, %v7847
        %7976 = vst.msk [vmem:[%s790 + $0x300] sm:$0xff] %vm2821, %v7848
        %7977 = vst.msk [vmem:[%s790 + $0x308] sm:$0xff] %vm2821, %v7849
        %7978 = vst.msk [vmem:[%s790 + $0x310] sm:$0xff] %vm2821, %v7850
        %7979 = vst.msk [vmem:[%s790 + $0x318] sm:$0xff] %vm2821, %v7851
        %7980 = vst.msk [vmem:[%s790 + $0x320] sm:$0xff] %vm2821, %v7852
        %7981 = vst.msk [vmem:[%s790 + $0x328] sm:$0xff] %vm2821, %v7853
        %7982 = vst.msk [vmem:[%s790 + $0x330] sm:$0xff] %vm2821, %v7854
        %7983 = vst.msk [vmem:[%s790 + $0x338] sm:$0xff] %vm2821, %v7855
        %7984 = vst.msk [vmem:[%s790 + $0x340] sm:$0xff] %vm2821, %v7856
        %7985 = vst.msk [vmem:[%s790 + $0x348] sm:$0xff] %vm2821, %v7857
        %7986 = vst.msk [vmem:[%s790 + $0x350] sm:$0xff] %vm2821, %v7858
        %7987 = vst.msk [vmem:[%s790 + $0x358] sm:$0xff] %vm2821, %v7859
        %7988 = vst.msk [vmem:[%s790 + $0x360] sm:$0xff] %vm2821, %v7860
        %7989 = vst.msk [vmem:[%s790 + $0x368] sm:$0xff] %vm2821, %v7861
        %7990 = vst.msk [vmem:[%s790 + $0x370] sm:$0xff] %vm2821, %v7862
        %7991 = vst.msk [vmem:[%s790 + $0x378] sm:$0xff] %vm2821, %v7863
        %7992 = vst.msk [vmem:[%s790 + $0x380] sm:$0xff] %vm2821, %v7864
        %7993 = vst.msk [vmem:[%s790 + $0x388] sm:$0xff] %vm2821, %v7865
        %7994 = vst.msk [vmem:[%s790 + $0x390] sm:$0xff] %vm2821, %v7866
        %7995 = vst.msk [vmem:[%s790 + $0x398] sm:$0xff] %vm2821, %v7867
        %7996 = vst.msk [vmem:[%s790 + $0x3a0] sm:$0xff] %vm2821, %v7868
        %7997 = vst.msk [vmem:[%s790 + $0x3a8] sm:$0xff] %vm2821, %v7869
        %7998 = vst.msk [vmem:[%s790 + $0x3b0] sm:$0xff] %vm2821, %v7870
        %7999 = vst.msk [vmem:[%s790 + $0x3b8] sm:$0xff] %vm2821, %v7871
        %8000 = vst.msk [vmem:[%s790 + $0x3c0] sm:$0xff] %vm2821, %v7872
        %8001 = vst.msk [vmem:[%s790 + $0x3c8] sm:$0xff] %vm2821, %v7873
        %8002 = vst.msk [vmem:[%s790 + $0x3d0] sm:$0xff] %vm2821, %v7874
        %8003 = vst.msk [vmem:[%s790 + $0x3d8] sm:$0xff] %vm2821, %v7875
        %8004 = vst.msk [vmem:[%s790 + $0x3e0] sm:$0xff] %vm2821, %v7876
        %8005 = vst.msk [vmem:[%s790 + $0x3e8] sm:$0xff] %vm2821, %v7877
        %8006 = vst.msk [vmem:[%s790 + $0x3f0] sm:$0xff] %vm2821, %v7878
        %8007 = vst.msk [vmem:[%s790 + $0x3f8] sm:$0xff] %vm2821, %v7879
        %s8008 = sand.u32 %s153, 1
        %s8009 = scalar_lea.sflag [#allocation6], %s8008
        %s8010 = sand.u32 %s153, 1
        %s8011 = smul.addr %s8010, 1024
        %s8012 = scalar_lea.vmem [#allocation5], %s8011
        // Predicated region
        $region82: #{dilated_dcnn_v2_forward.1} parent=76 // pred_check
          %p8013 = pneg %p163
        $region83: #{dilated_dcnn_v2_forward.1} parent=76 // pred_check_branch
          %8015 = sbr.rel (%p8013) target = $region85
        $region84: #{dilated_dcnn_v2_forward.1} parent=76 // pred_region
          #allocation8 [shape = 'u32[6]{0}', space=smem, size = 0x18, scoped, tag = 'DMA stride descriptor']
          %s8016 = smul.u32 16, %s24
          %s8018 = ssub.s32 16384, 16384
          %8019 = vsyncadd %s8009, %s8018
          %s8020 = smul.addr %s23, 256
          %s8021 = sadd.s32 %s8016, %s8020
          %s8022 = smul.addr %s8021, 128
          %s8023 = scalar_lea.hbm %s5, %s8022
          %s8025 = sshll.u32 1, 14
          %s8026 = sxor.u32 4294967295, %s8025
          %s8029 = sshll.u32 7, 18
          %s8030 = sxor.u32 4294967295, %s8029
          %s8031 = sand.u32 0, %s8030
          %s8033 = sor.u32 %s8031, 0
          %s8035 = sshll.u32 3, 24
          %s8036 = sxor.u32 4294967295, %s8035
          %s8037 = sand.u32 %s8033, %s8036
          %s8039 = sor.u32 %s8037, 0
          %s8040 = sshll.u32 %s8012, 4
          %s8041 = int_to_ptr.vmem [resolvable:$true] %s8040
          %8047 = sst [smem:[#allocation8]] 2048
          %s8048 = scalar_lea.smem [#allocation8], 1
          %8049 = sst [smem:[%s8048]] 4096
          %s8050 = scalar_lea.smem [#allocation8], 2
          %8051 = sst [smem:[%s8050]] 16
          %s8052 = scalar_lea.smem [#allocation8], 3
          %8053 = sst [smem:[%s8052]] 128
          %s8054 = scalar_lea.smem [#allocation8], 4
          %8055 = sst [smem:[%s8054]] 128
          %s8056 = scalar_lea.smem [#allocation8], 5
          %8057 = sst [smem:[%s8056]] 8
          %8059 = dma.general %s8041, 16384, %s8023, %s8009, [#allocation7], [#allocation8], %s8039, 0
        $region85: #{dilated_dcnn_v2_forward.1} parent=76 // pred_fallthru
          _
      $region77: #{dilated_dcnn_v2_forward.1} parent=5 // pred_fallthru
        _
      %p8060 = scmp.le.s32.totalorder 2, %s14
      // Predicated region
      $region86: #{dilated_dcnn_v2_forward.1} parent=5 // pred_check
        %p8061 = pneg %p8060
      $region87: #{dilated_dcnn_v2_forward.1} parent=5 // pred_check_branch
        %8063 = sbr.rel (%p8061) target = $region89
      $region88: #{dilated_dcnn_v2_forward.1} parent=5 // pred_region
        %s8064 = ssub.s32 %s14, 2
        // Predicated region
        $region90: #{dilated_dcnn_v2_forward.1} parent=88 // pred_check
          %p8065 = pneg %p169
        $region91: #{dilated_dcnn_v2_forward.1} parent=88 // pred_check_branch
          %8067 = sbr.rel (%p8065) target = $region93
        $region92: #{dilated_dcnn_v2_forward.1} parent=88 // pred_region
          %s8068 = sand.u32 %s154, 1
          %s8069 = scalar_lea.sflag [#allocation6], %s8068
          %s8070 = sand.u32 %s154, 1
          %s8071 = smul.addr %s8070, 1024
          %s8072 = scalar_lea.vmem [#allocation5], %s8071
          %8073 = dma.done %s8069, 16384
        $region93: #{dilated_dcnn_v2_forward.1} parent=88 // pred_fallthru
          _
      $region89: #{dilated_dcnn_v2_forward.1} parent=5 // pred_fallthru
        _
    $region6: #{dilated_dcnn_v2_forward.1} parent=1 // loop_footer
      %s18 = sadd.s32 1, %s14
    $region7: #{dilated_dcnn_v2_forward.1} parent=1 // loop_footer_branch
      %13 = sbr.rel target = $region3
    $region8: #{dilated_dcnn_v2_forward.1} parent=1 // loop_exit
      _
    %8074 = vsyncpa [#allocation6], 1
    %s8075 = scalar_lea.sflag [#allocation6], 1
    %8076 = vsyncpa %s8075, 1

</llo_original>
